<compile_context>
chip_gen: v7x
topology: tpu7x:2x2x1
jax: 0.10.0
libtpu: 0.0.40
codegen_flags: <defaults>
</compile_context>

<pallas_src>
import jax
import jax.numpy as jnp
from jax.experimental import pallas as pl
from jax.experimental.pallas import tpu as pltpu


CPAD = 128  # lane-dense output-channel padding (fits v5e 128-wide MXU; fine on v6e/v7x)


# ---------------------------------------------------------------------------
# Kernel: 3x3 stride-2 conv (+bias +ReLU) for one image, as 9 accumulated
# tap matmuls over flattened stride-2 parity planes held in VMEM.
# ---------------------------------------------------------------------------
def _make_conv_kernel(l_rows, wo):
    wop1 = wo + 1

    def kernel(xq_ref, w_ref, b_ref, o_ref):
        # xq_ref: (2, 2, Pflat, Cin)  bf16 parity planes, spatial dims flattened
        # w_ref : (9, Cin, CPAD)      bf16 tap weights (Cout zero-padded to 128)
        # b_ref : (1, CPAD)           f32 bias
        # o_ref : (L, CPAD)           f32 output, L = Ho*(Wo+1) (junk col sliced off outside)
        acc = jnp.zeros((l_rows, CPAD), jnp.float32)
        for kh in range(3):                                # static 9-tap unroll
            ph, dh = kh % 2, kh // 2
            for kw in range(3):
                pw, dw = kw % 2, kw // 2
                off = dh * wop1 + dw                       # static element offset
                lhs = xq_ref[ph, pw, off:off + l_rows, :]  # (L, Cin) contiguous slice
                acc = acc + jnp.dot(lhs, w_ref[kh * 3 + kw],
                                    preferred_element_type=jnp.float32)
        acc = jnp.maximum(acc + b_ref[...], 0.0)           # bias + ReLU in f32
        o_ref[...] = acc.astype(o_ref.dtype)

    return kernel


def conv3x3_s2_relu(x_nhwc, w_hwio, b_vec):
    """3x3 / stride-2 / pad-1 conv + bias + ReLU.  (N,H,W,Cin) f32 -> (N,Ho,Wo,Cout) f32."""
    n, h, w, cin = x_nhwc.shape
    cout = w_hwio.shape[-1]
    ho = (h - 1) // 2 + 1          # PyTorch Conv2d(k=3,s=2,p=1) size (handles odd H/W)
    wo = (w - 1) // 2 + 1
    # Pad H straight to 2*(ho+2): halo + the extra zero parity row in ONE pad.
    hp, wp = 2 * (ho + 2), 2 * (wo + 1)

    # ---- wrapper-side layout pass (~1x input HBM traffic; replaces 9x im2col) ----
    xp = jnp.pad(x_nhwc.astype(jnp.bfloat16),
                 ((0, 0), (1, hp - 1 - h), (1, wp - 1 - w), (0, 0)))
    # parity split: xq[n, ph, pw, i, j, c] = xp[n, 2i+ph, 2j+pw, c]
    xq = xp.reshape(n, ho + 2, 2, wo + 1, 2, cin).transpose(0, 2, 4, 1, 3, 5)
    pflat = (ho + 2) * (wo + 1)
    xqf = xq.reshape(n, 2, 2, pflat, cin)                  # flatten (i, j)

    # weights as 9 taps, Cout zero-padded to CPAD for lane-dense output stores
    w_taps = w_hwio.reshape(9, cin, cout).astype(jnp.bfloat16)
    w_taps = jnp.pad(w_taps, ((0, 0), (0, 0), (0, CPAD - cout)))
    b_row = jnp.pad(b_vec.astype(jnp.float32), (0, CPAD - cout)).reshape(1, CPAD)

    l_rows = ho * (wo + 1)
    flops = 2 * n * l_rows * cin * CPAD * 9
    bytes_accessed = (xqf.size * 2 + w_taps.size * 2 + b_row.size * 4
                      + n * l_rows * CPAD * 4)

    out = pl.pallas_call(
        _make_conv_kernel(l_rows, wo),
        out_shape=jax.ShapeDtypeStruct((n, l_rows, CPAD), jnp.float32),
        grid=(n,),
        in_specs=[
            pl.BlockSpec((None, 2, 2, pflat, cin), lambda i: (i, 0, 0, 0, 0)),
            pl.BlockSpec((9, cin, CPAD), lambda i: (0, 0, 0)),   # resident weights
            pl.BlockSpec((1, CPAD), lambda i: (0, 0)),           # resident bias
        ],
        out_specs=pl.BlockSpec((None, l_rows, CPAD), lambda i: (i, 0, 0)),
        compiler_params=pltpu.CompilerParams(
            dimension_semantics=("parallel",),        # v7x: shard images across 2 TCs
            vmem_limit_bytes=32 * 1024 * 1024,        # explicit; safe on v7x 64 MiB VMEM
        ),
        cost_estimate=pl.CostEstimate(flops=flops, transcendentals=0,
                                      bytes_accessed=bytes_accessed),
    )(xqf, w_taps, b_row)
    # drop the junk (Wo-th) column and the padded channels
    return out.reshape(n, ho, wo + 1, CPAD)[:, :, :wo, :cout]


# ---------------------------------------------------------------------------
# Mask resize: F.interpolate(mask.float(), size, mode='nearest') -> bool.
# Nearest is a pure gather (src = floor(dst*in/out)); done as fused XLA
# integer-index takes on the bool mask (no GEMM, no f32 round-trip, no
# separate >0.5 pass). Exact for arbitrary sizes.
# ---------------------------------------------------------------------------
def mask_nearest_resize_bool(mask_bool, ho, wo):
    _, h, w = mask_bool.shape
    ri = (jnp.arange(ho) * h) // ho
    ci = (jnp.arange(wo) * w) // wo
    return jnp.take(jnp.take(mask_bool, ri, axis=1), ci, axis=2)


# ---------------------------------------------------------------------------
# BackboneBase equivalent.
# ---------------------------------------------------------------------------
class BackboneBasePallas:
    def __init__(self, in_channels, return_interm_layers, key):
        chans = [in_channels, 8, 16, 32, 64]
        self.params = []
        for i in range(4):
            kw_key, kb_key = jax.random.split(jax.random.fold_in(key, i))
            cin, cout = chans[i], chans[i + 1]
            wgt = jax.random.normal(kw_key, (3, 3, cin, cout), jnp.float32)
            wgt = wgt * (1.0 / (9.0 * cin) ** 0.5)
            b = jax.random.normal(kb_key, (cout,), jnp.float32) * 0.01
            self.params.append((wgt, b))
        self.return_interm_layers = return_interm_layers
        self.num_channels = chans[-1]

    def __call__(self, tensors_nchw, mask):
        # tensors_nchw: (N, C, H, W) f32;  mask: (N, H, W) bool (True = padded pixel)
        assert mask is not None
        x = jnp.transpose(tensors_nchw, (0, 2, 3, 1))            # NCHW -> NHWC
        feats = []
        for wgt, b in self.params:                               # layer1..layer4
            x = conv3x3_s2_relu(x, wgt, b)
            feats.append(x)
        if self.return_interm_layers:
            selected = {"0": feats[0], "1": feats[1], "2": feats[2], "3": feats[3]}
        else:
            selected = {"0": feats[3]}
        out = {}
        for name, f in selected.items():
            ho, wo = f.shape[1], f.shape[2]
            m_ds = mask_nearest_resize_bool(mask, ho, wo)        # bool, fused gather
            out[name] = (jnp.transpose(f, (0, 3, 1, 2)), m_ds)   # NCHW like PyTorch
        return out


if __name__ == "__main__":
    key = jax.random.PRNGKey(0)
    kx, kp = jax.random.split(key)
    N, C, H, W = 2, 4, 32, 32
    tensors = jax.random.normal(kx, (N, C, H, W), jnp.float32)
    # DETR-style padding mask: True marks padded pixels.
    col = jnp.arange(W)[None, None, :]
    row = jnp.arange(H)[None, :, None]
    valid_w = jnp.array([32, 24])[:, None, None]
    valid_h = jnp.array([32, 28])[:, None, None]
    mask = (col >= valid_w) | (row >= valid_h)                   # (N, H, W) bool

    model = BackboneBasePallas(in_channels=C, return_interm_layers=True, key=kp)
    fwd = jax.jit(model.__call__)
    out = fwd(tensors, mask)
    for name in sorted(out):
        feat, m = out[name]
        jax.block_until_ready(feat)
        jax.block_until_ready(m)
    print("KERNEL_OK")
</pallas_src>

<mosaic_0001>
module attributes {stable_mosaic.version = 11 : i64} {
  func.func @kernel(%arg0: i32, %arg1: memref<1x2x2x306x4xbf16, #tpu.memory_space<vmem>>, %arg2: memref<9x4x128xbf16, #tpu.memory_space<vmem>>, %arg3: memref<1x128xf32, #tpu.memory_space<vmem>>, %arg4: memref<1x272x128xf32, #tpu.memory_space<vmem>>) attributes {dimension_semantics = [#tpu.dimension_semantics<parallel>], iteration_bounds = array<i64: 2>, scalar_prefetch = 0 : i64, scratch_operands = 0 : i64, tpu.core_type = #tpu.core_type<tc>, window_params = [{transform_indices = @transform_0, window_bounds = array<i64: 1, 2, 2, 306, 4>}, {pipeline_mode = #tpu.pipeline_mode<synchronous>, transform_indices = @transform_1, window_bounds = array<i64: 9, 4, 128>}, {pipeline_mode = #tpu.pipeline_mode<synchronous>, transform_indices = @transform_2, window_bounds = array<i64: 1, 128>}, {transform_indices = @transform_3, window_bounds = array<i64: 1, 272, 128>}]} {
    %cst = arith.constant 0.000000e+00 : f32
    %0 = vector.broadcast %cst : f32 to vector<272x128xf32>
    %c0 = arith.constant 0 : index
    %c0_0 = arith.constant 0 : index
    %c0_1 = arith.constant 0 : index
    %c0_2 = arith.constant 0 : index
    %c0_3 = arith.constant 0 : index
    %1 = vector.load %arg1[%c0, %c0_0, %c0_1, %c0_2, %c0_3] : memref<1x2x2x306x4xbf16, #tpu.memory_space<vmem>>, vector<1x1x1x272x4xbf16>
    %2 = vector.shape_cast %1 : vector<1x1x1x272x4xbf16> to vector<272x4xbf16>
    %c0_4 = arith.constant 0 : index
    %c0_5 = arith.constant 0 : index
    %c0_6 = arith.constant 0 : index
    %3 = vector.load %arg2[%c0_4, %c0_5, %c0_6] : memref<9x4x128xbf16, #tpu.memory_space<vmem>>, vector<1x4x128xbf16>
    %4 = vector.shape_cast %3 : vector<1x4x128xbf16> to vector<4x128xbf16>
    %cst_7 = arith.constant dense<0.000000e+00> : vector<272x128xf32>
    %5 = tpu.matmul %2, %4, %cst_7 {dimension_numbers = #tpu.dot_dimension_numbers<[1], [0], [0], [1], [0, 0, 1, 1], [], []>} : vector<272x4xbf16>, vector<4x128xbf16>, vector<272x128xf32> -> vector<272x128xf32>
    %6 = arith.addf %0, %5 : vector<272x128xf32>
    %c0_8 = arith.constant 0 : index
    %c0_9 = arith.constant 0 : index
    %c1 = arith.constant 1 : index
    %c0_10 = arith.constant 0 : index
    %c0_11 = arith.constant 0 : index
    %7 = vector.load %arg1[%c0_8, %c0_9, %c1, %c0_10, %c0_11] : memref<1x2x2x306x4xbf16, #tpu.memory_space<vmem>>, vector<1x1x1x272x4xbf16>
    %8 = vector.shape_cast %7 : vector<1x1x1x272x4xbf16> to vector<272x4xbf16>
    %c1_12 = arith.constant 1 : index
    %c0_13 = arith.constant 0 : index
    %c0_14 = arith.constant 0 : index
    %9 = vector.load %arg2[%c1_12, %c0_13, %c0_14] : memref<9x4x128xbf16, #tpu.memory_space<vmem>>, vector<1x4x128xbf16>
    %10 = vector.shape_cast %9 : vector<1x4x128xbf16> to vector<4x128xbf16>
    %cst_15 = arith.constant dense<0.000000e+00> : vector<272x128xf32>
    %11 = tpu.matmul %8, %10, %cst_15 {dimension_numbers = #tpu.dot_dimension_numbers<[1], [0], [0], [1], [0, 0, 1, 1], [], []>} : vector<272x4xbf16>, vector<4x128xbf16>, vector<272x128xf32> -> vector<272x128xf32>
    %12 = arith.addf %6, %11 : vector<272x128xf32>
    %c0_16 = arith.constant 0 : index
    %c0_17 = arith.constant 0 : index
    %c0_18 = arith.constant 0 : index
    %c1_19 = arith.constant 1 : index
    %c0_20 = arith.constant 0 : index
    %13 = vector.load %arg1[%c0_16, %c0_17, %c0_18, %c1_19, %c0_20] : memref<1x2x2x306x4xbf16, #tpu.memory_space<vmem>>, vector<1x1x1x272x4xbf16>
    %14 = vector.shape_cast %13 : vector<1x1x1x272x4xbf16> to vector<272x4xbf16>
    %c2 = arith.constant 2 : index
    %c0_21 = arith.constant 0 : index
    %c0_22 = arith.constant 0 : index
    %15 = vector.load %arg2[%c2, %c0_21, %c0_22] : memref<9x4x128xbf16, #tpu.memory_space<vmem>>, vector<1x4x128xbf16>
    %16 = vector.shape_cast %15 : vector<1x4x128xbf16> to vector<4x128xbf16>
    %cst_23 = arith.constant dense<0.000000e+00> : vector<272x128xf32>
    %17 = tpu.matmul %14, %16, %cst_23 {dimension_numbers = #tpu.dot_dimension_numbers<[1], [0], [0], [1], [0, 0, 1, 1], [], []>} : vector<272x4xbf16>, vector<4x128xbf16>, vector<272x128xf32> -> vector<272x128xf32>
    %18 = arith.addf %12, %17 : vector<272x128xf32>
    %c0_24 = arith.constant 0 : index
    %c1_25 = arith.constant 1 : index
    %c0_26 = arith.constant 0 : index
    %c0_27 = arith.constant 0 : index
    %c0_28 = arith.constant 0 : index
    %19 = vector.load %arg1[%c0_24, %c1_25, %c0_26, %c0_27, %c0_28] : memref<1x2x2x306x4xbf16, #tpu.memory_space<vmem>>, vector<1x1x1x272x4xbf16>
    %20 = vector.shape_cast %19 : vector<1x1x1x272x4xbf16> to vector<272x4xbf16>
    %c3 = arith.constant 3 : index
    %c0_29 = arith.constant 0 : index
    %c0_30 = arith.constant 0 : index
    %21 = vector.load %arg2[%c3, %c0_29, %c0_30] : memref<9x4x128xbf16, #tpu.memory_space<vmem>>, vector<1x4x128xbf16>
    %22 = vector.shape_cast %21 : vector<1x4x128xbf16> to vector<4x128xbf16>
    %cst_31 = arith.constant dense<0.000000e+00> : vector<272x128xf32>
    %23 = tpu.matmul %20, %22, %cst_31 {dimension_numbers = #tpu.dot_dimension_numbers<[1], [0], [0], [1], [0, 0, 1, 1], [], []>} : vector<272x4xbf16>, vector<4x128xbf16>, vector<272x128xf32> -> vector<272x128xf32>
    %24 = arith.addf %18, %23 : vector<272x128xf32>
    %c0_32 = arith.constant 0 : index
    %c1_33 = arith.constant 1 : index
    %c1_34 = arith.constant 1 : index
    %c0_35 = arith.constant 0 : index
    %c0_36 = arith.constant 0 : index
    %25 = vector.load %arg1[%c0_32, %c1_33, %c1_34, %c0_35, %c0_36] : memref<1x2x2x306x4xbf16, #tpu.memory_space<vmem>>, vector<1x1x1x272x4xbf16>
    %26 = vector.shape_cast %25 : vector<1x1x1x272x4xbf16> to vector<272x4xbf16>
    %c4 = arith.constant 4 : index
    %c0_37 = arith.constant 0 : index
    %c0_38 = arith.constant 0 : index
    %27 = vector.load %arg2[%c4, %c0_37, %c0_38] : memref<9x4x128xbf16, #tpu.memory_space<vmem>>, vector<1x4x128xbf16>
    %28 = vector.shape_cast %27 : vector<1x4x128xbf16> to vector<4x128xbf16>
    %cst_39 = arith.constant dense<0.000000e+00> : vector<272x128xf32>
    %29 = tpu.matmul %26, %28, %cst_39 {dimension_numbers = #tpu.dot_dimension_numbers<[1], [0], [0], [1], [0, 0, 1, 1], [], []>} : vector<272x4xbf16>, vector<4x128xbf16>, vector<272x128xf32> -> vector<272x128xf32>
    %30 = arith.addf %24, %29 : vector<272x128xf32>
    %c0_40 = arith.constant 0 : index
    %c1_41 = arith.constant 1 : index
    %c0_42 = arith.constant 0 : index
    %c1_43 = arith.constant 1 : index
    %c0_44 = arith.constant 0 : index
    %31 = vector.load %arg1[%c0_40, %c1_41, %c0_42, %c1_43, %c0_44] : memref<1x2x2x306x4xbf16, #tpu.memory_space<vmem>>, vector<1x1x1x272x4xbf16>
    %32 = vector.shape_cast %31 : vector<1x1x1x272x4xbf16> to vector<272x4xbf16>
    %c5 = arith.constant 5 : index
    %c0_45 = arith.constant 0 : index
    %c0_46 = arith.constant 0 : index
    %33 = vector.load %arg2[%c5, %c0_45, %c0_46] : memref<9x4x128xbf16, #tpu.memory_space<vmem>>, vector<1x4x128xbf16>
    %34 = vector.shape_cast %33 : vector<1x4x128xbf16> to vector<4x128xbf16>
    %cst_47 = arith.constant dense<0.000000e+00> : vector<272x128xf32>
    %35 = tpu.matmul %32, %34, %cst_47 {dimension_numbers = #tpu.dot_dimension_numbers<[1], [0], [0], [1], [0, 0, 1, 1], [], []>} : vector<272x4xbf16>, vector<4x128xbf16>, vector<272x128xf32> -> vector<272x128xf32>
    %36 = arith.addf %30, %35 : vector<272x128xf32>
    %c0_48 = arith.constant 0 : index
    %c0_49 = arith.constant 0 : index
    %c0_50 = arith.constant 0 : index
    %c17 = arith.constant 17 : index
    %c0_51 = arith.constant 0 : index
    %37 = vector.load %arg1[%c0_48, %c0_49, %c0_50, %c17, %c0_51] : memref<1x2x2x306x4xbf16, #tpu.memory_space<vmem>>, vector<1x1x1x272x4xbf16>
    %38 = vector.shape_cast %37 : vector<1x1x1x272x4xbf16> to vector<272x4xbf16>
    %c6 = arith.constant 6 : index
    %c0_52 = arith.constant 0 : index
    %c0_53 = arith.constant 0 : index
    %39 = vector.load %arg2[%c6, %c0_52, %c0_53] : memref<9x4x128xbf16, #tpu.memory_space<vmem>>, vector<1x4x128xbf16>
    %40 = vector.shape_cast %39 : vector<1x4x128xbf16> to vector<4x128xbf16>
    %cst_54 = arith.constant dense<0.000000e+00> : vector<272x128xf32>
    %41 = tpu.matmul %38, %40, %cst_54 {dimension_numbers = #tpu.dot_dimension_numbers<[1], [0], [0], [1], [0, 0, 1, 1], [], []>} : vector<272x4xbf16>, vector<4x128xbf16>, vector<272x128xf32> -> vector<272x128xf32>
    %42 = arith.addf %36, %41 : vector<272x128xf32>
    %c0_55 = arith.constant 0 : index
    %c0_56 = arith.constant 0 : index
    %c1_57 = arith.constant 1 : index
    %c17_58 = arith.constant 17 : index
    %c0_59 = arith.constant 0 : index
    %43 = vector.load %arg1[%c0_55, %c0_56, %c1_57, %c17_58, %c0_59] : memref<1x2x2x306x4xbf16, #tpu.memory_space<vmem>>, vector<1x1x1x272x4xbf16>
    %44 = vector.shape_cast %43 : vector<1x1x1x272x4xbf16> to vector<272x4xbf16>
    %c7 = arith.constant 7 : index
    %c0_60 = arith.constant 0 : index
    %c0_61 = arith.constant 0 : index
    %45 = vector.load %arg2[%c7, %c0_60, %c0_61] : memref<9x4x128xbf16, #tpu.memory_space<vmem>>, vector<1x4x128xbf16>
    %46 = vector.shape_cast %45 : vector<1x4x128xbf16> to vector<4x128xbf16>
    %cst_62 = arith.constant dense<0.000000e+00> : vector<272x128xf32>
    %47 = tpu.matmul %44, %46, %cst_62 {dimension_numbers = #tpu.dot_dimension_numbers<[1], [0], [0], [1], [0, 0, 1, 1], [], []>} : vector<272x4xbf16>, vector<4x128xbf16>, vector<272x128xf32> -> vector<272x128xf32>
    %48 = arith.addf %42, %47 : vector<272x128xf32>
    %c0_63 = arith.constant 0 : index
    %c0_64 = arith.constant 0 : index
    %c0_65 = arith.constant 0 : index
    %c18 = arith.constant 18 : index
    %c0_66 = arith.constant 0 : index
    %49 = vector.load %arg1[%c0_63, %c0_64, %c0_65, %c18, %c0_66] : memref<1x2x2x306x4xbf16, #tpu.memory_space<vmem>>, vector<1x1x1x272x4xbf16>
    %50 = vector.shape_cast %49 : vector<1x1x1x272x4xbf16> to vector<272x4xbf16>
    %c8 = arith.constant 8 : index
    %c0_67 = arith.constant 0 : index
    %c0_68 = arith.constant 0 : index
    %51 = vector.load %arg2[%c8, %c0_67, %c0_68] : memref<9x4x128xbf16, #tpu.memory_space<vmem>>, vector<1x4x128xbf16>
    %52 = vector.shape_cast %51 : vector<1x4x128xbf16> to vector<4x128xbf16>
    %cst_69 = arith.constant dense<0.000000e+00> : vector<272x128xf32>
    %53 = tpu.matmul %50, %52, %cst_69 {dimension_numbers = #tpu.dot_dimension_numbers<[1], [0], [0], [1], [0, 0, 1, 1], [], []>} : vector<272x4xbf16>, vector<4x128xbf16>, vector<272x128xf32> -> vector<272x128xf32>
    %54 = arith.addf %48, %53 : vector<272x128xf32>
    %c0_70 = arith.constant 0 : index
    %c0_71 = arith.constant 0 : index
    %55 = vector.load %arg3[%c0_70, %c0_71] : memref<1x128xf32, #tpu.memory_space<vmem>>, vector<1x128xf32>
    %56 = vector.broadcast %55 : vector<1x128xf32> to vector<272x128xf32>
    %57 = arith.addf %54, %56 : vector<272x128xf32>
    %cst_72 = arith.constant 0.000000e+00 : f32
    %58 = vector.broadcast %cst_72 : f32 to vector<272x128xf32>
    %59 = arith.maximumf %57, %58 : vector<272x128xf32>
    %c0_73 = arith.constant 0 : index
    %c0_74 = arith.constant 0 : index
    %c0_75 = arith.constant 0 : index
    %60 = vector.load %arg4[%c0_73, %c0_74, %c0_75] : memref<1x272x128xf32, #tpu.memory_space<vmem>>, vector<1x272x128xf32>
    %61 = vector.shape_cast %60 : vector<1x272x128xf32> to vector<272x128xf32>
    %62 = vector.shape_cast %59 : vector<272x128xf32> to vector<1x272x128xf32>
    tpu.vector_store %arg4[%c0_73, %c0_74, %c0_75], %62 {strides = array<i32>} : memref<1x272x128xf32, #tpu.memory_space<vmem>>, vector<1x272x128xf32>,
    return
  }
  func.func @transform_0(%arg0: i32) -> (i32, i32, i32, i32, i32) {
    %c0_i32 = arith.constant 0 : i32
    %c0_i32_0 = arith.constant 0 : i32
    %c0_i32_1 = arith.constant 0 : i32
    %c0_i32_2 = arith.constant 0 : i32
    %c0_i32_3 = arith.constant 0 : i32
    return %arg0, %c0_i32, %c0_i32_0, %c0_i32_1, %c0_i32_2 : i32, i32, i32, i32, i32
  }
  func.func @transform_1(%arg0: i32) -> (i32, i32, i32) {
    %c0_i32 = arith.constant 0 : i32
    %c0_i32_0 = arith.constant 0 : i32
    %c0_i32_1 = arith.constant 0 : i32
    %c0_i32_2 = arith.constant 0 : i32
    return %c0_i32, %c0_i32_0, %c0_i32_1 : i32, i32, i32
  }
  func.func @transform_2(%arg0: i32) -> (i32, i32) {
    %c0_i32 = arith.constant 0 : i32
    %c0_i32_0 = arith.constant 0 : i32
    %c0_i32_1 = arith.constant 0 : i32
    return %c0_i32, %c0_i32_0 : i32, i32
  }
  func.func @transform_3(%arg0: i32) -> (i32, i32, i32) {
    %c0_i32 = arith.constant 0 : i32
    %c0_i32_0 = arith.constant 0 : i32
    %c0_i32_1 = arith.constant 0 : i32
    return %arg0, %c0_i32, %c0_i32_0 : i32, i32, i32
  }
}

module attributes {stable_mosaic.version = 11 : i64} {
  func.func @kernel(%arg0: i32, %arg1: memref<1x2x2x90x8xbf16, #tpu.memory_space<vmem>>, %arg2: memref<9x8x128xbf16, #tpu.memory_space<vmem>>, %arg3: memref<1x128xf32, #tpu.memory_space<vmem>>, %arg4: memref<1x72x128xf32, #tpu.memory_space<vmem>>) attributes {dimension_semantics = [#tpu.dimension_semantics<parallel>], iteration_bounds = array<i64: 2>, scalar_prefetch = 0 : i64, scratch_operands = 0 : i64, tpu.core_type = #tpu.core_type<tc>, window_params = [{transform_indices = @transform_0, window_bounds = array<i64: 1, 2, 2, 90, 8>}, {pipeline_mode = #tpu.pipeline_mode<synchronous>, transform_indices = @transform_1, window_bounds = array<i64: 9, 8, 128>}, {pipeline_mode = #tpu.pipeline_mode<synchronous>, transform_indices = @transform_2, window_bounds = array<i64: 1, 128>}, {transform_indices = @transform_3, window_bounds = array<i64: 1, 72, 128>}]} {
    %cst = arith.constant 0.000000e+00 : f32
    %0 = vector.broadcast %cst : f32 to vector<72x128xf32>
    %c0 = arith.constant 0 : index
    %c0_0 = arith.constant 0 : index
    %c0_1 = arith.constant 0 : index
    %c0_2 = arith.constant 0 : index
    %c0_3 = arith.constant 0 : index
    %1 = vector.load %arg1[%c0, %c0_0, %c0_1, %c0_2, %c0_3] : memref<1x2x2x90x8xbf16, #tpu.memory_space<vmem>>, vector<1x1x1x72x8xbf16>
    %2 = vector.shape_cast %1 : vector<1x1x1x72x8xbf16> to vector<72x8xbf16>
    %c0_4 = arith.constant 0 : index
    %c0_5 = arith.constant 0 : index
    %c0_6 = arith.constant 0 : index
    %3 = vector.load %arg2[%c0_4, %c0_5, %c0_6] : memref<9x8x128xbf16, #tpu.memory_space<vmem>>, vector<1x8x128xbf16>
    %4 = vector.shape_cast %3 : vector<1x8x128xbf16> to vector<8x128xbf16>
    %cst_7 = arith.constant dense<0.000000e+00> : vector<72x128xf32>
    %5 = tpu.matmul %2, %4, %cst_7 {dimension_numbers = #tpu.dot_dimension_numbers<[1], [0], [0], [1], [0, 0, 1, 1], [], []>} : vector<72x8xbf16>, vector<8x128xbf16>, vector<72x128xf32> -> vector<72x128xf32>
    %6 = arith.addf %0, %5 : vector<72x128xf32>
    %c0_8 = arith.constant 0 : index
    %c0_9 = arith.constant 0 : index
    %c1 = arith.constant 1 : index
    %c0_10 = arith.constant 0 : index
    %c0_11 = arith.constant 0 : index
    %7 = vector.load %arg1[%c0_8, %c0_9, %c1, %c0_10, %c0_11] : memref<1x2x2x90x8xbf16, #tpu.memory_space<vmem>>, vector<1x1x1x72x8xbf16>
    %8 = vector.shape_cast %7 : vector<1x1x1x72x8xbf16> to vector<72x8xbf16>
    %c1_12 = arith.constant 1 : index
    %c0_13 = arith.constant 0 : index
    %c0_14 = arith.constant 0 : index
    %9 = vector.load %arg2[%c1_12, %c0_13, %c0_14] : memref<9x8x128xbf16, #tpu.memory_space<vmem>>, vector<1x8x128xbf16>
    %10 = vector.shape_cast %9 : vector<1x8x128xbf16> to vector<8x128xbf16>
    %cst_15 = arith.constant dense<0.000000e+00> : vector<72x128xf32>
    %11 = tpu.matmul %8, %10, %cst_15 {dimension_numbers = #tpu.dot_dimension_numbers<[1], [0], [0], [1], [0, 0, 1, 1], [], []>} : vector<72x8xbf16>, vector<8x128xbf16>, vector<72x128xf32> -> vector<72x128xf32>
    %12 = arith.addf %6, %11 : vector<72x128xf32>
    %c0_16 = arith.constant 0 : index
    %c0_17 = arith.constant 0 : index
    %c0_18 = arith.constant 0 : index
    %c1_19 = arith.constant 1 : index
    %c0_20 = arith.constant 0 : index
    %13 = vector.load %arg1[%c0_16, %c0_17, %c0_18, %c1_19, %c0_20] : memref<1x2x2x90x8xbf16, #tpu.memory_space<vmem>>, vector<1x1x1x72x8xbf16>
    %14 = vector.shape_cast %13 : vector<1x1x1x72x8xbf16> to vector<72x8xbf16>
    %c2 = arith.constant 2 : index
    %c0_21 = arith.constant 0 : index
    %c0_22 = arith.constant 0 : index
    %15 = vector.load %arg2[%c2, %c0_21, %c0_22] : memref<9x8x128xbf16, #tpu.memory_space<vmem>>, vector<1x8x128xbf16>
    %16 = vector.shape_cast %15 : vector<1x8x128xbf16> to vector<8x128xbf16>
    %cst_23 = arith.constant dense<0.000000e+00> : vector<72x128xf32>
    %17 = tpu.matmul %14, %16, %cst_23 {dimension_numbers = #tpu.dot_dimension_numbers<[1], [0], [0], [1], [0, 0, 1, 1], [], []>} : vector<72x8xbf16>, vector<8x128xbf16>, vector<72x128xf32> -> vector<72x128xf32>
    %18 = arith.addf %12, %17 : vector<72x128xf32>
    %c0_24 = arith.constant 0 : index
    %c1_25 = arith.constant 1 : index
    %c0_26 = arith.constant 0 : index
    %c0_27 = arith.constant 0 : index
    %c0_28 = arith.constant 0 : index
    %19 = vector.load %arg1[%c0_24, %c1_25, %c0_26, %c0_27, %c0_28] : memref<1x2x2x90x8xbf16, #tpu.memory_space<vmem>>, vector<1x1x1x72x8xbf16>
    %20 = vector.shape_cast %19 : vector<1x1x1x72x8xbf16> to vector<72x8xbf16>
    %c3 = arith.constant 3 : index
    %c0_29 = arith.constant 0 : index
    %c0_30 = arith.constant 0 : index
    %21 = vector.load %arg2[%c3, %c0_29, %c0_30] : memref<9x8x128xbf16, #tpu.memory_space<vmem>>, vector<1x8x128xbf16>
    %22 = vector.shape_cast %21 : vector<1x8x128xbf16> to vector<8x128xbf16>
    %cst_31 = arith.constant dense<0.000000e+00> : vector<72x128xf32>
    %23 = tpu.matmul %20, %22, %cst_31 {dimension_numbers = #tpu.dot_dimension_numbers<[1], [0], [0], [1], [0, 0, 1, 1], [], []>} : vector<72x8xbf16>, vector<8x128xbf16>, vector<72x128xf32> -> vector<72x128xf32>
    %24 = arith.addf %18, %23 : vector<72x128xf32>
    %c0_32 = arith.constant 0 : index
    %c1_33 = arith.constant 1 : index
    %c1_34 = arith.constant 1 : index
    %c0_35 = arith.constant 0 : index
    %c0_36 = arith.constant 0 : index
    %25 = vector.load %arg1[%c0_32, %c1_33, %c1_34, %c0_35, %c0_36] : memref<1x2x2x90x8xbf16, #tpu.memory_space<vmem>>, vector<1x1x1x72x8xbf16>
    %26 = vector.shape_cast %25 : vector<1x1x1x72x8xbf16> to vector<72x8xbf16>
    %c4 = arith.constant 4 : index
    %c0_37 = arith.constant 0 : index
    %c0_38 = arith.constant 0 : index
    %27 = vector.load %arg2[%c4, %c0_37, %c0_38] : memref<9x8x128xbf16, #tpu.memory_space<vmem>>, vector<1x8x128xbf16>
    %28 = vector.shape_cast %27 : vector<1x8x128xbf16> to vector<8x128xbf16>
    %cst_39 = arith.constant dense<0.000000e+00> : vector<72x128xf32>
    %29 = tpu.matmul %26, %28, %cst_39 {dimension_numbers = #tpu.dot_dimension_numbers<[1], [0], [0], [1], [0, 0, 1, 1], [], []>} : vector<72x8xbf16>, vector<8x128xbf16>, vector<72x128xf32> -> vector<72x128xf32>
    %30 = arith.addf %24, %29 : vector<72x128xf32>
    %c0_40 = arith.constant 0 : index
    %c1_41 = arith.constant 1 : index
    %c0_42 = arith.constant 0 : index
    %c1_43 = arith.constant 1 : index
    %c0_44 = arith.constant 0 : index
    %31 = vector.load %arg1[%c0_40, %c1_41, %c0_42, %c1_43, %c0_44] : memref<1x2x2x90x8xbf16, #tpu.memory_space<vmem>>, vector<1x1x1x72x8xbf16>
    %32 = vector.shape_cast %31 : vector<1x1x1x72x8xbf16> to vector<72x8xbf16>
    %c5 = arith.constant 5 : index
    %c0_45 = arith.constant 0 : index
    %c0_46 = arith.constant 0 : index
    %33 = vector.load %arg2[%c5, %c0_45, %c0_46] : memref<9x8x128xbf16, #tpu.memory_space<vmem>>, vector<1x8x128xbf16>
    %34 = vector.shape_cast %33 : vector<1x8x128xbf16> to vector<8x128xbf16>
    %cst_47 = arith.constant dense<0.000000e+00> : vector<72x128xf32>
    %35 = tpu.matmul %32, %34, %cst_47 {dimension_numbers = #tpu.dot_dimension_numbers<[1], [0], [0], [1], [0, 0, 1, 1], [], []>} : vector<72x8xbf16>, vector<8x128xbf16>, vector<72x128xf32> -> vector<72x128xf32>
    %36 = arith.addf %30, %35 : vector<72x128xf32>
    %c0_48 = arith.constant 0 : index
    %c0_49 = arith.constant 0 : index
    %c0_50 = arith.constant 0 : index
    %c9 = arith.constant 9 : index
    %c0_51 = arith.constant 0 : index
    %37 = vector.load %arg1[%c0_48, %c0_49, %c0_50, %c9, %c0_51] : memref<1x2x2x90x8xbf16, #tpu.memory_space<vmem>>, vector<1x1x1x72x8xbf16>
    %38 = vector.shape_cast %37 : vector<1x1x1x72x8xbf16> to vector<72x8xbf16>
    %c6 = arith.constant 6 : index
    %c0_52 = arith.constant 0 : index
    %c0_53 = arith.constant 0 : index
    %39 = vector.load %arg2[%c6, %c0_52, %c0_53] : memref<9x8x128xbf16, #tpu.memory_space<vmem>>, vector<1x8x128xbf16>
    %40 = vector.shape_cast %39 : vector<1x8x128xbf16> to vector<8x128xbf16>
    %cst_54 = arith.constant dense<0.000000e+00> : vector<72x128xf32>
    %41 = tpu.matmul %38, %40, %cst_54 {dimension_numbers = #tpu.dot_dimension_numbers<[1], [0], [0], [1], [0, 0, 1, 1], [], []>} : vector<72x8xbf16>, vector<8x128xbf16>, vector<72x128xf32> -> vector<72x128xf32>
    %42 = arith.addf %36, %41 : vector<72x128xf32>
    %c0_55 = arith.constant 0 : index
    %c0_56 = arith.constant 0 : index
    %c1_57 = arith.constant 1 : index
    %c9_58 = arith.constant 9 : index
    %c0_59 = arith.constant 0 : index
    %43 = vector.load %arg1[%c0_55, %c0_56, %c1_57, %c9_58, %c0_59] : memref<1x2x2x90x8xbf16, #tpu.memory_space<vmem>>, vector<1x1x1x72x8xbf16>
    %44 = vector.shape_cast %43 : vector<1x1x1x72x8xbf16> to vector<72x8xbf16>
    %c7 = arith.constant 7 : index
    %c0_60 = arith.constant 0 : index
    %c0_61 = arith.constant 0 : index
    %45 = vector.load %arg2[%c7, %c0_60, %c0_61] : memref<9x8x128xbf16, #tpu.memory_space<vmem>>, vector<1x8x128xbf16>
    %46 = vector.shape_cast %45 : vector<1x8x128xbf16> to vector<8x128xbf16>
    %cst_62 = arith.constant dense<0.000000e+00> : vector<72x128xf32>
    %47 = tpu.matmul %44, %46, %cst_62 {dimension_numbers = #tpu.dot_dimension_numbers<[1], [0], [0], [1], [0, 0, 1, 1], [], []>} : vector<72x8xbf16>, vector<8x128xbf16>, vector<72x128xf32> -> vector<72x128xf32>
    %48 = arith.addf %42, %47 : vector<72x128xf32>
    %c0_63 = arith.constant 0 : index
    %c0_64 = arith.constant 0 : index
    %c0_65 = arith.constant 0 : index
    %c10 = arith.constant 10 : index
    %c0_66 = arith.constant 0 : index
    %49 = vector.load %arg1[%c0_63, %c0_64, %c0_65, %c10, %c0_66] : memref<1x2x2x90x8xbf16, #tpu.memory_space<vmem>>, vector<1x1x1x72x8xbf16>
    %50 = vector.shape_cast %49 : vector<1x1x1x72x8xbf16> to vector<72x8xbf16>
    %c8 = arith.constant 8 : index
    %c0_67 = arith.constant 0 : index
    %c0_68 = arith.constant 0 : index
    %51 = vector.load %arg2[%c8, %c0_67, %c0_68] : memref<9x8x128xbf16, #tpu.memory_space<vmem>>, vector<1x8x128xbf16>
    %52 = vector.shape_cast %51 : vector<1x8x128xbf16> to vector<8x128xbf16>
    %cst_69 = arith.constant dense<0.000000e+00> : vector<72x128xf32>
    %53 = tpu.matmul %50, %52, %cst_69 {dimension_numbers = #tpu.dot_dimension_numbers<[1], [0], [0], [1], [0, 0, 1, 1], [], []>} : vector<72x8xbf16>, vector<8x128xbf16>, vector<72x128xf32> -> vector<72x128xf32>
    %54 = arith.addf %48, %53 : vector<72x128xf32>
    %c0_70 = arith.constant 0 : index
    %c0_71 = arith.constant 0 : index
    %55 = vector.load %arg3[%c0_70, %c0_71] : memref<1x128xf32, #tpu.memory_space<vmem>>, vector<1x128xf32>
    %56 = vector.broadcast %55 : vector<1x128xf32> to vector<72x128xf32>
    %57 = arith.addf %54, %56 : vector<72x128xf32>
    %cst_72 = arith.constant 0.000000e+00 : f32
    %58 = vector.broadcast %cst_72 : f32 to vector<72x128xf32>
    %59 = arith.maximumf %57, %58 : vector<72x128xf32>
    %c0_73 = arith.constant 0 : index
    %c0_74 = arith.constant 0 : index
    %c0_75 = arith.constant 0 : index
    %60 = vector.load %arg4[%c0_73, %c0_74, %c0_75] : memref<1x72x128xf32, #tpu.memory_space<vmem>>, vector<1x72x128xf32>
    %61 = vector.shape_cast %60 : vector<1x72x128xf32> to vector<72x128xf32>
    %62 = vector.shape_cast %59 : vector<72x128xf32> to vector<1x72x128xf32>
    tpu.vector_store %arg4[%c0_73, %c0_74, %c0_75], %62 {strides = array<i32>} : memref<1x72x128xf32, #tpu.memory_space<vmem>>, vector<1x72x128xf32>,
    return
  }
  func.func @transform_0(%arg0: i32) -> (i32, i32, i32, i32, i32) {
    %c0_i32 = arith.constant 0 : i32
    %c0_i32_0 = arith.constant 0 : i32
    %c0_i32_1 = arith.constant 0 : i32
    %c0_i32_2 = arith.constant 0 : i32
    %c0_i32_3 = arith.constant 0 : i32
    return %arg0, %c0_i32, %c0_i32_0, %c0_i32_1, %c0_i32_2 : i32, i32, i32, i32, i32
  }
  func.func @transform_1(%arg0: i32) -> (i32, i32, i32) {
    %c0_i32 = arith.constant 0 : i32
    %c0_i32_0 = arith.constant 0 : i32
    %c0_i32_1 = arith.constant 0 : i32
    %c0_i32_2 = arith.constant 0 : i32
    return %c0_i32, %c0_i32_0, %c0_i32_1 : i32, i32, i32
  }
  func.func @transform_2(%arg0: i32) -> (i32, i32) {
    %c0_i32 = arith.constant 0 : i32
    %c0_i32_0 = arith.constant 0 : i32
    %c0_i32_1 = arith.constant 0 : i32
    return %c0_i32, %c0_i32_0 : i32, i32
  }
  func.func @transform_3(%arg0: i32) -> (i32, i32, i32) {
    %c0_i32 = arith.constant 0 : i32
    %c0_i32_0 = arith.constant 0 : i32
    %c0_i32_1 = arith.constant 0 : i32
    return %arg0, %c0_i32, %c0_i32_0 : i32, i32, i32
  }
}

module attributes {stable_mosaic.version = 11 : i64} {
  func.func @kernel(%arg0: i32, %arg1: memref<1x2x2x30x16xbf16, #tpu.memory_space<vmem>>, %arg2: memref<9x16x128xbf16, #tpu.memory_space<vmem>>, %arg3: memref<1x128xf32, #tpu.memory_space<vmem>>, %arg4: memref<1x20x128xf32, #tpu.memory_space<vmem>>) attributes {dimension_semantics = [#tpu.dimension_semantics<parallel>], iteration_bounds = array<i64: 2>, scalar_prefetch = 0 : i64, scratch_operands = 0 : i64, tpu.core_type = #tpu.core_type<tc>, window_params = [{transform_indices = @transform_0, window_bounds = array<i64: 1, 2, 2, 30, 16>}, {pipeline_mode = #tpu.pipeline_mode<synchronous>, transform_indices = @transform_1, window_bounds = array<i64: 9, 16, 128>}, {pipeline_mode = #tpu.pipeline_mode<synchronous>, transform_indices = @transform_2, window_bounds = array<i64: 1, 128>}, {transform_indices = @transform_3, window_bounds = array<i64: 1, 20, 128>}]} {
    %cst = arith.constant 0.000000e+00 : f32
    %0 = vector.broadcast %cst : f32 to vector<20x128xf32>
    %c0 = arith.constant 0 : index
    %c0_0 = arith.constant 0 : index
    %c0_1 = arith.constant 0 : index
    %c0_2 = arith.constant 0 : index
    %c0_3 = arith.constant 0 : index
    %1 = vector.load %arg1[%c0, %c0_0, %c0_1, %c0_2, %c0_3] : memref<1x2x2x30x16xbf16, #tpu.memory_space<vmem>>, vector<1x1x1x20x16xbf16>
    %2 = vector.shape_cast %1 : vector<1x1x1x20x16xbf16> to vector<20x16xbf16>
    %c0_4 = arith.constant 0 : index
    %c0_5 = arith.constant 0 : index
    %c0_6 = arith.constant 0 : index
    %3 = vector.load %arg2[%c0_4, %c0_5, %c0_6] : memref<9x16x128xbf16, #tpu.memory_space<vmem>>, vector<1x16x128xbf16>
    %4 = vector.shape_cast %3 : vector<1x16x128xbf16> to vector<16x128xbf16>
    %cst_7 = arith.constant dense<0.000000e+00> : vector<20x128xf32>
    %5 = tpu.matmul %2, %4, %cst_7 {dimension_numbers = #tpu.dot_dimension_numbers<[1], [0], [0], [1], [0, 0, 1, 1], [], []>} : vector<20x16xbf16>, vector<16x128xbf16>, vector<20x128xf32> -> vector<20x128xf32>
    %6 = arith.addf %0, %5 : vector<20x128xf32>
    %c0_8 = arith.constant 0 : index
    %c0_9 = arith.constant 0 : index
    %c1 = arith.constant 1 : index
    %c0_10 = arith.constant 0 : index
    %c0_11 = arith.constant 0 : index
    %7 = vector.load %arg1[%c0_8, %c0_9, %c1, %c0_10, %c0_11] : memref<1x2x2x30x16xbf16, #tpu.memory_space<vmem>>, vector<1x1x1x20x16xbf16>
    %8 = vector.shape_cast %7 : vector<1x1x1x20x16xbf16> to vector<20x16xbf16>
    %c1_12 = arith.constant 1 : index
    %c0_13 = arith.constant 0 : index
    %c0_14 = arith.constant 0 : index
    %9 = vector.load %arg2[%c1_12, %c0_13, %c0_14] : memref<9x16x128xbf16, #tpu.memory_space<vmem>>, vector<1x16x128xbf16>
    %10 = vector.shape_cast %9 : vector<1x16x128xbf16> to vector<16x128xbf16>
    %cst_15 = arith.constant dense<0.000000e+00> : vector<20x128xf32>
    %11 = tpu.matmul %8, %10, %cst_15 {dimension_numbers = #tpu.dot_dimension_numbers<[1], [0], [0], [1], [0, 0, 1, 1], [], []>} : vector<20x16xbf16>, vector<16x128xbf16>, vector<20x128xf32> -> vector<20x128xf32>
    %12 = arith.addf %6, %11 : vector<20x128xf32>
    %c0_16 = arith.constant 0 : index
    %c0_17 = arith.constant 0 : index
    %c0_18 = arith.constant 0 : index
    %c1_19 = arith.constant 1 : index
    %c0_20 = arith.constant 0 : index
    %13 = vector.load %arg1[%c0_16, %c0_17, %c0_18, %c1_19, %c0_20] : memref<1x2x2x30x16xbf16, #tpu.memory_space<vmem>>, vector<1x1x1x20x16xbf16>
    %14 = vector.shape_cast %13 : vector<1x1x1x20x16xbf16> to vector<20x16xbf16>
    %c2 = arith.constant 2 : index
    %c0_21 = arith.constant 0 : index
    %c0_22 = arith.constant 0 : index
    %15 = vector.load %arg2[%c2, %c0_21, %c0_22] : memref<9x16x128xbf16, #tpu.memory_space<vmem>>, vector<1x16x128xbf16>
    %16 = vector.shape_cast %15 : vector<1x16x128xbf16> to vector<16x128xbf16>
    %cst_23 = arith.constant dense<0.000000e+00> : vector<20x128xf32>
    %17 = tpu.matmul %14, %16, %cst_23 {dimension_numbers = #tpu.dot_dimension_numbers<[1], [0], [0], [1], [0, 0, 1, 1], [], []>} : vector<20x16xbf16>, vector<16x128xbf16>, vector<20x128xf32> -> vector<20x128xf32>
    %18 = arith.addf %12, %17 : vector<20x128xf32>
    %c0_24 = arith.constant 0 : index
    %c1_25 = arith.constant 1 : index
    %c0_26 = arith.constant 0 : index
    %c0_27 = arith.constant 0 : index
    %c0_28 = arith.constant 0 : index
    %19 = vector.load %arg1[%c0_24, %c1_25, %c0_26, %c0_27, %c0_28] : memref<1x2x2x30x16xbf16, #tpu.memory_space<vmem>>, vector<1x1x1x20x16xbf16>
    %20 = vector.shape_cast %19 : vector<1x1x1x20x16xbf16> to vector<20x16xbf16>
    %c3 = arith.constant 3 : index
    %c0_29 = arith.constant 0 : index
    %c0_30 = arith.constant 0 : index
    %21 = vector.load %arg2[%c3, %c0_29, %c0_30] : memref<9x16x128xbf16, #tpu.memory_space<vmem>>, vector<1x16x128xbf16>
    %22 = vector.shape_cast %21 : vector<1x16x128xbf16> to vector<16x128xbf16>
    %cst_31 = arith.constant dense<0.000000e+00> : vector<20x128xf32>
    %23 = tpu.matmul %20, %22, %cst_31 {dimension_numbers = #tpu.dot_dimension_numbers<[1], [0], [0], [1], [0, 0, 1, 1], [], []>} : vector<20x16xbf16>, vector<16x128xbf16>, vector<20x128xf32> -> vector<20x128xf32>
    %24 = arith.addf %18, %23 : vector<20x128xf32>
    %c0_32 = arith.constant 0 : index
    %c1_33 = arith.constant 1 : index
    %c1_34 = arith.constant 1 : index
    %c0_35 = arith.constant 0 : index
    %c0_36 = arith.constant 0 : index
    %25 = vector.load %arg1[%c0_32, %c1_33, %c1_34, %c0_35, %c0_36] : memref<1x2x2x30x16xbf16, #tpu.memory_space<vmem>>, vector<1x1x1x20x16xbf16>
    %26 = vector.shape_cast %25 : vector<1x1x1x20x16xbf16> to vector<20x16xbf16>
    %c4 = arith.constant 4 : index
    %c0_37 = arith.constant 0 : index
    %c0_38 = arith.constant 0 : index
    %27 = vector.load %arg2[%c4, %c0_37, %c0_38] : memref<9x16x128xbf16, #tpu.memory_space<vmem>>, vector<1x16x128xbf16>
    %28 = vector.shape_cast %27 : vector<1x16x128xbf16> to vector<16x128xbf16>
    %cst_39 = arith.constant dense<0.000000e+00> : vector<20x128xf32>
    %29 = tpu.matmul %26, %28, %cst_39 {dimension_numbers = #tpu.dot_dimension_numbers<[1], [0], [0], [1], [0, 0, 1, 1], [], []>} : vector<20x16xbf16>, vector<16x128xbf16>, vector<20x128xf32> -> vector<20x128xf32>
    %30 = arith.addf %24, %29 : vector<20x128xf32>
    %c0_40 = arith.constant 0 : index
    %c1_41 = arith.constant 1 : index
    %c0_42 = arith.constant 0 : index
    %c1_43 = arith.constant 1 : index
    %c0_44 = arith.constant 0 : index
    %31 = vector.load %arg1[%c0_40, %c1_41, %c0_42, %c1_43, %c0_44] : memref<1x2x2x30x16xbf16, #tpu.memory_space<vmem>>, vector<1x1x1x20x16xbf16>
    %32 = vector.shape_cast %31 : vector<1x1x1x20x16xbf16> to vector<20x16xbf16>
    %c5 = arith.constant 5 : index
    %c0_45 = arith.constant 0 : index
    %c0_46 = arith.constant 0 : index
    %33 = vector.load %arg2[%c5, %c0_45, %c0_46] : memref<9x16x128xbf16, #tpu.memory_space<vmem>>, vector<1x16x128xbf16>
    %34 = vector.shape_cast %33 : vector<1x16x128xbf16> to vector<16x128xbf16>
    %cst_47 = arith.constant dense<0.000000e+00> : vector<20x128xf32>
    %35 = tpu.matmul %32, %34, %cst_47 {dimension_numbers = #tpu.dot_dimension_numbers<[1], [0], [0], [1], [0, 0, 1, 1], [], []>} : vector<20x16xbf16>, vector<16x128xbf16>, vector<20x128xf32> -> vector<20x128xf32>
    %36 = arith.addf %30, %35 : vector<20x128xf32>
    %c0_48 = arith.constant 0 : index
    %c0_49 = arith.constant 0 : index
    %c0_50 = arith.constant 0 : index
    %c5_51 = arith.constant 5 : index
    %c0_52 = arith.constant 0 : index
    %37 = vector.load %arg1[%c0_48, %c0_49, %c0_50, %c5_51, %c0_52] : memref<1x2x2x30x16xbf16, #tpu.memory_space<vmem>>, vector<1x1x1x20x16xbf16>
    %38 = vector.shape_cast %37 : vector<1x1x1x20x16xbf16> to vector<20x16xbf16>
    %c6 = arith.constant 6 : index
    %c0_53 = arith.constant 0 : index
    %c0_54 = arith.constant 0 : index
    %39 = vector.load %arg2[%c6, %c0_53, %c0_54] : memref<9x16x128xbf16, #tpu.memory_space<vmem>>, vector<1x16x128xbf16>
    %40 = vector.shape_cast %39 : vector<1x16x128xbf16> to vector<16x128xbf16>
    %cst_55 = arith.constant dense<0.000000e+00> : vector<20x128xf32>
    %41 = tpu.matmul %38, %40, %cst_55 {dimension_numbers = #tpu.dot_dimension_numbers<[1], [0], [0], [1], [0, 0, 1, 1], [], []>} : vector<20x16xbf16>, vector<16x128xbf16>, vector<20x128xf32> -> vector<20x128xf32>
    %42 = arith.addf %36, %41 : vector<20x128xf32>
    %c0_56 = arith.constant 0 : index
    %c0_57 = arith.constant 0 : index
    %c1_58 = arith.constant 1 : index
    %c5_59 = arith.constant 5 : index
    %c0_60 = arith.constant 0 : index
    %43 = vector.load %arg1[%c0_56, %c0_57, %c1_58, %c5_59, %c0_60] : memref<1x2x2x30x16xbf16, #tpu.memory_space<vmem>>, vector<1x1x1x20x16xbf16>
    %44 = vector.shape_cast %43 : vector<1x1x1x20x16xbf16> to vector<20x16xbf16>
    %c7 = arith.constant 7 : index
    %c0_61 = arith.constant 0 : index
    %c0_62 = arith.constant 0 : index
    %45 = vector.load %arg2[%c7, %c0_61, %c0_62] : memref<9x16x128xbf16, #tpu.memory_space<vmem>>, vector<1x16x128xbf16>
    %46 = vector.shape_cast %45 : vector<1x16x128xbf16> to vector<16x128xbf16>
    %cst_63 = arith.constant dense<0.000000e+00> : vector<20x128xf32>
    %47 = tpu.matmul %44, %46, %cst_63 {dimension_numbers = #tpu.dot_dimension_numbers<[1], [0], [0], [1], [0, 0, 1, 1], [], []>} : vector<20x16xbf16>, vector<16x128xbf16>, vector<20x128xf32> -> vector<20x128xf32>
    %48 = arith.addf %42, %47 : vector<20x128xf32>
    %c0_64 = arith.constant 0 : index
    %c0_65 = arith.constant 0 : index
    %c0_66 = arith.constant 0 : index
    %c6_67 = arith.constant 6 : index
    %c0_68 = arith.constant 0 : index
    %49 = vector.load %arg1[%c0_64, %c0_65, %c0_66, %c6_67, %c0_68] : memref<1x2x2x30x16xbf16, #tpu.memory_space<vmem>>, vector<1x1x1x20x16xbf16>
    %50 = vector.shape_cast %49 : vector<1x1x1x20x16xbf16> to vector<20x16xbf16>
    %c8 = arith.constant 8 : index
    %c0_69 = arith.constant 0 : index
    %c0_70 = arith.constant 0 : index
    %51 = vector.load %arg2[%c8, %c0_69, %c0_70] : memref<9x16x128xbf16, #tpu.memory_space<vmem>>, vector<1x16x128xbf16>
    %52 = vector.shape_cast %51 : vector<1x16x128xbf16> to vector<16x128xbf16>
    %cst_71 = arith.constant dense<0.000000e+00> : vector<20x128xf32>
    %53 = tpu.matmul %50, %52, %cst_71 {dimension_numbers = #tpu.dot_dimension_numbers<[1], [0], [0], [1], [0, 0, 1, 1], [], []>} : vector<20x16xbf16>, vector<16x128xbf16>, vector<20x128xf32> -> vector<20x128xf32>
    %54 = arith.addf %48, %53 : vector<20x128xf32>
    %c0_72 = arith.constant 0 : index
    %c0_73 = arith.constant 0 : index
    %55 = vector.load %arg3[%c0_72, %c0_73] : memref<1x128xf32, #tpu.memory_space<vmem>>, vector<1x128xf32>
    %56 = vector.broadcast %55 : vector<1x128xf32> to vector<20x128xf32>
    %57 = arith.addf %54, %56 : vector<20x128xf32>
    %cst_74 = arith.constant 0.000000e+00 : f32
    %58 = vector.broadcast %cst_74 : f32 to vector<20x128xf32>
    %59 = arith.maximumf %57, %58 : vector<20x128xf32>
    %c0_75 = arith.constant 0 : index
    %c0_76 = arith.constant 0 : index
    %c0_77 = arith.constant 0 : index
    %60 = vector.load %arg4[%c0_75, %c0_76, %c0_77] : memref<1x20x128xf32, #tpu.memory_space<vmem>>, vector<1x20x128xf32>
    %61 = vector.shape_cast %60 : vector<1x20x128xf32> to vector<20x128xf32>
    %62 = vector.shape_cast %59 : vector<20x128xf32> to vector<1x20x128xf32>
    tpu.vector_store %arg4[%c0_75, %c0_76, %c0_77], %62 {strides = array<i32>} : memref<1x20x128xf32, #tpu.memory_space<vmem>>, vector<1x20x128xf32>,
    return
  }
  func.func @transform_0(%arg0: i32) -> (i32, i32, i32, i32, i32) {
    %c0_i32 = arith.constant 0 : i32
    %c0_i32_0 = arith.constant 0 : i32
    %c0_i32_1 = arith.constant 0 : i32
    %c0_i32_2 = arith.constant 0 : i32
    %c0_i32_3 = arith.constant 0 : i32
    return %arg0, %c0_i32, %c0_i32_0, %c0_i32_1, %c0_i32_2 : i32, i32, i32, i32, i32
  }
  func.func @transform_1(%arg0: i32) -> (i32, i32, i32) {
    %c0_i32 = arith.constant 0 : i32
    %c0_i32_0 = arith.constant 0 : i32
    %c0_i32_1 = arith.constant 0 : i32
    %c0_i32_2 = arith.constant 0 : i32
    return %c0_i32, %c0_i32_0, %c0_i32_1 : i32, i32, i32
  }
  func.func @transform_2(%arg0: i32) -> (i32, i32) {
    %c0_i32 = arith.constant 0 : i32
    %c0_i32_0 = arith.constant 0 : i32
    %c0_i32_1 = arith.constant 0 : i32
    return %c0_i32, %c0_i32_0 : i32, i32
  }
  func.func @transform_3(%arg0: i32) -> (i32, i32, i32) {
    %c0_i32 = arith.constant 0 : i32
    %c0_i32_0 = arith.constant 0 : i32
    %c0_i32_1 = arith.constant 0 : i32
    return %arg0, %c0_i32, %c0_i32_0 : i32, i32, i32
  }
}

module attributes {stable_mosaic.version = 11 : i64} {
  func.func @kernel(%arg0: i32, %arg1: memref<1x2x2x12x32xbf16, #tpu.memory_space<vmem>>, %arg2: memref<9x32x128xbf16, #tpu.memory_space<vmem>>, %arg3: memref<1x128xf32, #tpu.memory_space<vmem>>, %arg4: memref<1x6x128xf32, #tpu.memory_space<vmem>>) attributes {dimension_semantics = [#tpu.dimension_semantics<parallel>], iteration_bounds = array<i64: 2>, scalar_prefetch = 0 : i64, scratch_operands = 0 : i64, tpu.core_type = #tpu.core_type<tc>, window_params = [{transform_indices = @transform_0, window_bounds = array<i64: 1, 2, 2, 12, 32>}, {pipeline_mode = #tpu.pipeline_mode<synchronous>, transform_indices = @transform_1, window_bounds = array<i64: 9, 32, 128>}, {pipeline_mode = #tpu.pipeline_mode<synchronous>, transform_indices = @transform_2, window_bounds = array<i64: 1, 128>}, {transform_indices = @transform_3, window_bounds = array<i64: 1, 6, 128>}]} {
    %cst = arith.constant 0.000000e+00 : f32
    %0 = vector.broadcast %cst : f32 to vector<6x128xf32>
    %c0 = arith.constant 0 : index
    %c0_0 = arith.constant 0 : index
    %c0_1 = arith.constant 0 : index
    %c0_2 = arith.constant 0 : index
    %c0_3 = arith.constant 0 : index
    %1 = vector.load %arg1[%c0, %c0_0, %c0_1, %c0_2, %c0_3] : memref<1x2x2x12x32xbf16, #tpu.memory_space<vmem>>, vector<1x1x1x6x32xbf16>
    %2 = vector.shape_cast %1 : vector<1x1x1x6x32xbf16> to vector<6x32xbf16>
    %c0_4 = arith.constant 0 : index
    %c0_5 = arith.constant 0 : index
    %c0_6 = arith.constant 0 : index
    %3 = vector.load %arg2[%c0_4, %c0_5, %c0_6] : memref<9x32x128xbf16, #tpu.memory_space<vmem>>, vector<1x32x128xbf16>
    %4 = vector.shape_cast %3 : vector<1x32x128xbf16> to vector<32x128xbf16>
    %cst_7 = arith.constant dense<0.000000e+00> : vector<6x128xf32>
    %5 = tpu.matmul %2, %4, %cst_7 {dimension_numbers = #tpu.dot_dimension_numbers<[1], [0], [0], [1], [0, 0, 1, 1], [], []>} : vector<6x32xbf16>, vector<32x128xbf16>, vector<6x128xf32> -> vector<6x128xf32>
    %6 = arith.addf %0, %5 : vector<6x128xf32>
    %c0_8 = arith.constant 0 : index
    %c0_9 = arith.constant 0 : index
    %c1 = arith.constant 1 : index
    %c0_10 = arith.constant 0 : index
    %c0_11 = arith.constant 0 : index
    %7 = vector.load %arg1[%c0_8, %c0_9, %c1, %c0_10, %c0_11] : memref<1x2x2x12x32xbf16, #tpu.memory_space<vmem>>, vector<1x1x1x6x32xbf16>
    %8 = vector.shape_cast %7 : vector<1x1x1x6x32xbf16> to vector<6x32xbf16>
    %c1_12 = arith.constant 1 : index
    %c0_13 = arith.constant 0 : index
    %c0_14 = arith.constant 0 : index
    %9 = vector.load %arg2[%c1_12, %c0_13, %c0_14] : memref<9x32x128xbf16, #tpu.memory_space<vmem>>, vector<1x32x128xbf16>
    %10 = vector.shape_cast %9 : vector<1x32x128xbf16> to vector<32x128xbf16>
    %cst_15 = arith.constant dense<0.000000e+00> : vector<6x128xf32>
    %11 = tpu.matmul %8, %10, %cst_15 {dimension_numbers = #tpu.dot_dimension_numbers<[1], [0], [0], [1], [0, 0, 1, 1], [], []>} : vector<6x32xbf16>, vector<32x128xbf16>, vector<6x128xf32> -> vector<6x128xf32>
    %12 = arith.addf %6, %11 : vector<6x128xf32>
    %c0_16 = arith.constant 0 : index
    %c0_17 = arith.constant 0 : index
    %c0_18 = arith.constant 0 : index
    %c1_19 = arith.constant 1 : index
    %c0_20 = arith.constant 0 : index
    %13 = vector.load %arg1[%c0_16, %c0_17, %c0_18, %c1_19, %c0_20] : memref<1x2x2x12x32xbf16, #tpu.memory_space<vmem>>, vector<1x1x1x6x32xbf16>
    %14 = vector.shape_cast %13 : vector<1x1x1x6x32xbf16> to vector<6x32xbf16>
    %c2 = arith.constant 2 : index
    %c0_21 = arith.constant 0 : index
    %c0_22 = arith.constant 0 : index
    %15 = vector.load %arg2[%c2, %c0_21, %c0_22] : memref<9x32x128xbf16, #tpu.memory_space<vmem>>, vector<1x32x128xbf16>
    %16 = vector.shape_cast %15 : vector<1x32x128xbf16> to vector<32x128xbf16>
    %cst_23 = arith.constant dense<0.000000e+00> : vector<6x128xf32>
    %17 = tpu.matmul %14, %16, %cst_23 {dimension_numbers = #tpu.dot_dimension_numbers<[1], [0], [0], [1], [0, 0, 1, 1], [], []>} : vector<6x32xbf16>, vector<32x128xbf16>, vector<6x128xf32> -> vector<6x128xf32>
    %18 = arith.addf %12, %17 : vector<6x128xf32>
    %c0_24 = arith.constant 0 : index
    %c1_25 = arith.constant 1 : index
    %c0_26 = arith.constant 0 : index
    %c0_27 = arith.constant 0 : index
    %c0_28 = arith.constant 0 : index
    %19 = vector.load %arg1[%c0_24, %c1_25, %c0_26, %c0_27, %c0_28] : memref<1x2x2x12x32xbf16, #tpu.memory_space<vmem>>, vector<1x1x1x6x32xbf16>
    %20 = vector.shape_cast %19 : vector<1x1x1x6x32xbf16> to vector<6x32xbf16>
    %c3 = arith.constant 3 : index
    %c0_29 = arith.constant 0 : index
    %c0_30 = arith.constant 0 : index
    %21 = vector.load %arg2[%c3, %c0_29, %c0_30] : memref<9x32x128xbf16, #tpu.memory_space<vmem>>, vector<1x32x128xbf16>
    %22 = vector.shape_cast %21 : vector<1x32x128xbf16> to vector<32x128xbf16>
    %cst_31 = arith.constant dense<0.000000e+00> : vector<6x128xf32>
    %23 = tpu.matmul %20, %22, %cst_31 {dimension_numbers = #tpu.dot_dimension_numbers<[1], [0], [0], [1], [0, 0, 1, 1], [], []>} : vector<6x32xbf16>, vector<32x128xbf16>, vector<6x128xf32> -> vector<6x128xf32>
    %24 = arith.addf %18, %23 : vector<6x128xf32>
    %c0_32 = arith.constant 0 : index
    %c1_33 = arith.constant 1 : index
    %c1_34 = arith.constant 1 : index
    %c0_35 = arith.constant 0 : index
    %c0_36 = arith.constant 0 : index
    %25 = vector.load %arg1[%c0_32, %c1_33, %c1_34, %c0_35, %c0_36] : memref<1x2x2x12x32xbf16, #tpu.memory_space<vmem>>, vector<1x1x1x6x32xbf16>
    %26 = vector.shape_cast %25 : vector<1x1x1x6x32xbf16> to vector<6x32xbf16>
    %c4 = arith.constant 4 : index
    %c0_37 = arith.constant 0 : index
    %c0_38 = arith.constant 0 : index
    %27 = vector.load %arg2[%c4, %c0_37, %c0_38] : memref<9x32x128xbf16, #tpu.memory_space<vmem>>, vector<1x32x128xbf16>
    %28 = vector.shape_cast %27 : vector<1x32x128xbf16> to vector<32x128xbf16>
    %cst_39 = arith.constant dense<0.000000e+00> : vector<6x128xf32>
    %29 = tpu.matmul %26, %28, %cst_39 {dimension_numbers = #tpu.dot_dimension_numbers<[1], [0], [0], [1], [0, 0, 1, 1], [], []>} : vector<6x32xbf16>, vector<32x128xbf16>, vector<6x128xf32> -> vector<6x128xf32>
    %30 = arith.addf %24, %29 : vector<6x128xf32>
    %c0_40 = arith.constant 0 : index
    %c1_41 = arith.constant 1 : index
    %c0_42 = arith.constant 0 : index
    %c1_43 = arith.constant 1 : index
    %c0_44 = arith.constant 0 : index
    %31 = vector.load %arg1[%c0_40, %c1_41, %c0_42, %c1_43, %c0_44] : memref<1x2x2x12x32xbf16, #tpu.memory_space<vmem>>, vector<1x1x1x6x32xbf16>
    %32 = vector.shape_cast %31 : vector<1x1x1x6x32xbf16> to vector<6x32xbf16>
    %c5 = arith.constant 5 : index
    %c0_45 = arith.constant 0 : index
    %c0_46 = arith.constant 0 : index
    %33 = vector.load %arg2[%c5, %c0_45, %c0_46] : memref<9x32x128xbf16, #tpu.memory_space<vmem>>, vector<1x32x128xbf16>
    %34 = vector.shape_cast %33 : vector<1x32x128xbf16> to vector<32x128xbf16>
    %cst_47 = arith.constant dense<0.000000e+00> : vector<6x128xf32>
    %35 = tpu.matmul %32, %34, %cst_47 {dimension_numbers = #tpu.dot_dimension_numbers<[1], [0], [0], [1], [0, 0, 1, 1], [], []>} : vector<6x32xbf16>, vector<32x128xbf16>, vector<6x128xf32> -> vector<6x128xf32>
    %36 = arith.addf %30, %35 : vector<6x128xf32>
    %c0_48 = arith.constant 0 : index
    %c0_49 = arith.constant 0 : index
    %c0_50 = arith.constant 0 : index
    %c3_51 = arith.constant 3 : index
    %c0_52 = arith.constant 0 : index
    %37 = vector.load %arg1[%c0_48, %c0_49, %c0_50, %c3_51, %c0_52] : memref<1x2x2x12x32xbf16, #tpu.memory_space<vmem>>, vector<1x1x1x6x32xbf16>
    %38 = vector.shape_cast %37 : vector<1x1x1x6x32xbf16> to vector<6x32xbf16>
    %c6 = arith.constant 6 : index
    %c0_53 = arith.constant 0 : index
    %c0_54 = arith.constant 0 : index
    %39 = vector.load %arg2[%c6, %c0_53, %c0_54] : memref<9x32x128xbf16, #tpu.memory_space<vmem>>, vector<1x32x128xbf16>
    %40 = vector.shape_cast %39 : vector<1x32x128xbf16> to vector<32x128xbf16>
    %cst_55 = arith.constant dense<0.000000e+00> : vector<6x128xf32>
    %41 = tpu.matmul %38, %40, %cst_55 {dimension_numbers = #tpu.dot_dimension_numbers<[1], [0], [0], [1], [0, 0, 1, 1], [], []>} : vector<6x32xbf16>, vector<32x128xbf16>, vector<6x128xf32> -> vector<6x128xf32>
    %42 = arith.addf %36, %41 : vector<6x128xf32>
    %c0_56 = arith.constant 0 : index
    %c0_57 = arith.constant 0 : index
    %c1_58 = arith.constant 1 : index
    %c3_59 = arith.constant 3 : index
    %c0_60 = arith.constant 0 : index
    %43 = vector.load %arg1[%c0_56, %c0_57, %c1_58, %c3_59, %c0_60] : memref<1x2x2x12x32xbf16, #tpu.memory_space<vmem>>, vector<1x1x1x6x32xbf16>
    %44 = vector.shape_cast %43 : vector<1x1x1x6x32xbf16> to vector<6x32xbf16>
    %c7 = arith.constant 7 : index
    %c0_61 = arith.constant 0 : index
    %c0_62 = arith.constant 0 : index
    %45 = vector.load %arg2[%c7, %c0_61, %c0_62] : memref<9x32x128xbf16, #tpu.memory_space<vmem>>, vector<1x32x128xbf16>
    %46 = vector.shape_cast %45 : vector<1x32x128xbf16> to vector<32x128xbf16>
    %cst_63 = arith.constant dense<0.000000e+00> : vector<6x128xf32>
    %47 = tpu.matmul %44, %46, %cst_63 {dimension_numbers = #tpu.dot_dimension_numbers<[1], [0], [0], [1], [0, 0, 1, 1], [], []>} : vector<6x32xbf16>, vector<32x128xbf16>, vector<6x128xf32> -> vector<6x128xf32>
    %48 = arith.addf %42, %47 : vector<6x128xf32>
    %c0_64 = arith.constant 0 : index
    %c0_65 = arith.constant 0 : index
    %c0_66 = arith.constant 0 : index
    %c4_67 = arith.constant 4 : index
    %c0_68 = arith.constant 0 : index
    %49 = vector.load %arg1[%c0_64, %c0_65, %c0_66, %c4_67, %c0_68] : memref<1x2x2x12x32xbf16, #tpu.memory_space<vmem>>, vector<1x1x1x6x32xbf16>
    %50 = vector.shape_cast %49 : vector<1x1x1x6x32xbf16> to vector<6x32xbf16>
    %c8 = arith.constant 8 : index
    %c0_69 = arith.constant 0 : index
    %c0_70 = arith.constant 0 : index
    %51 = vector.load %arg2[%c8, %c0_69, %c0_70] : memref<9x32x128xbf16, #tpu.memory_space<vmem>>, vector<1x32x128xbf16>
    %52 = vector.shape_cast %51 : vector<1x32x128xbf16> to vector<32x128xbf16>
    %cst_71 = arith.constant dense<0.000000e+00> : vector<6x128xf32>
    %53 = tpu.matmul %50, %52, %cst_71 {dimension_numbers = #tpu.dot_dimension_numbers<[1], [0], [0], [1], [0, 0, 1, 1], [], []>} : vector<6x32xbf16>, vector<32x128xbf16>, vector<6x128xf32> -> vector<6x128xf32>
    %54 = arith.addf %48, %53 : vector<6x128xf32>
    %c0_72 = arith.constant 0 : index
    %c0_73 = arith.constant 0 : index
    %55 = vector.load %arg3[%c0_72, %c0_73] : memref<1x128xf32, #tpu.memory_space<vmem>>, vector<1x128xf32>
    %56 = vector.broadcast %55 : vector<1x128xf32> to vector<6x128xf32>
    %57 = arith.addf %54, %56 : vector<6x128xf32>
    %cst_74 = arith.constant 0.000000e+00 : f32
    %58 = vector.broadcast %cst_74 : f32 to vector<6x128xf32>
    %59 = arith.maximumf %57, %58 : vector<6x128xf32>
    %c0_75 = arith.constant 0 : index
    %c0_76 = arith.constant 0 : index
    %c0_77 = arith.constant 0 : index
    %60 = vector.load %arg4[%c0_75, %c0_76, %c0_77] : memref<1x6x128xf32, #tpu.memory_space<vmem>>, vector<1x6x128xf32>
    %61 = vector.shape_cast %60 : vector<1x6x128xf32> to vector<6x128xf32>
    %62 = vector.shape_cast %59 : vector<6x128xf32> to vector<1x6x128xf32>
    tpu.vector_store %arg4[%c0_75, %c0_76, %c0_77], %62 {strides = array<i32>} : memref<1x6x128xf32, #tpu.memory_space<vmem>>, vector<1x6x128xf32>,
    return
  }
  func.func @transform_0(%arg0: i32) -> (i32, i32, i32, i32, i32) {
    %c0_i32 = arith.constant 0 : i32
    %c0_i32_0 = arith.constant 0 : i32
    %c0_i32_1 = arith.constant 0 : i32
    %c0_i32_2 = arith.constant 0 : i32
    %c0_i32_3 = arith.constant 0 : i32
    return %arg0, %c0_i32, %c0_i32_0, %c0_i32_1, %c0_i32_2 : i32, i32, i32, i32, i32
  }
  func.func @transform_1(%arg0: i32) -> (i32, i32, i32) {
    %c0_i32 = arith.constant 0 : i32
    %c0_i32_0 = arith.constant 0 : i32
    %c0_i32_1 = arith.constant 0 : i32
    %c0_i32_2 = arith.constant 0 : i32
    return %c0_i32, %c0_i32_0, %c0_i32_1 : i32, i32, i32
  }
  func.func @transform_2(%arg0: i32) -> (i32, i32) {
    %c0_i32 = arith.constant 0 : i32
    %c0_i32_0 = arith.constant 0 : i32
    %c0_i32_1 = arith.constant 0 : i32
    return %c0_i32, %c0_i32_0 : i32, i32
  }
  func.func @transform_3(%arg0: i32) -> (i32, i32, i32) {
    %c0_i32 = arith.constant 0 : i32
    %c0_i32_0 = arith.constant 0 : i32
    %c0_i32_1 = arith.constant 0 : i32
    return %arg0, %c0_i32, %c0_i32_0 : i32, i32, i32
  }
}

</mosaic_0001>

<llo_original>
// kernel: a_call__.4
$region0: #{a_call__.4}
  #allocation0 [shape = 'u32[]', space=smem, size = 0x4, offset = 0x4, fixed_abs, tag = 'smem constant byte address 0x4 - core index']
  #allocation1 [shape = 'u32[144,128]{1,0:T(1,128)}', space=vmem, size = 0x12000, scoped, tag = 'internal scratch']
  %s0 = inlined_call_operand.vmem [shape: bf16[2,2,2,306,4], index: 0, kind: input, shape index: {}]
  %s1 = inlined_call_operand.vmem [shape: bf16[9,4,128], index: 1, kind: input, shape index: {}]
  %s2 = inlined_call_operand.vmem [shape: f32[1,128], index: 2, kind: input, shape index: {}]
  %s3 = inlined_call_operand.vmem [shape: f32[2,272,128], index: 3, kind: output, shape index: {}]
  %s4 = sld [smem:[#allocation0]]
  $region45: #{a_call__.4} parent=0
    _
  %s6 = ssub.s32 1, %s4
  %s7 = scalar_select 0, %s6, %s4
  loop: start=0, step=1, limit=4
  $region2: #{a_call__.4} parent=0 // loop_pre_header
    _
  $region3: #{a_call__.4} parent=0 // loop_header
    %s9 = sphi 0, %s13
    %p10 = scmp.ge.s32.totalorder %s9, 4
    %s19 = sphi 0, %s21
    %s22 = sphi 0, %s19
    %s23 = sphi 0, %s22
    %s39 = sphi 0, %s23
    %s43 = sphi 0, %s43
    %s45 = sphi 0, %s43
    %s46 = sphi 0, %s45
    %s60 = sphi 0, %s46
    %s64 = sphi 0, %s64
    %s66 = sphi 0, %s64
    %s67 = sphi 0, %s66
    %s81 = sphi 0, %s67
    %s87 = sphi 0, %s89
    %s90 = sphi 0, %s87
    %s91 = sphi 0, %s90
    %s107 = sphi 0, %s91
  $region4: #{a_call__.4} parent=0 // loop_header_branch
    %12 = sbr.rel (%p10) target = $region8
  $region5: #{a_call__.4} parent=0 // loop_body
    %s14 = ssub.s32 %s9, 1
    %s15 = ssub.s32 %s9, 2
    %s16 = sadd.s32 %s9, 1
    %s17 = ssub.s32 %s9, %s16
    %p18 = scmp.eq.s32.totalorder %s17, 0
    %s20 = sadd.s32 %s19, 1
    %s21 = scalar_select %p18, %s19, %s20
    %p24 = pneg %p18
    %p25 = scmp.eq.s32.totalorder %s9, 1
    %p26 = por %p24, %p25
    %p27 = scmp.ne.s32.totalorder %s19, %s22
    %p28 = scmp.eq.s32.totalorder %s9, 0
    %p29 = por %p27, %p28
    %p30 = scmp.ne.s32.totalorder %s19, %s22
    %p31 = scmp.eq.s32.totalorder %s14, 1
    %p32 = por %p30, %p31
    %p33 = scmp.ne.s32.totalorder %s22, %s23
    %p34 = scmp.eq.s32.totalorder %s14, 0
    %p35 = por %p33, %p34
    %p36 = scmp.ne.s32.totalorder %s22, %s23
    %p37 = scmp.eq.s32.totalorder %s15, 1
    %p38 = por %p36, %p37
    %p40 = scmp.ne.s32.totalorder %s23, %s39
    %p41 = scmp.eq.s32.totalorder %s15, 0
    %p42 = por %p40, %p41
    %s44 = sadd.s32 %s43, 1
    %p47 = scmp.eq.s32.totalorder %s9, 1
    %p48 = scmp.ne.s32.totalorder %s43, %s45
    %p49 = scmp.eq.s32.totalorder %s9, 0
    %p50 = por %p48, %p49
    %p51 = scmp.ne.s32.totalorder %s43, %s45
    %p52 = scmp.eq.s32.totalorder %s14, 1
    %p53 = por %p51, %p52
    %p54 = scmp.ne.s32.totalorder %s45, %s46
    %p55 = scmp.eq.s32.totalorder %s14, 0
    %p56 = por %p54, %p55
    %p57 = scmp.ne.s32.totalorder %s45, %s46
    %p58 = scmp.eq.s32.totalorder %s15, 1
    %p59 = por %p57, %p58
    %p61 = scmp.ne.s32.totalorder %s46, %s60
    %p62 = scmp.eq.s32.totalorder %s15, 0
    %p63 = por %p61, %p62
    %s65 = sadd.s32 %s64, 1
    %p68 = scmp.eq.s32.totalorder %s9, 1
    %p69 = scmp.ne.s32.totalorder %s64, %s66
    %p70 = scmp.eq.s32.totalorder %s9, 0
    %p71 = por %p69, %p70
    %p72 = scmp.ne.s32.totalorder %s64, %s66
    %p73 = scmp.eq.s32.totalorder %s14, 1
    %p74 = por %p72, %p73
    %p75 = scmp.ne.s32.totalorder %s66, %s67
    %p76 = scmp.eq.s32.totalorder %s14, 0
    %p77 = por %p75, %p76
    %p78 = scmp.ne.s32.totalorder %s66, %s67
    %p79 = scmp.eq.s32.totalorder %s15, 1
    %p80 = por %p78, %p79
    %p82 = scmp.ne.s32.totalorder %s67, %s81
    %p83 = scmp.eq.s32.totalorder %s15, 0
    %p84 = por %p82, %p83
    %s85 = ssub.s32 %s9, %s16
    %p86 = scmp.eq.s32.totalorder %s85, 0
    %s88 = sadd.s32 %s87, 1
    %s89 = scalar_select %p86, %s87, %s88
    %p92 = pneg %p86
    %p93 = scmp.eq.s32.totalorder %s9, 1
    %p94 = por %p92, %p93
    %p95 = scmp.ne.s32.totalorder %s87, %s90
    %p96 = scmp.eq.s32.totalorder %s9, 0
    %p97 = por %p95, %p96
    %p98 = scmp.ne.s32.totalorder %s87, %s90
    %p99 = scmp.eq.s32.totalorder %s14, 1
    %p100 = por %p98, %p99
    %p101 = scmp.ne.s32.totalorder %s90, %s91
    %p102 = scmp.eq.s32.totalorder %s14, 0
    %p103 = por %p101, %p102
    %p104 = scmp.ne.s32.totalorder %s90, %s91
    %p105 = scmp.eq.s32.totalorder %s15, 1
    %p106 = por %p104, %p105
    %p108 = scmp.ne.s32.totalorder %s91, %s107
    %p109 = scmp.eq.s32.totalorder %s15, 0
    %p110 = por %p108, %p109
    %p111 = scmp.le.s32.totalorder 1, %s9
    %p112 = scmp.lt.s32.totalorder %s9, 3
    %p113 = pnand %p111, %p112
    %p114 = pneg %p113
    // Predicated region
    $region9: #{a_call__.4} parent=5 // pred_check
      _
    $region10: #{a_call__.4} parent=5 // pred_check_branch
      %116 = sbr.rel (%p113) target = $region12
    $region11: #{a_call__.4} parent=5 // pred_region
      %s117 = ssub.s32 %s9, 1
      // Predicated region
      $region13: #{a_call__.4} parent=11 // pred_check
        %p118 = pneg %p56
      $region14: #{a_call__.4} parent=11 // pred_check_branch
        %120 = sbr.rel (%p118) target = $region16
      $region15: #{a_call__.4} parent=11 // pred_region
        _
      $region16: #{a_call__.4} parent=11 // pred_fallthru
        _
      // Predicated region
      $region17: #{a_call__.4} parent=11 // pred_check
        %p121 = pneg %p77
      $region18: #{a_call__.4} parent=11 // pred_check_branch
        %123 = sbr.rel (%p121) target = $region20
      $region19: #{a_call__.4} parent=11 // pred_region
        _
      $region20: #{a_call__.4} parent=11 // pred_fallthru
        _
    $region12: #{a_call__.4} parent=5 // pred_fallthru
      _
    %p124 = scmp.lt.s32.totalorder %s9, 2
    // Predicated region
    $region21: #{a_call__.4} parent=5 // pred_check
      %p125 = pneg %p124
    $region22: #{a_call__.4} parent=5 // pred_check_branch
      %127 = sbr.rel (%p125) target = $region24
    $region23: #{a_call__.4} parent=5 // pred_region
      // Predicated region
      $region25: #{a_call__.4} parent=23 // pred_check
        %p128 = pneg %p29
      $region26: #{a_call__.4} parent=23 // pred_check_branch
        %130 = sbr.rel (%p128) target = $region28
      $region27: #{a_call__.4} parent=23 // pred_region
        %p131 = scmp.lt.s32.totalorder %s9, 1
        %s132 = scalar_select %p131, %s9, 1
        %s133 = smul.addr %s132, 156
        %s134 = smul.addr %s133, 4
        %s135 = scalar_lea.vmem %s0, %s134
      $region28: #{a_call__.4} parent=23 // pred_fallthru
        _
    $region24: #{a_call__.4} parent=5 // pred_fallthru
      _
    %p136 = scmp.le.s32.totalorder 1, %s9
    %p137 = scmp.lt.s32.totalorder %s9, 3
    %p138 = pnand %p136, %p137
    %p139 = pneg %p138
    // Predicated region
    $region29: #{a_call__.4} parent=5 // pred_check
      _
    $region30: #{a_call__.4} parent=5 // pred_check_branch
      %141 = sbr.rel (%p138) target = $region32
    $region31: #{a_call__.4} parent=5 // pred_region
      %s142 = ssub.s32 %s9, 1
      %p143 = scmp.lt.s32.totalorder %s14, 1
      %s144 = scalar_select %p143, %s14, 1
      %s145 = smul.addr %s144, 156
      %s146 = smul.addr %s145, 4
      %s147 = scalar_lea.vmem %s0, %s146
      %p148 = pneg %p35
      %p149 = pneg %p32
      %p150 = pneg %p56
      %p151 = pneg %p53
      %p152 = pneg %p77
      %p153 = pneg %p74
      %p154 = pneg %p103
      %p155 = pneg %p100
      %p156 = scmp.lt.s32.totalorder %s14, 1
      %s157 = scalar_select %p156, %s14, 1
      %s158 = smul.addr %s157, 34
      %s159 = smul.addr %s158, 8
      %s160 = scalar_lea.vmem %s3, %s159
      %p161 = scmp.lt.s32.totalorder %s14, 1
      %s162 = scalar_select %p161, %s14, 1
      %s163 = smul.addr %s162, 156
      %s164 = smul.addr %s163, 4
      %s165 = scalar_lea.vmem %s0, %s164
      %p166 = scmp.lt.s32.totalorder %s14, 1
      %s167 = scalar_select %p166, %s14, 1
      %s168 = smul.addr %s167, 34
      %s169 = smul.addr %s168, 8
      %s170 = scalar_lea.vmem %s3, %s169
      %v172 = vld [vmem:[%s165] sm:$0xf]
      %v173 = vld [vmem:[%s165 + $0x4] sm:$0xf]
      %v174 = vld [vmem:[%s165 + $0x8] sm:$0xf]
      %v175 = vld [vmem:[%s165 + $0xc] sm:$0xf]
      %v176 = vld [vmem:[%s165 + $0x10] sm:$0xf]
      %v177 = vld [vmem:[%s165 + $0x14] sm:$0xf]
      %v178 = vld [vmem:[%s165 + $0x18] sm:$0xf]
      %v179 = vld [vmem:[%s165 + $0x1c] sm:$0xf]
      %v180 = vld [vmem:[%s165 + $0x20] sm:$0xf]
      %v181 = vld [vmem:[%s165 + $0x24] sm:$0xf]
      %v182 = vld [vmem:[%s165 + $0x28] sm:$0xf]
      %v183 = vld [vmem:[%s165 + $0x2c] sm:$0xf]
      %v184 = vld [vmem:[%s165 + $0x30] sm:$0xf]
      %v185 = vld [vmem:[%s165 + $0x34] sm:$0xf]
      %v186 = vld [vmem:[%s165 + $0x38] sm:$0xf]
      %v187 = vld [vmem:[%s165 + $0x3c] sm:$0xf]
      %v188 = vld [vmem:[%s165 + $0x40] sm:$0xf]
      %v189 = vld [vmem:[%s165 + $0x44] sm:$0xf]
      %v190 = vld [vmem:[%s165 + $0x48] sm:$0xf]
      %v191 = vld [vmem:[%s165 + $0x4c] sm:$0xf]
      %v192 = vld [vmem:[%s165 + $0x50] sm:$0xf]
      %v193 = vld [vmem:[%s165 + $0x54] sm:$0xf]
      %v194 = vld [vmem:[%s165 + $0x58] sm:$0xf]
      %v195 = vld [vmem:[%s165 + $0x5c] sm:$0xf]
      %v196 = vld [vmem:[%s165 + $0x60] sm:$0xf]
      %v197 = vld [vmem:[%s165 + $0x64] sm:$0xf]
      %v198 = vld [vmem:[%s165 + $0x68] sm:$0xf]
      %v199 = vld [vmem:[%s165 + $0x6c] sm:$0xf]
      %v200 = vld [vmem:[%s165 + $0x70] sm:$0xf]
      %v201 = vld [vmem:[%s165 + $0x74] sm:$0xf]
      %v202 = vld [vmem:[%s165 + $0x78] sm:$0xf]
      %v203 = vld [vmem:[%s165 + $0x7c] sm:$0xf]
      %v204 = vld [vmem:[%s165 + $0x80] sm:$0xf]
      %v205 = vld [vmem:[%s165 + $0x84] sm:$0xf]
      %v206 = vld [vmem:[%s1] sm:$0x3]
      %s207 = scalar_lea.vmem %s165, 156
      %v208 = vld [vmem:[%s207] sm:$0xf]
      %v209 = vld [vmem:[%s207 + $0x4] sm:$0xf]
      %v210 = vld [vmem:[%s207 + $0x8] sm:$0xf]
      %v211 = vld [vmem:[%s207 + $0xc] sm:$0xf]
      %v212 = vld [vmem:[%s207 + $0x10] sm:$0xf]
      %v213 = vld [vmem:[%s207 + $0x14] sm:$0xf]
      %v214 = vld [vmem:[%s207 + $0x18] sm:$0xf]
      %v215 = vld [vmem:[%s207 + $0x1c] sm:$0xf]
      %v216 = vld [vmem:[%s207 + $0x20] sm:$0xf]
      %v217 = vld [vmem:[%s207 + $0x24] sm:$0xf]
      %v218 = vld [vmem:[%s207 + $0x28] sm:$0xf]
      %v219 = vld [vmem:[%s207 + $0x2c] sm:$0xf]
      %v220 = vld [vmem:[%s207 + $0x30] sm:$0xf]
      %v221 = vld [vmem:[%s207 + $0x34] sm:$0xf]
      %v222 = vld [vmem:[%s207 + $0x38] sm:$0xf]
      %v223 = vld [vmem:[%s207 + $0x3c] sm:$0xf]
      %v224 = vld [vmem:[%s207 + $0x40] sm:$0xf]
      %v225 = vld [vmem:[%s207 + $0x44] sm:$0xf]
      %v226 = vld [vmem:[%s207 + $0x48] sm:$0xf]
      %v227 = vld [vmem:[%s207 + $0x4c] sm:$0xf]
      %v228 = vld [vmem:[%s207 + $0x50] sm:$0xf]
      %v229 = vld [vmem:[%s207 + $0x54] sm:$0xf]
      %v230 = vld [vmem:[%s207 + $0x58] sm:$0xf]
      %v231 = vld [vmem:[%s207 + $0x5c] sm:$0xf]
      %v232 = vld [vmem:[%s207 + $0x60] sm:$0xf]
      %v233 = vld [vmem:[%s207 + $0x64] sm:$0xf]
      %v234 = vld [vmem:[%s207 + $0x68] sm:$0xf]
      %v235 = vld [vmem:[%s207 + $0x6c] sm:$0xf]
      %v236 = vld [vmem:[%s207 + $0x70] sm:$0xf]
      %v237 = vld [vmem:[%s207 + $0x74] sm:$0xf]
      %v238 = vld [vmem:[%s207 + $0x78] sm:$0xf]
      %v239 = vld [vmem:[%s207 + $0x7c] sm:$0xf]
      %v240 = vld [vmem:[%s207 + $0x80] sm:$0xf]
      %v241 = vld [vmem:[%s207 + $0x84] sm:$0xf]
      %s242 = scalar_lea.vmem %s1, 2
      %v243 = vld [vmem:[%s242] sm:$0x3]
      %v278 = vunpack.c.l.b16 %v208
      %v279 = vunpack.c.l.b16 %v209
      %v280 = vunpack.c.l.b16 %v210
      %v281 = vunpack.c.l.b16 %v211
      %v282 = vunpack.c.l.b16 %v212
      %v283 = vunpack.c.l.b16 %v213
      %v284 = vunpack.c.l.b16 %v214
      %v285 = vunpack.c.l.b16 %v215
      %v286 = vunpack.c.l.b16 %v216
      %v287 = vunpack.c.l.b16 %v217
      %v288 = vunpack.c.l.b16 %v218
      %v289 = vunpack.c.l.b16 %v219
      %v290 = vunpack.c.l.b16 %v220
      %v291 = vunpack.c.l.b16 %v221
      %v292 = vunpack.c.l.b16 %v222
      %v293 = vunpack.c.l.b16 %v223
      %v294 = vunpack.c.l.b16 %v224
      %v295 = vunpack.c.l.b16 %v225
      %v296 = vunpack.c.l.b16 %v226
      %v297 = vunpack.c.l.b16 %v227
      %v298 = vunpack.c.l.b16 %v228
      %v299 = vunpack.c.l.b16 %v229
      %v300 = vunpack.c.l.b16 %v230
      %v301 = vunpack.c.l.b16 %v231
      %v302 = vunpack.c.l.b16 %v232
      %v303 = vunpack.c.l.b16 %v233
      %v304 = vunpack.c.l.b16 %v234
      %v305 = vunpack.c.l.b16 %v235
      %v306 = vunpack.c.l.b16 %v236
      %v307 = vunpack.c.l.b16 %v237
      %v308 = vunpack.c.l.b16 %v238
      %v309 = vunpack.c.l.b16 %v239
      %v310 = vunpack.c.l.b16 %v240
      %v311 = vunpack.c.l.b16 %v241
      %v312 = vpack.c.b16 %v279, %v278
      %v313 = vpack.c.b16 %v281, %v280
      %v314 = vpack.c.b16 %v283, %v282
      %v315 = vpack.c.b16 %v285, %v284
      %v316 = vpack.c.b16 %v287, %v286
      %v317 = vpack.c.b16 %v289, %v288
      %v318 = vpack.c.b16 %v291, %v290
      %v319 = vpack.c.b16 %v293, %v292
      %v320 = vpack.c.b16 %v295, %v294
      %v321 = vpack.c.b16 %v297, %v296
      %v322 = vpack.c.b16 %v299, %v298
      %v323 = vpack.c.b16 %v301, %v300
      %v324 = vpack.c.b16 %v303, %v302
      %v325 = vpack.c.b16 %v305, %v304
      %v326 = vpack.c.b16 %v307, %v306
      %v327 = vpack.c.b16 %v309, %v308
      %v328 = vpack.c.b16 %v311, %v310
      %vm329 = vcmask 31744
      %v331 = vsel %vm329, %v312, 0
      %v334 = vsel %vm329, %v313, 0
      %v337 = vsel %vm329, %v314, 0
      %v340 = vsel %vm329, %v315, 0
      %v343 = vsel %vm329, %v316, 0
      %v346 = vsel %vm329, %v317, 0
      %v349 = vsel %vm329, %v318, 0
      %v352 = vsel %vm329, %v319, 0
      %v355 = vsel %vm329, %v320, 0
      %v358 = vsel %vm329, %v321, 0
      %v361 = vsel %vm329, %v322, 0
      %v364 = vsel %vm329, %v323, 0
      %v367 = vsel %vm329, %v324, 0
      %v370 = vsel %vm329, %v325, 0
      %v373 = vsel %vm329, %v326, 0
      %v376 = vsel %vm329, %v327, 0
      %v379 = vsel %vm329, %v328, 0
      %vm381 = vcmask 1041408
      %v383 = vsel %vm381, %v243, 0
      %385 = vmatprep.subr.bf16.mxu0 0
      %386 = vmatpush1.bf16.msra.mxu0 %v383
      %387 = vmatprep.subr.bf16.mxu0 0
      %388 = vmatpush1.bf16.msra.mxu0 0
      %389 = vmatprep.subr.bf16.mxu0 0
      %390 = vmatpush1.bf16.msra.mxu0 0
      %391 = vmatprep.subr.bf16.mxu0 0
      %392 = vmatpush1.bf16.msra.mxu0 0
      %393 = vmatprep.subr.bf16.mxu0 0
      %394 = vmatpush1.bf16.msra.mxu0 0
      %395 = vmatprep.subr.bf16.mxu0 0
      %396 = vmatpush1.bf16.msra.mxu0 0
      %397 = vmatprep.subr.bf16.mxu0 0
      %398 = vmatpush1.bf16.msra.mxu0 0
      %399 = vmatprep.subr.bf16.mxu0 0
      %400 = vmatpush1.bf16.msra.mxu0 0
      %401 = vmatprep.subr.bf16.mxu0 0
      %402 = vmatpush1.bf16.msra.mxu0 0
      %403 = vmatprep.subr.bf16.mxu0 0
      %404 = vmatpush1.bf16.msra.mxu0 0
      %405 = vmatprep.subr.bf16.mxu0 0
      %406 = vmatpush1.bf16.msra.mxu0 0
      %407 = vmatprep.subr.bf16.mxu0 0
      %408 = vmatpush1.bf16.msra.mxu0 0
      %409 = vmatprep.subr.bf16.mxu0 0
      %410 = vmatpush1.bf16.msra.mxu0 0
      %411 = vmatprep.subr.bf16.mxu0 0
      %412 = vmatpush1.bf16.msra.mxu0 0
      %413 = vmatprep.subr.bf16.mxu0 0
      %414 = vmatpush1.bf16.msra.mxu0 0
      %415 = vmatprep.subr.bf16.mxu0 0
      %416 = vmatpush1.bf16.msra.mxu0 0
      %417 = vmatprep.mubr.bf16.mxu0 0
      %418 = vmatmul.mubr.bf16.gmra.mrb[0].mxu0 %v331
      %v419 = vpop.f32.mrb[0].mxu0
      %v420 = vadd.f32 0.0, %v419
      %v421 = vpop.f32.mrb[0].mxu0
      %v422 = vpop.f32.mrb[0].mxu0
      %v423 = vadd.f32 0.0, %v422
      %v424 = vpop.f32.mrb[0].mxu0
      %425 = vmatprep.mubr.bf16.mxu0 0
      %426 = vmatmul.mubr.bf16.gmra.mrb[0].mxu0 %v334
      %v427 = vpop.f32.mrb[0].mxu0
      %v428 = vadd.f32 0.0, %v427
      %v429 = vpop.f32.mrb[0].mxu0
      %v430 = vpop.f32.mrb[0].mxu0
      %v431 = vadd.f32 0.0, %v430
      %v432 = vpop.f32.mrb[0].mxu0
      %433 = vmatprep.mubr.bf16.mxu0 0
      %434 = vmatmul.mubr.bf16.gmra.mrb[0].mxu0 %v337
      %v435 = vpop.f32.mrb[0].mxu0
      %v436 = vadd.f32 0.0, %v435
      %v437 = vpop.f32.mrb[0].mxu0
      %v438 = vpop.f32.mrb[0].mxu0
      %v439 = vadd.f32 0.0, %v438
      %v440 = vpop.f32.mrb[0].mxu0
      %441 = vmatprep.mubr.bf16.mxu0 0
      %442 = vmatmul.mubr.bf16.gmra.mrb[0].mxu0 %v340
      %v443 = vpop.f32.mrb[0].mxu0
      %v444 = vadd.f32 0.0, %v443
      %v445 = vpop.f32.mrb[0].mxu0
      %v446 = vpop.f32.mrb[0].mxu0
      %v447 = vadd.f32 0.0, %v446
      %v448 = vpop.f32.mrb[0].mxu0
      %449 = vmatprep.mubr.bf16.mxu0 0
      %450 = vmatmul.mubr.bf16.gmra.mrb[0].mxu0 %v343
      %v451 = vpop.f32.mrb[0].mxu0
      %v452 = vadd.f32 0.0, %v451
      %v453 = vpop.f32.mrb[0].mxu0
      %v454 = vpop.f32.mrb[0].mxu0
      %v455 = vadd.f32 0.0, %v454
      %v456 = vpop.f32.mrb[0].mxu0
      %457 = vmatprep.mubr.bf16.mxu0 0
      %458 = vmatmul.mubr.bf16.gmra.mrb[0].mxu0 %v346
      %v459 = vpop.f32.mrb[0].mxu0
      %v460 = vadd.f32 0.0, %v459
      %v461 = vpop.f32.mrb[0].mxu0
      %v462 = vpop.f32.mrb[0].mxu0
      %v463 = vadd.f32 0.0, %v462
      %v464 = vpop.f32.mrb[0].mxu0
      %465 = vmatprep.mubr.bf16.mxu0 0
      %466 = vmatmul.mubr.bf16.gmra.mrb[0].mxu0 %v349
      %v467 = vpop.f32.mrb[0].mxu0
      %v468 = vadd.f32 0.0, %v467
      %v469 = vpop.f32.mrb[0].mxu0
      %v470 = vpop.f32.mrb[0].mxu0
      %v471 = vadd.f32 0.0, %v470
      %v472 = vpop.f32.mrb[0].mxu0
      %473 = vmatprep.mubr.bf16.mxu0 0
      %474 = vmatmul.mubr.bf16.gmra.mrb[0].mxu0 %v352
      %v475 = vpop.f32.mrb[0].mxu0
      %v476 = vadd.f32 0.0, %v475
      %v477 = vpop.f32.mrb[0].mxu0
      %v478 = vpop.f32.mrb[0].mxu0
      %v479 = vadd.f32 0.0, %v478
      %v480 = vpop.f32.mrb[0].mxu0
      %481 = vmatprep.mubr.bf16.mxu0 0
      %482 = vmatmul.mubr.bf16.gmra.mrb[0].mxu0 %v355
      %v483 = vpop.f32.mrb[0].mxu0
      %v484 = vadd.f32 0.0, %v483
      %v485 = vpop.f32.mrb[0].mxu0
      %v486 = vpop.f32.mrb[0].mxu0
      %v487 = vadd.f32 0.0, %v486
      %v488 = vpop.f32.mrb[0].mxu0
      %489 = vmatprep.mubr.bf16.mxu0 0
      %490 = vmatmul.mubr.bf16.gmra.mrb[0].mxu0 %v358
      %v491 = vpop.f32.mrb[0].mxu0
      %v492 = vadd.f32 0.0, %v491
      %v493 = vpop.f32.mrb[0].mxu0
      %v494 = vpop.f32.mrb[0].mxu0
      %v495 = vadd.f32 0.0, %v494
      %v496 = vpop.f32.mrb[0].mxu0
      %497 = vmatprep.mubr.bf16.mxu0 0
      %498 = vmatmul.mubr.bf16.gmra.mrb[0].mxu0 %v361
      %v499 = vpop.f32.mrb[0].mxu0
      %v500 = vadd.f32 0.0, %v499
      %v501 = vpop.f32.mrb[0].mxu0
      %v502 = vpop.f32.mrb[0].mxu0
      %v503 = vadd.f32 0.0, %v502
      %v504 = vpop.f32.mrb[0].mxu0
      %505 = vmatprep.mubr.bf16.mxu0 0
      %506 = vmatmul.mubr.bf16.gmra.mrb[0].mxu0 %v364
      %v507 = vpop.f32.mrb[0].mxu0
      %v508 = vadd.f32 0.0, %v507
      %v509 = vpop.f32.mrb[0].mxu0
      %v510 = vpop.f32.mrb[0].mxu0
      %v511 = vadd.f32 0.0, %v510
      %v512 = vpop.f32.mrb[0].mxu0
      %513 = vmatprep.mubr.bf16.mxu0 0
      %514 = vmatmul.mubr.bf16.gmra.mrb[0].mxu0 %v367
      %v515 = vpop.f32.mrb[0].mxu0
      %v516 = vadd.f32 0.0, %v515
      %v517 = vpop.f32.mrb[0].mxu0
      %v518 = vpop.f32.mrb[0].mxu0
      %v519 = vadd.f32 0.0, %v518
      %v520 = vpop.f32.mrb[0].mxu0
      %521 = vmatprep.mubr.bf16.mxu0 0
      %522 = vmatmul.mubr.bf16.gmra.mrb[0].mxu0 %v370
      %v523 = vpop.f32.mrb[0].mxu0
      %v524 = vadd.f32 0.0, %v523
      %v525 = vpop.f32.mrb[0].mxu0
      %v526 = vpop.f32.mrb[0].mxu0
      %v527 = vadd.f32 0.0, %v526
      %v528 = vpop.f32.mrb[0].mxu0
      %529 = vmatprep.mubr.bf16.mxu0 0
      %530 = vmatmul.mubr.bf16.gmra.mrb[0].mxu0 %v373
      %v531 = vpop.f32.mrb[0].mxu0
      %v532 = vadd.f32 0.0, %v531
      %v533 = vpop.f32.mrb[0].mxu0
      %v534 = vpop.f32.mrb[0].mxu0
      %v535 = vadd.f32 0.0, %v534
      %v536 = vpop.f32.mrb[0].mxu0
      %537 = vmatprep.mubr.bf16.mxu0 0
      %538 = vmatmul.mubr.bf16.gmra.mrb[0].mxu0 %v376
      %v539 = vpop.f32.mrb[0].mxu0
      %v540 = vadd.f32 0.0, %v539
      %v541 = vpop.f32.mrb[0].mxu0
      %v542 = vpop.f32.mrb[0].mxu0
      %v543 = vadd.f32 0.0, %v542
      %v544 = vpop.f32.mrb[0].mxu0
      %545 = vmatprep.mubr.bf16.mxu0 0
      %546 = vmatmul.mubr.bf16.gmra.mrb[0].mxu0 %v379
      %v547 = vpop.f32.mrb[0].mxu0
      %v548 = vadd.f32 0.0, %v547
      %v549 = vpop.f32.mrb[0].mxu0
      %v550 = vpop.f32.mrb[0].mxu0
      %v551 = vadd.f32 0.0, %v550
      %v552 = vpop.f32.mrb[0].mxu0
      %553 = vdwg.mxu0
      %v588 = vunpack.c.l.b16 %v172
      %v589 = vunpack.c.l.b16 %v173
      %v590 = vunpack.c.l.b16 %v174
      %v591 = vunpack.c.l.b16 %v175
      %v592 = vunpack.c.l.b16 %v176
      %v593 = vunpack.c.l.b16 %v177
      %v594 = vunpack.c.l.b16 %v178
      %v595 = vunpack.c.l.b16 %v179
      %v596 = vunpack.c.l.b16 %v180
      %v597 = vunpack.c.l.b16 %v181
      %v598 = vunpack.c.l.b16 %v182
      %v599 = vunpack.c.l.b16 %v183
      %v600 = vunpack.c.l.b16 %v184
      %v601 = vunpack.c.l.b16 %v185
      %v602 = vunpack.c.l.b16 %v186
      %v603 = vunpack.c.l.b16 %v187
      %v604 = vunpack.c.l.b16 %v188
      %v605 = vunpack.c.l.b16 %v189
      %v606 = vunpack.c.l.b16 %v190
      %v607 = vunpack.c.l.b16 %v191
      %v608 = vunpack.c.l.b16 %v192
      %v609 = vunpack.c.l.b16 %v193
      %v610 = vunpack.c.l.b16 %v194
      %v611 = vunpack.c.l.b16 %v195
      %v612 = vunpack.c.l.b16 %v196
      %v613 = vunpack.c.l.b16 %v197
      %v614 = vunpack.c.l.b16 %v198
      %v615 = vunpack.c.l.b16 %v199
      %v616 = vunpack.c.l.b16 %v200
      %v617 = vunpack.c.l.b16 %v201
      %v618 = vunpack.c.l.b16 %v202
      %v619 = vunpack.c.l.b16 %v203
      %v620 = vunpack.c.l.b16 %v204
      %v621 = vunpack.c.l.b16 %v205
      %v622 = vpack.c.b16 %v589, %v588
      %v623 = vpack.c.b16 %v591, %v590
      %v624 = vpack.c.b16 %v593, %v592
      %v625 = vpack.c.b16 %v595, %v594
      %v626 = vpack.c.b16 %v597, %v596
      %v627 = vpack.c.b16 %v599, %v598
      %v628 = vpack.c.b16 %v601, %v600
      %v629 = vpack.c.b16 %v603, %v602
      %v630 = vpack.c.b16 %v605, %v604
      %v631 = vpack.c.b16 %v607, %v606
      %v632 = vpack.c.b16 %v609, %v608
      %v633 = vpack.c.b16 %v611, %v610
      %v634 = vpack.c.b16 %v613, %v612
      %v635 = vpack.c.b16 %v615, %v614
      %v636 = vpack.c.b16 %v617, %v616
      %v637 = vpack.c.b16 %v619, %v618
      %v638 = vpack.c.b16 %v621, %v620
      %v640 = vsel %vm329, %v622, 0
      %v643 = vsel %vm329, %v623, 0
      %v646 = vsel %vm329, %v624, 0
      %v649 = vsel %vm329, %v625, 0
      %v652 = vsel %vm329, %v626, 0
      %v655 = vsel %vm329, %v627, 0
      %v658 = vsel %vm329, %v628, 0
      %v661 = vsel %vm329, %v629, 0
      %v664 = vsel %vm329, %v630, 0
      %v667 = vsel %vm329, %v631, 0
      %v670 = vsel %vm329, %v632, 0
      %v673 = vsel %vm329, %v633, 0
      %v676 = vsel %vm329, %v634, 0
      %v679 = vsel %vm329, %v635, 0
      %v682 = vsel %vm329, %v636, 0
      %v685 = vsel %vm329, %v637, 0
      %v688 = vsel %vm329, %v638, 0
      %v691 = vsel %vm381, %v206, 0
      %693 = vmatprep.subr.bf16.mxu0 0
      %694 = vmatpush1.bf16.msra.mxu0 %v691
      %695 = vmatprep.subr.bf16.mxu0 0
      %696 = vmatpush1.bf16.msra.mxu0 0
      %697 = vmatprep.subr.bf16.mxu0 0
      %698 = vmatpush1.bf16.msra.mxu0 0
      %699 = vmatprep.subr.bf16.mxu0 0
      %700 = vmatpush1.bf16.msra.mxu0 0
      %701 = vmatprep.subr.bf16.mxu0 0
      %702 = vmatpush1.bf16.msra.mxu0 0
      %703 = vmatprep.subr.bf16.mxu0 0
      %704 = vmatpush1.bf16.msra.mxu0 0
      %705 = vmatprep.subr.bf16.mxu0 0
      %706 = vmatpush1.bf16.msra.mxu0 0
      %707 = vmatprep.subr.bf16.mxu0 0
      %708 = vmatpush1.bf16.msra.mxu0 0
      %709 = vmatprep.subr.bf16.mxu0 0
      %710 = vmatpush1.bf16.msra.mxu0 0
      %711 = vmatprep.subr.bf16.mxu0 0
      %712 = vmatpush1.bf16.msra.mxu0 0
      %713 = vmatprep.subr.bf16.mxu0 0
      %714 = vmatpush1.bf16.msra.mxu0 0
      %715 = vmatprep.subr.bf16.mxu0 0
      %716 = vmatpush1.bf16.msra.mxu0 0
      %717 = vmatprep.subr.bf16.mxu0 0
      %718 = vmatpush1.bf16.msra.mxu0 0
      %719 = vmatprep.subr.bf16.mxu0 0
      %720 = vmatpush1.bf16.msra.mxu0 0
      %721 = vmatprep.subr.bf16.mxu0 0
      %722 = vmatpush1.bf16.msra.mxu0 0
      %723 = vmatprep.subr.bf16.mxu0 0
      %724 = vmatpush1.bf16.msra.mxu0 0
      %725 = vmatprep.mubr.bf16.mxu0 0
      %726 = vmatmul.mubr.bf16.gmra.mrb[0].mxu0 %v640
      %v727 = vpop.f32.mrb[0].mxu0
      %v728 = vadd.f32 %v420, %v727
      %v729 = vpop.f32.mrb[0].mxu0
      %v730 = vpop.f32.mrb[0].mxu0
      %v731 = vadd.f32 %v423, %v730
      %v732 = vpop.f32.mrb[0].mxu0
      %733 = vmatprep.mubr.bf16.mxu0 0
      %734 = vmatmul.mubr.bf16.gmra.mrb[0].mxu0 %v643
      %v735 = vpop.f32.mrb[0].mxu0
      %v736 = vadd.f32 %v428, %v735
      %v737 = vpop.f32.mrb[0].mxu0
      %v738 = vpop.f32.mrb[0].mxu0
      %v739 = vadd.f32 %v431, %v738
      %v740 = vpop.f32.mrb[0].mxu0
      %741 = vmatprep.mubr.bf16.mxu0 0
      %742 = vmatmul.mubr.bf16.gmra.mrb[0].mxu0 %v646
      %v743 = vpop.f32.mrb[0].mxu0
      %v744 = vadd.f32 %v436, %v743
      %v745 = vpop.f32.mrb[0].mxu0
      %v746 = vpop.f32.mrb[0].mxu0
      %v747 = vadd.f32 %v439, %v746
      %v748 = vpop.f32.mrb[0].mxu0
      %749 = vmatprep.mubr.bf16.mxu0 0
      %750 = vmatmul.mubr.bf16.gmra.mrb[0].mxu0 %v649
      %v751 = vpop.f32.mrb[0].mxu0
      %v752 = vadd.f32 %v444, %v751
      %v753 = vpop.f32.mrb[0].mxu0
      %v754 = vpop.f32.mrb[0].mxu0
      %v755 = vadd.f32 %v447, %v754
      %v756 = vpop.f32.mrb[0].mxu0
      %757 = vmatprep.mubr.bf16.mxu0 0
      %758 = vmatmul.mubr.bf16.gmra.mrb[0].mxu0 %v652
      %v759 = vpop.f32.mrb[0].mxu0
      %v760 = vadd.f32 %v452, %v759
      %v761 = vpop.f32.mrb[0].mxu0
      %v762 = vpop.f32.mrb[0].mxu0
      %v763 = vadd.f32 %v455, %v762
      %v764 = vpop.f32.mrb[0].mxu0
      %765 = vmatprep.mubr.bf16.mxu0 0
      %766 = vmatmul.mubr.bf16.gmra.mrb[0].mxu0 %v655
      %v767 = vpop.f32.mrb[0].mxu0
      %v768 = vadd.f32 %v460, %v767
      %v769 = vpop.f32.mrb[0].mxu0
      %v770 = vpop.f32.mrb[0].mxu0
      %v771 = vadd.f32 %v463, %v770
      %v772 = vpop.f32.mrb[0].mxu0
      %773 = vmatprep.mubr.bf16.mxu0 0
      %774 = vmatmul.mubr.bf16.gmra.mrb[0].mxu0 %v658
      %v775 = vpop.f32.mrb[0].mxu0
      %v776 = vadd.f32 %v468, %v775
      %v777 = vpop.f32.mrb[0].mxu0
      %v778 = vpop.f32.mrb[0].mxu0
      %v779 = vadd.f32 %v471, %v778
      %v780 = vpop.f32.mrb[0].mxu0
      %781 = vmatprep.mubr.bf16.mxu0 0
      %782 = vmatmul.mubr.bf16.gmra.mrb[0].mxu0 %v661
      %v783 = vpop.f32.mrb[0].mxu0
      %v784 = vadd.f32 %v476, %v783
      %v785 = vpop.f32.mrb[0].mxu0
      %v786 = vpop.f32.mrb[0].mxu0
      %v787 = vadd.f32 %v479, %v786
      %v788 = vpop.f32.mrb[0].mxu0
      %789 = vmatprep.mubr.bf16.mxu0 0
      %790 = vmatmul.mubr.bf16.gmra.mrb[0].mxu0 %v664
      %v791 = vpop.f32.mrb[0].mxu0
      %v792 = vadd.f32 %v484, %v791
      %v793 = vpop.f32.mrb[0].mxu0
      %v794 = vpop.f32.mrb[0].mxu0
      %v795 = vadd.f32 %v487, %v794
      %v796 = vpop.f32.mrb[0].mxu0
      %797 = vmatprep.mubr.bf16.mxu0 0
      %798 = vmatmul.mubr.bf16.gmra.mrb[0].mxu0 %v667
      %v799 = vpop.f32.mrb[0].mxu0
      %v800 = vadd.f32 %v492, %v799
      %v801 = vpop.f32.mrb[0].mxu0
      %v802 = vpop.f32.mrb[0].mxu0
      %v803 = vadd.f32 %v495, %v802
      %v804 = vpop.f32.mrb[0].mxu0
      %805 = vmatprep.mubr.bf16.mxu0 0
      %806 = vmatmul.mubr.bf16.gmra.mrb[0].mxu0 %v670
      %v807 = vpop.f32.mrb[0].mxu0
      %v808 = vadd.f32 %v500, %v807
      %v809 = vpop.f32.mrb[0].mxu0
      %v810 = vpop.f32.mrb[0].mxu0
      %v811 = vadd.f32 %v503, %v810
      %v812 = vpop.f32.mrb[0].mxu0
      %813 = vmatprep.mubr.bf16.mxu0 0
      %814 = vmatmul.mubr.bf16.gmra.mrb[0].mxu0 %v673
      %v815 = vpop.f32.mrb[0].mxu0
      %v816 = vadd.f32 %v508, %v815
      %v817 = vpop.f32.mrb[0].mxu0
      %v818 = vpop.f32.mrb[0].mxu0
      %v819 = vadd.f32 %v511, %v818
      %v820 = vpop.f32.mrb[0].mxu0
      %821 = vmatprep.mubr.bf16.mxu0 0
      %822 = vmatmul.mubr.bf16.gmra.mrb[0].mxu0 %v676
      %v823 = vpop.f32.mrb[0].mxu0
      %v824 = vadd.f32 %v516, %v823
      %v825 = vpop.f32.mrb[0].mxu0
      %v826 = vpop.f32.mrb[0].mxu0
      %v827 = vadd.f32 %v519, %v826
      %v828 = vpop.f32.mrb[0].mxu0
      %829 = vmatprep.mubr.bf16.mxu0 0
      %830 = vmatmul.mubr.bf16.gmra.mrb[0].mxu0 %v679
      %v831 = vpop.f32.mrb[0].mxu0
      %v832 = vadd.f32 %v524, %v831
      %v833 = vpop.f32.mrb[0].mxu0
      %v834 = vpop.f32.mrb[0].mxu0
      %v835 = vadd.f32 %v527, %v834
      %v836 = vpop.f32.mrb[0].mxu0
      %837 = vmatprep.mubr.bf16.mxu0 0
      %838 = vmatmul.mubr.bf16.gmra.mrb[0].mxu0 %v682
      %v839 = vpop.f32.mrb[0].mxu0
      %v840 = vadd.f32 %v532, %v839
      %v841 = vpop.f32.mrb[0].mxu0
      %v842 = vpop.f32.mrb[0].mxu0
      %v843 = vadd.f32 %v535, %v842
      %v844 = vpop.f32.mrb[0].mxu0
      %845 = vmatprep.mubr.bf16.mxu0 0
      %846 = vmatmul.mubr.bf16.gmra.mrb[0].mxu0 %v685
      %v847 = vpop.f32.mrb[0].mxu0
      %v848 = vadd.f32 %v540, %v847
      %v849 = vpop.f32.mrb[0].mxu0
      %v850 = vpop.f32.mrb[0].mxu0
      %v851 = vadd.f32 %v543, %v850
      %v852 = vpop.f32.mrb[0].mxu0
      %853 = vmatprep.mubr.bf16.mxu0 0
      %854 = vmatmul.mubr.bf16.gmra.mrb[0].mxu0 %v688
      %v855 = vpop.f32.mrb[0].mxu0
      %v856 = vadd.f32 %v548, %v855
      %v857 = vpop.f32.mrb[0].mxu0
      %v858 = vpop.f32.mrb[0].mxu0
      %v859 = vadd.f32 %v551, %v858
      %v860 = vpop.f32.mrb[0].mxu0
      %861 = vdwg.mxu0
      %v862 = vld [vmem:[%s165] sm:$0xf]
      %v863 = vld [vmem:[%s165 + $0x4] sm:$0xf]
      %v864 = vld [vmem:[%s165 + $0x8] sm:$0xf]
      %v865 = vld [vmem:[%s165 + $0xc] sm:$0xf]
      %v866 = vld [vmem:[%s165 + $0x10] sm:$0xf]
      %v867 = vld [vmem:[%s165 + $0x14] sm:$0xf]
      %v868 = vld [vmem:[%s165 + $0x18] sm:$0xf]
      %v869 = vld [vmem:[%s165 + $0x1c] sm:$0xf]
      %v870 = vld [vmem:[%s165 + $0x20] sm:$0xf]
      %v871 = vld [vmem:[%s165 + $0x24] sm:$0xf]
      %v872 = vld [vmem:[%s165 + $0x28] sm:$0xf]
      %v873 = vld [vmem:[%s165 + $0x2c] sm:$0xf]
      %v874 = vld [vmem:[%s165 + $0x30] sm:$0xf]
      %v875 = vld [vmem:[%s165 + $0x34] sm:$0xf]
      %v876 = vld [vmem:[%s165 + $0x38] sm:$0xf]
      %v877 = vld [vmem:[%s165 + $0x3c] sm:$0xf]
      %v878 = vld [vmem:[%s165 + $0x40] sm:$0xf]
      %v879 = vld [vmem:[%s165 + $0x44] sm:$0xf]
      %v880 = vld [vmem:[%s165 + $0x48] sm:$0xf]
      %v881 = vld [vmem:[%s165 + $0x4c] sm:$0xf]
      %v882 = vld [vmem:[%s165 + $0x50] sm:$0xf]
      %v883 = vld [vmem:[%s165 + $0x54] sm:$0xf]
      %v884 = vld [vmem:[%s165 + $0x58] sm:$0xf]
      %v885 = vld [vmem:[%s165 + $0x5c] sm:$0xf]
      %v886 = vld [vmem:[%s165 + $0x60] sm:$0xf]
      %v887 = vld [vmem:[%s165 + $0x64] sm:$0xf]
      %v888 = vld [vmem:[%s165 + $0x68] sm:$0xf]
      %v889 = vld [vmem:[%s165 + $0x6c] sm:$0xf]
      %v890 = vld [vmem:[%s165 + $0x70] sm:$0xf]
      %v891 = vld [vmem:[%s165 + $0x74] sm:$0xf]
      %v892 = vld [vmem:[%s165 + $0x78] sm:$0xf]
      %v893 = vld [vmem:[%s165 + $0x7c] sm:$0xf]
      %v894 = vld [vmem:[%s165 + $0x80] sm:$0xf]
      %v895 = vld [vmem:[%s165 + $0x84] sm:$0xf]
      %v896 = vld [vmem:[%s165 + $0x88] sm:$0x1]
      %s897 = scalar_lea.vmem %s1, 4
      %v898 = vld [vmem:[%s897] sm:$0x3]
      %v934 = vunpack.c.l.b16 %v862
      %v935 = vunpack.c.l.b16 %v863
      %v936 = vunpack.c.l.b16 %v864
      %v937 = vunpack.c.l.b16 %v865
      %v938 = vunpack.c.l.b16 %v866
      %v939 = vunpack.c.l.b16 %v867
      %v940 = vunpack.c.l.b16 %v868
      %v941 = vunpack.c.l.b16 %v869
      %v942 = vunpack.c.l.b16 %v870
      %v943 = vunpack.c.l.b16 %v871
      %v944 = vunpack.c.l.b16 %v872
      %v945 = vunpack.c.l.b16 %v873
      %v946 = vunpack.c.l.b16 %v874
      %v947 = vunpack.c.l.b16 %v875
      %v948 = vunpack.c.l.b16 %v876
      %v949 = vunpack.c.l.b16 %v877
      %v950 = vunpack.c.l.b16 %v878
      %v951 = vunpack.c.l.b16 %v879
      %v952 = vunpack.c.l.b16 %v880
      %v953 = vunpack.c.l.b16 %v881
      %v954 = vunpack.c.l.b16 %v882
      %v955 = vunpack.c.l.b16 %v883
      %v956 = vunpack.c.l.b16 %v884
      %v957 = vunpack.c.l.b16 %v885
      %v958 = vunpack.c.l.b16 %v886
      %v959 = vunpack.c.l.b16 %v887
      %v960 = vunpack.c.l.b16 %v888
      %v961 = vunpack.c.l.b16 %v889
      %v962 = vunpack.c.l.b16 %v890
      %v963 = vunpack.c.l.b16 %v891
      %v964 = vunpack.c.l.b16 %v892
      %v965 = vunpack.c.l.b16 %v893
      %v966 = vunpack.c.l.b16 %v894
      %v967 = vunpack.c.l.b16 %v895
      %v968 = vunpack.c.l.b16 %v896
      %v969 = vpack.c.b16 %v935, %v934
      %v970 = vpack.c.b16 %v937, %v936
      %v971 = vpack.c.b16 %v939, %v938
      %v972 = vpack.c.b16 %v941, %v940
      %v973 = vpack.c.b16 %v943, %v942
      %v974 = vpack.c.b16 %v945, %v944
      %v975 = vpack.c.b16 %v947, %v946
      %v976 = vpack.c.b16 %v949, %v948
      %v977 = vpack.c.b16 %v951, %v950
      %v978 = vpack.c.b16 %v953, %v952
      %v979 = vpack.c.b16 %v955, %v954
      %v980 = vpack.c.b16 %v957, %v956
      %v981 = vpack.c.b16 %v959, %v958
      %v982 = vpack.c.b16 %v961, %v960
      %v983 = vpack.c.b16 %v963, %v962
      %v984 = vpack.c.b16 %v965, %v964
      %v985 = vpack.c.b16 %v967, %v966
      %v986 = vpack.c.b16 %v968, %v968
      %vm987 = vsmask.f32 7424
      %v989 = vshrl.u32 %v969, 16
      %v991 = vshll.u32 %v969, 16
      %v993 = vrot.slane %v991, 1
      %v994 = vor.u32 %v989, %v993
      %v996 = vshll.u32 %v970, 16
      %v998 = vrot.slane %v996, 1
      %v999 = vsel %vm987, %v994, %v998
      %v1000 = vshrl.u32 %v970, 16
      %v1002 = vor.u32 %v1000, %v998
      %v1004 = vshll.u32 %v971, 16
      %v1006 = vrot.slane %v1004, 1
      %v1007 = vsel %vm987, %v1002, %v1006
      %v1008 = vshrl.u32 %v971, 16
      %v1010 = vor.u32 %v1008, %v1006
      %v1012 = vshll.u32 %v972, 16
      %v1014 = vrot.slane %v1012, 1
      %v1015 = vsel %vm987, %v1010, %v1014
      %v1016 = vshrl.u32 %v972, 16
      %v1018 = vor.u32 %v1016, %v1014
      %v1020 = vshll.u32 %v973, 16
      %v1022 = vrot.slane %v1020, 1
      %v1023 = vsel %vm987, %v1018, %v1022
      %v1024 = vshrl.u32 %v973, 16
      %v1026 = vor.u32 %v1024, %v1022
      %v1028 = vshll.u32 %v974, 16
      %v1030 = vrot.slane %v1028, 1
      %v1031 = vsel %vm987, %v1026, %v1030
      %v1032 = vshrl.u32 %v974, 16
      %v1034 = vor.u32 %v1032, %v1030
      %v1036 = vshll.u32 %v975, 16
      %v1038 = vrot.slane %v1036, 1
      %v1039 = vsel %vm987, %v1034, %v1038
      %v1040 = vshrl.u32 %v975, 16
      %v1042 = vor.u32 %v1040, %v1038
      %v1044 = vshll.u32 %v976, 16
      %v1046 = vrot.slane %v1044, 1
      %v1047 = vsel %vm987, %v1042, %v1046
      %v1048 = vshrl.u32 %v976, 16
      %v1050 = vor.u32 %v1048, %v1046
      %v1052 = vshll.u32 %v977, 16
      %v1054 = vrot.slane %v1052, 1
      %v1055 = vsel %vm987, %v1050, %v1054
      %v1056 = vshrl.u32 %v977, 16
      %v1058 = vor.u32 %v1056, %v1054
      %v1060 = vshll.u32 %v978, 16
      %v1062 = vrot.slane %v1060, 1
      %v1063 = vsel %vm987, %v1058, %v1062
      %v1064 = vshrl.u32 %v978, 16
      %v1066 = vor.u32 %v1064, %v1062
      %v1068 = vshll.u32 %v979, 16
      %v1070 = vrot.slane %v1068, 1
      %v1071 = vsel %vm987, %v1066, %v1070
      %v1072 = vshrl.u32 %v979, 16
      %v1074 = vor.u32 %v1072, %v1070
      %v1076 = vshll.u32 %v980, 16
      %v1078 = vrot.slane %v1076, 1
      %v1079 = vsel %vm987, %v1074, %v1078
      %v1080 = vshrl.u32 %v980, 16
      %v1082 = vor.u32 %v1080, %v1078
      %v1084 = vshll.u32 %v981, 16
      %v1086 = vrot.slane %v1084, 1
      %v1087 = vsel %vm987, %v1082, %v1086
      %v1088 = vshrl.u32 %v981, 16
      %v1090 = vor.u32 %v1088, %v1086
      %v1092 = vshll.u32 %v982, 16
      %v1094 = vrot.slane %v1092, 1
      %v1095 = vsel %vm987, %v1090, %v1094
      %v1096 = vshrl.u32 %v982, 16
      %v1098 = vor.u32 %v1096, %v1094
      %v1100 = vshll.u32 %v983, 16
      %v1102 = vrot.slane %v1100, 1
      %v1103 = vsel %vm987, %v1098, %v1102
      %v1104 = vshrl.u32 %v983, 16
      %v1106 = vor.u32 %v1104, %v1102
      %v1108 = vshll.u32 %v984, 16
      %v1110 = vrot.slane %v1108, 1
      %v1111 = vsel %vm987, %v1106, %v1110
      %v1112 = vshrl.u32 %v984, 16
      %v1114 = vor.u32 %v1112, %v1110
      %v1116 = vshll.u32 %v985, 16
      %v1118 = vrot.slane %v1116, 1
      %v1119 = vsel %vm987, %v1114, %v1118
      %v1120 = vshrl.u32 %v985, 16
      %v1122 = vor.u32 %v1120, %v1118
      %v1124 = vshll.u32 %v986, 16
      %v1126 = vrot.slane %v1124, 1
      %v1127 = vsel %vm987, %v1122, %v1126
      %v1129 = vsel %vm329, %v999, 0
      %v1132 = vsel %vm329, %v1007, 0
      %v1135 = vsel %vm329, %v1015, 0
      %v1138 = vsel %vm329, %v1023, 0
      %v1141 = vsel %vm329, %v1031, 0
      %v1144 = vsel %vm329, %v1039, 0
      %v1147 = vsel %vm329, %v1047, 0
      %v1150 = vsel %vm329, %v1055, 0
      %v1153 = vsel %vm329, %v1063, 0
      %v1156 = vsel %vm329, %v1071, 0
      %v1159 = vsel %vm329, %v1079, 0
      %v1162 = vsel %vm329, %v1087, 0
      %v1165 = vsel %vm329, %v1095, 0
      %v1168 = vsel %vm329, %v1103, 0
      %v1171 = vsel %vm329, %v1111, 0
      %v1174 = vsel %vm329, %v1119, 0
      %v1177 = vsel %vm329, %v1127, 0
      %v1180 = vsel %vm381, %v898, 0
      %1182 = vmatprep.subr.bf16.mxu0 0
      %1183 = vmatpush1.bf16.msra.mxu0 %v1180
      %1184 = vmatprep.subr.bf16.mxu0 0
      %1185 = vmatpush1.bf16.msra.mxu0 0
      %1186 = vmatprep.subr.bf16.mxu0 0
      %1187 = vmatpush1.bf16.msra.mxu0 0
      %1188 = vmatprep.subr.bf16.mxu0 0
      %1189 = vmatpush1.bf16.msra.mxu0 0
      %1190 = vmatprep.subr.bf16.mxu0 0
      %1191 = vmatpush1.bf16.msra.mxu0 0
      %1192 = vmatprep.subr.bf16.mxu0 0
      %1193 = vmatpush1.bf16.msra.mxu0 0
      %1194 = vmatprep.subr.bf16.mxu0 0
      %1195 = vmatpush1.bf16.msra.mxu0 0
      %1196 = vmatprep.subr.bf16.mxu0 0
      %1197 = vmatpush1.bf16.msra.mxu0 0
      %1198 = vmatprep.subr.bf16.mxu0 0
      %1199 = vmatpush1.bf16.msra.mxu0 0
      %1200 = vmatprep.subr.bf16.mxu0 0
      %1201 = vmatpush1.bf16.msra.mxu0 0
      %1202 = vmatprep.subr.bf16.mxu0 0
      %1203 = vmatpush1.bf16.msra.mxu0 0
      %1204 = vmatprep.subr.bf16.mxu0 0
      %1205 = vmatpush1.bf16.msra.mxu0 0
      %1206 = vmatprep.subr.bf16.mxu0 0
      %1207 = vmatpush1.bf16.msra.mxu0 0
      %1208 = vmatprep.subr.bf16.mxu0 0
      %1209 = vmatpush1.bf16.msra.mxu0 0
      %1210 = vmatprep.subr.bf16.mxu0 0
      %1211 = vmatpush1.bf16.msra.mxu0 0
      %1212 = vmatprep.subr.bf16.mxu0 0
      %1213 = vmatpush1.bf16.msra.mxu0 0
      %1214 = vmatprep.mubr.bf16.mxu0 0
      %1215 = vmatmul.mubr.bf16.gmra.mrb[0].mxu0 %v1129
      %v1216 = vpop.f32.mrb[0].mxu0
      %v1217 = vadd.f32 0.0, %v1216
      %v1218 = vpop.f32.mrb[0].mxu0
      %v1219 = vpop.f32.mrb[0].mxu0
      %v1220 = vadd.f32 0.0, %v1219
      %v1221 = vpop.f32.mrb[0].mxu0
      %1222 = vmatprep.mubr.bf16.mxu0 0
      %1223 = vmatmul.mubr.bf16.gmra.mrb[0].mxu0 %v1132
      %v1224 = vpop.f32.mrb[0].mxu0
      %v1225 = vadd.f32 0.0, %v1224
      %v1226 = vpop.f32.mrb[0].mxu0
      %v1227 = vpop.f32.mrb[0].mxu0
      %v1228 = vadd.f32 0.0, %v1227
      %v1229 = vpop.f32.mrb[0].mxu0
      %1230 = vmatprep.mubr.bf16.mxu0 0
      %1231 = vmatmul.mubr.bf16.gmra.mrb[0].mxu0 %v1135
      %v1232 = vpop.f32.mrb[0].mxu0
      %v1233 = vadd.f32 0.0, %v1232
      %v1234 = vpop.f32.mrb[0].mxu0
      %v1235 = vpop.f32.mrb[0].mxu0
      %v1236 = vadd.f32 0.0, %v1235
      %v1237 = vpop.f32.mrb[0].mxu0
      %1238 = vmatprep.mubr.bf16.mxu0 0
      %1239 = vmatmul.mubr.bf16.gmra.mrb[0].mxu0 %v1138
      %v1240 = vpop.f32.mrb[0].mxu0
      %v1241 = vadd.f32 0.0, %v1240
      %v1242 = vpop.f32.mrb[0].mxu0
      %v1243 = vpop.f32.mrb[0].mxu0
      %v1244 = vadd.f32 0.0, %v1243
      %v1245 = vpop.f32.mrb[0].mxu0
      %1246 = vmatprep.mubr.bf16.mxu0 0
      %1247 = vmatmul.mubr.bf16.gmra.mrb[0].mxu0 %v1141
      %v1248 = vpop.f32.mrb[0].mxu0
      %v1249 = vadd.f32 0.0, %v1248
      %v1250 = vpop.f32.mrb[0].mxu0
      %v1251 = vpop.f32.mrb[0].mxu0
      %v1252 = vadd.f32 0.0, %v1251
      %v1253 = vpop.f32.mrb[0].mxu0
      %1254 = vmatprep.mubr.bf16.mxu0 0
      %1255 = vmatmul.mubr.bf16.gmra.mrb[0].mxu0 %v1144
      %v1256 = vpop.f32.mrb[0].mxu0
      %v1257 = vadd.f32 0.0, %v1256
      %v1258 = vpop.f32.mrb[0].mxu0
      %v1259 = vpop.f32.mrb[0].mxu0
      %v1260 = vadd.f32 0.0, %v1259
      %v1261 = vpop.f32.mrb[0].mxu0
      %1262 = vmatprep.mubr.bf16.mxu0 0
      %1263 = vmatmul.mubr.bf16.gmra.mrb[0].mxu0 %v1147
      %v1264 = vpop.f32.mrb[0].mxu0
      %v1265 = vadd.f32 0.0, %v1264
      %v1266 = vpop.f32.mrb[0].mxu0
      %v1267 = vpop.f32.mrb[0].mxu0
      %v1268 = vadd.f32 0.0, %v1267
      %v1269 = vpop.f32.mrb[0].mxu0
      %1270 = vmatprep.mubr.bf16.mxu0 0
      %1271 = vmatmul.mubr.bf16.gmra.mrb[0].mxu0 %v1150
      %v1272 = vpop.f32.mrb[0].mxu0
      %v1273 = vadd.f32 0.0, %v1272
      %v1274 = vpop.f32.mrb[0].mxu0
      %v1275 = vpop.f32.mrb[0].mxu0
      %v1276 = vadd.f32 0.0, %v1275
      %v1277 = vpop.f32.mrb[0].mxu0
      %1278 = vmatprep.mubr.bf16.mxu0 0
      %1279 = vmatmul.mubr.bf16.gmra.mrb[0].mxu0 %v1153
      %v1280 = vpop.f32.mrb[0].mxu0
      %v1281 = vadd.f32 0.0, %v1280
      %v1282 = vpop.f32.mrb[0].mxu0
      %v1283 = vpop.f32.mrb[0].mxu0
      %v1284 = vadd.f32 0.0, %v1283
      %v1285 = vpop.f32.mrb[0].mxu0
      %1286 = vmatprep.mubr.bf16.mxu0 0
      %1287 = vmatmul.mubr.bf16.gmra.mrb[0].mxu0 %v1156
      %v1288 = vpop.f32.mrb[0].mxu0
      %v1289 = vadd.f32 0.0, %v1288
      %v1290 = vpop.f32.mrb[0].mxu0
      %v1291 = vpop.f32.mrb[0].mxu0
      %v1292 = vadd.f32 0.0, %v1291
      %v1293 = vpop.f32.mrb[0].mxu0
      %1294 = vmatprep.mubr.bf16.mxu0 0
      %1295 = vmatmul.mubr.bf16.gmra.mrb[0].mxu0 %v1159
      %v1296 = vpop.f32.mrb[0].mxu0
      %v1297 = vadd.f32 0.0, %v1296
      %v1298 = vpop.f32.mrb[0].mxu0
      %v1299 = vpop.f32.mrb[0].mxu0
      %v1300 = vadd.f32 0.0, %v1299
      %v1301 = vpop.f32.mrb[0].mxu0
      %1302 = vmatprep.mubr.bf16.mxu0 0
      %1303 = vmatmul.mubr.bf16.gmra.mrb[0].mxu0 %v1162
      %v1304 = vpop.f32.mrb[0].mxu0
      %v1305 = vadd.f32 0.0, %v1304
      %v1306 = vpop.f32.mrb[0].mxu0
      %v1307 = vpop.f32.mrb[0].mxu0
      %v1308 = vadd.f32 0.0, %v1307
      %v1309 = vpop.f32.mrb[0].mxu0
      %1310 = vmatprep.mubr.bf16.mxu0 0
      %1311 = vmatmul.mubr.bf16.gmra.mrb[0].mxu0 %v1165
      %v1312 = vpop.f32.mrb[0].mxu0
      %v1313 = vadd.f32 0.0, %v1312
      %v1314 = vpop.f32.mrb[0].mxu0
      %v1315 = vpop.f32.mrb[0].mxu0
      %v1316 = vadd.f32 0.0, %v1315
      %v1317 = vpop.f32.mrb[0].mxu0
      %1318 = vmatprep.mubr.bf16.mxu0 0
      %1319 = vmatmul.mubr.bf16.gmra.mrb[0].mxu0 %v1168
      %v1320 = vpop.f32.mrb[0].mxu0
      %v1321 = vadd.f32 0.0, %v1320
      %v1322 = vpop.f32.mrb[0].mxu0
      %v1323 = vpop.f32.mrb[0].mxu0
      %v1324 = vadd.f32 0.0, %v1323
      %v1325 = vpop.f32.mrb[0].mxu0
      %1326 = vmatprep.mubr.bf16.mxu0 0
      %1327 = vmatmul.mubr.bf16.gmra.mrb[0].mxu0 %v1171
      %v1328 = vpop.f32.mrb[0].mxu0
      %v1329 = vadd.f32 0.0, %v1328
      %v1330 = vpop.f32.mrb[0].mxu0
      %v1331 = vpop.f32.mrb[0].mxu0
      %v1332 = vadd.f32 0.0, %v1331
      %v1333 = vpop.f32.mrb[0].mxu0
      %1334 = vmatprep.mubr.bf16.mxu0 0
      %1335 = vmatmul.mubr.bf16.gmra.mrb[0].mxu0 %v1174
      %v1336 = vpop.f32.mrb[0].mxu0
      %v1337 = vadd.f32 0.0, %v1336
      %v1338 = vpop.f32.mrb[0].mxu0
      %v1339 = vpop.f32.mrb[0].mxu0
      %v1340 = vadd.f32 0.0, %v1339
      %v1341 = vpop.f32.mrb[0].mxu0
      %1342 = vmatprep.mubr.bf16.mxu0 0
      %1343 = vmatmul.mubr.bf16.gmra.mrb[0].mxu0 %v1177
      %v1344 = vpop.f32.mrb[0].mxu0
      %v1345 = vadd.f32 0.0, %v1344
      %v1346 = vpop.f32.mrb[0].mxu0
      %v1347 = vpop.f32.mrb[0].mxu0
      %v1348 = vadd.f32 0.0, %v1347
      %v1349 = vpop.f32.mrb[0].mxu0
      %1350 = vdwg.mxu0
      %v1351 = vadd.f32 %v728, %v1217
      %v1352 = vadd.f32 %v731, %v1220
      %v1353 = vadd.f32 %v736, %v1225
      %v1354 = vadd.f32 %v739, %v1228
      %v1355 = vadd.f32 %v744, %v1233
      %v1356 = vadd.f32 %v747, %v1236
      %v1357 = vadd.f32 %v752, %v1241
      %v1358 = vadd.f32 %v755, %v1244
      %v1359 = vadd.f32 %v760, %v1249
      %v1360 = vadd.f32 %v763, %v1252
      %v1361 = vadd.f32 %v768, %v1257
      %v1362 = vadd.f32 %v771, %v1260
      %v1363 = vadd.f32 %v776, %v1265
      %v1364 = vadd.f32 %v779, %v1268
      %v1365 = vadd.f32 %v784, %v1273
      %v1366 = vadd.f32 %v787, %v1276
      %v1367 = vadd.f32 %v792, %v1281
      %v1368 = vadd.f32 %v795, %v1284
      %v1369 = vadd.f32 %v800, %v1289
      %v1370 = vadd.f32 %v803, %v1292
      %v1371 = vadd.f32 %v808, %v1297
      %v1372 = vadd.f32 %v811, %v1300
      %v1373 = vadd.f32 %v816, %v1305
      %v1374 = vadd.f32 %v819, %v1308
      %v1375 = vadd.f32 %v824, %v1313
      %v1376 = vadd.f32 %v827, %v1316
      %v1377 = vadd.f32 %v832, %v1321
      %v1378 = vadd.f32 %v835, %v1324
      %v1379 = vadd.f32 %v840, %v1329
      %v1380 = vadd.f32 %v843, %v1332
      %v1381 = vadd.f32 %v848, %v1337
      %v1382 = vadd.f32 %v851, %v1340
      %v1383 = vadd.f32 %v856, %v1345
      %v1384 = vadd.f32 %v859, %v1348
      %s1385 = scalar_lea.vmem %s165, 312
      %v1386 = vld [vmem:[%s1385] sm:$0xf]
      %v1387 = vld [vmem:[%s1385 + $0x4] sm:$0xf]
      %v1388 = vld [vmem:[%s1385 + $0x8] sm:$0xf]
      %v1389 = vld [vmem:[%s1385 + $0xc] sm:$0xf]
      %v1390 = vld [vmem:[%s1385 + $0x10] sm:$0xf]
      %v1391 = vld [vmem:[%s1385 + $0x14] sm:$0xf]
      %v1392 = vld [vmem:[%s1385 + $0x18] sm:$0xf]
      %v1393 = vld [vmem:[%s1385 + $0x1c] sm:$0xf]
      %v1394 = vld [vmem:[%s1385 + $0x20] sm:$0xf]
      %v1395 = vld [vmem:[%s1385 + $0x24] sm:$0xf]
      %v1396 = vld [vmem:[%s1385 + $0x28] sm:$0xf]
      %v1397 = vld [vmem:[%s1385 + $0x2c] sm:$0xf]
      %v1398 = vld [vmem:[%s1385 + $0x30] sm:$0xf]
      %v1399 = vld [vmem:[%s1385 + $0x34] sm:$0xf]
      %v1400 = vld [vmem:[%s1385 + $0x38] sm:$0xf]
      %v1401 = vld [vmem:[%s1385 + $0x3c] sm:$0xf]
      %v1402 = vld [vmem:[%s1385 + $0x40] sm:$0xf]
      %v1403 = vld [vmem:[%s1385 + $0x44] sm:$0xf]
      %v1404 = vld [vmem:[%s1385 + $0x48] sm:$0xf]
      %v1405 = vld [vmem:[%s1385 + $0x4c] sm:$0xf]
      %v1406 = vld [vmem:[%s1385 + $0x50] sm:$0xf]
      %v1407 = vld [vmem:[%s1385 + $0x54] sm:$0xf]
      %v1408 = vld [vmem:[%s1385 + $0x58] sm:$0xf]
      %v1409 = vld [vmem:[%s1385 + $0x5c] sm:$0xf]
      %v1410 = vld [vmem:[%s1385 + $0x60] sm:$0xf]
      %v1411 = vld [vmem:[%s1385 + $0x64] sm:$0xf]
      %v1412 = vld [vmem:[%s1385 + $0x68] sm:$0xf]
      %v1413 = vld [vmem:[%s1385 + $0x6c] sm:$0xf]
      %v1414 = vld [vmem:[%s1385 + $0x70] sm:$0xf]
      %v1415 = vld [vmem:[%s1385 + $0x74] sm:$0xf]
      %v1416 = vld [vmem:[%s1385 + $0x78] sm:$0xf]
      %v1417 = vld [vmem:[%s1385 + $0x7c] sm:$0xf]
      %v1418 = vld [vmem:[%s1385 + $0x80] sm:$0xf]
      %v1419 = vld [vmem:[%s1385 + $0x84] sm:$0xf]
      %s1420 = scalar_lea.vmem %s1, 6
      %v1421 = vld [vmem:[%s1420] sm:$0x3]
      %v1456 = vunpack.c.l.b16 %v1386
      %v1457 = vunpack.c.l.b16 %v1387
      %v1458 = vunpack.c.l.b16 %v1388
      %v1459 = vunpack.c.l.b16 %v1389
      %v1460 = vunpack.c.l.b16 %v1390
      %v1461 = vunpack.c.l.b16 %v1391
      %v1462 = vunpack.c.l.b16 %v1392
      %v1463 = vunpack.c.l.b16 %v1393
      %v1464 = vunpack.c.l.b16 %v1394
      %v1465 = vunpack.c.l.b16 %v1395
      %v1466 = vunpack.c.l.b16 %v1396
      %v1467 = vunpack.c.l.b16 %v1397
      %v1468 = vunpack.c.l.b16 %v1398
      %v1469 = vunpack.c.l.b16 %v1399
      %v1470 = vunpack.c.l.b16 %v1400
      %v1471 = vunpack.c.l.b16 %v1401
      %v1472 = vunpack.c.l.b16 %v1402
      %v1473 = vunpack.c.l.b16 %v1403
      %v1474 = vunpack.c.l.b16 %v1404
      %v1475 = vunpack.c.l.b16 %v1405
      %v1476 = vunpack.c.l.b16 %v1406
      %v1477 = vunpack.c.l.b16 %v1407
      %v1478 = vunpack.c.l.b16 %v1408
      %v1479 = vunpack.c.l.b16 %v1409
      %v1480 = vunpack.c.l.b16 %v1410
      %v1481 = vunpack.c.l.b16 %v1411
      %v1482 = vunpack.c.l.b16 %v1412
      %v1483 = vunpack.c.l.b16 %v1413
      %v1484 = vunpack.c.l.b16 %v1414
      %v1485 = vunpack.c.l.b16 %v1415
      %v1486 = vunpack.c.l.b16 %v1416
      %v1487 = vunpack.c.l.b16 %v1417
      %v1488 = vunpack.c.l.b16 %v1418
      %v1489 = vunpack.c.l.b16 %v1419
      %v1490 = vpack.c.b16 %v1457, %v1456
      %v1491 = vpack.c.b16 %v1459, %v1458
      %v1492 = vpack.c.b16 %v1461, %v1460
      %v1493 = vpack.c.b16 %v1463, %v1462
      %v1494 = vpack.c.b16 %v1465, %v1464
      %v1495 = vpack.c.b16 %v1467, %v1466
      %v1496 = vpack.c.b16 %v1469, %v1468
      %v1497 = vpack.c.b16 %v1471, %v1470
      %v1498 = vpack.c.b16 %v1473, %v1472
      %v1499 = vpack.c.b16 %v1475, %v1474
      %v1500 = vpack.c.b16 %v1477, %v1476
      %v1501 = vpack.c.b16 %v1479, %v1478
      %v1502 = vpack.c.b16 %v1481, %v1480
      %v1503 = vpack.c.b16 %v1483, %v1482
      %v1504 = vpack.c.b16 %v1485, %v1484
      %v1505 = vpack.c.b16 %v1487, %v1486
      %v1506 = vpack.c.b16 %v1489, %v1488
      %v1508 = vsel %vm329, %v1490, 0
      %v1511 = vsel %vm329, %v1491, 0
      %v1514 = vsel %vm329, %v1492, 0
      %v1517 = vsel %vm329, %v1493, 0
      %v1520 = vsel %vm329, %v1494, 0
      %v1523 = vsel %vm329, %v1495, 0
      %v1526 = vsel %vm329, %v1496, 0
      %v1529 = vsel %vm329, %v1497, 0
      %v1532 = vsel %vm329, %v1498, 0
      %v1535 = vsel %vm329, %v1499, 0
      %v1538 = vsel %vm329, %v1500, 0
      %v1541 = vsel %vm329, %v1501, 0
      %v1544 = vsel %vm329, %v1502, 0
      %v1547 = vsel %vm329, %v1503, 0
      %v1550 = vsel %vm329, %v1504, 0
      %v1553 = vsel %vm329, %v1505, 0
      %v1556 = vsel %vm329, %v1506, 0
      %v1559 = vsel %vm381, %v1421, 0
      %1561 = vmatprep.subr.bf16.mxu0 0
      %1562 = vmatpush1.bf16.msra.mxu0 %v1559
      %1563 = vmatprep.subr.bf16.mxu0 0
      %1564 = vmatpush1.bf16.msra.mxu0 0
      %1565 = vmatprep.subr.bf16.mxu0 0
      %1566 = vmatpush1.bf16.msra.mxu0 0
      %1567 = vmatprep.subr.bf16.mxu0 0
      %1568 = vmatpush1.bf16.msra.mxu0 0
      %1569 = vmatprep.subr.bf16.mxu0 0
      %1570 = vmatpush1.bf16.msra.mxu0 0
      %1571 = vmatprep.subr.bf16.mxu0 0
      %1572 = vmatpush1.bf16.msra.mxu0 0
      %1573 = vmatprep.subr.bf16.mxu0 0
      %1574 = vmatpush1.bf16.msra.mxu0 0
      %1575 = vmatprep.subr.bf16.mxu0 0
      %1576 = vmatpush1.bf16.msra.mxu0 0
      %1577 = vmatprep.subr.bf16.mxu0 0
      %1578 = vmatpush1.bf16.msra.mxu0 0
      %1579 = vmatprep.subr.bf16.mxu0 0
      %1580 = vmatpush1.bf16.msra.mxu0 0
      %1581 = vmatprep.subr.bf16.mxu0 0
      %1582 = vmatpush1.bf16.msra.mxu0 0
      %1583 = vmatprep.subr.bf16.mxu0 0
      %1584 = vmatpush1.bf16.msra.mxu0 0
      %1585 = vmatprep.subr.bf16.mxu0 0
      %1586 = vmatpush1.bf16.msra.mxu0 0
      %1587 = vmatprep.subr.bf16.mxu0 0
      %1588 = vmatpush1.bf16.msra.mxu0 0
      %1589 = vmatprep.subr.bf16.mxu0 0
      %1590 = vmatpush1.bf16.msra.mxu0 0
      %1591 = vmatprep.subr.bf16.mxu0 0
      %1592 = vmatpush1.bf16.msra.mxu0 0
      %1593 = vmatprep.mubr.bf16.mxu0 0
      %1594 = vmatmul.mubr.bf16.gmra.mrb[0].mxu0 %v1508
      %v1595 = vpop.f32.mrb[0].mxu0
      %v1596 = vadd.f32 0.0, %v1595
      %v1597 = vpop.f32.mrb[0].mxu0
      %v1598 = vpop.f32.mrb[0].mxu0
      %v1599 = vadd.f32 0.0, %v1598
      %v1600 = vpop.f32.mrb[0].mxu0
      %1601 = vmatprep.mubr.bf16.mxu0 0
      %1602 = vmatmul.mubr.bf16.gmra.mrb[0].mxu0 %v1511
      %v1603 = vpop.f32.mrb[0].mxu0
      %v1604 = vadd.f32 0.0, %v1603
      %v1605 = vpop.f32.mrb[0].mxu0
      %v1606 = vpop.f32.mrb[0].mxu0
      %v1607 = vadd.f32 0.0, %v1606
      %v1608 = vpop.f32.mrb[0].mxu0
      %1609 = vmatprep.mubr.bf16.mxu0 0
      %1610 = vmatmul.mubr.bf16.gmra.mrb[0].mxu0 %v1514
      %v1611 = vpop.f32.mrb[0].mxu0
      %v1612 = vadd.f32 0.0, %v1611
      %v1613 = vpop.f32.mrb[0].mxu0
      %v1614 = vpop.f32.mrb[0].mxu0
      %v1615 = vadd.f32 0.0, %v1614
      %v1616 = vpop.f32.mrb[0].mxu0
      %1617 = vmatprep.mubr.bf16.mxu0 0
      %1618 = vmatmul.mubr.bf16.gmra.mrb[0].mxu0 %v1517
      %v1619 = vpop.f32.mrb[0].mxu0
      %v1620 = vadd.f32 0.0, %v1619
      %v1621 = vpop.f32.mrb[0].mxu0
      %v1622 = vpop.f32.mrb[0].mxu0
      %v1623 = vadd.f32 0.0, %v1622
      %v1624 = vpop.f32.mrb[0].mxu0
      %1625 = vmatprep.mubr.bf16.mxu0 0
      %1626 = vmatmul.mubr.bf16.gmra.mrb[0].mxu0 %v1520
      %v1627 = vpop.f32.mrb[0].mxu0
      %v1628 = vadd.f32 0.0, %v1627
      %v1629 = vpop.f32.mrb[0].mxu0
      %v1630 = vpop.f32.mrb[0].mxu0
      %v1631 = vadd.f32 0.0, %v1630
      %v1632 = vpop.f32.mrb[0].mxu0
      %1633 = vmatprep.mubr.bf16.mxu0 0
      %1634 = vmatmul.mubr.bf16.gmra.mrb[0].mxu0 %v1523
      %v1635 = vpop.f32.mrb[0].mxu0
      %v1636 = vadd.f32 0.0, %v1635
      %v1637 = vpop.f32.mrb[0].mxu0
      %v1638 = vpop.f32.mrb[0].mxu0
      %v1639 = vadd.f32 0.0, %v1638
      %v1640 = vpop.f32.mrb[0].mxu0
      %1641 = vmatprep.mubr.bf16.mxu0 0
      %1642 = vmatmul.mubr.bf16.gmra.mrb[0].mxu0 %v1526
      %v1643 = vpop.f32.mrb[0].mxu0
      %v1644 = vadd.f32 0.0, %v1643
      %v1645 = vpop.f32.mrb[0].mxu0
      %v1646 = vpop.f32.mrb[0].mxu0
      %v1647 = vadd.f32 0.0, %v1646
      %v1648 = vpop.f32.mrb[0].mxu0
      %1649 = vmatprep.mubr.bf16.mxu0 0
      %1650 = vmatmul.mubr.bf16.gmra.mrb[0].mxu0 %v1529
      %v1651 = vpop.f32.mrb[0].mxu0
      %v1652 = vadd.f32 0.0, %v1651
      %v1653 = vpop.f32.mrb[0].mxu0
      %v1654 = vpop.f32.mrb[0].mxu0
      %v1655 = vadd.f32 0.0, %v1654
      %v1656 = vpop.f32.mrb[0].mxu0
      %1657 = vmatprep.mubr.bf16.mxu0 0
      %1658 = vmatmul.mubr.bf16.gmra.mrb[0].mxu0 %v1532
      %v1659 = vpop.f32.mrb[0].mxu0
      %v1660 = vadd.f32 0.0, %v1659
      %v1661 = vpop.f32.mrb[0].mxu0
      %v1662 = vpop.f32.mrb[0].mxu0
      %v1663 = vadd.f32 0.0, %v1662
      %v1664 = vpop.f32.mrb[0].mxu0
      %1665 = vmatprep.mubr.bf16.mxu0 0
      %1666 = vmatmul.mubr.bf16.gmra.mrb[0].mxu0 %v1535
      %v1667 = vpop.f32.mrb[0].mxu0
      %v1668 = vadd.f32 0.0, %v1667
      %v1669 = vpop.f32.mrb[0].mxu0
      %v1670 = vpop.f32.mrb[0].mxu0
      %v1671 = vadd.f32 0.0, %v1670
      %v1672 = vpop.f32.mrb[0].mxu0
      %1673 = vmatprep.mubr.bf16.mxu0 0
      %1674 = vmatmul.mubr.bf16.gmra.mrb[0].mxu0 %v1538
      %v1675 = vpop.f32.mrb[0].mxu0
      %v1676 = vadd.f32 0.0, %v1675
      %v1677 = vpop.f32.mrb[0].mxu0
      %v1678 = vpop.f32.mrb[0].mxu0
      %v1679 = vadd.f32 0.0, %v1678
      %v1680 = vpop.f32.mrb[0].mxu0
      %1681 = vmatprep.mubr.bf16.mxu0 0
      %1682 = vmatmul.mubr.bf16.gmra.mrb[0].mxu0 %v1541
      %v1683 = vpop.f32.mrb[0].mxu0
      %v1684 = vadd.f32 0.0, %v1683
      %v1685 = vpop.f32.mrb[0].mxu0
      %v1686 = vpop.f32.mrb[0].mxu0
      %v1687 = vadd.f32 0.0, %v1686
      %v1688 = vpop.f32.mrb[0].mxu0
      %1689 = vmatprep.mubr.bf16.mxu0 0
      %1690 = vmatmul.mubr.bf16.gmra.mrb[0].mxu0 %v1544
      %v1691 = vpop.f32.mrb[0].mxu0
      %v1692 = vadd.f32 0.0, %v1691
      %v1693 = vpop.f32.mrb[0].mxu0
      %v1694 = vpop.f32.mrb[0].mxu0
      %v1695 = vadd.f32 0.0, %v1694
      %v1696 = vpop.f32.mrb[0].mxu0
      %1697 = vmatprep.mubr.bf16.mxu0 0
      %1698 = vmatmul.mubr.bf16.gmra.mrb[0].mxu0 %v1547
      %v1699 = vpop.f32.mrb[0].mxu0
      %v1700 = vadd.f32 0.0, %v1699
      %v1701 = vpop.f32.mrb[0].mxu0
      %v1702 = vpop.f32.mrb[0].mxu0
      %v1703 = vadd.f32 0.0, %v1702
      %v1704 = vpop.f32.mrb[0].mxu0
      %1705 = vmatprep.mubr.bf16.mxu0 0
      %1706 = vmatmul.mubr.bf16.gmra.mrb[0].mxu0 %v1550
      %v1707 = vpop.f32.mrb[0].mxu0
      %v1708 = vadd.f32 0.0, %v1707
      %v1709 = vpop.f32.mrb[0].mxu0
      %v1710 = vpop.f32.mrb[0].mxu0
      %v1711 = vadd.f32 0.0, %v1710
      %v1712 = vpop.f32.mrb[0].mxu0
      %1713 = vmatprep.mubr.bf16.mxu0 0
      %1714 = vmatmul.mubr.bf16.gmra.mrb[0].mxu0 %v1553
      %v1715 = vpop.f32.mrb[0].mxu0
      %v1716 = vadd.f32 0.0, %v1715
      %v1717 = vpop.f32.mrb[0].mxu0
      %v1718 = vpop.f32.mrb[0].mxu0
      %v1719 = vadd.f32 0.0, %v1718
      %v1720 = vpop.f32.mrb[0].mxu0
      %1721 = vmatprep.mubr.bf16.mxu0 0
      %1722 = vmatmul.mubr.bf16.gmra.mrb[0].mxu0 %v1556
      %v1723 = vpop.f32.mrb[0].mxu0
      %v1724 = vadd.f32 0.0, %v1723
      %v1725 = vpop.f32.mrb[0].mxu0
      %v1726 = vpop.f32.mrb[0].mxu0
      %v1727 = vadd.f32 0.0, %v1726
      %v1728 = vpop.f32.mrb[0].mxu0
      %1729 = vdwg.mxu0
      %v1730 = vadd.f32 %v1351, %v1596
      %v1731 = vadd.f32 %v1352, %v1599
      %v1732 = vadd.f32 %v1353, %v1604
      %v1733 = vadd.f32 %v1354, %v1607
      %v1734 = vadd.f32 %v1355, %v1612
      %v1735 = vadd.f32 %v1356, %v1615
      %v1736 = vadd.f32 %v1357, %v1620
      %v1737 = vadd.f32 %v1358, %v1623
      %v1738 = vadd.f32 %v1359, %v1628
      %v1739 = vadd.f32 %v1360, %v1631
      %v1740 = vadd.f32 %v1361, %v1636
      %v1741 = vadd.f32 %v1362, %v1639
      %v1742 = vadd.f32 %v1363, %v1644
      %v1743 = vadd.f32 %v1364, %v1647
      %v1744 = vadd.f32 %v1365, %v1652
      %v1745 = vadd.f32 %v1366, %v1655
      %v1746 = vadd.f32 %v1367, %v1660
      %v1747 = vadd.f32 %v1368, %v1663
      %v1748 = vadd.f32 %v1369, %v1668
      %v1749 = vadd.f32 %v1370, %v1671
      %v1750 = vadd.f32 %v1371, %v1676
      %v1751 = vadd.f32 %v1372, %v1679
      %v1752 = vadd.f32 %v1373, %v1684
      %v1753 = vadd.f32 %v1374, %v1687
      %v1754 = vadd.f32 %v1375, %v1692
      %v1755 = vadd.f32 %v1376, %v1695
      %v1756 = vadd.f32 %v1377, %v1700
      %v1757 = vadd.f32 %v1378, %v1703
      %v1758 = vadd.f32 %v1379, %v1708
      %v1759 = vadd.f32 %v1380, %v1711
      %v1760 = vadd.f32 %v1381, %v1716
      %v1761 = vadd.f32 %v1382, %v1719
      %v1762 = vadd.f32 %v1383, %v1724
      %v1763 = vadd.f32 %v1384, %v1727
      %s1764 = scalar_lea.vmem %s165, 468
      %v1765 = vld [vmem:[%s1764] sm:$0xf]
      %v1766 = vld [vmem:[%s1764 + $0x4] sm:$0xf]
      %v1767 = vld [vmem:[%s1764 + $0x8] sm:$0xf]
      %v1768 = vld [vmem:[%s1764 + $0xc] sm:$0xf]
      %v1769 = vld [vmem:[%s1764 + $0x10] sm:$0xf]
      %v1770 = vld [vmem:[%s1764 + $0x14] sm:$0xf]
      %v1771 = vld [vmem:[%s1764 + $0x18] sm:$0xf]
      %v1772 = vld [vmem:[%s1764 + $0x1c] sm:$0xf]
      %v1773 = vld [vmem:[%s1764 + $0x20] sm:$0xf]
      %v1774 = vld [vmem:[%s1764 + $0x24] sm:$0xf]
      %v1775 = vld [vmem:[%s1764 + $0x28] sm:$0xf]
      %v1776 = vld [vmem:[%s1764 + $0x2c] sm:$0xf]
      %v1777 = vld [vmem:[%s1764 + $0x30] sm:$0xf]
      %v1778 = vld [vmem:[%s1764 + $0x34] sm:$0xf]
      %v1779 = vld [vmem:[%s1764 + $0x38] sm:$0xf]
      %v1780 = vld [vmem:[%s1764 + $0x3c] sm:$0xf]
      %v1781 = vld [vmem:[%s1764 + $0x40] sm:$0xf]
      %v1782 = vld [vmem:[%s1764 + $0x44] sm:$0xf]
      %v1783 = vld [vmem:[%s1764 + $0x48] sm:$0xf]
      %v1784 = vld [vmem:[%s1764 + $0x4c] sm:$0xf]
      %v1785 = vld [vmem:[%s1764 + $0x50] sm:$0xf]
      %v1786 = vld [vmem:[%s1764 + $0x54] sm:$0xf]
      %v1787 = vld [vmem:[%s1764 + $0x58] sm:$0xf]
      %v1788 = vld [vmem:[%s1764 + $0x5c] sm:$0xf]
      %v1789 = vld [vmem:[%s1764 + $0x60] sm:$0xf]
      %v1790 = vld [vmem:[%s1764 + $0x64] sm:$0xf]
      %v1791 = vld [vmem:[%s1764 + $0x68] sm:$0xf]
      %v1792 = vld [vmem:[%s1764 + $0x6c] sm:$0xf]
      %v1793 = vld [vmem:[%s1764 + $0x70] sm:$0xf]
      %v1794 = vld [vmem:[%s1764 + $0x74] sm:$0xf]
      %v1795 = vld [vmem:[%s1764 + $0x78] sm:$0xf]
      %v1796 = vld [vmem:[%s1764 + $0x7c] sm:$0xf]
      %v1797 = vld [vmem:[%s1764 + $0x80] sm:$0xf]
      %v1798 = vld [vmem:[%s1764 + $0x84] sm:$0xf]
      %s1799 = scalar_lea.vmem %s1, 8
      %v1800 = vld [vmem:[%s1799] sm:$0x3]
      %v1835 = vunpack.c.l.b16 %v1765
      %v1836 = vunpack.c.l.b16 %v1766
      %v1837 = vunpack.c.l.b16 %v1767
      %v1838 = vunpack.c.l.b16 %v1768
      %v1839 = vunpack.c.l.b16 %v1769
      %v1840 = vunpack.c.l.b16 %v1770
      %v1841 = vunpack.c.l.b16 %v1771
      %v1842 = vunpack.c.l.b16 %v1772
      %v1843 = vunpack.c.l.b16 %v1773
      %v1844 = vunpack.c.l.b16 %v1774
      %v1845 = vunpack.c.l.b16 %v1775
      %v1846 = vunpack.c.l.b16 %v1776
      %v1847 = vunpack.c.l.b16 %v1777
      %v1848 = vunpack.c.l.b16 %v1778
      %v1849 = vunpack.c.l.b16 %v1779
      %v1850 = vunpack.c.l.b16 %v1780
      %v1851 = vunpack.c.l.b16 %v1781
      %v1852 = vunpack.c.l.b16 %v1782
      %v1853 = vunpack.c.l.b16 %v1783
      %v1854 = vunpack.c.l.b16 %v1784
      %v1855 = vunpack.c.l.b16 %v1785
      %v1856 = vunpack.c.l.b16 %v1786
      %v1857 = vunpack.c.l.b16 %v1787
      %v1858 = vunpack.c.l.b16 %v1788
      %v1859 = vunpack.c.l.b16 %v1789
      %v1860 = vunpack.c.l.b16 %v1790
      %v1861 = vunpack.c.l.b16 %v1791
      %v1862 = vunpack.c.l.b16 %v1792
      %v1863 = vunpack.c.l.b16 %v1793
      %v1864 = vunpack.c.l.b16 %v1794
      %v1865 = vunpack.c.l.b16 %v1795
      %v1866 = vunpack.c.l.b16 %v1796
      %v1867 = vunpack.c.l.b16 %v1797
      %v1868 = vunpack.c.l.b16 %v1798
      %v1869 = vpack.c.b16 %v1836, %v1835
      %v1870 = vpack.c.b16 %v1838, %v1837
      %v1871 = vpack.c.b16 %v1840, %v1839
      %v1872 = vpack.c.b16 %v1842, %v1841
      %v1873 = vpack.c.b16 %v1844, %v1843
      %v1874 = vpack.c.b16 %v1846, %v1845
      %v1875 = vpack.c.b16 %v1848, %v1847
      %v1876 = vpack.c.b16 %v1850, %v1849
      %v1877 = vpack.c.b16 %v1852, %v1851
      %v1878 = vpack.c.b16 %v1854, %v1853
      %v1879 = vpack.c.b16 %v1856, %v1855
      %v1880 = vpack.c.b16 %v1858, %v1857
      %v1881 = vpack.c.b16 %v1860, %v1859
      %v1882 = vpack.c.b16 %v1862, %v1861
      %v1883 = vpack.c.b16 %v1864, %v1863
      %v1884 = vpack.c.b16 %v1866, %v1865
      %v1885 = vpack.c.b16 %v1868, %v1867
      %v1887 = vsel %vm329, %v1869, 0
      %v1890 = vsel %vm329, %v1870, 0
      %v1893 = vsel %vm329, %v1871, 0
      %v1896 = vsel %vm329, %v1872, 0
      %v1899 = vsel %vm329, %v1873, 0
      %v1902 = vsel %vm329, %v1874, 0
      %v1905 = vsel %vm329, %v1875, 0
      %v1908 = vsel %vm329, %v1876, 0
      %v1911 = vsel %vm329, %v1877, 0
      %v1914 = vsel %vm329, %v1878, 0
      %v1917 = vsel %vm329, %v1879, 0
      %v1920 = vsel %vm329, %v1880, 0
      %v1923 = vsel %vm329, %v1881, 0
      %v1926 = vsel %vm329, %v1882, 0
      %v1929 = vsel %vm329, %v1883, 0
      %v1932 = vsel %vm329, %v1884, 0
      %v1935 = vsel %vm329, %v1885, 0
      %v1938 = vsel %vm381, %v1800, 0
      %1940 = vmatprep.subr.bf16.mxu0 0
      %1941 = vmatpush1.bf16.msra.mxu0 %v1938
      %1942 = vmatprep.subr.bf16.mxu0 0
      %1943 = vmatpush1.bf16.msra.mxu0 0
      %1944 = vmatprep.subr.bf16.mxu0 0
      %1945 = vmatpush1.bf16.msra.mxu0 0
      %1946 = vmatprep.subr.bf16.mxu0 0
      %1947 = vmatpush1.bf16.msra.mxu0 0
      %1948 = vmatprep.subr.bf16.mxu0 0
      %1949 = vmatpush1.bf16.msra.mxu0 0
      %1950 = vmatprep.subr.bf16.mxu0 0
      %1951 = vmatpush1.bf16.msra.mxu0 0
      %1952 = vmatprep.subr.bf16.mxu0 0
      %1953 = vmatpush1.bf16.msra.mxu0 0
      %1954 = vmatprep.subr.bf16.mxu0 0
      %1955 = vmatpush1.bf16.msra.mxu0 0
      %1956 = vmatprep.subr.bf16.mxu0 0
      %1957 = vmatpush1.bf16.msra.mxu0 0
      %1958 = vmatprep.subr.bf16.mxu0 0
      %1959 = vmatpush1.bf16.msra.mxu0 0
      %1960 = vmatprep.subr.bf16.mxu0 0
      %1961 = vmatpush1.bf16.msra.mxu0 0
      %1962 = vmatprep.subr.bf16.mxu0 0
      %1963 = vmatpush1.bf16.msra.mxu0 0
      %1964 = vmatprep.subr.bf16.mxu0 0
      %1965 = vmatpush1.bf16.msra.mxu0 0
      %1966 = vmatprep.subr.bf16.mxu0 0
      %1967 = vmatpush1.bf16.msra.mxu0 0
      %1968 = vmatprep.subr.bf16.mxu0 0
      %1969 = vmatpush1.bf16.msra.mxu0 0
      %1970 = vmatprep.subr.bf16.mxu0 0
      %1971 = vmatpush1.bf16.msra.mxu0 0
      %1972 = vmatprep.mubr.bf16.mxu0 0
      %1973 = vmatmul.mubr.bf16.gmra.mrb[0].mxu0 %v1887
      %v1974 = vpop.f32.mrb[0].mxu0
      %v1975 = vadd.f32 0.0, %v1974
      %v1976 = vpop.f32.mrb[0].mxu0
      %v1977 = vpop.f32.mrb[0].mxu0
      %v1978 = vadd.f32 0.0, %v1977
      %v1979 = vpop.f32.mrb[0].mxu0
      %1980 = vmatprep.mubr.bf16.mxu0 0
      %1981 = vmatmul.mubr.bf16.gmra.mrb[0].mxu0 %v1890
      %v1982 = vpop.f32.mrb[0].mxu0
      %v1983 = vadd.f32 0.0, %v1982
      %v1984 = vpop.f32.mrb[0].mxu0
      %v1985 = vpop.f32.mrb[0].mxu0
      %v1986 = vadd.f32 0.0, %v1985
      %v1987 = vpop.f32.mrb[0].mxu0
      %1988 = vmatprep.mubr.bf16.mxu0 0
      %1989 = vmatmul.mubr.bf16.gmra.mrb[0].mxu0 %v1893
      %v1990 = vpop.f32.mrb[0].mxu0
      %v1991 = vadd.f32 0.0, %v1990
      %v1992 = vpop.f32.mrb[0].mxu0
      %v1993 = vpop.f32.mrb[0].mxu0
      %v1994 = vadd.f32 0.0, %v1993
      %v1995 = vpop.f32.mrb[0].mxu0
      %1996 = vmatprep.mubr.bf16.mxu0 0
      %1997 = vmatmul.mubr.bf16.gmra.mrb[0].mxu0 %v1896
      %v1998 = vpop.f32.mrb[0].mxu0
      %v1999 = vadd.f32 0.0, %v1998
      %v2000 = vpop.f32.mrb[0].mxu0
      %v2001 = vpop.f32.mrb[0].mxu0
      %v2002 = vadd.f32 0.0, %v2001
      %v2003 = vpop.f32.mrb[0].mxu0
      %2004 = vmatprep.mubr.bf16.mxu0 0
      %2005 = vmatmul.mubr.bf16.gmra.mrb[0].mxu0 %v1899
      %v2006 = vpop.f32.mrb[0].mxu0
      %v2007 = vadd.f32 0.0, %v2006
      %v2008 = vpop.f32.mrb[0].mxu0
      %v2009 = vpop.f32.mrb[0].mxu0
      %v2010 = vadd.f32 0.0, %v2009
      %v2011 = vpop.f32.mrb[0].mxu0
      %2012 = vmatprep.mubr.bf16.mxu0 0
      %2013 = vmatmul.mubr.bf16.gmra.mrb[0].mxu0 %v1902
      %v2014 = vpop.f32.mrb[0].mxu0
      %v2015 = vadd.f32 0.0, %v2014
      %v2016 = vpop.f32.mrb[0].mxu0
      %v2017 = vpop.f32.mrb[0].mxu0
      %v2018 = vadd.f32 0.0, %v2017
      %v2019 = vpop.f32.mrb[0].mxu0
      %2020 = vmatprep.mubr.bf16.mxu0 0
      %2021 = vmatmul.mubr.bf16.gmra.mrb[0].mxu0 %v1905
      %v2022 = vpop.f32.mrb[0].mxu0
      %v2023 = vadd.f32 0.0, %v2022
      %v2024 = vpop.f32.mrb[0].mxu0
      %v2025 = vpop.f32.mrb[0].mxu0
      %v2026 = vadd.f32 0.0, %v2025
      %v2027 = vpop.f32.mrb[0].mxu0
      %2028 = vmatprep.mubr.bf16.mxu0 0
      %2029 = vmatmul.mubr.bf16.gmra.mrb[0].mxu0 %v1908
      %v2030 = vpop.f32.mrb[0].mxu0
      %v2031 = vadd.f32 0.0, %v2030
      %v2032 = vpop.f32.mrb[0].mxu0
      %v2033 = vpop.f32.mrb[0].mxu0
      %v2034 = vadd.f32 0.0, %v2033
      %v2035 = vpop.f32.mrb[0].mxu0
      %2036 = vmatprep.mubr.bf16.mxu0 0
      %2037 = vmatmul.mubr.bf16.gmra.mrb[0].mxu0 %v1911
      %v2038 = vpop.f32.mrb[0].mxu0
      %v2039 = vadd.f32 0.0, %v2038
      %v2040 = vpop.f32.mrb[0].mxu0
      %v2041 = vpop.f32.mrb[0].mxu0
      %v2042 = vadd.f32 0.0, %v2041
      %v2043 = vpop.f32.mrb[0].mxu0
      %2044 = vmatprep.mubr.bf16.mxu0 0
      %2045 = vmatmul.mubr.bf16.gmra.mrb[0].mxu0 %v1914
      %v2046 = vpop.f32.mrb[0].mxu0
      %v2047 = vadd.f32 0.0, %v2046
      %v2048 = vpop.f32.mrb[0].mxu0
      %v2049 = vpop.f32.mrb[0].mxu0
      %v2050 = vadd.f32 0.0, %v2049
      %v2051 = vpop.f32.mrb[0].mxu0
      %2052 = vmatprep.mubr.bf16.mxu0 0
      %2053 = vmatmul.mubr.bf16.gmra.mrb[0].mxu0 %v1917
      %v2054 = vpop.f32.mrb[0].mxu0
      %v2055 = vadd.f32 0.0, %v2054
      %v2056 = vpop.f32.mrb[0].mxu0
      %v2057 = vpop.f32.mrb[0].mxu0
      %v2058 = vadd.f32 0.0, %v2057
      %v2059 = vpop.f32.mrb[0].mxu0
      %2060 = vmatprep.mubr.bf16.mxu0 0
      %2061 = vmatmul.mubr.bf16.gmra.mrb[0].mxu0 %v1920
      %v2062 = vpop.f32.mrb[0].mxu0
      %v2063 = vadd.f32 0.0, %v2062
      %v2064 = vpop.f32.mrb[0].mxu0
      %v2065 = vpop.f32.mrb[0].mxu0
      %v2066 = vadd.f32 0.0, %v2065
      %v2067 = vpop.f32.mrb[0].mxu0
      %2068 = vmatprep.mubr.bf16.mxu0 0
      %2069 = vmatmul.mubr.bf16.gmra.mrb[0].mxu0 %v1923
      %v2070 = vpop.f32.mrb[0].mxu0
      %v2071 = vadd.f32 0.0, %v2070
      %v2072 = vpop.f32.mrb[0].mxu0
      %v2073 = vpop.f32.mrb[0].mxu0
      %v2074 = vadd.f32 0.0, %v2073
      %v2075 = vpop.f32.mrb[0].mxu0
      %2076 = vmatprep.mubr.bf16.mxu0 0
      %2077 = vmatmul.mubr.bf16.gmra.mrb[0].mxu0 %v1926
      %v2078 = vpop.f32.mrb[0].mxu0
      %v2079 = vadd.f32 0.0, %v2078
      %v2080 = vpop.f32.mrb[0].mxu0
      %v2081 = vpop.f32.mrb[0].mxu0
      %v2082 = vadd.f32 0.0, %v2081
      %v2083 = vpop.f32.mrb[0].mxu0
      %2084 = vmatprep.mubr.bf16.mxu0 0
      %2085 = vmatmul.mubr.bf16.gmra.mrb[0].mxu0 %v1929
      %v2086 = vpop.f32.mrb[0].mxu0
      %v2087 = vadd.f32 0.0, %v2086
      %v2088 = vpop.f32.mrb[0].mxu0
      %v2089 = vpop.f32.mrb[0].mxu0
      %v2090 = vadd.f32 0.0, %v2089
      %v2091 = vpop.f32.mrb[0].mxu0
      %2092 = vmatprep.mubr.bf16.mxu0 0
      %2093 = vmatmul.mubr.bf16.gmra.mrb[0].mxu0 %v1932
      %v2094 = vpop.f32.mrb[0].mxu0
      %v2095 = vadd.f32 0.0, %v2094
      %v2096 = vpop.f32.mrb[0].mxu0
      %v2097 = vpop.f32.mrb[0].mxu0
      %v2098 = vadd.f32 0.0, %v2097
      %v2099 = vpop.f32.mrb[0].mxu0
      %2100 = vmatprep.mubr.bf16.mxu0 0
      %2101 = vmatmul.mubr.bf16.gmra.mrb[0].mxu0 %v1935
      %v2102 = vpop.f32.mrb[0].mxu0
      %v2103 = vadd.f32 0.0, %v2102
      %v2104 = vpop.f32.mrb[0].mxu0
      %v2105 = vpop.f32.mrb[0].mxu0
      %v2106 = vadd.f32 0.0, %v2105
      %v2107 = vpop.f32.mrb[0].mxu0
      %2108 = vdwg.mxu0
      %v2109 = vadd.f32 %v1730, %v1975
      %v2110 = vadd.f32 %v1731, %v1978
      %v2111 = vadd.f32 %v1732, %v1983
      %v2112 = vadd.f32 %v1733, %v1986
      %v2113 = vadd.f32 %v1734, %v1991
      %v2114 = vadd.f32 %v1735, %v1994
      %v2115 = vadd.f32 %v1736, %v1999
      %v2116 = vadd.f32 %v1737, %v2002
      %v2117 = vadd.f32 %v1738, %v2007
      %v2118 = vadd.f32 %v1739, %v2010
      %v2119 = vadd.f32 %v1740, %v2015
      %v2120 = vadd.f32 %v1741, %v2018
      %v2121 = vadd.f32 %v1742, %v2023
      %v2122 = vadd.f32 %v1743, %v2026
      %v2123 = vadd.f32 %v1744, %v2031
      %v2124 = vadd.f32 %v1745, %v2034
      %v2125 = vadd.f32 %v1746, %v2039
      %v2126 = vadd.f32 %v1747, %v2042
      %v2127 = vadd.f32 %v1748, %v2047
      %v2128 = vadd.f32 %v1749, %v2050
      %v2129 = vadd.f32 %v1750, %v2055
      %v2130 = vadd.f32 %v1751, %v2058
      %v2131 = vadd.f32 %v1752, %v2063
      %v2132 = vadd.f32 %v1753, %v2066
      %v2133 = vadd.f32 %v1754, %v2071
      %v2134 = vadd.f32 %v1755, %v2074
      %v2135 = vadd.f32 %v1756, %v2079
      %v2136 = vadd.f32 %v1757, %v2082
      %v2137 = vadd.f32 %v1758, %v2087
      %v2138 = vadd.f32 %v1759, %v2090
      %v2139 = vadd.f32 %v1760, %v2095
      %v2140 = vadd.f32 %v1761, %v2098
      %v2141 = vadd.f32 %v1762, %v2103
      %v2142 = vadd.f32 %v1763, %v2106
      %v2143 = vld [vmem:[%s1385] sm:$0xf]
      %v2144 = vld [vmem:[%s1385 + $0x4] sm:$0xf]
      %v2145 = vld [vmem:[%s1385 + $0x8] sm:$0xf]
      %v2146 = vld [vmem:[%s1385 + $0xc] sm:$0xf]
      %v2147 = vld [vmem:[%s1385 + $0x10] sm:$0xf]
      %v2148 = vld [vmem:[%s1385 + $0x14] sm:$0xf]
      %v2149 = vld [vmem:[%s1385 + $0x18] sm:$0xf]
      %v2150 = vld [vmem:[%s1385 + $0x1c] sm:$0xf]
      %v2151 = vld [vmem:[%s1385 + $0x20] sm:$0xf]
      %v2152 = vld [vmem:[%s1385 + $0x24] sm:$0xf]
      %v2153 = vld [vmem:[%s1385 + $0x28] sm:$0xf]
      %v2154 = vld [vmem:[%s1385 + $0x2c] sm:$0xf]
      %v2155 = vld [vmem:[%s1385 + $0x30] sm:$0xf]
      %v2156 = vld [vmem:[%s1385 + $0x34] sm:$0xf]
      %v2157 = vld [vmem:[%s1385 + $0x38] sm:$0xf]
      %v2158 = vld [vmem:[%s1385 + $0x3c] sm:$0xf]
      %v2159 = vld [vmem:[%s1385 + $0x40] sm:$0xf]
      %v2160 = vld [vmem:[%s1385 + $0x44] sm:$0xf]
      %v2161 = vld [vmem:[%s1385 + $0x48] sm:$0xf]
      %v2162 = vld [vmem:[%s1385 + $0x4c] sm:$0xf]
      %v2163 = vld [vmem:[%s1385 + $0x50] sm:$0xf]
      %v2164 = vld [vmem:[%s1385 + $0x54] sm:$0xf]
      %v2165 = vld [vmem:[%s1385 + $0x58] sm:$0xf]
      %v2166 = vld [vmem:[%s1385 + $0x5c] sm:$0xf]
      %v2167 = vld [vmem:[%s1385 + $0x60] sm:$0xf]
      %v2168 = vld [vmem:[%s1385 + $0x64] sm:$0xf]
      %v2169 = vld [vmem:[%s1385 + $0x68] sm:$0xf]
      %v2170 = vld [vmem:[%s1385 + $0x6c] sm:$0xf]
      %v2171 = vld [vmem:[%s1385 + $0x70] sm:$0xf]
      %v2172 = vld [vmem:[%s1385 + $0x74] sm:$0xf]
      %v2173 = vld [vmem:[%s1385 + $0x78] sm:$0xf]
      %v2174 = vld [vmem:[%s1385 + $0x7c] sm:$0xf]
      %v2175 = vld [vmem:[%s1385 + $0x80] sm:$0xf]
      %v2176 = vld [vmem:[%s1385 + $0x84] sm:$0xf]
      %v2177 = vld [vmem:[%s1385 + $0x88] sm:$0x1]
      %s2178 = scalar_lea.vmem %s1, 10
      %v2179 = vld [vmem:[%s2178] sm:$0x3]
      %v2215 = vunpack.c.l.b16 %v2143
      %v2216 = vunpack.c.l.b16 %v2144
      %v2217 = vunpack.c.l.b16 %v2145
      %v2218 = vunpack.c.l.b16 %v2146
      %v2219 = vunpack.c.l.b16 %v2147
      %v2220 = vunpack.c.l.b16 %v2148
      %v2221 = vunpack.c.l.b16 %v2149
      %v2222 = vunpack.c.l.b16 %v2150
      %v2223 = vunpack.c.l.b16 %v2151
      %v2224 = vunpack.c.l.b16 %v2152
      %v2225 = vunpack.c.l.b16 %v2153
      %v2226 = vunpack.c.l.b16 %v2154
      %v2227 = vunpack.c.l.b16 %v2155
      %v2228 = vunpack.c.l.b16 %v2156
      %v2229 = vunpack.c.l.b16 %v2157
      %v2230 = vunpack.c.l.b16 %v2158
      %v2231 = vunpack.c.l.b16 %v2159
      %v2232 = vunpack.c.l.b16 %v2160
      %v2233 = vunpack.c.l.b16 %v2161
      %v2234 = vunpack.c.l.b16 %v2162
      %v2235 = vunpack.c.l.b16 %v2163
      %v2236 = vunpack.c.l.b16 %v2164
      %v2237 = vunpack.c.l.b16 %v2165
      %v2238 = vunpack.c.l.b16 %v2166
      %v2239 = vunpack.c.l.b16 %v2167
      %v2240 = vunpack.c.l.b16 %v2168
      %v2241 = vunpack.c.l.b16 %v2169
      %v2242 = vunpack.c.l.b16 %v2170
      %v2243 = vunpack.c.l.b16 %v2171
      %v2244 = vunpack.c.l.b16 %v2172
      %v2245 = vunpack.c.l.b16 %v2173
      %v2246 = vunpack.c.l.b16 %v2174
      %v2247 = vunpack.c.l.b16 %v2175
      %v2248 = vunpack.c.l.b16 %v2176
      %v2249 = vunpack.c.l.b16 %v2177
      %v2250 = vpack.c.b16 %v2216, %v2215
      %v2251 = vpack.c.b16 %v2218, %v2217
      %v2252 = vpack.c.b16 %v2220, %v2219
      %v2253 = vpack.c.b16 %v2222, %v2221
      %v2254 = vpack.c.b16 %v2224, %v2223
      %v2255 = vpack.c.b16 %v2226, %v2225
      %v2256 = vpack.c.b16 %v2228, %v2227
      %v2257 = vpack.c.b16 %v2230, %v2229
      %v2258 = vpack.c.b16 %v2232, %v2231
      %v2259 = vpack.c.b16 %v2234, %v2233
      %v2260 = vpack.c.b16 %v2236, %v2235
      %v2261 = vpack.c.b16 %v2238, %v2237
      %v2262 = vpack.c.b16 %v2240, %v2239
      %v2263 = vpack.c.b16 %v2242, %v2241
      %v2264 = vpack.c.b16 %v2244, %v2243
      %v2265 = vpack.c.b16 %v2246, %v2245
      %v2266 = vpack.c.b16 %v2248, %v2247
      %v2267 = vpack.c.b16 %v2249, %v2249
      %v2269 = vshrl.u32 %v2250, 16
      %v2271 = vshll.u32 %v2250, 16
      %v2273 = vrot.slane %v2271, 1
      %v2274 = vor.u32 %v2269, %v2273
      %v2276 = vshll.u32 %v2251, 16
      %v2278 = vrot.slane %v2276, 1
      %v2279 = vsel %vm987, %v2274, %v2278
      %v2280 = vshrl.u32 %v2251, 16
      %v2282 = vor.u32 %v2280, %v2278
      %v2284 = vshll.u32 %v2252, 16
      %v2286 = vrot.slane %v2284, 1
      %v2287 = vsel %vm987, %v2282, %v2286
      %v2288 = vshrl.u32 %v2252, 16
      %v2290 = vor.u32 %v2288, %v2286
      %v2292 = vshll.u32 %v2253, 16
      %v2294 = vrot.slane %v2292, 1
      %v2295 = vsel %vm987, %v2290, %v2294
      %v2296 = vshrl.u32 %v2253, 16
      %v2298 = vor.u32 %v2296, %v2294
      %v2300 = vshll.u32 %v2254, 16
      %v2302 = vrot.slane %v2300, 1
      %v2303 = vsel %vm987, %v2298, %v2302
      %v2304 = vshrl.u32 %v2254, 16
      %v2306 = vor.u32 %v2304, %v2302
      %v2308 = vshll.u32 %v2255, 16
      %v2310 = vrot.slane %v2308, 1
      %v2311 = vsel %vm987, %v2306, %v2310
      %v2312 = vshrl.u32 %v2255, 16
      %v2314 = vor.u32 %v2312, %v2310
      %v2316 = vshll.u32 %v2256, 16
      %v2318 = vrot.slane %v2316, 1
      %v2319 = vsel %vm987, %v2314, %v2318
      %v2320 = vshrl.u32 %v2256, 16
      %v2322 = vor.u32 %v2320, %v2318
      %v2324 = vshll.u32 %v2257, 16
      %v2326 = vrot.slane %v2324, 1
      %v2327 = vsel %vm987, %v2322, %v2326
      %v2328 = vshrl.u32 %v2257, 16
      %v2330 = vor.u32 %v2328, %v2326
      %v2332 = vshll.u32 %v2258, 16
      %v2334 = vrot.slane %v2332, 1
      %v2335 = vsel %vm987, %v2330, %v2334
      %v2336 = vshrl.u32 %v2258, 16
      %v2338 = vor.u32 %v2336, %v2334
      %v2340 = vshll.u32 %v2259, 16
      %v2342 = vrot.slane %v2340, 1
      %v2343 = vsel %vm987, %v2338, %v2342
      %v2344 = vshrl.u32 %v2259, 16
      %v2346 = vor.u32 %v2344, %v2342
      %v2348 = vshll.u32 %v2260, 16
      %v2350 = vrot.slane %v2348, 1
      %v2351 = vsel %vm987, %v2346, %v2350
      %v2352 = vshrl.u32 %v2260, 16
      %v2354 = vor.u32 %v2352, %v2350
      %v2356 = vshll.u32 %v2261, 16
      %v2358 = vrot.slane %v2356, 1
      %v2359 = vsel %vm987, %v2354, %v2358
      %v2360 = vshrl.u32 %v2261, 16
      %v2362 = vor.u32 %v2360, %v2358
      %v2364 = vshll.u32 %v2262, 16
      %v2366 = vrot.slane %v2364, 1
      %v2367 = vsel %vm987, %v2362, %v2366
      %v2368 = vshrl.u32 %v2262, 16
      %v2370 = vor.u32 %v2368, %v2366
      %v2372 = vshll.u32 %v2263, 16
      %v2374 = vrot.slane %v2372, 1
      %v2375 = vsel %vm987, %v2370, %v2374
      %v2376 = vshrl.u32 %v2263, 16
      %v2378 = vor.u32 %v2376, %v2374
      %v2380 = vshll.u32 %v2264, 16
      %v2382 = vrot.slane %v2380, 1
      %v2383 = vsel %vm987, %v2378, %v2382
      %v2384 = vshrl.u32 %v2264, 16
      %v2386 = vor.u32 %v2384, %v2382
      %v2388 = vshll.u32 %v2265, 16
      %v2390 = vrot.slane %v2388, 1
      %v2391 = vsel %vm987, %v2386, %v2390
      %v2392 = vshrl.u32 %v2265, 16
      %v2394 = vor.u32 %v2392, %v2390
      %v2396 = vshll.u32 %v2266, 16
      %v2398 = vrot.slane %v2396, 1
      %v2399 = vsel %vm987, %v2394, %v2398
      %v2400 = vshrl.u32 %v2266, 16
      %v2402 = vor.u32 %v2400, %v2398
      %v2404 = vshll.u32 %v2267, 16
      %v2406 = vrot.slane %v2404, 1
      %v2407 = vsel %vm987, %v2402, %v2406
      %v2409 = vsel %vm329, %v2279, 0
      %v2412 = vsel %vm329, %v2287, 0
      %v2415 = vsel %vm329, %v2295, 0
      %v2418 = vsel %vm329, %v2303, 0
      %v2421 = vsel %vm329, %v2311, 0
      %v2424 = vsel %vm329, %v2319, 0
      %v2427 = vsel %vm329, %v2327, 0
      %v2430 = vsel %vm329, %v2335, 0
      %v2433 = vsel %vm329, %v2343, 0
      %v2436 = vsel %vm329, %v2351, 0
      %v2439 = vsel %vm329, %v2359, 0
      %v2442 = vsel %vm329, %v2367, 0
      %v2445 = vsel %vm329, %v2375, 0
      %v2448 = vsel %vm329, %v2383, 0
      %v2451 = vsel %vm329, %v2391, 0
      %v2454 = vsel %vm329, %v2399, 0
      %v2457 = vsel %vm329, %v2407, 0
      %v2460 = vsel %vm381, %v2179, 0
      %2462 = vmatprep.subr.bf16.mxu0 0
      %2463 = vmatpush1.bf16.msra.mxu0 %v2460
      %2464 = vmatprep.subr.bf16.mxu0 0
      %2465 = vmatpush1.bf16.msra.mxu0 0
      %2466 = vmatprep.subr.bf16.mxu0 0
      %2467 = vmatpush1.bf16.msra.mxu0 0
      %2468 = vmatprep.subr.bf16.mxu0 0
      %2469 = vmatpush1.bf16.msra.mxu0 0
      %2470 = vmatprep.subr.bf16.mxu0 0
      %2471 = vmatpush1.bf16.msra.mxu0 0
      %2472 = vmatprep.subr.bf16.mxu0 0
      %2473 = vmatpush1.bf16.msra.mxu0 0
      %2474 = vmatprep.subr.bf16.mxu0 0
      %2475 = vmatpush1.bf16.msra.mxu0 0
      %2476 = vmatprep.subr.bf16.mxu0 0
      %2477 = vmatpush1.bf16.msra.mxu0 0
      %2478 = vmatprep.subr.bf16.mxu0 0
      %2479 = vmatpush1.bf16.msra.mxu0 0
      %2480 = vmatprep.subr.bf16.mxu0 0
      %2481 = vmatpush1.bf16.msra.mxu0 0
      %2482 = vmatprep.subr.bf16.mxu0 0
      %2483 = vmatpush1.bf16.msra.mxu0 0
      %2484 = vmatprep.subr.bf16.mxu0 0
      %2485 = vmatpush1.bf16.msra.mxu0 0
      %2486 = vmatprep.subr.bf16.mxu0 0
      %2487 = vmatpush1.bf16.msra.mxu0 0
      %2488 = vmatprep.subr.bf16.mxu0 0
      %2489 = vmatpush1.bf16.msra.mxu0 0
      %2490 = vmatprep.subr.bf16.mxu0 0
      %2491 = vmatpush1.bf16.msra.mxu0 0
      %2492 = vmatprep.subr.bf16.mxu0 0
      %2493 = vmatpush1.bf16.msra.mxu0 0
      %2494 = vmatprep.mubr.bf16.mxu0 0
      %2495 = vmatmul.mubr.bf16.gmra.mrb[0].mxu0 %v2409
      %v2496 = vpop.f32.mrb[0].mxu0
      %v2497 = vadd.f32 0.0, %v2496
      %v2498 = vpop.f32.mrb[0].mxu0
      %v2499 = vpop.f32.mrb[0].mxu0
      %v2500 = vadd.f32 0.0, %v2499
      %v2501 = vpop.f32.mrb[0].mxu0
      %2502 = vmatprep.mubr.bf16.mxu0 0
      %2503 = vmatmul.mubr.bf16.gmra.mrb[0].mxu0 %v2412
      %v2504 = vpop.f32.mrb[0].mxu0
      %v2505 = vadd.f32 0.0, %v2504
      %v2506 = vpop.f32.mrb[0].mxu0
      %v2507 = vpop.f32.mrb[0].mxu0
      %v2508 = vadd.f32 0.0, %v2507
      %v2509 = vpop.f32.mrb[0].mxu0
      %2510 = vmatprep.mubr.bf16.mxu0 0
      %2511 = vmatmul.mubr.bf16.gmra.mrb[0].mxu0 %v2415
      %v2512 = vpop.f32.mrb[0].mxu0
      %v2513 = vadd.f32 0.0, %v2512
      %v2514 = vpop.f32.mrb[0].mxu0
      %v2515 = vpop.f32.mrb[0].mxu0
      %v2516 = vadd.f32 0.0, %v2515
      %v2517 = vpop.f32.mrb[0].mxu0
      %2518 = vmatprep.mubr.bf16.mxu0 0
      %2519 = vmatmul.mubr.bf16.gmra.mrb[0].mxu0 %v2418
      %v2520 = vpop.f32.mrb[0].mxu0
      %v2521 = vadd.f32 0.0, %v2520
      %v2522 = vpop.f32.mrb[0].mxu0
      %v2523 = vpop.f32.mrb[0].mxu0
      %v2524 = vadd.f32 0.0, %v2523
      %v2525 = vpop.f32.mrb[0].mxu0
      %2526 = vmatprep.mubr.bf16.mxu0 0
      %2527 = vmatmul.mubr.bf16.gmra.mrb[0].mxu0 %v2421
      %v2528 = vpop.f32.mrb[0].mxu0
      %v2529 = vadd.f32 0.0, %v2528
      %v2530 = vpop.f32.mrb[0].mxu0
      %v2531 = vpop.f32.mrb[0].mxu0
      %v2532 = vadd.f32 0.0, %v2531
      %v2533 = vpop.f32.mrb[0].mxu0
      %2534 = vmatprep.mubr.bf16.mxu0 0
      %2535 = vmatmul.mubr.bf16.gmra.mrb[0].mxu0 %v2424
      %v2536 = vpop.f32.mrb[0].mxu0
      %v2537 = vadd.f32 0.0, %v2536
      %v2538 = vpop.f32.mrb[0].mxu0
      %v2539 = vpop.f32.mrb[0].mxu0
      %v2540 = vadd.f32 0.0, %v2539
      %v2541 = vpop.f32.mrb[0].mxu0
      %2542 = vmatprep.mubr.bf16.mxu0 0
      %2543 = vmatmul.mubr.bf16.gmra.mrb[0].mxu0 %v2427
      %v2544 = vpop.f32.mrb[0].mxu0
      %v2545 = vadd.f32 0.0, %v2544
      %v2546 = vpop.f32.mrb[0].mxu0
      %v2547 = vpop.f32.mrb[0].mxu0
      %v2548 = vadd.f32 0.0, %v2547
      %v2549 = vpop.f32.mrb[0].mxu0
      %2550 = vmatprep.mubr.bf16.mxu0 0
      %2551 = vmatmul.mubr.bf16.gmra.mrb[0].mxu0 %v2430
      %v2552 = vpop.f32.mrb[0].mxu0
      %v2553 = vadd.f32 0.0, %v2552
      %v2554 = vpop.f32.mrb[0].mxu0
      %v2555 = vpop.f32.mrb[0].mxu0
      %v2556 = vadd.f32 0.0, %v2555
      %v2557 = vpop.f32.mrb[0].mxu0
      %2558 = vmatprep.mubr.bf16.mxu0 0
      %2559 = vmatmul.mubr.bf16.gmra.mrb[0].mxu0 %v2433
      %v2560 = vpop.f32.mrb[0].mxu0
      %v2561 = vadd.f32 0.0, %v2560
      %v2562 = vpop.f32.mrb[0].mxu0
      %v2563 = vpop.f32.mrb[0].mxu0
      %v2564 = vadd.f32 0.0, %v2563
      %v2565 = vpop.f32.mrb[0].mxu0
      %2566 = vmatprep.mubr.bf16.mxu0 0
      %2567 = vmatmul.mubr.bf16.gmra.mrb[0].mxu0 %v2436
      %v2568 = vpop.f32.mrb[0].mxu0
      %v2569 = vadd.f32 0.0, %v2568
      %v2570 = vpop.f32.mrb[0].mxu0
      %v2571 = vpop.f32.mrb[0].mxu0
      %v2572 = vadd.f32 0.0, %v2571
      %v2573 = vpop.f32.mrb[0].mxu0
      %2574 = vmatprep.mubr.bf16.mxu0 0
      %2575 = vmatmul.mubr.bf16.gmra.mrb[0].mxu0 %v2439
      %v2576 = vpop.f32.mrb[0].mxu0
      %v2577 = vadd.f32 0.0, %v2576
      %v2578 = vpop.f32.mrb[0].mxu0
      %v2579 = vpop.f32.mrb[0].mxu0
      %v2580 = vadd.f32 0.0, %v2579
      %v2581 = vpop.f32.mrb[0].mxu0
      %2582 = vmatprep.mubr.bf16.mxu0 0
      %2583 = vmatmul.mubr.bf16.gmra.mrb[0].mxu0 %v2442
      %v2584 = vpop.f32.mrb[0].mxu0
      %v2585 = vadd.f32 0.0, %v2584
      %v2586 = vpop.f32.mrb[0].mxu0
      %v2587 = vpop.f32.mrb[0].mxu0
      %v2588 = vadd.f32 0.0, %v2587
      %v2589 = vpop.f32.mrb[0].mxu0
      %2590 = vmatprep.mubr.bf16.mxu0 0
      %2591 = vmatmul.mubr.bf16.gmra.mrb[0].mxu0 %v2445
      %v2592 = vpop.f32.mrb[0].mxu0
      %v2593 = vadd.f32 0.0, %v2592
      %v2594 = vpop.f32.mrb[0].mxu0
      %v2595 = vpop.f32.mrb[0].mxu0
      %v2596 = vadd.f32 0.0, %v2595
      %v2597 = vpop.f32.mrb[0].mxu0
      %2598 = vmatprep.mubr.bf16.mxu0 0
      %2599 = vmatmul.mubr.bf16.gmra.mrb[0].mxu0 %v2448
      %v2600 = vpop.f32.mrb[0].mxu0
      %v2601 = vadd.f32 0.0, %v2600
      %v2602 = vpop.f32.mrb[0].mxu0
      %v2603 = vpop.f32.mrb[0].mxu0
      %v2604 = vadd.f32 0.0, %v2603
      %v2605 = vpop.f32.mrb[0].mxu0
      %2606 = vmatprep.mubr.bf16.mxu0 0
      %2607 = vmatmul.mubr.bf16.gmra.mrb[0].mxu0 %v2451
      %v2608 = vpop.f32.mrb[0].mxu0
      %v2609 = vadd.f32 0.0, %v2608
      %v2610 = vpop.f32.mrb[0].mxu0
      %v2611 = vpop.f32.mrb[0].mxu0
      %v2612 = vadd.f32 0.0, %v2611
      %v2613 = vpop.f32.mrb[0].mxu0
      %2614 = vmatprep.mubr.bf16.mxu0 0
      %2615 = vmatmul.mubr.bf16.gmra.mrb[0].mxu0 %v2454
      %v2616 = vpop.f32.mrb[0].mxu0
      %v2617 = vadd.f32 0.0, %v2616
      %v2618 = vpop.f32.mrb[0].mxu0
      %v2619 = vpop.f32.mrb[0].mxu0
      %v2620 = vadd.f32 0.0, %v2619
      %v2621 = vpop.f32.mrb[0].mxu0
      %2622 = vmatprep.mubr.bf16.mxu0 0
      %2623 = vmatmul.mubr.bf16.gmra.mrb[0].mxu0 %v2457
      %v2624 = vpop.f32.mrb[0].mxu0
      %v2625 = vadd.f32 0.0, %v2624
      %v2626 = vpop.f32.mrb[0].mxu0
      %v2627 = vpop.f32.mrb[0].mxu0
      %v2628 = vadd.f32 0.0, %v2627
      %v2629 = vpop.f32.mrb[0].mxu0
      %2630 = vdwg.mxu0
      %v2631 = vadd.f32 %v2109, %v2497
      %v2632 = vadd.f32 %v2110, %v2500
      %v2633 = vadd.f32 %v2111, %v2505
      %v2634 = vadd.f32 %v2112, %v2508
      %v2635 = vadd.f32 %v2113, %v2513
      %v2636 = vadd.f32 %v2114, %v2516
      %v2637 = vadd.f32 %v2115, %v2521
      %v2638 = vadd.f32 %v2116, %v2524
      %v2639 = vadd.f32 %v2117, %v2529
      %v2640 = vadd.f32 %v2118, %v2532
      %v2641 = vadd.f32 %v2119, %v2537
      %v2642 = vadd.f32 %v2120, %v2540
      %v2643 = vadd.f32 %v2121, %v2545
      %v2644 = vadd.f32 %v2122, %v2548
      %v2645 = vadd.f32 %v2123, %v2553
      %v2646 = vadd.f32 %v2124, %v2556
      %v2647 = vadd.f32 %v2125, %v2561
      %v2648 = vadd.f32 %v2126, %v2564
      %v2649 = vadd.f32 %v2127, %v2569
      %v2650 = vadd.f32 %v2128, %v2572
      %v2651 = vadd.f32 %v2129, %v2577
      %v2652 = vadd.f32 %v2130, %v2580
      %v2653 = vadd.f32 %v2131, %v2585
      %v2654 = vadd.f32 %v2132, %v2588
      %v2655 = vadd.f32 %v2133, %v2593
      %v2656 = vadd.f32 %v2134, %v2596
      %v2657 = vadd.f32 %v2135, %v2601
      %v2658 = vadd.f32 %v2136, %v2604
      %v2659 = vadd.f32 %v2137, %v2609
      %v2660 = vadd.f32 %v2138, %v2612
      %v2661 = vadd.f32 %v2139, %v2617
      %v2662 = vadd.f32 %v2140, %v2620
      %v2663 = vadd.f32 %v2141, %v2625
      %v2664 = vadd.f32 %v2142, %v2628
      %v2665 = vld [vmem:[%s165 + $0x8] sm:$0xf]
      %v2666 = vld [vmem:[%s165 + $0xc] sm:$0xf]
      %v2667 = vld [vmem:[%s165 + $0x10] sm:$0xf]
      %v2668 = vld [vmem:[%s165 + $0x14] sm:$0xf]
      %v2669 = vld [vmem:[%s165 + $0x18] sm:$0xf]
      %v2670 = vld [vmem:[%s165 + $0x1c] sm:$0xf]
      %v2671 = vld [vmem:[%s165 + $0x20] sm:$0xf]
      %v2672 = vld [vmem:[%s165 + $0x24] sm:$0xf]
      %v2673 = vld [vmem:[%s165 + $0x28] sm:$0xf]
      %v2674 = vld [vmem:[%s165 + $0x2c] sm:$0xf]
      %v2675 = vld [vmem:[%s165 + $0x30] sm:$0xf]
      %v2676 = vld [vmem:[%s165 + $0x34] sm:$0xf]
      %v2677 = vld [vmem:[%s165 + $0x38] sm:$0xf]
      %v2678 = vld [vmem:[%s165 + $0x3c] sm:$0xf]
      %v2679 = vld [vmem:[%s165 + $0x40] sm:$0xf]
      %v2680 = vld [vmem:[%s165 + $0x44] sm:$0xf]
      %v2681 = vld [vmem:[%s165 + $0x48] sm:$0xf]
      %v2682 = vld [vmem:[%s165 + $0x4c] sm:$0xf]
      %v2683 = vld [vmem:[%s165 + $0x50] sm:$0xf]
      %v2684 = vld [vmem:[%s165 + $0x54] sm:$0xf]
      %v2685 = vld [vmem:[%s165 + $0x58] sm:$0xf]
      %v2686 = vld [vmem:[%s165 + $0x5c] sm:$0xf]
      %v2687 = vld [vmem:[%s165 + $0x60] sm:$0xf]
      %v2688 = vld [vmem:[%s165 + $0x64] sm:$0xf]
      %v2689 = vld [vmem:[%s165 + $0x68] sm:$0xf]
      %v2690 = vld [vmem:[%s165 + $0x6c] sm:$0xf]
      %v2691 = vld [vmem:[%s165 + $0x70] sm:$0xf]
      %v2692 = vld [vmem:[%s165 + $0x74] sm:$0xf]
      %v2693 = vld [vmem:[%s165 + $0x78] sm:$0xf]
      %v2694 = vld [vmem:[%s165 + $0x7c] sm:$0xf]
      %v2695 = vld [vmem:[%s165 + $0x80] sm:$0xf]
      %v2696 = vld [vmem:[%s165 + $0x84] sm:$0xf]
      %v2697 = vld [vmem:[%s165 + $0x88] sm:$0xf]
      %v2698 = vld [vmem:[%s165 + $0x8c] sm:$0xf]
      %v2699 = vld [vmem:[%s165 + $0x90] sm:$0x1]
      %s2700 = scalar_lea.vmem %s1, 12
      %v2701 = vld [vmem:[%s2700] sm:$0x3]
      %v2737 = vunpack.c.l.b16 %v2665
      %v2738 = vunpack.c.l.b16 %v2666
      %v2739 = vunpack.c.l.b16 %v2667
      %v2740 = vunpack.c.l.b16 %v2668
      %v2741 = vunpack.c.l.b16 %v2669
      %v2742 = vunpack.c.l.b16 %v2670
      %v2743 = vunpack.c.l.b16 %v2671
      %v2744 = vunpack.c.l.b16 %v2672
      %v2745 = vunpack.c.l.b16 %v2673
      %v2746 = vunpack.c.l.b16 %v2674
      %v2747 = vunpack.c.l.b16 %v2675
      %v2748 = vunpack.c.l.b16 %v2676
      %v2749 = vunpack.c.l.b16 %v2677
      %v2750 = vunpack.c.l.b16 %v2678
      %v2751 = vunpack.c.l.b16 %v2679
      %v2752 = vunpack.c.l.b16 %v2680
      %v2753 = vunpack.c.l.b16 %v2681
      %v2754 = vunpack.c.l.b16 %v2682
      %v2755 = vunpack.c.l.b16 %v2683
      %v2756 = vunpack.c.l.b16 %v2684
      %v2757 = vunpack.c.l.b16 %v2685
      %v2758 = vunpack.c.l.b16 %v2686
      %v2759 = vunpack.c.l.b16 %v2687
      %v2760 = vunpack.c.l.b16 %v2688
      %v2761 = vunpack.c.l.b16 %v2689
      %v2762 = vunpack.c.l.b16 %v2690
      %v2763 = vunpack.c.l.b16 %v2691
      %v2764 = vunpack.c.l.b16 %v2692
      %v2765 = vunpack.c.l.b16 %v2693
      %v2766 = vunpack.c.l.b16 %v2694
      %v2767 = vunpack.c.l.b16 %v2695
      %v2768 = vunpack.c.l.b16 %v2696
      %v2769 = vunpack.c.l.b16 %v2697
      %v2770 = vunpack.c.l.b16 %v2698
      %v2771 = vunpack.c.l.b16 %v2699
      %v2772 = vpack.c.b16 %v2738, %v2737
      %v2773 = vpack.c.b16 %v2740, %v2739
      %v2774 = vpack.c.b16 %v2742, %v2741
      %v2775 = vpack.c.b16 %v2744, %v2743
      %v2776 = vpack.c.b16 %v2746, %v2745
      %v2777 = vpack.c.b16 %v2748, %v2747
      %v2778 = vpack.c.b16 %v2750, %v2749
      %v2779 = vpack.c.b16 %v2752, %v2751
      %v2780 = vpack.c.b16 %v2754, %v2753
      %v2781 = vpack.c.b16 %v2756, %v2755
      %v2782 = vpack.c.b16 %v2758, %v2757
      %v2783 = vpack.c.b16 %v2760, %v2759
      %v2784 = vpack.c.b16 %v2762, %v2761
      %v2785 = vpack.c.b16 %v2764, %v2763
      %v2786 = vpack.c.b16 %v2766, %v2765
      %v2787 = vpack.c.b16 %v2768, %v2767
      %v2788 = vpack.c.b16 %v2770, %v2769
      %v2789 = vpack.c.b16 %v2771, %v2771
      %v2791 = vshrl.u32 %v2772, 16
      %v2793 = vshll.u32 %v2772, 16
      %v2795 = vrot.slane %v2793, 1
      %v2796 = vor.u32 %v2791, %v2795
      %v2798 = vshll.u32 %v2773, 16
      %v2800 = vrot.slane %v2798, 1
      %v2801 = vsel %vm987, %v2796, %v2800
      %v2802 = vshrl.u32 %v2773, 16
      %v2804 = vor.u32 %v2802, %v2800
      %v2806 = vshll.u32 %v2774, 16
      %v2808 = vrot.slane %v2806, 1
      %v2809 = vsel %vm987, %v2804, %v2808
      %v2810 = vshrl.u32 %v2774, 16
      %v2812 = vor.u32 %v2810, %v2808
      %v2814 = vshll.u32 %v2775, 16
      %v2816 = vrot.slane %v2814, 1
      %v2817 = vsel %vm987, %v2812, %v2816
      %v2818 = vshrl.u32 %v2775, 16
      %v2820 = vor.u32 %v2818, %v2816
      %v2822 = vshll.u32 %v2776, 16
      %v2824 = vrot.slane %v2822, 1
      %v2825 = vsel %vm987, %v2820, %v2824
      %v2826 = vshrl.u32 %v2776, 16
      %v2828 = vor.u32 %v2826, %v2824
      %v2830 = vshll.u32 %v2777, 16
      %v2832 = vrot.slane %v2830, 1
      %v2833 = vsel %vm987, %v2828, %v2832
      %v2834 = vshrl.u32 %v2777, 16
      %v2836 = vor.u32 %v2834, %v2832
      %v2838 = vshll.u32 %v2778, 16
      %v2840 = vrot.slane %v2838, 1
      %v2841 = vsel %vm987, %v2836, %v2840
      %v2842 = vshrl.u32 %v2778, 16
      %v2844 = vor.u32 %v2842, %v2840
      %v2846 = vshll.u32 %v2779, 16
      %v2848 = vrot.slane %v2846, 1
      %v2849 = vsel %vm987, %v2844, %v2848
      %v2850 = vshrl.u32 %v2779, 16
      %v2852 = vor.u32 %v2850, %v2848
      %v2854 = vshll.u32 %v2780, 16
      %v2856 = vrot.slane %v2854, 1
      %v2857 = vsel %vm987, %v2852, %v2856
      %v2858 = vshrl.u32 %v2780, 16
      %v2860 = vor.u32 %v2858, %v2856
      %v2862 = vshll.u32 %v2781, 16
      %v2864 = vrot.slane %v2862, 1
      %v2865 = vsel %vm987, %v2860, %v2864
      %v2866 = vshrl.u32 %v2781, 16
      %v2868 = vor.u32 %v2866, %v2864
      %v2870 = vshll.u32 %v2782, 16
      %v2872 = vrot.slane %v2870, 1
      %v2873 = vsel %vm987, %v2868, %v2872
      %v2874 = vshrl.u32 %v2782, 16
      %v2876 = vor.u32 %v2874, %v2872
      %v2878 = vshll.u32 %v2783, 16
      %v2880 = vrot.slane %v2878, 1
      %v2881 = vsel %vm987, %v2876, %v2880
      %v2882 = vshrl.u32 %v2783, 16
      %v2884 = vor.u32 %v2882, %v2880
      %v2886 = vshll.u32 %v2784, 16
      %v2888 = vrot.slane %v2886, 1
      %v2889 = vsel %vm987, %v2884, %v2888
      %v2890 = vshrl.u32 %v2784, 16
      %v2892 = vor.u32 %v2890, %v2888
      %v2894 = vshll.u32 %v2785, 16
      %v2896 = vrot.slane %v2894, 1
      %v2897 = vsel %vm987, %v2892, %v2896
      %v2898 = vshrl.u32 %v2785, 16
      %v2900 = vor.u32 %v2898, %v2896
      %v2902 = vshll.u32 %v2786, 16
      %v2904 = vrot.slane %v2902, 1
      %v2905 = vsel %vm987, %v2900, %v2904
      %v2906 = vshrl.u32 %v2786, 16
      %v2908 = vor.u32 %v2906, %v2904
      %v2910 = vshll.u32 %v2787, 16
      %v2912 = vrot.slane %v2910, 1
      %v2913 = vsel %vm987, %v2908, %v2912
      %v2914 = vshrl.u32 %v2787, 16
      %v2916 = vor.u32 %v2914, %v2912
      %v2918 = vshll.u32 %v2788, 16
      %v2920 = vrot.slane %v2918, 1
      %v2921 = vsel %vm987, %v2916, %v2920
      %v2922 = vshrl.u32 %v2788, 16
      %v2924 = vor.u32 %v2922, %v2920
      %v2926 = vshll.u32 %v2789, 16
      %v2928 = vrot.slane %v2926, 1
      %v2929 = vsel %vm987, %v2924, %v2928
      %v2931 = vsel %vm329, %v2801, 0
      %v2934 = vsel %vm329, %v2809, 0
      %v2937 = vsel %vm329, %v2817, 0
      %v2940 = vsel %vm329, %v2825, 0
      %v2943 = vsel %vm329, %v2833, 0
      %v2946 = vsel %vm329, %v2841, 0
      %v2949 = vsel %vm329, %v2849, 0
      %v2952 = vsel %vm329, %v2857, 0
      %v2955 = vsel %vm329, %v2865, 0
      %v2958 = vsel %vm329, %v2873, 0
      %v2961 = vsel %vm329, %v2881, 0
      %v2964 = vsel %vm329, %v2889, 0
      %v2967 = vsel %vm329, %v2897, 0
      %v2970 = vsel %vm329, %v2905, 0
      %v2973 = vsel %vm329, %v2913, 0
      %v2976 = vsel %vm329, %v2921, 0
      %v2979 = vsel %vm329, %v2929, 0
      %v2982 = vsel %vm381, %v2701, 0
      %2984 = vmatprep.subr.bf16.mxu0 0
      %2985 = vmatpush1.bf16.msra.mxu0 %v2982
      %2986 = vmatprep.subr.bf16.mxu0 0
      %2987 = vmatpush1.bf16.msra.mxu0 0
      %2988 = vmatprep.subr.bf16.mxu0 0
      %2989 = vmatpush1.bf16.msra.mxu0 0
      %2990 = vmatprep.subr.bf16.mxu0 0
      %2991 = vmatpush1.bf16.msra.mxu0 0
      %2992 = vmatprep.subr.bf16.mxu0 0
      %2993 = vmatpush1.bf16.msra.mxu0 0
      %2994 = vmatprep.subr.bf16.mxu0 0
      %2995 = vmatpush1.bf16.msra.mxu0 0
      %2996 = vmatprep.subr.bf16.mxu0 0
      %2997 = vmatpush1.bf16.msra.mxu0 0
      %2998 = vmatprep.subr.bf16.mxu0 0
      %2999 = vmatpush1.bf16.msra.mxu0 0
      %3000 = vmatprep.subr.bf16.mxu0 0
      %3001 = vmatpush1.bf16.msra.mxu0 0
      %3002 = vmatprep.subr.bf16.mxu0 0
      %3003 = vmatpush1.bf16.msra.mxu0 0
      %3004 = vmatprep.subr.bf16.mxu0 0
      %3005 = vmatpush1.bf16.msra.mxu0 0
      %3006 = vmatprep.subr.bf16.mxu0 0
      %3007 = vmatpush1.bf16.msra.mxu0 0
      %3008 = vmatprep.subr.bf16.mxu0 0
      %3009 = vmatpush1.bf16.msra.mxu0 0
      %3010 = vmatprep.subr.bf16.mxu0 0
      %3011 = vmatpush1.bf16.msra.mxu0 0
      %3012 = vmatprep.subr.bf16.mxu0 0
      %3013 = vmatpush1.bf16.msra.mxu0 0
      %3014 = vmatprep.subr.bf16.mxu0 0
      %3015 = vmatpush1.bf16.msra.mxu0 0
      %3016 = vmatprep.mubr.bf16.mxu0 0
      %3017 = vmatmul.mubr.bf16.gmra.mrb[0].mxu0 %v2931
      %v3018 = vpop.f32.mrb[0].mxu0
      %v3019 = vadd.f32 0.0, %v3018
      %v3020 = vpop.f32.mrb[0].mxu0
      %v3021 = vpop.f32.mrb[0].mxu0
      %v3022 = vadd.f32 0.0, %v3021
      %v3023 = vpop.f32.mrb[0].mxu0
      %3024 = vmatprep.mubr.bf16.mxu0 0
      %3025 = vmatmul.mubr.bf16.gmra.mrb[0].mxu0 %v2934
      %v3026 = vpop.f32.mrb[0].mxu0
      %v3027 = vadd.f32 0.0, %v3026
      %v3028 = vpop.f32.mrb[0].mxu0
      %v3029 = vpop.f32.mrb[0].mxu0
      %v3030 = vadd.f32 0.0, %v3029
      %v3031 = vpop.f32.mrb[0].mxu0
      %3032 = vmatprep.mubr.bf16.mxu0 0
      %3033 = vmatmul.mubr.bf16.gmra.mrb[0].mxu0 %v2937
      %v3034 = vpop.f32.mrb[0].mxu0
      %v3035 = vadd.f32 0.0, %v3034
      %v3036 = vpop.f32.mrb[0].mxu0
      %v3037 = vpop.f32.mrb[0].mxu0
      %v3038 = vadd.f32 0.0, %v3037
      %v3039 = vpop.f32.mrb[0].mxu0
      %3040 = vmatprep.mubr.bf16.mxu0 0
      %3041 = vmatmul.mubr.bf16.gmra.mrb[0].mxu0 %v2940
      %v3042 = vpop.f32.mrb[0].mxu0
      %v3043 = vadd.f32 0.0, %v3042
      %v3044 = vpop.f32.mrb[0].mxu0
      %v3045 = vpop.f32.mrb[0].mxu0
      %v3046 = vadd.f32 0.0, %v3045
      %v3047 = vpop.f32.mrb[0].mxu0
      %3048 = vmatprep.mubr.bf16.mxu0 0
      %3049 = vmatmul.mubr.bf16.gmra.mrb[0].mxu0 %v2943
      %v3050 = vpop.f32.mrb[0].mxu0
      %v3051 = vadd.f32 0.0, %v3050
      %v3052 = vpop.f32.mrb[0].mxu0
      %v3053 = vpop.f32.mrb[0].mxu0
      %v3054 = vadd.f32 0.0, %v3053
      %v3055 = vpop.f32.mrb[0].mxu0
      %3056 = vmatprep.mubr.bf16.mxu0 0
      %3057 = vmatmul.mubr.bf16.gmra.mrb[0].mxu0 %v2946
      %v3058 = vpop.f32.mrb[0].mxu0
      %v3059 = vadd.f32 0.0, %v3058
      %v3060 = vpop.f32.mrb[0].mxu0
      %v3061 = vpop.f32.mrb[0].mxu0
      %v3062 = vadd.f32 0.0, %v3061
      %v3063 = vpop.f32.mrb[0].mxu0
      %3064 = vmatprep.mubr.bf16.mxu0 0
      %3065 = vmatmul.mubr.bf16.gmra.mrb[0].mxu0 %v2949
      %v3066 = vpop.f32.mrb[0].mxu0
      %v3067 = vadd.f32 0.0, %v3066
      %v3068 = vpop.f32.mrb[0].mxu0
      %v3069 = vpop.f32.mrb[0].mxu0
      %v3070 = vadd.f32 0.0, %v3069
      %v3071 = vpop.f32.mrb[0].mxu0
      %3072 = vmatprep.mubr.bf16.mxu0 0
      %3073 = vmatmul.mubr.bf16.gmra.mrb[0].mxu0 %v2952
      %v3074 = vpop.f32.mrb[0].mxu0
      %v3075 = vadd.f32 0.0, %v3074
      %v3076 = vpop.f32.mrb[0].mxu0
      %v3077 = vpop.f32.mrb[0].mxu0
      %v3078 = vadd.f32 0.0, %v3077
      %v3079 = vpop.f32.mrb[0].mxu0
      %3080 = vmatprep.mubr.bf16.mxu0 0
      %3081 = vmatmul.mubr.bf16.gmra.mrb[0].mxu0 %v2955
      %v3082 = vpop.f32.mrb[0].mxu0
      %v3083 = vadd.f32 0.0, %v3082
      %v3084 = vpop.f32.mrb[0].mxu0
      %v3085 = vpop.f32.mrb[0].mxu0
      %v3086 = vadd.f32 0.0, %v3085
      %v3087 = vpop.f32.mrb[0].mxu0
      %3088 = vmatprep.mubr.bf16.mxu0 0
      %3089 = vmatmul.mubr.bf16.gmra.mrb[0].mxu0 %v2958
      %v3090 = vpop.f32.mrb[0].mxu0
      %v3091 = vadd.f32 0.0, %v3090
      %v3092 = vpop.f32.mrb[0].mxu0
      %v3093 = vpop.f32.mrb[0].mxu0
      %v3094 = vadd.f32 0.0, %v3093
      %v3095 = vpop.f32.mrb[0].mxu0
      %3096 = vmatprep.mubr.bf16.mxu0 0
      %3097 = vmatmul.mubr.bf16.gmra.mrb[0].mxu0 %v2961
      %v3098 = vpop.f32.mrb[0].mxu0
      %v3099 = vadd.f32 0.0, %v3098
      %v3100 = vpop.f32.mrb[0].mxu0
      %v3101 = vpop.f32.mrb[0].mxu0
      %v3102 = vadd.f32 0.0, %v3101
      %v3103 = vpop.f32.mrb[0].mxu0
      %3104 = vmatprep.mubr.bf16.mxu0 0
      %3105 = vmatmul.mubr.bf16.gmra.mrb[0].mxu0 %v2964
      %v3106 = vpop.f32.mrb[0].mxu0
      %v3107 = vadd.f32 0.0, %v3106
      %v3108 = vpop.f32.mrb[0].mxu0
      %v3109 = vpop.f32.mrb[0].mxu0
      %v3110 = vadd.f32 0.0, %v3109
      %v3111 = vpop.f32.mrb[0].mxu0
      %3112 = vmatprep.mubr.bf16.mxu0 0
      %3113 = vmatmul.mubr.bf16.gmra.mrb[0].mxu0 %v2967
      %v3114 = vpop.f32.mrb[0].mxu0
      %v3115 = vadd.f32 0.0, %v3114
      %v3116 = vpop.f32.mrb[0].mxu0
      %v3117 = vpop.f32.mrb[0].mxu0
      %v3118 = vadd.f32 0.0, %v3117
      %v3119 = vpop.f32.mrb[0].mxu0
      %3120 = vmatprep.mubr.bf16.mxu0 0
      %3121 = vmatmul.mubr.bf16.gmra.mrb[0].mxu0 %v2970
      %v3122 = vpop.f32.mrb[0].mxu0
      %v3123 = vadd.f32 0.0, %v3122
      %v3124 = vpop.f32.mrb[0].mxu0
      %v3125 = vpop.f32.mrb[0].mxu0
      %v3126 = vadd.f32 0.0, %v3125
      %v3127 = vpop.f32.mrb[0].mxu0
      %3128 = vmatprep.mubr.bf16.mxu0 0
      %3129 = vmatmul.mubr.bf16.gmra.mrb[0].mxu0 %v2973
      %v3130 = vpop.f32.mrb[0].mxu0
      %v3131 = vadd.f32 0.0, %v3130
      %v3132 = vpop.f32.mrb[0].mxu0
      %v3133 = vpop.f32.mrb[0].mxu0
      %v3134 = vadd.f32 0.0, %v3133
      %v3135 = vpop.f32.mrb[0].mxu0
      %3136 = vmatprep.mubr.bf16.mxu0 0
      %3137 = vmatmul.mubr.bf16.gmra.mrb[0].mxu0 %v2976
      %v3138 = vpop.f32.mrb[0].mxu0
      %v3139 = vadd.f32 0.0, %v3138
      %v3140 = vpop.f32.mrb[0].mxu0
      %v3141 = vpop.f32.mrb[0].mxu0
      %v3142 = vadd.f32 0.0, %v3141
      %v3143 = vpop.f32.mrb[0].mxu0
      %3144 = vmatprep.mubr.bf16.mxu0 0
      %3145 = vmatmul.mubr.bf16.gmra.mrb[0].mxu0 %v2979
      %v3146 = vpop.f32.mrb[0].mxu0
      %v3147 = vadd.f32 0.0, %v3146
      %v3148 = vpop.f32.mrb[0].mxu0
      %v3149 = vpop.f32.mrb[0].mxu0
      %v3150 = vadd.f32 0.0, %v3149
      %v3151 = vpop.f32.mrb[0].mxu0
      %3152 = vdwg.mxu0
      %v3153 = vadd.f32 %v2631, %v3019
      %v3154 = vadd.f32 %v2632, %v3022
      %v3155 = vadd.f32 %v2633, %v3027
      %v3156 = vadd.f32 %v2634, %v3030
      %v3157 = vadd.f32 %v2635, %v3035
      %v3158 = vadd.f32 %v2636, %v3038
      %v3159 = vadd.f32 %v2637, %v3043
      %v3160 = vadd.f32 %v2638, %v3046
      %v3161 = vadd.f32 %v2639, %v3051
      %v3162 = vadd.f32 %v2640, %v3054
      %v3163 = vadd.f32 %v2641, %v3059
      %v3164 = vadd.f32 %v2642, %v3062
      %v3165 = vadd.f32 %v2643, %v3067
      %v3166 = vadd.f32 %v2644, %v3070
      %v3167 = vadd.f32 %v2645, %v3075
      %v3168 = vadd.f32 %v2646, %v3078
      %v3169 = vadd.f32 %v2647, %v3083
      %v3170 = vadd.f32 %v2648, %v3086
      %v3171 = vadd.f32 %v2649, %v3091
      %v3172 = vadd.f32 %v2650, %v3094
      %v3173 = vadd.f32 %v2651, %v3099
      %v3174 = vadd.f32 %v2652, %v3102
      %v3175 = vadd.f32 %v2653, %v3107
      %v3176 = vadd.f32 %v2654, %v3110
      %v3177 = vadd.f32 %v2655, %v3115
      %v3178 = vadd.f32 %v2656, %v3118
      %v3179 = vadd.f32 %v2657, %v3123
      %v3180 = vadd.f32 %v2658, %v3126
      %v3181 = vadd.f32 %v2659, %v3131
      %v3182 = vadd.f32 %v2660, %v3134
      %v3183 = vadd.f32 %v2661, %v3139
      %v3184 = vadd.f32 %v2662, %v3142
      %v3185 = vadd.f32 %v2663, %v3147
      %v3186 = vadd.f32 %v2664, %v3150
      %v3187 = vld [vmem:[%s207 + $0x8] sm:$0xf]
      %v3188 = vld [vmem:[%s207 + $0xc] sm:$0xf]
      %v3189 = vld [vmem:[%s207 + $0x10] sm:$0xf]
      %v3190 = vld [vmem:[%s207 + $0x14] sm:$0xf]
      %v3191 = vld [vmem:[%s207 + $0x18] sm:$0xf]
      %v3192 = vld [vmem:[%s207 + $0x1c] sm:$0xf]
      %v3193 = vld [vmem:[%s207 + $0x20] sm:$0xf]
      %v3194 = vld [vmem:[%s207 + $0x24] sm:$0xf]
      %v3195 = vld [vmem:[%s207 + $0x28] sm:$0xf]
      %v3196 = vld [vmem:[%s207 + $0x2c] sm:$0xf]
      %v3197 = vld [vmem:[%s207 + $0x30] sm:$0xf]
      %v3198 = vld [vmem:[%s207 + $0x34] sm:$0xf]
      %v3199 = vld [vmem:[%s207 + $0x38] sm:$0xf]
      %v3200 = vld [vmem:[%s207 + $0x3c] sm:$0xf]
      %v3201 = vld [vmem:[%s207 + $0x40] sm:$0xf]
      %v3202 = vld [vmem:[%s207 + $0x44] sm:$0xf]
      %v3203 = vld [vmem:[%s207 + $0x48] sm:$0xf]
      %v3204 = vld [vmem:[%s207 + $0x4c] sm:$0xf]
      %v3205 = vld [vmem:[%s207 + $0x50] sm:$0xf]
      %v3206 = vld [vmem:[%s207 + $0x54] sm:$0xf]
      %v3207 = vld [vmem:[%s207 + $0x58] sm:$0xf]
      %v3208 = vld [vmem:[%s207 + $0x5c] sm:$0xf]
      %v3209 = vld [vmem:[%s207 + $0x60] sm:$0xf]
      %v3210 = vld [vmem:[%s207 + $0x64] sm:$0xf]
      %v3211 = vld [vmem:[%s207 + $0x68] sm:$0xf]
      %v3212 = vld [vmem:[%s207 + $0x6c] sm:$0xf]
      %v3213 = vld [vmem:[%s207 + $0x70] sm:$0xf]
      %v3214 = vld [vmem:[%s207 + $0x74] sm:$0xf]
      %v3215 = vld [vmem:[%s207 + $0x78] sm:$0xf]
      %v3216 = vld [vmem:[%s207 + $0x7c] sm:$0xf]
      %v3217 = vld [vmem:[%s207 + $0x80] sm:$0xf]
      %v3218 = vld [vmem:[%s207 + $0x84] sm:$0xf]
      %v3219 = vld [vmem:[%s207 + $0x88] sm:$0xf]
      %v3220 = vld [vmem:[%s207 + $0x8c] sm:$0xf]
      %v3221 = vld [vmem:[%s207 + $0x90] sm:$0x1]
      %s3222 = scalar_lea.vmem %s1, 14
      %v3223 = vld [vmem:[%s3222] sm:$0x3]
      %v3259 = vunpack.c.l.b16 %v3187
      %v3260 = vunpack.c.l.b16 %v3188
      %v3261 = vunpack.c.l.b16 %v3189
      %v3262 = vunpack.c.l.b16 %v3190
      %v3263 = vunpack.c.l.b16 %v3191
      %v3264 = vunpack.c.l.b16 %v3192
      %v3265 = vunpack.c.l.b16 %v3193
      %v3266 = vunpack.c.l.b16 %v3194
      %v3267 = vunpack.c.l.b16 %v3195
      %v3268 = vunpack.c.l.b16 %v3196
      %v3269 = vunpack.c.l.b16 %v3197
      %v3270 = vunpack.c.l.b16 %v3198
      %v3271 = vunpack.c.l.b16 %v3199
      %v3272 = vunpack.c.l.b16 %v3200
      %v3273 = vunpack.c.l.b16 %v3201
      %v3274 = vunpack.c.l.b16 %v3202
      %v3275 = vunpack.c.l.b16 %v3203
      %v3276 = vunpack.c.l.b16 %v3204
      %v3277 = vunpack.c.l.b16 %v3205
      %v3278 = vunpack.c.l.b16 %v3206
      %v3279 = vunpack.c.l.b16 %v3207
      %v3280 = vunpack.c.l.b16 %v3208
      %v3281 = vunpack.c.l.b16 %v3209
      %v3282 = vunpack.c.l.b16 %v3210
      %v3283 = vunpack.c.l.b16 %v3211
      %v3284 = vunpack.c.l.b16 %v3212
      %v3285 = vunpack.c.l.b16 %v3213
      %v3286 = vunpack.c.l.b16 %v3214
      %v3287 = vunpack.c.l.b16 %v3215
      %v3288 = vunpack.c.l.b16 %v3216
      %v3289 = vunpack.c.l.b16 %v3217
      %v3290 = vunpack.c.l.b16 %v3218
      %v3291 = vunpack.c.l.b16 %v3219
      %v3292 = vunpack.c.l.b16 %v3220
      %v3293 = vunpack.c.l.b16 %v3221
      %v3294 = vpack.c.b16 %v3260, %v3259
      %v3295 = vpack.c.b16 %v3262, %v3261
      %v3296 = vpack.c.b16 %v3264, %v3263
      %v3297 = vpack.c.b16 %v3266, %v3265
      %v3298 = vpack.c.b16 %v3268, %v3267
      %v3299 = vpack.c.b16 %v3270, %v3269
      %v3300 = vpack.c.b16 %v3272, %v3271
      %v3301 = vpack.c.b16 %v3274, %v3273
      %v3302 = vpack.c.b16 %v3276, %v3275
      %v3303 = vpack.c.b16 %v3278, %v3277
      %v3304 = vpack.c.b16 %v3280, %v3279
      %v3305 = vpack.c.b16 %v3282, %v3281
      %v3306 = vpack.c.b16 %v3284, %v3283
      %v3307 = vpack.c.b16 %v3286, %v3285
      %v3308 = vpack.c.b16 %v3288, %v3287
      %v3309 = vpack.c.b16 %v3290, %v3289
      %v3310 = vpack.c.b16 %v3292, %v3291
      %v3311 = vpack.c.b16 %v3293, %v3293
      %v3313 = vshrl.u32 %v3294, 16
      %v3315 = vshll.u32 %v3294, 16
      %v3317 = vrot.slane %v3315, 1
      %v3318 = vor.u32 %v3313, %v3317
      %v3320 = vshll.u32 %v3295, 16
      %v3322 = vrot.slane %v3320, 1
      %v3323 = vsel %vm987, %v3318, %v3322
      %v3324 = vshrl.u32 %v3295, 16
      %v3326 = vor.u32 %v3324, %v3322
      %v3328 = vshll.u32 %v3296, 16
      %v3330 = vrot.slane %v3328, 1
      %v3331 = vsel %vm987, %v3326, %v3330
      %v3332 = vshrl.u32 %v3296, 16
      %v3334 = vor.u32 %v3332, %v3330
      %v3336 = vshll.u32 %v3297, 16
      %v3338 = vrot.slane %v3336, 1
      %v3339 = vsel %vm987, %v3334, %v3338
      %v3340 = vshrl.u32 %v3297, 16
      %v3342 = vor.u32 %v3340, %v3338
      %v3344 = vshll.u32 %v3298, 16
      %v3346 = vrot.slane %v3344, 1
      %v3347 = vsel %vm987, %v3342, %v3346
      %v3348 = vshrl.u32 %v3298, 16
      %v3350 = vor.u32 %v3348, %v3346
      %v3352 = vshll.u32 %v3299, 16
      %v3354 = vrot.slane %v3352, 1
      %v3355 = vsel %vm987, %v3350, %v3354
      %v3356 = vshrl.u32 %v3299, 16
      %v3358 = vor.u32 %v3356, %v3354
      %v3360 = vshll.u32 %v3300, 16
      %v3362 = vrot.slane %v3360, 1
      %v3363 = vsel %vm987, %v3358, %v3362
      %v3364 = vshrl.u32 %v3300, 16
      %v3366 = vor.u32 %v3364, %v3362
      %v3368 = vshll.u32 %v3301, 16
      %v3370 = vrot.slane %v3368, 1
      %v3371 = vsel %vm987, %v3366, %v3370
      %v3372 = vshrl.u32 %v3301, 16
      %v3374 = vor.u32 %v3372, %v3370
      %v3376 = vshll.u32 %v3302, 16
      %v3378 = vrot.slane %v3376, 1
      %v3379 = vsel %vm987, %v3374, %v3378
      %v3380 = vshrl.u32 %v3302, 16
      %v3382 = vor.u32 %v3380, %v3378
      %v3384 = vshll.u32 %v3303, 16
      %v3386 = vrot.slane %v3384, 1
      %v3387 = vsel %vm987, %v3382, %v3386
      %v3388 = vshrl.u32 %v3303, 16
      %v3390 = vor.u32 %v3388, %v3386
      %v3392 = vshll.u32 %v3304, 16
      %v3394 = vrot.slane %v3392, 1
      %v3395 = vsel %vm987, %v3390, %v3394
      %v3396 = vshrl.u32 %v3304, 16
      %v3398 = vor.u32 %v3396, %v3394
      %v3400 = vshll.u32 %v3305, 16
      %v3402 = vrot.slane %v3400, 1
      %v3403 = vsel %vm987, %v3398, %v3402
      %v3404 = vshrl.u32 %v3305, 16
      %v3406 = vor.u32 %v3404, %v3402
      %v3408 = vshll.u32 %v3306, 16
      %v3410 = vrot.slane %v3408, 1
      %v3411 = vsel %vm987, %v3406, %v3410
      %v3412 = vshrl.u32 %v3306, 16
      %v3414 = vor.u32 %v3412, %v3410
      %v3416 = vshll.u32 %v3307, 16
      %v3418 = vrot.slane %v3416, 1
      %v3419 = vsel %vm987, %v3414, %v3418
      %v3420 = vshrl.u32 %v3307, 16
      %v3422 = vor.u32 %v3420, %v3418
      %v3424 = vshll.u32 %v3308, 16
      %v3426 = vrot.slane %v3424, 1
      %v3427 = vsel %vm987, %v3422, %v3426
      %v3428 = vshrl.u32 %v3308, 16
      %v3430 = vor.u32 %v3428, %v3426
      %v3432 = vshll.u32 %v3309, 16
      %v3434 = vrot.slane %v3432, 1
      %v3435 = vsel %vm987, %v3430, %v3434
      %v3436 = vshrl.u32 %v3309, 16
      %v3438 = vor.u32 %v3436, %v3434
      %v3440 = vshll.u32 %v3310, 16
      %v3442 = vrot.slane %v3440, 1
      %v3443 = vsel %vm987, %v3438, %v3442
      %v3444 = vshrl.u32 %v3310, 16
      %v3446 = vor.u32 %v3444, %v3442
      %v3448 = vshll.u32 %v3311, 16
      %v3450 = vrot.slane %v3448, 1
      %v3451 = vsel %vm987, %v3446, %v3450
      %v3453 = vsel %vm329, %v3323, 0
      %v3456 = vsel %vm329, %v3331, 0
      %v3459 = vsel %vm329, %v3339, 0
      %v3462 = vsel %vm329, %v3347, 0
      %v3465 = vsel %vm329, %v3355, 0
      %v3468 = vsel %vm329, %v3363, 0
      %v3471 = vsel %vm329, %v3371, 0
      %v3474 = vsel %vm329, %v3379, 0
      %v3477 = vsel %vm329, %v3387, 0
      %v3480 = vsel %vm329, %v3395, 0
      %v3483 = vsel %vm329, %v3403, 0
      %v3486 = vsel %vm329, %v3411, 0
      %v3489 = vsel %vm329, %v3419, 0
      %v3492 = vsel %vm329, %v3427, 0
      %v3495 = vsel %vm329, %v3435, 0
      %v3498 = vsel %vm329, %v3443, 0
      %v3501 = vsel %vm329, %v3451, 0
      %v3504 = vsel %vm381, %v3223, 0
      %3506 = vmatprep.subr.bf16.mxu0 0
      %3507 = vmatpush1.bf16.msra.mxu0 %v3504
      %3508 = vmatprep.subr.bf16.mxu0 0
      %3509 = vmatpush1.bf16.msra.mxu0 0
      %3510 = vmatprep.subr.bf16.mxu0 0
      %3511 = vmatpush1.bf16.msra.mxu0 0
      %3512 = vmatprep.subr.bf16.mxu0 0
      %3513 = vmatpush1.bf16.msra.mxu0 0
      %3514 = vmatprep.subr.bf16.mxu0 0
      %3515 = vmatpush1.bf16.msra.mxu0 0
      %3516 = vmatprep.subr.bf16.mxu0 0
      %3517 = vmatpush1.bf16.msra.mxu0 0
      %3518 = vmatprep.subr.bf16.mxu0 0
      %3519 = vmatpush1.bf16.msra.mxu0 0
      %3520 = vmatprep.subr.bf16.mxu0 0
      %3521 = vmatpush1.bf16.msra.mxu0 0
      %3522 = vmatprep.subr.bf16.mxu0 0
      %3523 = vmatpush1.bf16.msra.mxu0 0
      %3524 = vmatprep.subr.bf16.mxu0 0
      %3525 = vmatpush1.bf16.msra.mxu0 0
      %3526 = vmatprep.subr.bf16.mxu0 0
      %3527 = vmatpush1.bf16.msra.mxu0 0
      %3528 = vmatprep.subr.bf16.mxu0 0
      %3529 = vmatpush1.bf16.msra.mxu0 0
      %3530 = vmatprep.subr.bf16.mxu0 0
      %3531 = vmatpush1.bf16.msra.mxu0 0
      %3532 = vmatprep.subr.bf16.mxu0 0
      %3533 = vmatpush1.bf16.msra.mxu0 0
      %3534 = vmatprep.subr.bf16.mxu0 0
      %3535 = vmatpush1.bf16.msra.mxu0 0
      %3536 = vmatprep.subr.bf16.mxu0 0
      %3537 = vmatpush1.bf16.msra.mxu0 0
      %3538 = vmatprep.mubr.bf16.mxu0 0
      %3539 = vmatmul.mubr.bf16.gmra.mrb[0].mxu0 %v3453
      %v3540 = vpop.f32.mrb[0].mxu0
      %v3541 = vadd.f32 0.0, %v3540
      %v3542 = vpop.f32.mrb[0].mxu0
      %v3543 = vpop.f32.mrb[0].mxu0
      %v3544 = vadd.f32 0.0, %v3543
      %v3545 = vpop.f32.mrb[0].mxu0
      %3546 = vmatprep.mubr.bf16.mxu0 0
      %3547 = vmatmul.mubr.bf16.gmra.mrb[0].mxu0 %v3456
      %v3548 = vpop.f32.mrb[0].mxu0
      %v3549 = vadd.f32 0.0, %v3548
      %v3550 = vpop.f32.mrb[0].mxu0
      %v3551 = vpop.f32.mrb[0].mxu0
      %v3552 = vadd.f32 0.0, %v3551
      %v3553 = vpop.f32.mrb[0].mxu0
      %3554 = vmatprep.mubr.bf16.mxu0 0
      %3555 = vmatmul.mubr.bf16.gmra.mrb[0].mxu0 %v3459
      %v3556 = vpop.f32.mrb[0].mxu0
      %v3557 = vadd.f32 0.0, %v3556
      %v3558 = vpop.f32.mrb[0].mxu0
      %v3559 = vpop.f32.mrb[0].mxu0
      %v3560 = vadd.f32 0.0, %v3559
      %v3561 = vpop.f32.mrb[0].mxu0
      %3562 = vmatprep.mubr.bf16.mxu0 0
      %3563 = vmatmul.mubr.bf16.gmra.mrb[0].mxu0 %v3462
      %v3564 = vpop.f32.mrb[0].mxu0
      %v3565 = vadd.f32 0.0, %v3564
      %v3566 = vpop.f32.mrb[0].mxu0
      %v3567 = vpop.f32.mrb[0].mxu0
      %v3568 = vadd.f32 0.0, %v3567
      %v3569 = vpop.f32.mrb[0].mxu0
      %3570 = vmatprep.mubr.bf16.mxu0 0
      %3571 = vmatmul.mubr.bf16.gmra.mrb[0].mxu0 %v3465
      %v3572 = vpop.f32.mrb[0].mxu0
      %v3573 = vadd.f32 0.0, %v3572
      %v3574 = vpop.f32.mrb[0].mxu0
      %v3575 = vpop.f32.mrb[0].mxu0
      %v3576 = vadd.f32 0.0, %v3575
      %v3577 = vpop.f32.mrb[0].mxu0
      %3578 = vmatprep.mubr.bf16.mxu0 0
      %3579 = vmatmul.mubr.bf16.gmra.mrb[0].mxu0 %v3468
      %v3580 = vpop.f32.mrb[0].mxu0
      %v3581 = vadd.f32 0.0, %v3580
      %v3582 = vpop.f32.mrb[0].mxu0
      %v3583 = vpop.f32.mrb[0].mxu0
      %v3584 = vadd.f32 0.0, %v3583
      %v3585 = vpop.f32.mrb[0].mxu0
      %3586 = vmatprep.mubr.bf16.mxu0 0
      %3587 = vmatmul.mubr.bf16.gmra.mrb[0].mxu0 %v3471
      %v3588 = vpop.f32.mrb[0].mxu0
      %v3589 = vadd.f32 0.0, %v3588
      %v3590 = vpop.f32.mrb[0].mxu0
      %v3591 = vpop.f32.mrb[0].mxu0
      %v3592 = vadd.f32 0.0, %v3591
      %v3593 = vpop.f32.mrb[0].mxu0
      %3594 = vmatprep.mubr.bf16.mxu0 0
      %3595 = vmatmul.mubr.bf16.gmra.mrb[0].mxu0 %v3474
      %v3596 = vpop.f32.mrb[0].mxu0
      %v3597 = vadd.f32 0.0, %v3596
      %v3598 = vpop.f32.mrb[0].mxu0
      %v3599 = vpop.f32.mrb[0].mxu0
      %v3600 = vadd.f32 0.0, %v3599
      %v3601 = vpop.f32.mrb[0].mxu0
      %3602 = vmatprep.mubr.bf16.mxu0 0
      %3603 = vmatmul.mubr.bf16.gmra.mrb[0].mxu0 %v3477
      %v3604 = vpop.f32.mrb[0].mxu0
      %v3605 = vadd.f32 0.0, %v3604
      %v3606 = vpop.f32.mrb[0].mxu0
      %v3607 = vpop.f32.mrb[0].mxu0
      %v3608 = vadd.f32 0.0, %v3607
      %v3609 = vpop.f32.mrb[0].mxu0
      %3610 = vmatprep.mubr.bf16.mxu0 0
      %3611 = vmatmul.mubr.bf16.gmra.mrb[0].mxu0 %v3480
      %v3612 = vpop.f32.mrb[0].mxu0
      %v3613 = vadd.f32 0.0, %v3612
      %v3614 = vpop.f32.mrb[0].mxu0
      %v3615 = vpop.f32.mrb[0].mxu0
      %v3616 = vadd.f32 0.0, %v3615
      %v3617 = vpop.f32.mrb[0].mxu0
      %3618 = vmatprep.mubr.bf16.mxu0 0
      %3619 = vmatmul.mubr.bf16.gmra.mrb[0].mxu0 %v3483
      %v3620 = vpop.f32.mrb[0].mxu0
      %v3621 = vadd.f32 0.0, %v3620
      %v3622 = vpop.f32.mrb[0].mxu0
      %v3623 = vpop.f32.mrb[0].mxu0
      %v3624 = vadd.f32 0.0, %v3623
      %v3625 = vpop.f32.mrb[0].mxu0
      %3626 = vmatprep.mubr.bf16.mxu0 0
      %3627 = vmatmul.mubr.bf16.gmra.mrb[0].mxu0 %v3486
      %v3628 = vpop.f32.mrb[0].mxu0
      %v3629 = vadd.f32 0.0, %v3628
      %v3630 = vpop.f32.mrb[0].mxu0
      %v3631 = vpop.f32.mrb[0].mxu0
      %v3632 = vadd.f32 0.0, %v3631
      %v3633 = vpop.f32.mrb[0].mxu0
      %3634 = vmatprep.mubr.bf16.mxu0 0
      %3635 = vmatmul.mubr.bf16.gmra.mrb[0].mxu0 %v3489
      %v3636 = vpop.f32.mrb[0].mxu0
      %v3637 = vadd.f32 0.0, %v3636
      %v3638 = vpop.f32.mrb[0].mxu0
      %v3639 = vpop.f32.mrb[0].mxu0
      %v3640 = vadd.f32 0.0, %v3639
      %v3641 = vpop.f32.mrb[0].mxu0
      %3642 = vmatprep.mubr.bf16.mxu0 0
      %3643 = vmatmul.mubr.bf16.gmra.mrb[0].mxu0 %v3492
      %v3644 = vpop.f32.mrb[0].mxu0
      %v3645 = vadd.f32 0.0, %v3644
      %v3646 = vpop.f32.mrb[0].mxu0
      %v3647 = vpop.f32.mrb[0].mxu0
      %v3648 = vadd.f32 0.0, %v3647
      %v3649 = vpop.f32.mrb[0].mxu0
      %3650 = vmatprep.mubr.bf16.mxu0 0
      %3651 = vmatmul.mubr.bf16.gmra.mrb[0].mxu0 %v3495
      %v3652 = vpop.f32.mrb[0].mxu0
      %v3653 = vadd.f32 0.0, %v3652
      %v3654 = vpop.f32.mrb[0].mxu0
      %v3655 = vpop.f32.mrb[0].mxu0
      %v3656 = vadd.f32 0.0, %v3655
      %v3657 = vpop.f32.mrb[0].mxu0
      %3658 = vmatprep.mubr.bf16.mxu0 0
      %3659 = vmatmul.mubr.bf16.gmra.mrb[0].mxu0 %v3498
      %v3660 = vpop.f32.mrb[0].mxu0
      %v3661 = vadd.f32 0.0, %v3660
      %v3662 = vpop.f32.mrb[0].mxu0
      %v3663 = vpop.f32.mrb[0].mxu0
      %v3664 = vadd.f32 0.0, %v3663
      %v3665 = vpop.f32.mrb[0].mxu0
      %3666 = vmatprep.mubr.bf16.mxu0 0
      %3667 = vmatmul.mubr.bf16.gmra.mrb[0].mxu0 %v3501
      %v3668 = vpop.f32.mrb[0].mxu0
      %v3669 = vadd.f32 0.0, %v3668
      %v3670 = vpop.f32.mrb[0].mxu0
      %v3671 = vpop.f32.mrb[0].mxu0
      %v3672 = vadd.f32 0.0, %v3671
      %v3673 = vpop.f32.mrb[0].mxu0
      %3674 = vdwg.mxu0
      %v3675 = vadd.f32 %v3153, %v3541
      %v3676 = vadd.f32 %v3154, %v3544
      %v3677 = vadd.f32 %v3155, %v3549
      %v3678 = vadd.f32 %v3156, %v3552
      %v3679 = vadd.f32 %v3157, %v3557
      %v3680 = vadd.f32 %v3158, %v3560
      %v3681 = vadd.f32 %v3159, %v3565
      %v3682 = vadd.f32 %v3160, %v3568
      %v3683 = vadd.f32 %v3161, %v3573
      %v3684 = vadd.f32 %v3162, %v3576
      %v3685 = vadd.f32 %v3163, %v3581
      %v3686 = vadd.f32 %v3164, %v3584
      %v3687 = vadd.f32 %v3165, %v3589
      %v3688 = vadd.f32 %v3166, %v3592
      %v3689 = vadd.f32 %v3167, %v3597
      %v3690 = vadd.f32 %v3168, %v3600
      %v3691 = vadd.f32 %v3169, %v3605
      %v3692 = vadd.f32 %v3170, %v3608
      %v3693 = vadd.f32 %v3171, %v3613
      %v3694 = vadd.f32 %v3172, %v3616
      %v3695 = vadd.f32 %v3173, %v3621
      %v3696 = vadd.f32 %v3174, %v3624
      %v3697 = vadd.f32 %v3175, %v3629
      %v3698 = vadd.f32 %v3176, %v3632
      %v3699 = vadd.f32 %v3177, %v3637
      %v3700 = vadd.f32 %v3178, %v3640
      %v3701 = vadd.f32 %v3179, %v3645
      %v3702 = vadd.f32 %v3180, %v3648
      %v3703 = vadd.f32 %v3181, %v3653
      %v3704 = vadd.f32 %v3182, %v3656
      %v3705 = vadd.f32 %v3183, %v3661
      %v3706 = vadd.f32 %v3184, %v3664
      %v3707 = vadd.f32 %v3185, %v3669
      %v3708 = vadd.f32 %v3186, %v3672
      %v3709 = vld [vmem:[%s165 + $0x8] sm:$0xe]
      %s3710 = scalar_lea.vmem %s1, 16
      %v3711 = vld [vmem:[%s3710] sm:$0x3]
      %v3713 = vunpack.c.l.b16 %v3709
      %v3714 = vpack.c.b16 %v2738, %v3713
      %vm3715 = vcmask 1046528
      %v3716 = vrot.slane %v3714, 1
      %v3717 = vrot.slane %v2773, 1
      %v3718 = vsel %vm3715, %v3716, %v3717
      %v3719 = vrot.slane %v2774, 1
      %v3720 = vsel %vm3715, %v3717, %v3719
      %v3721 = vrot.slane %v2775, 1
      %v3722 = vsel %vm3715, %v3719, %v3721
      %v3723 = vrot.slane %v2776, 1
      %v3724 = vsel %vm3715, %v3721, %v3723
      %v3725 = vrot.slane %v2777, 1
      %v3726 = vsel %vm3715, %v3723, %v3725
      %v3727 = vrot.slane %v2778, 1
      %v3728 = vsel %vm3715, %v3725, %v3727
      %v3729 = vrot.slane %v2779, 1
      %v3730 = vsel %vm3715, %v3727, %v3729
      %v3731 = vrot.slane %v2780, 1
      %v3732 = vsel %vm3715, %v3729, %v3731
      %v3733 = vrot.slane %v2781, 1
      %v3734 = vsel %vm3715, %v3731, %v3733
      %v3735 = vrot.slane %v2782, 1
      %v3736 = vsel %vm3715, %v3733, %v3735
      %v3737 = vrot.slane %v2783, 1
      %v3738 = vsel %vm3715, %v3735, %v3737
      %v3739 = vrot.slane %v2784, 1
      %v3740 = vsel %vm3715, %v3737, %v3739
      %v3741 = vrot.slane %v2785, 1
      %v3742 = vsel %vm3715, %v3739, %v3741
      %v3743 = vrot.slane %v2786, 1
      %v3744 = vsel %vm3715, %v3741, %v3743
      %v3745 = vrot.slane %v2787, 1
      %v3746 = vsel %vm3715, %v3743, %v3745
      %v3747 = vrot.slane %v2788, 1
      %v3748 = vsel %vm3715, %v3745, %v3747
      %v3749 = vrot.slane %v2789, 1
      %v3750 = vsel %vm3715, %v3747, %v3749
      %v3752 = vsel %vm329, %v3718, 0
      %v3755 = vsel %vm329, %v3720, 0
      %v3758 = vsel %vm329, %v3722, 0
      %v3761 = vsel %vm329, %v3724, 0
      %v3764 = vsel %vm329, %v3726, 0
      %v3767 = vsel %vm329, %v3728, 0
      %v3770 = vsel %vm329, %v3730, 0
      %v3773 = vsel %vm329, %v3732, 0
      %v3776 = vsel %vm329, %v3734, 0
      %v3779 = vsel %vm329, %v3736, 0
      %v3782 = vsel %vm329, %v3738, 0
      %v3785 = vsel %vm329, %v3740, 0
      %v3788 = vsel %vm329, %v3742, 0
      %v3791 = vsel %vm329, %v3744, 0
      %v3794 = vsel %vm329, %v3746, 0
      %v3797 = vsel %vm329, %v3748, 0
      %v3800 = vsel %vm329, %v3750, 0
      %v3803 = vsel %vm381, %v3711, 0
      %3805 = vmatprep.subr.bf16.mxu0 0
      %3806 = vmatpush1.bf16.msra.mxu0 %v3803
      %3807 = vmatprep.subr.bf16.mxu0 0
      %3808 = vmatpush1.bf16.msra.mxu0 0
      %3809 = vmatprep.subr.bf16.mxu0 0
      %3810 = vmatpush1.bf16.msra.mxu0 0
      %3811 = vmatprep.subr.bf16.mxu0 0
      %3812 = vmatpush1.bf16.msra.mxu0 0
      %3813 = vmatprep.subr.bf16.mxu0 0
      %3814 = vmatpush1.bf16.msra.mxu0 0
      %3815 = vmatprep.subr.bf16.mxu0 0
      %3816 = vmatpush1.bf16.msra.mxu0 0
      %3817 = vmatprep.subr.bf16.mxu0 0
      %3818 = vmatpush1.bf16.msra.mxu0 0
      %3819 = vmatprep.subr.bf16.mxu0 0
      %3820 = vmatpush1.bf16.msra.mxu0 0
      %3821 = vmatprep.subr.bf16.mxu0 0
      %3822 = vmatpush1.bf16.msra.mxu0 0
      %3823 = vmatprep.subr.bf16.mxu0 0
      %3824 = vmatpush1.bf16.msra.mxu0 0
      %3825 = vmatprep.subr.bf16.mxu0 0
      %3826 = vmatpush1.bf16.msra.mxu0 0
      %3827 = vmatprep.subr.bf16.mxu0 0
      %3828 = vmatpush1.bf16.msra.mxu0 0
      %3829 = vmatprep.subr.bf16.mxu0 0
      %3830 = vmatpush1.bf16.msra.mxu0 0
      %3831 = vmatprep.subr.bf16.mxu0 0
      %3832 = vmatpush1.bf16.msra.mxu0 0
      %3833 = vmatprep.subr.bf16.mxu0 0
      %3834 = vmatpush1.bf16.msra.mxu0 0
      %3835 = vmatprep.subr.bf16.mxu0 0
      %3836 = vmatpush1.bf16.msra.mxu0 0
      %3837 = vmatprep.mubr.bf16.mxu0 0
      %3838 = vmatmul.mubr.bf16.gmra.mrb[0].mxu0 %v3752
      %v3839 = vpop.f32.mrb[0].mxu0
      %v3840 = vadd.f32 0.0, %v3839
      %v3841 = vpop.f32.mrb[0].mxu0
      %v3842 = vpop.f32.mrb[0].mxu0
      %v3843 = vadd.f32 0.0, %v3842
      %v3844 = vpop.f32.mrb[0].mxu0
      %3845 = vmatprep.mubr.bf16.mxu0 0
      %3846 = vmatmul.mubr.bf16.gmra.mrb[0].mxu0 %v3755
      %v3847 = vpop.f32.mrb[0].mxu0
      %v3848 = vadd.f32 0.0, %v3847
      %v3849 = vpop.f32.mrb[0].mxu0
      %v3850 = vpop.f32.mrb[0].mxu0
      %v3851 = vadd.f32 0.0, %v3850
      %v3852 = vpop.f32.mrb[0].mxu0
      %3853 = vmatprep.mubr.bf16.mxu0 0
      %3854 = vmatmul.mubr.bf16.gmra.mrb[0].mxu0 %v3758
      %v3855 = vpop.f32.mrb[0].mxu0
      %v3856 = vadd.f32 0.0, %v3855
      %v3857 = vpop.f32.mrb[0].mxu0
      %v3858 = vpop.f32.mrb[0].mxu0
      %v3859 = vadd.f32 0.0, %v3858
      %v3860 = vpop.f32.mrb[0].mxu0
      %3861 = vmatprep.mubr.bf16.mxu0 0
      %3862 = vmatmul.mubr.bf16.gmra.mrb[0].mxu0 %v3761
      %v3863 = vpop.f32.mrb[0].mxu0
      %v3864 = vadd.f32 0.0, %v3863
      %v3865 = vpop.f32.mrb[0].mxu0
      %v3866 = vpop.f32.mrb[0].mxu0
      %v3867 = vadd.f32 0.0, %v3866
      %v3868 = vpop.f32.mrb[0].mxu0
      %3869 = vmatprep.mubr.bf16.mxu0 0
      %3870 = vmatmul.mubr.bf16.gmra.mrb[0].mxu0 %v3764
      %v3871 = vpop.f32.mrb[0].mxu0
      %v3872 = vadd.f32 0.0, %v3871
      %v3873 = vpop.f32.mrb[0].mxu0
      %v3874 = vpop.f32.mrb[0].mxu0
      %v3875 = vadd.f32 0.0, %v3874
      %v3876 = vpop.f32.mrb[0].mxu0
      %3877 = vmatprep.mubr.bf16.mxu0 0
      %3878 = vmatmul.mubr.bf16.gmra.mrb[0].mxu0 %v3767
      %v3879 = vpop.f32.mrb[0].mxu0
      %v3880 = vadd.f32 0.0, %v3879
      %v3881 = vpop.f32.mrb[0].mxu0
      %v3882 = vpop.f32.mrb[0].mxu0
      %v3883 = vadd.f32 0.0, %v3882
      %v3884 = vpop.f32.mrb[0].mxu0
      %3885 = vmatprep.mubr.bf16.mxu0 0
      %3886 = vmatmul.mubr.bf16.gmra.mrb[0].mxu0 %v3770
      %v3887 = vpop.f32.mrb[0].mxu0
      %v3888 = vadd.f32 0.0, %v3887
      %v3889 = vpop.f32.mrb[0].mxu0
      %v3890 = vpop.f32.mrb[0].mxu0
      %v3891 = vadd.f32 0.0, %v3890
      %v3892 = vpop.f32.mrb[0].mxu0
      %3893 = vmatprep.mubr.bf16.mxu0 0
      %3894 = vmatmul.mubr.bf16.gmra.mrb[0].mxu0 %v3773
      %v3895 = vpop.f32.mrb[0].mxu0
      %v3896 = vadd.f32 0.0, %v3895
      %v3897 = vpop.f32.mrb[0].mxu0
      %v3898 = vpop.f32.mrb[0].mxu0
      %v3899 = vadd.f32 0.0, %v3898
      %v3900 = vpop.f32.mrb[0].mxu0
      %3901 = vmatprep.mubr.bf16.mxu0 0
      %3902 = vmatmul.mubr.bf16.gmra.mrb[0].mxu0 %v3776
      %v3903 = vpop.f32.mrb[0].mxu0
      %v3904 = vadd.f32 0.0, %v3903
      %v3905 = vpop.f32.mrb[0].mxu0
      %v3906 = vpop.f32.mrb[0].mxu0
      %v3907 = vadd.f32 0.0, %v3906
      %v3908 = vpop.f32.mrb[0].mxu0
      %3909 = vmatprep.mubr.bf16.mxu0 0
      %3910 = vmatmul.mubr.bf16.gmra.mrb[0].mxu0 %v3779
      %v3911 = vpop.f32.mrb[0].mxu0
      %v3912 = vadd.f32 0.0, %v3911
      %v3913 = vpop.f32.mrb[0].mxu0
      %v3914 = vpop.f32.mrb[0].mxu0
      %v3915 = vadd.f32 0.0, %v3914
      %v3916 = vpop.f32.mrb[0].mxu0
      %3917 = vmatprep.mubr.bf16.mxu0 0
      %3918 = vmatmul.mubr.bf16.gmra.mrb[0].mxu0 %v3782
      %v3919 = vpop.f32.mrb[0].mxu0
      %v3920 = vadd.f32 0.0, %v3919
      %v3921 = vpop.f32.mrb[0].mxu0
      %v3922 = vpop.f32.mrb[0].mxu0
      %v3923 = vadd.f32 0.0, %v3922
      %v3924 = vpop.f32.mrb[0].mxu0
      %3925 = vmatprep.mubr.bf16.mxu0 0
      %3926 = vmatmul.mubr.bf16.gmra.mrb[0].mxu0 %v3785
      %v3927 = vpop.f32.mrb[0].mxu0
      %v3928 = vadd.f32 0.0, %v3927
      %v3929 = vpop.f32.mrb[0].mxu0
      %v3930 = vpop.f32.mrb[0].mxu0
      %v3931 = vadd.f32 0.0, %v3930
      %v3932 = vpop.f32.mrb[0].mxu0
      %3933 = vmatprep.mubr.bf16.mxu0 0
      %3934 = vmatmul.mubr.bf16.gmra.mrb[0].mxu0 %v3788
      %v3935 = vpop.f32.mrb[0].mxu0
      %v3936 = vadd.f32 0.0, %v3935
      %v3937 = vpop.f32.mrb[0].mxu0
      %v3938 = vpop.f32.mrb[0].mxu0
      %v3939 = vadd.f32 0.0, %v3938
      %v3940 = vpop.f32.mrb[0].mxu0
      %3941 = vmatprep.mubr.bf16.mxu0 0
      %3942 = vmatmul.mubr.bf16.gmra.mrb[0].mxu0 %v3791
      %v3943 = vpop.f32.mrb[0].mxu0
      %v3944 = vadd.f32 0.0, %v3943
      %v3945 = vpop.f32.mrb[0].mxu0
      %v3946 = vpop.f32.mrb[0].mxu0
      %v3947 = vadd.f32 0.0, %v3946
      %v3948 = vpop.f32.mrb[0].mxu0
      %3949 = vmatprep.mubr.bf16.mxu0 0
      %3950 = vmatmul.mubr.bf16.gmra.mrb[0].mxu0 %v3794
      %v3951 = vpop.f32.mrb[0].mxu0
      %v3952 = vadd.f32 0.0, %v3951
      %v3953 = vpop.f32.mrb[0].mxu0
      %v3954 = vpop.f32.mrb[0].mxu0
      %v3955 = vadd.f32 0.0, %v3954
      %v3956 = vpop.f32.mrb[0].mxu0
      %3957 = vmatprep.mubr.bf16.mxu0 0
      %3958 = vmatmul.mubr.bf16.gmra.mrb[0].mxu0 %v3797
      %v3959 = vpop.f32.mrb[0].mxu0
      %v3960 = vadd.f32 0.0, %v3959
      %v3961 = vpop.f32.mrb[0].mxu0
      %v3962 = vpop.f32.mrb[0].mxu0
      %v3963 = vadd.f32 0.0, %v3962
      %v3964 = vpop.f32.mrb[0].mxu0
      %3965 = vmatprep.mubr.bf16.mxu0 0
      %3966 = vmatmul.mubr.bf16.gmra.mrb[0].mxu0 %v3800
      %v3967 = vpop.f32.mrb[0].mxu0
      %v3968 = vadd.f32 0.0, %v3967
      %v3969 = vpop.f32.mrb[0].mxu0
      %v3970 = vpop.f32.mrb[0].mxu0
      %v3971 = vadd.f32 0.0, %v3970
      %v3972 = vpop.f32.mrb[0].mxu0
      %3973 = vdwg.mxu0
      %v3974 = vadd.f32 %v3675, %v3840
      %v3975 = vadd.f32 %v3676, %v3843
      %v3976 = vadd.f32 %v3677, %v3848
      %v3977 = vadd.f32 %v3678, %v3851
      %v3978 = vadd.f32 %v3679, %v3856
      %v3979 = vadd.f32 %v3680, %v3859
      %v3980 = vadd.f32 %v3681, %v3864
      %v3981 = vadd.f32 %v3682, %v3867
      %v3982 = vadd.f32 %v3683, %v3872
      %v3983 = vadd.f32 %v3684, %v3875
      %v3984 = vadd.f32 %v3685, %v3880
      %v3985 = vadd.f32 %v3686, %v3883
      %v3986 = vadd.f32 %v3687, %v3888
      %v3987 = vadd.f32 %v3688, %v3891
      %v3988 = vadd.f32 %v3689, %v3896
      %v3989 = vadd.f32 %v3690, %v3899
      %v3990 = vadd.f32 %v3691, %v3904
      %v3991 = vadd.f32 %v3692, %v3907
      %v3992 = vadd.f32 %v3693, %v3912
      %v3993 = vadd.f32 %v3694, %v3915
      %v3994 = vadd.f32 %v3695, %v3920
      %v3995 = vadd.f32 %v3696, %v3923
      %v3996 = vadd.f32 %v3697, %v3928
      %v3997 = vadd.f32 %v3698, %v3931
      %v3998 = vadd.f32 %v3699, %v3936
      %v3999 = vadd.f32 %v3700, %v3939
      %v4000 = vadd.f32 %v3701, %v3944
      %v4001 = vadd.f32 %v3702, %v3947
      %v4002 = vadd.f32 %v3703, %v3952
      %v4003 = vadd.f32 %v3704, %v3955
      %v4004 = vadd.f32 %v3705, %v3960
      %v4005 = vadd.f32 %v3706, %v3963
      %v4006 = vadd.f32 %v3707, %v3968
      %v4007 = vadd.f32 %v3708, %v3971
      %v4008 = vld [vmem:[%s2] sm:$0x1]
      %v4010 = vlaneseq
      %v4011 = vshrl.u32 %v4010, 7
      %v4012 = vsub.s32 0, %v4011
      %v4013 = vrot.slane %v4008, %v4012
      %v4015 = vadd.f32 %v3974, %v4013
      %v4016 = vadd.f32 %v3975, %v4013
      %v4017 = vadd.f32 %v3976, %v4013
      %v4018 = vadd.f32 %v3977, %v4013
      %v4019 = vadd.f32 %v3978, %v4013
      %v4020 = vadd.f32 %v3979, %v4013
      %v4021 = vadd.f32 %v3980, %v4013
      %v4022 = vadd.f32 %v3981, %v4013
      %v4023 = vadd.f32 %v3982, %v4013
      %v4024 = vadd.f32 %v3983, %v4013
      %v4025 = vadd.f32 %v3984, %v4013
      %v4026 = vadd.f32 %v3985, %v4013
      %v4027 = vadd.f32 %v3986, %v4013
      %v4028 = vadd.f32 %v3987, %v4013
      %v4029 = vadd.f32 %v3988, %v4013
      %v4030 = vadd.f32 %v3989, %v4013
      %v4031 = vadd.f32 %v3990, %v4013
      %v4032 = vadd.f32 %v3991, %v4013
      %v4033 = vadd.f32 %v3992, %v4013
      %v4034 = vadd.f32 %v3993, %v4013
      %v4035 = vadd.f32 %v3994, %v4013
      %v4036 = vadd.f32 %v3995, %v4013
      %v4037 = vadd.f32 %v3996, %v4013
      %v4038 = vadd.f32 %v3997, %v4013
      %v4039 = vadd.f32 %v3998, %v4013
      %v4040 = vadd.f32 %v3999, %v4013
      %v4041 = vadd.f32 %v4000, %v4013
      %v4042 = vadd.f32 %v4001, %v4013
      %v4043 = vadd.f32 %v4002, %v4013
      %v4044 = vadd.f32 %v4003, %v4013
      %v4045 = vadd.f32 %v4004, %v4013
      %v4046 = vadd.f32 %v4005, %v4013
      %v4047 = vadd.f32 %v4006, %v4013
      %v4048 = vadd.f32 %v4007, %v4013
      %v4049 = vmax.f32 %v4015, 0.0
      %v4050 = vmax.f32 %v4016, 0.0
      %v4051 = vmax.f32 %v4017, 0.0
      %v4052 = vmax.f32 %v4018, 0.0
      %v4053 = vmax.f32 %v4019, 0.0
      %v4054 = vmax.f32 %v4020, 0.0
      %v4055 = vmax.f32 %v4021, 0.0
      %v4056 = vmax.f32 %v4022, 0.0
      %v4057 = vmax.f32 %v4023, 0.0
      %v4058 = vmax.f32 %v4024, 0.0
      %v4059 = vmax.f32 %v4025, 0.0
      %v4060 = vmax.f32 %v4026, 0.0
      %v4061 = vmax.f32 %v4027, 0.0
      %v4062 = vmax.f32 %v4028, 0.0
      %v4063 = vmax.f32 %v4029, 0.0
      %v4064 = vmax.f32 %v4030, 0.0
      %v4065 = vmax.f32 %v4031, 0.0
      %v4066 = vmax.f32 %v4032, 0.0
      %v4067 = vmax.f32 %v4033, 0.0
      %v4068 = vmax.f32 %v4034, 0.0
      %v4069 = vmax.f32 %v4035, 0.0
      %v4070 = vmax.f32 %v4036, 0.0
      %v4071 = vmax.f32 %v4037, 0.0
      %v4072 = vmax.f32 %v4038, 0.0
      %v4073 = vmax.f32 %v4039, 0.0
      %v4074 = vmax.f32 %v4040, 0.0
      %v4075 = vmax.f32 %v4041, 0.0
      %v4076 = vmax.f32 %v4042, 0.0
      %v4077 = vmax.f32 %v4043, 0.0
      %v4078 = vmax.f32 %v4044, 0.0
      %v4079 = vmax.f32 %v4045, 0.0
      %v4080 = vmax.f32 %v4046, 0.0
      %v4081 = vmax.f32 %v4047, 0.0
      %v4082 = vmax.f32 %v4048, 0.0
      %4083 = vst [vmem:[%s170] sm:$0xff] %v4049
      %4084 = vst [vmem:[%s170 + $0x8] sm:$0xff] %v4050
      %4085 = vst [vmem:[%s170 + $0x10] sm:$0xff] %v4051
      %4086 = vst [vmem:[%s170 + $0x18] sm:$0xff] %v4052
      %4087 = vst [vmem:[%s170 + $0x20] sm:$0xff] %v4053
      %4088 = vst [vmem:[%s170 + $0x28] sm:$0xff] %v4054
      %4089 = vst [vmem:[%s170 + $0x30] sm:$0xff] %v4055
      %4090 = vst [vmem:[%s170 + $0x38] sm:$0xff] %v4056
      %4091 = vst [vmem:[%s170 + $0x40] sm:$0xff] %v4057
      %4092 = vst [vmem:[%s170 + $0x48] sm:$0xff] %v4058
      %4093 = vst [vmem:[%s170 + $0x50] sm:$0xff] %v4059
      %4094 = vst [vmem:[%s170 + $0x58] sm:$0xff] %v4060
      %4095 = vst [vmem:[%s170 + $0x60] sm:$0xff] %v4061
      %4096 = vst [vmem:[%s170 + $0x68] sm:$0xff] %v4062
      %4097 = vst [vmem:[%s170 + $0x70] sm:$0xff] %v4063
      %4098 = vst [vmem:[%s170 + $0x78] sm:$0xff] %v4064
      %4099 = vst [vmem:[%s170 + $0x80] sm:$0xff] %v4065
      %4100 = vst [vmem:[%s170 + $0x88] sm:$0xff] %v4066
      %4101 = vst [vmem:[%s170 + $0x90] sm:$0xff] %v4067
      %4102 = vst [vmem:[%s170 + $0x98] sm:$0xff] %v4068
      %4103 = vst [vmem:[%s170 + $0xa0] sm:$0xff] %v4069
      %4104 = vst [vmem:[%s170 + $0xa8] sm:$0xff] %v4070
      %4105 = vst [vmem:[%s170 + $0xb0] sm:$0xff] %v4071
      %4106 = vst [vmem:[%s170 + $0xb8] sm:$0xff] %v4072
      %4107 = vst [vmem:[%s170 + $0xc0] sm:$0xff] %v4073
      %4108 = vst [vmem:[%s170 + $0xc8] sm:$0xff] %v4074
      %4109 = vst [vmem:[%s170 + $0xd0] sm:$0xff] %v4075
      %4110 = vst [vmem:[%s170 + $0xd8] sm:$0xff] %v4076
      %4111 = vst [vmem:[%s170 + $0xe0] sm:$0xff] %v4077
      %4112 = vst [vmem:[%s170 + $0xe8] sm:$0xff] %v4078
      %4113 = vst [vmem:[%s170 + $0xf0] sm:$0xff] %v4079
      %4114 = vst [vmem:[%s170 + $0xf8] sm:$0xff] %v4080
      %4115 = vst [vmem:[%s170 + $0x100] sm:$0xff] %v4081
      %4116 = vst [vmem:[%s170 + $0x108] sm:$0xff] %v4082
      %p4117 = scmp.lt.s32.totalorder %s14, 1
      %s4118 = scalar_select %p4117, %s14, 1
      %s4119 = smul.addr %s4118, 34
      %s4120 = smul.addr %s4119, 8
      %s4121 = scalar_lea.vmem %s3, %s4120
      // Predicated region
      $region33: #{a_call__.4} parent=31 // pred_check
        %p4122 = pneg %p100
      $region34: #{a_call__.4} parent=31 // pred_check_branch
        %4124 = sbr.rel (%p4122) target = $region36
      $region35: #{a_call__.4} parent=31 // pred_region
        _
      $region36: #{a_call__.4} parent=31 // pred_fallthru
        _
    $region32: #{a_call__.4} parent=5 // pred_fallthru
      _
    %p4125 = scmp.le.s32.totalorder 2, %s9
    // Predicated region
    $region37: #{a_call__.4} parent=5 // pred_check
      %p4126 = pneg %p4125
    $region38: #{a_call__.4} parent=5 // pred_check_branch
      %4128 = sbr.rel (%p4126) target = $region40
    $region39: #{a_call__.4} parent=5 // pred_region
      %s4129 = ssub.s32 %s9, 2
      // Predicated region
      $region41: #{a_call__.4} parent=39 // pred_check
        %p4130 = pneg %p106
      $region42: #{a_call__.4} parent=39 // pred_check_branch
        %4132 = sbr.rel (%p4130) target = $region44
      $region43: #{a_call__.4} parent=39 // pred_region
        %p4133 = scmp.lt.s32.totalorder %s15, 1
        %s4134 = scalar_select %p4133, %s15, 1
        %s4135 = smul.addr %s4134, 34
        %s4136 = smul.addr %s4135, 8
        %s4137 = scalar_lea.vmem %s3, %s4136
      $region44: #{a_call__.4} parent=39 // pred_fallthru
        _
    $region40: #{a_call__.4} parent=5 // pred_fallthru
      _
  $region6: #{a_call__.4} parent=0 // loop_footer
    %s13 = sadd.s32 1, %s9
  $region7: #{a_call__.4} parent=0 // loop_footer_branch
    %8 = sbr.rel target = $region3
  $region8: #{a_call__.4} parent=0 // loop_exit
    _

// kernel: a_call__.5
$region0: #{a_call__.5}
  #allocation0 [shape = 'u32[]', space=smem, size = 0x4, offset = 0x4, fixed_abs, tag = 'smem constant byte address 0x4 - core index']
  #allocation1 [shape = 'u32[144,128]{1,0:T(1,128)}', space=vmem, size = 0x12000, scoped, tag = 'internal scratch']
  %s0 = inlined_call_operand.vmem [shape: bf16[2,2,2,90,8], index: 0, kind: input, shape index: {}]
  %s1 = inlined_call_operand.vmem [shape: bf16[9,8,128], index: 1, kind: input, shape index: {}]
  %s2 = inlined_call_operand.vmem [shape: f32[1,128], index: 2, kind: input, shape index: {}]
  %s3 = inlined_call_operand.vmem [shape: f32[2,72,128], index: 3, kind: output, shape index: {}]
  %s4 = sld [smem:[#allocation0]]
  $region45: #{a_call__.5} parent=0
    _
  %s6 = ssub.s32 1, %s4
  %s7 = scalar_select 0, %s6, %s4
  loop: start=0, step=1, limit=4
  $region2: #{a_call__.5} parent=0 // loop_pre_header
    _
  $region3: #{a_call__.5} parent=0 // loop_header
    %s9 = sphi 0, %s13
    %p10 = scmp.ge.s32.totalorder %s9, 4
    %s19 = sphi 0, %s21
    %s22 = sphi 0, %s19
    %s23 = sphi 0, %s22
    %s39 = sphi 0, %s23
    %s43 = sphi 0, %s43
    %s45 = sphi 0, %s43
    %s46 = sphi 0, %s45
    %s60 = sphi 0, %s46
    %s64 = sphi 0, %s64
    %s66 = sphi 0, %s64
    %s67 = sphi 0, %s66
    %s81 = sphi 0, %s67
    %s87 = sphi 0, %s89
    %s90 = sphi 0, %s87
    %s91 = sphi 0, %s90
    %s107 = sphi 0, %s91
  $region4: #{a_call__.5} parent=0 // loop_header_branch
    %12 = sbr.rel (%p10) target = $region8
  $region5: #{a_call__.5} parent=0 // loop_body
    %s14 = ssub.s32 %s9, 1
    %s15 = ssub.s32 %s9, 2
    %s16 = sadd.s32 %s9, 1
    %s17 = ssub.s32 %s9, %s16
    %p18 = scmp.eq.s32.totalorder %s17, 0
    %s20 = sadd.s32 %s19, 1
    %s21 = scalar_select %p18, %s19, %s20
    %p24 = pneg %p18
    %p25 = scmp.eq.s32.totalorder %s9, 1
    %p26 = por %p24, %p25
    %p27 = scmp.ne.s32.totalorder %s19, %s22
    %p28 = scmp.eq.s32.totalorder %s9, 0
    %p29 = por %p27, %p28
    %p30 = scmp.ne.s32.totalorder %s19, %s22
    %p31 = scmp.eq.s32.totalorder %s14, 1
    %p32 = por %p30, %p31
    %p33 = scmp.ne.s32.totalorder %s22, %s23
    %p34 = scmp.eq.s32.totalorder %s14, 0
    %p35 = por %p33, %p34
    %p36 = scmp.ne.s32.totalorder %s22, %s23
    %p37 = scmp.eq.s32.totalorder %s15, 1
    %p38 = por %p36, %p37
    %p40 = scmp.ne.s32.totalorder %s23, %s39
    %p41 = scmp.eq.s32.totalorder %s15, 0
    %p42 = por %p40, %p41
    %s44 = sadd.s32 %s43, 1
    %p47 = scmp.eq.s32.totalorder %s9, 1
    %p48 = scmp.ne.s32.totalorder %s43, %s45
    %p49 = scmp.eq.s32.totalorder %s9, 0
    %p50 = por %p48, %p49
    %p51 = scmp.ne.s32.totalorder %s43, %s45
    %p52 = scmp.eq.s32.totalorder %s14, 1
    %p53 = por %p51, %p52
    %p54 = scmp.ne.s32.totalorder %s45, %s46
    %p55 = scmp.eq.s32.totalorder %s14, 0
    %p56 = por %p54, %p55
    %p57 = scmp.ne.s32.totalorder %s45, %s46
    %p58 = scmp.eq.s32.totalorder %s15, 1
    %p59 = por %p57, %p58
    %p61 = scmp.ne.s32.totalorder %s46, %s60
    %p62 = scmp.eq.s32.totalorder %s15, 0
    %p63 = por %p61, %p62
    %s65 = sadd.s32 %s64, 1
    %p68 = scmp.eq.s32.totalorder %s9, 1
    %p69 = scmp.ne.s32.totalorder %s64, %s66
    %p70 = scmp.eq.s32.totalorder %s9, 0
    %p71 = por %p69, %p70
    %p72 = scmp.ne.s32.totalorder %s64, %s66
    %p73 = scmp.eq.s32.totalorder %s14, 1
    %p74 = por %p72, %p73
    %p75 = scmp.ne.s32.totalorder %s66, %s67
    %p76 = scmp.eq.s32.totalorder %s14, 0
    %p77 = por %p75, %p76
    %p78 = scmp.ne.s32.totalorder %s66, %s67
    %p79 = scmp.eq.s32.totalorder %s15, 1
    %p80 = por %p78, %p79
    %p82 = scmp.ne.s32.totalorder %s67, %s81
    %p83 = scmp.eq.s32.totalorder %s15, 0
    %p84 = por %p82, %p83
    %s85 = ssub.s32 %s9, %s16
    %p86 = scmp.eq.s32.totalorder %s85, 0
    %s88 = sadd.s32 %s87, 1
    %s89 = scalar_select %p86, %s87, %s88
    %p92 = pneg %p86
    %p93 = scmp.eq.s32.totalorder %s9, 1
    %p94 = por %p92, %p93
    %p95 = scmp.ne.s32.totalorder %s87, %s90
    %p96 = scmp.eq.s32.totalorder %s9, 0
    %p97 = por %p95, %p96
    %p98 = scmp.ne.s32.totalorder %s87, %s90
    %p99 = scmp.eq.s32.totalorder %s14, 1
    %p100 = por %p98, %p99
    %p101 = scmp.ne.s32.totalorder %s90, %s91
    %p102 = scmp.eq.s32.totalorder %s14, 0
    %p103 = por %p101, %p102
    %p104 = scmp.ne.s32.totalorder %s90, %s91
    %p105 = scmp.eq.s32.totalorder %s15, 1
    %p106 = por %p104, %p105
    %p108 = scmp.ne.s32.totalorder %s91, %s107
    %p109 = scmp.eq.s32.totalorder %s15, 0
    %p110 = por %p108, %p109
    %p111 = scmp.le.s32.totalorder 1, %s9
    %p112 = scmp.lt.s32.totalorder %s9, 3
    %p113 = pnand %p111, %p112
    %p114 = pneg %p113
    // Predicated region
    $region9: #{a_call__.5} parent=5 // pred_check
      _
    $region10: #{a_call__.5} parent=5 // pred_check_branch
      %116 = sbr.rel (%p113) target = $region12
    $region11: #{a_call__.5} parent=5 // pred_region
      %s117 = ssub.s32 %s9, 1
      // Predicated region
      $region13: #{a_call__.5} parent=11 // pred_check
        %p118 = pneg %p56
      $region14: #{a_call__.5} parent=11 // pred_check_branch
        %120 = sbr.rel (%p118) target = $region16
      $region15: #{a_call__.5} parent=11 // pred_region
        _
      $region16: #{a_call__.5} parent=11 // pred_fallthru
        _
      // Predicated region
      $region17: #{a_call__.5} parent=11 // pred_check
        %p121 = pneg %p77
      $region18: #{a_call__.5} parent=11 // pred_check_branch
        %123 = sbr.rel (%p121) target = $region20
      $region19: #{a_call__.5} parent=11 // pred_region
        _
      $region20: #{a_call__.5} parent=11 // pred_fallthru
        _
    $region12: #{a_call__.5} parent=5 // pred_fallthru
      _
    %p124 = scmp.lt.s32.totalorder %s9, 2
    // Predicated region
    $region21: #{a_call__.5} parent=5 // pred_check
      %p125 = pneg %p124
    $region22: #{a_call__.5} parent=5 // pred_check_branch
      %127 = sbr.rel (%p125) target = $region24
    $region23: #{a_call__.5} parent=5 // pred_region
      // Predicated region
      $region25: #{a_call__.5} parent=23 // pred_check
        %p128 = pneg %p29
      $region26: #{a_call__.5} parent=23 // pred_check_branch
        %130 = sbr.rel (%p128) target = $region28
      $region27: #{a_call__.5} parent=23 // pred_region
        %p131 = scmp.lt.s32.totalorder %s9, 1
        %s132 = scalar_select %p131, %s9, 1
        %s133 = smul.addr %s132, 48
        %s134 = smul.addr %s133, 4
        %s135 = scalar_lea.vmem %s0, %s134
      $region28: #{a_call__.5} parent=23 // pred_fallthru
        _
    $region24: #{a_call__.5} parent=5 // pred_fallthru
      _
    %p136 = scmp.le.s32.totalorder 1, %s9
    %p137 = scmp.lt.s32.totalorder %s9, 3
    %p138 = pnand %p136, %p137
    %p139 = pneg %p138
    // Predicated region
    $region29: #{a_call__.5} parent=5 // pred_check
      _
    $region30: #{a_call__.5} parent=5 // pred_check_branch
      %141 = sbr.rel (%p138) target = $region32
    $region31: #{a_call__.5} parent=5 // pred_region
      %s142 = ssub.s32 %s9, 1
      %p143 = scmp.lt.s32.totalorder %s14, 1
      %s144 = scalar_select %p143, %s14, 1
      %s145 = smul.addr %s144, 48
      %s146 = smul.addr %s145, 4
      %s147 = scalar_lea.vmem %s0, %s146
      %p148 = pneg %p35
      %p149 = pneg %p32
      %p150 = pneg %p56
      %p151 = pneg %p53
      %p152 = pneg %p77
      %p153 = pneg %p74
      %p154 = pneg %p103
      %p155 = pneg %p100
      %p156 = scmp.lt.s32.totalorder %s14, 1
      %s157 = scalar_select %p156, %s14, 1
      %s158 = smul.addr %s157, 9
      %s159 = smul.addr %s158, 8
      %s160 = scalar_lea.vmem %s3, %s159
      %p161 = scmp.lt.s32.totalorder %s14, 1
      %s162 = scalar_select %p161, %s14, 1
      %s163 = smul.addr %s162, 48
      %s164 = smul.addr %s163, 4
      %s165 = scalar_lea.vmem %s0, %s164
      %p166 = scmp.lt.s32.totalorder %s14, 1
      %s167 = scalar_select %p166, %s14, 1
      %s168 = smul.addr %s167, 9
      %s169 = smul.addr %s168, 8
      %s170 = scalar_lea.vmem %s3, %s169
      %v172 = vld [vmem:[%s165] sm:$0xf]
      %v173 = vld [vmem:[%s165 + $0x4] sm:$0xf]
      %v174 = vld [vmem:[%s165 + $0x8] sm:$0xf]
      %v175 = vld [vmem:[%s165 + $0xc] sm:$0xf]
      %v176 = vld [vmem:[%s165 + $0x10] sm:$0xf]
      %v177 = vld [vmem:[%s165 + $0x14] sm:$0xf]
      %v178 = vld [vmem:[%s165 + $0x18] sm:$0xf]
      %v179 = vld [vmem:[%s165 + $0x1c] sm:$0xf]
      %v180 = vld [vmem:[%s165 + $0x20] sm:$0xf]
      %v181 = vld [vmem:[%s1] sm:$0xf]
      %s182 = scalar_lea.vmem %s165, 48
      %v183 = vld [vmem:[%s182] sm:$0xf]
      %v184 = vld [vmem:[%s182 + $0x4] sm:$0xf]
      %v185 = vld [vmem:[%s182 + $0x8] sm:$0xf]
      %v186 = vld [vmem:[%s182 + $0xc] sm:$0xf]
      %v187 = vld [vmem:[%s182 + $0x10] sm:$0xf]
      %v188 = vld [vmem:[%s182 + $0x14] sm:$0xf]
      %v189 = vld [vmem:[%s182 + $0x18] sm:$0xf]
      %v190 = vld [vmem:[%s182 + $0x1c] sm:$0xf]
      %v191 = vld [vmem:[%s182 + $0x20] sm:$0xf]
      %s192 = scalar_lea.vmem %s1, 4
      %v193 = vld [vmem:[%s192] sm:$0xf]
      %v203 = vunpack.c.l.b16 %v183
      %v204 = vunpack.c.l.b16 %v184
      %v205 = vunpack.c.l.b16 %v185
      %v206 = vunpack.c.l.b16 %v186
      %v207 = vunpack.c.l.b16 %v187
      %v208 = vunpack.c.l.b16 %v188
      %v209 = vunpack.c.l.b16 %v189
      %v210 = vunpack.c.l.b16 %v190
      %v211 = vunpack.c.l.b16 %v191
      %v212 = vpack.c.b16 %v204, %v203
      %v213 = vpack.c.b16 %v206, %v205
      %v214 = vpack.c.b16 %v208, %v207
      %v215 = vpack.c.b16 %v210, %v209
      %v216 = vpack.c.b16 %v211, %v211
      %vm217 = vcmask 64512
      %v219 = vsel %vm217, %v212, 0
      %v222 = vsel %vm217, %v213, 0
      %v225 = vsel %vm217, %v214, 0
      %v228 = vsel %vm217, %v215, 0
      %v231 = vsel %vm217, %v216, 0
      %vm233 = vcmask 1043456
      %v235 = vsel %vm233, %v193, 0
      %237 = vmatprep.subr.bf16.mxu0 0
      %238 = vmatpush1.bf16.msra.mxu0 %v235
      %239 = vmatprep.subr.bf16.mxu0 0
      %240 = vmatpush1.bf16.msra.mxu0 0
      %241 = vmatprep.subr.bf16.mxu0 0
      %242 = vmatpush1.bf16.msra.mxu0 0
      %243 = vmatprep.subr.bf16.mxu0 0
      %244 = vmatpush1.bf16.msra.mxu0 0
      %245 = vmatprep.subr.bf16.mxu0 0
      %246 = vmatpush1.bf16.msra.mxu0 0
      %247 = vmatprep.subr.bf16.mxu0 0
      %248 = vmatpush1.bf16.msra.mxu0 0
      %249 = vmatprep.subr.bf16.mxu0 0
      %250 = vmatpush1.bf16.msra.mxu0 0
      %251 = vmatprep.subr.bf16.mxu0 0
      %252 = vmatpush1.bf16.msra.mxu0 0
      %253 = vmatprep.subr.bf16.mxu0 0
      %254 = vmatpush1.bf16.msra.mxu0 0
      %255 = vmatprep.subr.bf16.mxu0 0
      %256 = vmatpush1.bf16.msra.mxu0 0
      %257 = vmatprep.subr.bf16.mxu0 0
      %258 = vmatpush1.bf16.msra.mxu0 0
      %259 = vmatprep.subr.bf16.mxu0 0
      %260 = vmatpush1.bf16.msra.mxu0 0
      %261 = vmatprep.subr.bf16.mxu0 0
      %262 = vmatpush1.bf16.msra.mxu0 0
      %263 = vmatprep.subr.bf16.mxu0 0
      %264 = vmatpush1.bf16.msra.mxu0 0
      %265 = vmatprep.subr.bf16.mxu0 0
      %266 = vmatpush1.bf16.msra.mxu0 0
      %267 = vmatprep.subr.bf16.mxu0 0
      %268 = vmatpush1.bf16.msra.mxu0 0
      %269 = vmatprep.mubr.bf16.mxu0 0
      %270 = vmatmul.mubr.bf16.gmra.mrb[0].mxu0 %v219
      %v271 = vpop.f32.mrb[0].mxu0
      %v272 = vadd.f32 0.0, %v271
      %v273 = vpop.f32.mrb[0].mxu0
      %v274 = vpop.f32.mrb[0].mxu0
      %v275 = vadd.f32 0.0, %v274
      %v276 = vpop.f32.mrb[0].mxu0
      %277 = vmatprep.mubr.bf16.mxu0 0
      %278 = vmatmul.mubr.bf16.gmra.mrb[0].mxu0 %v222
      %v279 = vpop.f32.mrb[0].mxu0
      %v280 = vadd.f32 0.0, %v279
      %v281 = vpop.f32.mrb[0].mxu0
      %v282 = vpop.f32.mrb[0].mxu0
      %v283 = vadd.f32 0.0, %v282
      %v284 = vpop.f32.mrb[0].mxu0
      %285 = vmatprep.mubr.bf16.mxu0 0
      %286 = vmatmul.mubr.bf16.gmra.mrb[0].mxu0 %v225
      %v287 = vpop.f32.mrb[0].mxu0
      %v288 = vadd.f32 0.0, %v287
      %v289 = vpop.f32.mrb[0].mxu0
      %v290 = vpop.f32.mrb[0].mxu0
      %v291 = vadd.f32 0.0, %v290
      %v292 = vpop.f32.mrb[0].mxu0
      %293 = vmatprep.mubr.bf16.mxu0 0
      %294 = vmatmul.mubr.bf16.gmra.mrb[0].mxu0 %v228
      %v295 = vpop.f32.mrb[0].mxu0
      %v296 = vadd.f32 0.0, %v295
      %v297 = vpop.f32.mrb[0].mxu0
      %v298 = vpop.f32.mrb[0].mxu0
      %v299 = vadd.f32 0.0, %v298
      %v300 = vpop.f32.mrb[0].mxu0
      %301 = vmatprep.mubr.bf16.mxu0 0
      %302 = vmatmul.mubr.bf16.gmra.mrb[0].mxu0 %v231
      %v303 = vpop.f32.mrb[0].mxu0
      %v304 = vadd.f32 0.0, %v303
      %v305 = vpop.f32.mrb[0].mxu0
      %v306 = vpop.f32.mrb[0].mxu0
      %v307 = vpop.f32.mrb[0].mxu0
      %308 = vdwg.mxu0
      %v318 = vunpack.c.l.b16 %v172
      %v319 = vunpack.c.l.b16 %v173
      %v320 = vunpack.c.l.b16 %v174
      %v321 = vunpack.c.l.b16 %v175
      %v322 = vunpack.c.l.b16 %v176
      %v323 = vunpack.c.l.b16 %v177
      %v324 = vunpack.c.l.b16 %v178
      %v325 = vunpack.c.l.b16 %v179
      %v326 = vunpack.c.l.b16 %v180
      %v327 = vpack.c.b16 %v319, %v318
      %v328 = vpack.c.b16 %v321, %v320
      %v329 = vpack.c.b16 %v323, %v322
      %v330 = vpack.c.b16 %v325, %v324
      %v331 = vpack.c.b16 %v326, %v326
      %v333 = vsel %vm217, %v327, 0
      %v336 = vsel %vm217, %v328, 0
      %v339 = vsel %vm217, %v329, 0
      %v342 = vsel %vm217, %v330, 0
      %v345 = vsel %vm217, %v331, 0
      %v348 = vsel %vm233, %v181, 0
      %350 = vmatprep.subr.bf16.mxu0 0
      %351 = vmatpush1.bf16.msra.mxu0 %v348
      %352 = vmatprep.subr.bf16.mxu0 0
      %353 = vmatpush1.bf16.msra.mxu0 0
      %354 = vmatprep.subr.bf16.mxu0 0
      %355 = vmatpush1.bf16.msra.mxu0 0
      %356 = vmatprep.subr.bf16.mxu0 0
      %357 = vmatpush1.bf16.msra.mxu0 0
      %358 = vmatprep.subr.bf16.mxu0 0
      %359 = vmatpush1.bf16.msra.mxu0 0
      %360 = vmatprep.subr.bf16.mxu0 0
      %361 = vmatpush1.bf16.msra.mxu0 0
      %362 = vmatprep.subr.bf16.mxu0 0
      %363 = vmatpush1.bf16.msra.mxu0 0
      %364 = vmatprep.subr.bf16.mxu0 0
      %365 = vmatpush1.bf16.msra.mxu0 0
      %366 = vmatprep.subr.bf16.mxu0 0
      %367 = vmatpush1.bf16.msra.mxu0 0
      %368 = vmatprep.subr.bf16.mxu0 0
      %369 = vmatpush1.bf16.msra.mxu0 0
      %370 = vmatprep.subr.bf16.mxu0 0
      %371 = vmatpush1.bf16.msra.mxu0 0
      %372 = vmatprep.subr.bf16.mxu0 0
      %373 = vmatpush1.bf16.msra.mxu0 0
      %374 = vmatprep.subr.bf16.mxu0 0
      %375 = vmatpush1.bf16.msra.mxu0 0
      %376 = vmatprep.subr.bf16.mxu0 0
      %377 = vmatpush1.bf16.msra.mxu0 0
      %378 = vmatprep.subr.bf16.mxu0 0
      %379 = vmatpush1.bf16.msra.mxu0 0
      %380 = vmatprep.subr.bf16.mxu0 0
      %381 = vmatpush1.bf16.msra.mxu0 0
      %382 = vmatprep.mubr.bf16.mxu0 0
      %383 = vmatmul.mubr.bf16.gmra.mrb[0].mxu0 %v333
      %v384 = vpop.f32.mrb[0].mxu0
      %v385 = vadd.f32 %v272, %v384
      %v386 = vpop.f32.mrb[0].mxu0
      %v387 = vpop.f32.mrb[0].mxu0
      %v388 = vadd.f32 %v275, %v387
      %v389 = vpop.f32.mrb[0].mxu0
      %390 = vmatprep.mubr.bf16.mxu0 0
      %391 = vmatmul.mubr.bf16.gmra.mrb[0].mxu0 %v336
      %v392 = vpop.f32.mrb[0].mxu0
      %v393 = vadd.f32 %v280, %v392
      %v394 = vpop.f32.mrb[0].mxu0
      %v395 = vpop.f32.mrb[0].mxu0
      %v396 = vadd.f32 %v283, %v395
      %v397 = vpop.f32.mrb[0].mxu0
      %398 = vmatprep.mubr.bf16.mxu0 0
      %399 = vmatmul.mubr.bf16.gmra.mrb[0].mxu0 %v339
      %v400 = vpop.f32.mrb[0].mxu0
      %v401 = vadd.f32 %v288, %v400
      %v402 = vpop.f32.mrb[0].mxu0
      %v403 = vpop.f32.mrb[0].mxu0
      %v404 = vadd.f32 %v291, %v403
      %v405 = vpop.f32.mrb[0].mxu0
      %406 = vmatprep.mubr.bf16.mxu0 0
      %407 = vmatmul.mubr.bf16.gmra.mrb[0].mxu0 %v342
      %v408 = vpop.f32.mrb[0].mxu0
      %v409 = vadd.f32 %v296, %v408
      %v410 = vpop.f32.mrb[0].mxu0
      %v411 = vpop.f32.mrb[0].mxu0
      %v412 = vadd.f32 %v299, %v411
      %v413 = vpop.f32.mrb[0].mxu0
      %414 = vmatprep.mubr.bf16.mxu0 0
      %415 = vmatmul.mubr.bf16.gmra.mrb[0].mxu0 %v345
      %v416 = vpop.f32.mrb[0].mxu0
      %v417 = vadd.f32 %v304, %v416
      %v418 = vpop.f32.mrb[0].mxu0
      %v419 = vpop.f32.mrb[0].mxu0
      %v420 = vpop.f32.mrb[0].mxu0
      %421 = vdwg.mxu0
      %v422 = vld [vmem:[%s165] sm:$0xf]
      %v423 = vld [vmem:[%s165 + $0x4] sm:$0xf]
      %v424 = vld [vmem:[%s165 + $0x8] sm:$0xf]
      %v425 = vld [vmem:[%s165 + $0xc] sm:$0xf]
      %v426 = vld [vmem:[%s165 + $0x10] sm:$0xf]
      %v427 = vld [vmem:[%s165 + $0x14] sm:$0xf]
      %v428 = vld [vmem:[%s165 + $0x18] sm:$0xf]
      %v429 = vld [vmem:[%s165 + $0x1c] sm:$0xf]
      %v430 = vld [vmem:[%s165 + $0x20] sm:$0xf]
      %v431 = vld [vmem:[%s165 + $0x24] sm:$0x1]
      %s432 = scalar_lea.vmem %s1, 8
      %v433 = vld [vmem:[%s432] sm:$0xf]
      %v444 = vunpack.c.l.b16 %v422
      %v445 = vunpack.c.l.b16 %v423
      %v446 = vunpack.c.l.b16 %v424
      %v447 = vunpack.c.l.b16 %v425
      %v448 = vunpack.c.l.b16 %v426
      %v449 = vunpack.c.l.b16 %v427
      %v450 = vunpack.c.l.b16 %v428
      %v451 = vunpack.c.l.b16 %v429
      %v452 = vunpack.c.l.b16 %v430
      %v453 = vunpack.c.l.b16 %v431
      %v454 = vpack.c.b16 %v445, %v444
      %v455 = vpack.c.b16 %v447, %v446
      %v456 = vpack.c.b16 %v449, %v448
      %v457 = vpack.c.b16 %v451, %v450
      %v458 = vpack.c.b16 %v453, %v452
      %vm459 = vsmask.f32 7424
      %v461 = vshrl.u32 %v454, 16
      %v463 = vshll.u32 %v454, 16
      %v465 = vrot.slane %v463, 1
      %v466 = vor.u32 %v461, %v465
      %v468 = vshll.u32 %v455, 16
      %v470 = vrot.slane %v468, 1
      %v471 = vsel %vm459, %v466, %v470
      %v472 = vshrl.u32 %v455, 16
      %v474 = vor.u32 %v472, %v470
      %v476 = vshll.u32 %v456, 16
      %v478 = vrot.slane %v476, 1
      %v479 = vsel %vm459, %v474, %v478
      %v480 = vshrl.u32 %v456, 16
      %v482 = vor.u32 %v480, %v478
      %v484 = vshll.u32 %v457, 16
      %v486 = vrot.slane %v484, 1
      %v487 = vsel %vm459, %v482, %v486
      %v488 = vshrl.u32 %v457, 16
      %v490 = vor.u32 %v488, %v486
      %v492 = vshll.u32 %v458, 16
      %v494 = vrot.slane %v492, 1
      %v495 = vsel %vm459, %v490, %v494
      %v496 = vshrl.u32 %v458, 16
      %v498 = vor.u32 %v496, %v494
      %v500 = vsel %vm217, %v471, 0
      %v503 = vsel %vm217, %v479, 0
      %v506 = vsel %vm217, %v487, 0
      %v509 = vsel %vm217, %v495, 0
      %v512 = vsel %vm217, %v498, 0
      %v515 = vsel %vm233, %v433, 0
      %517 = vmatprep.subr.bf16.mxu0 0
      %518 = vmatpush1.bf16.msra.mxu0 %v515
      %519 = vmatprep.subr.bf16.mxu0 0
      %520 = vmatpush1.bf16.msra.mxu0 0
      %521 = vmatprep.subr.bf16.mxu0 0
      %522 = vmatpush1.bf16.msra.mxu0 0
      %523 = vmatprep.subr.bf16.mxu0 0
      %524 = vmatpush1.bf16.msra.mxu0 0
      %525 = vmatprep.subr.bf16.mxu0 0
      %526 = vmatpush1.bf16.msra.mxu0 0
      %527 = vmatprep.subr.bf16.mxu0 0
      %528 = vmatpush1.bf16.msra.mxu0 0
      %529 = vmatprep.subr.bf16.mxu0 0
      %530 = vmatpush1.bf16.msra.mxu0 0
      %531 = vmatprep.subr.bf16.mxu0 0
      %532 = vmatpush1.bf16.msra.mxu0 0
      %533 = vmatprep.subr.bf16.mxu0 0
      %534 = vmatpush1.bf16.msra.mxu0 0
      %535 = vmatprep.subr.bf16.mxu0 0
      %536 = vmatpush1.bf16.msra.mxu0 0
      %537 = vmatprep.subr.bf16.mxu0 0
      %538 = vmatpush1.bf16.msra.mxu0 0
      %539 = vmatprep.subr.bf16.mxu0 0
      %540 = vmatpush1.bf16.msra.mxu0 0
      %541 = vmatprep.subr.bf16.mxu0 0
      %542 = vmatpush1.bf16.msra.mxu0 0
      %543 = vmatprep.subr.bf16.mxu0 0
      %544 = vmatpush1.bf16.msra.mxu0 0
      %545 = vmatprep.subr.bf16.mxu0 0
      %546 = vmatpush1.bf16.msra.mxu0 0
      %547 = vmatprep.subr.bf16.mxu0 0
      %548 = vmatpush1.bf16.msra.mxu0 0
      %549 = vmatprep.mubr.bf16.mxu0 0
      %550 = vmatmul.mubr.bf16.gmra.mrb[0].mxu0 %v500
      %v551 = vpop.f32.mrb[0].mxu0
      %v552 = vadd.f32 0.0, %v551
      %v553 = vpop.f32.mrb[0].mxu0
      %v554 = vpop.f32.mrb[0].mxu0
      %v555 = vadd.f32 0.0, %v554
      %v556 = vpop.f32.mrb[0].mxu0
      %557 = vmatprep.mubr.bf16.mxu0 0
      %558 = vmatmul.mubr.bf16.gmra.mrb[0].mxu0 %v503
      %v559 = vpop.f32.mrb[0].mxu0
      %v560 = vadd.f32 0.0, %v559
      %v561 = vpop.f32.mrb[0].mxu0
      %v562 = vpop.f32.mrb[0].mxu0
      %v563 = vadd.f32 0.0, %v562
      %v564 = vpop.f32.mrb[0].mxu0
      %565 = vmatprep.mubr.bf16.mxu0 0
      %566 = vmatmul.mubr.bf16.gmra.mrb[0].mxu0 %v506
      %v567 = vpop.f32.mrb[0].mxu0
      %v568 = vadd.f32 0.0, %v567
      %v569 = vpop.f32.mrb[0].mxu0
      %v570 = vpop.f32.mrb[0].mxu0
      %v571 = vadd.f32 0.0, %v570
      %v572 = vpop.f32.mrb[0].mxu0
      %573 = vmatprep.mubr.bf16.mxu0 0
      %574 = vmatmul.mubr.bf16.gmra.mrb[0].mxu0 %v509
      %v575 = vpop.f32.mrb[0].mxu0
      %v576 = vadd.f32 0.0, %v575
      %v577 = vpop.f32.mrb[0].mxu0
      %v578 = vpop.f32.mrb[0].mxu0
      %v579 = vadd.f32 0.0, %v578
      %v580 = vpop.f32.mrb[0].mxu0
      %581 = vmatprep.mubr.bf16.mxu0 0
      %582 = vmatmul.mubr.bf16.gmra.mrb[0].mxu0 %v512
      %v583 = vpop.f32.mrb[0].mxu0
      %v584 = vadd.f32 0.0, %v583
      %v585 = vpop.f32.mrb[0].mxu0
      %v586 = vpop.f32.mrb[0].mxu0
      %v587 = vpop.f32.mrb[0].mxu0
      %588 = vdwg.mxu0
      %v589 = vadd.f32 %v385, %v552
      %v590 = vadd.f32 %v388, %v555
      %v591 = vadd.f32 %v393, %v560
      %v592 = vadd.f32 %v396, %v563
      %v593 = vadd.f32 %v401, %v568
      %v594 = vadd.f32 %v404, %v571
      %v595 = vadd.f32 %v409, %v576
      %v596 = vadd.f32 %v412, %v579
      %v597 = vadd.f32 %v417, %v584
      %s598 = scalar_lea.vmem %s165, 96
      %v599 = vld [vmem:[%s598] sm:$0xf]
      %v600 = vld [vmem:[%s598 + $0x4] sm:$0xf]
      %v601 = vld [vmem:[%s598 + $0x8] sm:$0xf]
      %v602 = vld [vmem:[%s598 + $0xc] sm:$0xf]
      %v603 = vld [vmem:[%s598 + $0x10] sm:$0xf]
      %v604 = vld [vmem:[%s598 + $0x14] sm:$0xf]
      %v605 = vld [vmem:[%s598 + $0x18] sm:$0xf]
      %v606 = vld [vmem:[%s598 + $0x1c] sm:$0xf]
      %v607 = vld [vmem:[%s598 + $0x20] sm:$0xf]
      %s608 = scalar_lea.vmem %s1, 12
      %v609 = vld [vmem:[%s608] sm:$0xf]
      %v619 = vunpack.c.l.b16 %v599
      %v620 = vunpack.c.l.b16 %v600
      %v621 = vunpack.c.l.b16 %v601
      %v622 = vunpack.c.l.b16 %v602
      %v623 = vunpack.c.l.b16 %v603
      %v624 = vunpack.c.l.b16 %v604
      %v625 = vunpack.c.l.b16 %v605
      %v626 = vunpack.c.l.b16 %v606
      %v627 = vunpack.c.l.b16 %v607
      %v628 = vpack.c.b16 %v620, %v619
      %v629 = vpack.c.b16 %v622, %v621
      %v630 = vpack.c.b16 %v624, %v623
      %v631 = vpack.c.b16 %v626, %v625
      %v632 = vpack.c.b16 %v627, %v627
      %v634 = vsel %vm217, %v628, 0
      %v637 = vsel %vm217, %v629, 0
      %v640 = vsel %vm217, %v630, 0
      %v643 = vsel %vm217, %v631, 0
      %v646 = vsel %vm217, %v632, 0
      %v649 = vsel %vm233, %v609, 0
      %651 = vmatprep.subr.bf16.mxu0 0
      %652 = vmatpush1.bf16.msra.mxu0 %v649
      %653 = vmatprep.subr.bf16.mxu0 0
      %654 = vmatpush1.bf16.msra.mxu0 0
      %655 = vmatprep.subr.bf16.mxu0 0
      %656 = vmatpush1.bf16.msra.mxu0 0
      %657 = vmatprep.subr.bf16.mxu0 0
      %658 = vmatpush1.bf16.msra.mxu0 0
      %659 = vmatprep.subr.bf16.mxu0 0
      %660 = vmatpush1.bf16.msra.mxu0 0
      %661 = vmatprep.subr.bf16.mxu0 0
      %662 = vmatpush1.bf16.msra.mxu0 0
      %663 = vmatprep.subr.bf16.mxu0 0
      %664 = vmatpush1.bf16.msra.mxu0 0
      %665 = vmatprep.subr.bf16.mxu0 0
      %666 = vmatpush1.bf16.msra.mxu0 0
      %667 = vmatprep.subr.bf16.mxu0 0
      %668 = vmatpush1.bf16.msra.mxu0 0
      %669 = vmatprep.subr.bf16.mxu0 0
      %670 = vmatpush1.bf16.msra.mxu0 0
      %671 = vmatprep.subr.bf16.mxu0 0
      %672 = vmatpush1.bf16.msra.mxu0 0
      %673 = vmatprep.subr.bf16.mxu0 0
      %674 = vmatpush1.bf16.msra.mxu0 0
      %675 = vmatprep.subr.bf16.mxu0 0
      %676 = vmatpush1.bf16.msra.mxu0 0
      %677 = vmatprep.subr.bf16.mxu0 0
      %678 = vmatpush1.bf16.msra.mxu0 0
      %679 = vmatprep.subr.bf16.mxu0 0
      %680 = vmatpush1.bf16.msra.mxu0 0
      %681 = vmatprep.subr.bf16.mxu0 0
      %682 = vmatpush1.bf16.msra.mxu0 0
      %683 = vmatprep.mubr.bf16.mxu0 0
      %684 = vmatmul.mubr.bf16.gmra.mrb[0].mxu0 %v634
      %v685 = vpop.f32.mrb[0].mxu0
      %v686 = vadd.f32 0.0, %v685
      %v687 = vpop.f32.mrb[0].mxu0
      %v688 = vpop.f32.mrb[0].mxu0
      %v689 = vadd.f32 0.0, %v688
      %v690 = vpop.f32.mrb[0].mxu0
      %691 = vmatprep.mubr.bf16.mxu0 0
      %692 = vmatmul.mubr.bf16.gmra.mrb[0].mxu0 %v637
      %v693 = vpop.f32.mrb[0].mxu0
      %v694 = vadd.f32 0.0, %v693
      %v695 = vpop.f32.mrb[0].mxu0
      %v696 = vpop.f32.mrb[0].mxu0
      %v697 = vadd.f32 0.0, %v696
      %v698 = vpop.f32.mrb[0].mxu0
      %699 = vmatprep.mubr.bf16.mxu0 0
      %700 = vmatmul.mubr.bf16.gmra.mrb[0].mxu0 %v640
      %v701 = vpop.f32.mrb[0].mxu0
      %v702 = vadd.f32 0.0, %v701
      %v703 = vpop.f32.mrb[0].mxu0
      %v704 = vpop.f32.mrb[0].mxu0
      %v705 = vadd.f32 0.0, %v704
      %v706 = vpop.f32.mrb[0].mxu0
      %707 = vmatprep.mubr.bf16.mxu0 0
      %708 = vmatmul.mubr.bf16.gmra.mrb[0].mxu0 %v643
      %v709 = vpop.f32.mrb[0].mxu0
      %v710 = vadd.f32 0.0, %v709
      %v711 = vpop.f32.mrb[0].mxu0
      %v712 = vpop.f32.mrb[0].mxu0
      %v713 = vadd.f32 0.0, %v712
      %v714 = vpop.f32.mrb[0].mxu0
      %715 = vmatprep.mubr.bf16.mxu0 0
      %716 = vmatmul.mubr.bf16.gmra.mrb[0].mxu0 %v646
      %v717 = vpop.f32.mrb[0].mxu0
      %v718 = vadd.f32 0.0, %v717
      %v719 = vpop.f32.mrb[0].mxu0
      %v720 = vpop.f32.mrb[0].mxu0
      %v721 = vpop.f32.mrb[0].mxu0
      %722 = vdwg.mxu0
      %v723 = vadd.f32 %v589, %v686
      %v724 = vadd.f32 %v590, %v689
      %v725 = vadd.f32 %v591, %v694
      %v726 = vadd.f32 %v592, %v697
      %v727 = vadd.f32 %v593, %v702
      %v728 = vadd.f32 %v594, %v705
      %v729 = vadd.f32 %v595, %v710
      %v730 = vadd.f32 %v596, %v713
      %v731 = vadd.f32 %v597, %v718
      %s732 = scalar_lea.vmem %s165, 144
      %v733 = vld [vmem:[%s732] sm:$0xf]
      %v734 = vld [vmem:[%s732 + $0x4] sm:$0xf]
      %v735 = vld [vmem:[%s732 + $0x8] sm:$0xf]
      %v736 = vld [vmem:[%s732 + $0xc] sm:$0xf]
      %v737 = vld [vmem:[%s732 + $0x10] sm:$0xf]
      %v738 = vld [vmem:[%s732 + $0x14] sm:$0xf]
      %v739 = vld [vmem:[%s732 + $0x18] sm:$0xf]
      %v740 = vld [vmem:[%s732 + $0x1c] sm:$0xf]
      %v741 = vld [vmem:[%s732 + $0x20] sm:$0xf]
      %s742 = scalar_lea.vmem %s1, 16
      %v743 = vld [vmem:[%s742] sm:$0xf]
      %v753 = vunpack.c.l.b16 %v733
      %v754 = vunpack.c.l.b16 %v734
      %v755 = vunpack.c.l.b16 %v735
      %v756 = vunpack.c.l.b16 %v736
      %v757 = vunpack.c.l.b16 %v737
      %v758 = vunpack.c.l.b16 %v738
      %v759 = vunpack.c.l.b16 %v739
      %v760 = vunpack.c.l.b16 %v740
      %v761 = vunpack.c.l.b16 %v741
      %v762 = vpack.c.b16 %v754, %v753
      %v763 = vpack.c.b16 %v756, %v755
      %v764 = vpack.c.b16 %v758, %v757
      %v765 = vpack.c.b16 %v760, %v759
      %v766 = vpack.c.b16 %v761, %v761
      %v768 = vsel %vm217, %v762, 0
      %v771 = vsel %vm217, %v763, 0
      %v774 = vsel %vm217, %v764, 0
      %v777 = vsel %vm217, %v765, 0
      %v780 = vsel %vm217, %v766, 0
      %v783 = vsel %vm233, %v743, 0
      %785 = vmatprep.subr.bf16.mxu0 0
      %786 = vmatpush1.bf16.msra.mxu0 %v783
      %787 = vmatprep.subr.bf16.mxu0 0
      %788 = vmatpush1.bf16.msra.mxu0 0
      %789 = vmatprep.subr.bf16.mxu0 0
      %790 = vmatpush1.bf16.msra.mxu0 0
      %791 = vmatprep.subr.bf16.mxu0 0
      %792 = vmatpush1.bf16.msra.mxu0 0
      %793 = vmatprep.subr.bf16.mxu0 0
      %794 = vmatpush1.bf16.msra.mxu0 0
      %795 = vmatprep.subr.bf16.mxu0 0
      %796 = vmatpush1.bf16.msra.mxu0 0
      %797 = vmatprep.subr.bf16.mxu0 0
      %798 = vmatpush1.bf16.msra.mxu0 0
      %799 = vmatprep.subr.bf16.mxu0 0
      %800 = vmatpush1.bf16.msra.mxu0 0
      %801 = vmatprep.subr.bf16.mxu0 0
      %802 = vmatpush1.bf16.msra.mxu0 0
      %803 = vmatprep.subr.bf16.mxu0 0
      %804 = vmatpush1.bf16.msra.mxu0 0
      %805 = vmatprep.subr.bf16.mxu0 0
      %806 = vmatpush1.bf16.msra.mxu0 0
      %807 = vmatprep.subr.bf16.mxu0 0
      %808 = vmatpush1.bf16.msra.mxu0 0
      %809 = vmatprep.subr.bf16.mxu0 0
      %810 = vmatpush1.bf16.msra.mxu0 0
      %811 = vmatprep.subr.bf16.mxu0 0
      %812 = vmatpush1.bf16.msra.mxu0 0
      %813 = vmatprep.subr.bf16.mxu0 0
      %814 = vmatpush1.bf16.msra.mxu0 0
      %815 = vmatprep.subr.bf16.mxu0 0
      %816 = vmatpush1.bf16.msra.mxu0 0
      %817 = vmatprep.mubr.bf16.mxu0 0
      %818 = vmatmul.mubr.bf16.gmra.mrb[0].mxu0 %v768
      %v819 = vpop.f32.mrb[0].mxu0
      %v820 = vadd.f32 0.0, %v819
      %v821 = vpop.f32.mrb[0].mxu0
      %v822 = vpop.f32.mrb[0].mxu0
      %v823 = vadd.f32 0.0, %v822
      %v824 = vpop.f32.mrb[0].mxu0
      %825 = vmatprep.mubr.bf16.mxu0 0
      %826 = vmatmul.mubr.bf16.gmra.mrb[0].mxu0 %v771
      %v827 = vpop.f32.mrb[0].mxu0
      %v828 = vadd.f32 0.0, %v827
      %v829 = vpop.f32.mrb[0].mxu0
      %v830 = vpop.f32.mrb[0].mxu0
      %v831 = vadd.f32 0.0, %v830
      %v832 = vpop.f32.mrb[0].mxu0
      %833 = vmatprep.mubr.bf16.mxu0 0
      %834 = vmatmul.mubr.bf16.gmra.mrb[0].mxu0 %v774
      %v835 = vpop.f32.mrb[0].mxu0
      %v836 = vadd.f32 0.0, %v835
      %v837 = vpop.f32.mrb[0].mxu0
      %v838 = vpop.f32.mrb[0].mxu0
      %v839 = vadd.f32 0.0, %v838
      %v840 = vpop.f32.mrb[0].mxu0
      %841 = vmatprep.mubr.bf16.mxu0 0
      %842 = vmatmul.mubr.bf16.gmra.mrb[0].mxu0 %v777
      %v843 = vpop.f32.mrb[0].mxu0
      %v844 = vadd.f32 0.0, %v843
      %v845 = vpop.f32.mrb[0].mxu0
      %v846 = vpop.f32.mrb[0].mxu0
      %v847 = vadd.f32 0.0, %v846
      %v848 = vpop.f32.mrb[0].mxu0
      %849 = vmatprep.mubr.bf16.mxu0 0
      %850 = vmatmul.mubr.bf16.gmra.mrb[0].mxu0 %v780
      %v851 = vpop.f32.mrb[0].mxu0
      %v852 = vadd.f32 0.0, %v851
      %v853 = vpop.f32.mrb[0].mxu0
      %v854 = vpop.f32.mrb[0].mxu0
      %v855 = vpop.f32.mrb[0].mxu0
      %856 = vdwg.mxu0
      %v857 = vadd.f32 %v723, %v820
      %v858 = vadd.f32 %v724, %v823
      %v859 = vadd.f32 %v725, %v828
      %v860 = vadd.f32 %v726, %v831
      %v861 = vadd.f32 %v727, %v836
      %v862 = vadd.f32 %v728, %v839
      %v863 = vadd.f32 %v729, %v844
      %v864 = vadd.f32 %v730, %v847
      %v865 = vadd.f32 %v731, %v852
      %v866 = vld [vmem:[%s598] sm:$0xf]
      %v867 = vld [vmem:[%s598 + $0x4] sm:$0xf]
      %v868 = vld [vmem:[%s598 + $0x8] sm:$0xf]
      %v869 = vld [vmem:[%s598 + $0xc] sm:$0xf]
      %v870 = vld [vmem:[%s598 + $0x10] sm:$0xf]
      %v871 = vld [vmem:[%s598 + $0x14] sm:$0xf]
      %v872 = vld [vmem:[%s598 + $0x18] sm:$0xf]
      %v873 = vld [vmem:[%s598 + $0x1c] sm:$0xf]
      %v874 = vld [vmem:[%s598 + $0x20] sm:$0xf]
      %v875 = vld [vmem:[%s598 + $0x24] sm:$0x1]
      %s876 = scalar_lea.vmem %s1, 20
      %v877 = vld [vmem:[%s876] sm:$0xf]
      %v888 = vunpack.c.l.b16 %v866
      %v889 = vunpack.c.l.b16 %v867
      %v890 = vunpack.c.l.b16 %v868
      %v891 = vunpack.c.l.b16 %v869
      %v892 = vunpack.c.l.b16 %v870
      %v893 = vunpack.c.l.b16 %v871
      %v894 = vunpack.c.l.b16 %v872
      %v895 = vunpack.c.l.b16 %v873
      %v896 = vunpack.c.l.b16 %v874
      %v897 = vunpack.c.l.b16 %v875
      %v898 = vpack.c.b16 %v889, %v888
      %v899 = vpack.c.b16 %v891, %v890
      %v900 = vpack.c.b16 %v893, %v892
      %v901 = vpack.c.b16 %v895, %v894
      %v902 = vpack.c.b16 %v897, %v896
      %v904 = vshrl.u32 %v898, 16
      %v906 = vshll.u32 %v898, 16
      %v908 = vrot.slane %v906, 1
      %v909 = vor.u32 %v904, %v908
      %v911 = vshll.u32 %v899, 16
      %v913 = vrot.slane %v911, 1
      %v914 = vsel %vm459, %v909, %v913
      %v915 = vshrl.u32 %v899, 16
      %v917 = vor.u32 %v915, %v913
      %v919 = vshll.u32 %v900, 16
      %v921 = vrot.slane %v919, 1
      %v922 = vsel %vm459, %v917, %v921
      %v923 = vshrl.u32 %v900, 16
      %v925 = vor.u32 %v923, %v921
      %v927 = vshll.u32 %v901, 16
      %v929 = vrot.slane %v927, 1
      %v930 = vsel %vm459, %v925, %v929
      %v931 = vshrl.u32 %v901, 16
      %v933 = vor.u32 %v931, %v929
      %v935 = vshll.u32 %v902, 16
      %v937 = vrot.slane %v935, 1
      %v938 = vsel %vm459, %v933, %v937
      %v939 = vshrl.u32 %v902, 16
      %v941 = vor.u32 %v939, %v937
      %v943 = vsel %vm217, %v914, 0
      %v946 = vsel %vm217, %v922, 0
      %v949 = vsel %vm217, %v930, 0
      %v952 = vsel %vm217, %v938, 0
      %v955 = vsel %vm217, %v941, 0
      %v958 = vsel %vm233, %v877, 0
      %960 = vmatprep.subr.bf16.mxu0 0
      %961 = vmatpush1.bf16.msra.mxu0 %v958
      %962 = vmatprep.subr.bf16.mxu0 0
      %963 = vmatpush1.bf16.msra.mxu0 0
      %964 = vmatprep.subr.bf16.mxu0 0
      %965 = vmatpush1.bf16.msra.mxu0 0
      %966 = vmatprep.subr.bf16.mxu0 0
      %967 = vmatpush1.bf16.msra.mxu0 0
      %968 = vmatprep.subr.bf16.mxu0 0
      %969 = vmatpush1.bf16.msra.mxu0 0
      %970 = vmatprep.subr.bf16.mxu0 0
      %971 = vmatpush1.bf16.msra.mxu0 0
      %972 = vmatprep.subr.bf16.mxu0 0
      %973 = vmatpush1.bf16.msra.mxu0 0
      %974 = vmatprep.subr.bf16.mxu0 0
      %975 = vmatpush1.bf16.msra.mxu0 0
      %976 = vmatprep.subr.bf16.mxu0 0
      %977 = vmatpush1.bf16.msra.mxu0 0
      %978 = vmatprep.subr.bf16.mxu0 0
      %979 = vmatpush1.bf16.msra.mxu0 0
      %980 = vmatprep.subr.bf16.mxu0 0
      %981 = vmatpush1.bf16.msra.mxu0 0
      %982 = vmatprep.subr.bf16.mxu0 0
      %983 = vmatpush1.bf16.msra.mxu0 0
      %984 = vmatprep.subr.bf16.mxu0 0
      %985 = vmatpush1.bf16.msra.mxu0 0
      %986 = vmatprep.subr.bf16.mxu0 0
      %987 = vmatpush1.bf16.msra.mxu0 0
      %988 = vmatprep.subr.bf16.mxu0 0
      %989 = vmatpush1.bf16.msra.mxu0 0
      %990 = vmatprep.subr.bf16.mxu0 0
      %991 = vmatpush1.bf16.msra.mxu0 0
      %992 = vmatprep.mubr.bf16.mxu0 0
      %993 = vmatmul.mubr.bf16.gmra.mrb[0].mxu0 %v943
      %v994 = vpop.f32.mrb[0].mxu0
      %v995 = vadd.f32 0.0, %v994
      %v996 = vpop.f32.mrb[0].mxu0
      %v997 = vpop.f32.mrb[0].mxu0
      %v998 = vadd.f32 0.0, %v997
      %v999 = vpop.f32.mrb[0].mxu0
      %1000 = vmatprep.mubr.bf16.mxu0 0
      %1001 = vmatmul.mubr.bf16.gmra.mrb[0].mxu0 %v946
      %v1002 = vpop.f32.mrb[0].mxu0
      %v1003 = vadd.f32 0.0, %v1002
      %v1004 = vpop.f32.mrb[0].mxu0
      %v1005 = vpop.f32.mrb[0].mxu0
      %v1006 = vadd.f32 0.0, %v1005
      %v1007 = vpop.f32.mrb[0].mxu0
      %1008 = vmatprep.mubr.bf16.mxu0 0
      %1009 = vmatmul.mubr.bf16.gmra.mrb[0].mxu0 %v949
      %v1010 = vpop.f32.mrb[0].mxu0
      %v1011 = vadd.f32 0.0, %v1010
      %v1012 = vpop.f32.mrb[0].mxu0
      %v1013 = vpop.f32.mrb[0].mxu0
      %v1014 = vadd.f32 0.0, %v1013
      %v1015 = vpop.f32.mrb[0].mxu0
      %1016 = vmatprep.mubr.bf16.mxu0 0
      %1017 = vmatmul.mubr.bf16.gmra.mrb[0].mxu0 %v952
      %v1018 = vpop.f32.mrb[0].mxu0
      %v1019 = vadd.f32 0.0, %v1018
      %v1020 = vpop.f32.mrb[0].mxu0
      %v1021 = vpop.f32.mrb[0].mxu0
      %v1022 = vadd.f32 0.0, %v1021
      %v1023 = vpop.f32.mrb[0].mxu0
      %1024 = vmatprep.mubr.bf16.mxu0 0
      %1025 = vmatmul.mubr.bf16.gmra.mrb[0].mxu0 %v955
      %v1026 = vpop.f32.mrb[0].mxu0
      %v1027 = vadd.f32 0.0, %v1026
      %v1028 = vpop.f32.mrb[0].mxu0
      %v1029 = vpop.f32.mrb[0].mxu0
      %v1030 = vpop.f32.mrb[0].mxu0
      %1031 = vdwg.mxu0
      %v1032 = vadd.f32 %v857, %v995
      %v1033 = vadd.f32 %v858, %v998
      %v1034 = vadd.f32 %v859, %v1003
      %v1035 = vadd.f32 %v860, %v1006
      %v1036 = vadd.f32 %v861, %v1011
      %v1037 = vadd.f32 %v862, %v1014
      %v1038 = vadd.f32 %v863, %v1019
      %v1039 = vadd.f32 %v864, %v1022
      %v1040 = vadd.f32 %v865, %v1027
      %v1041 = vld [vmem:[%s165 + $0x4] sm:$0xf]
      %v1042 = vld [vmem:[%s165 + $0x8] sm:$0xf]
      %v1043 = vld [vmem:[%s165 + $0xc] sm:$0xf]
      %v1044 = vld [vmem:[%s165 + $0x10] sm:$0xf]
      %v1045 = vld [vmem:[%s165 + $0x14] sm:$0xf]
      %v1046 = vld [vmem:[%s165 + $0x18] sm:$0xf]
      %v1047 = vld [vmem:[%s165 + $0x1c] sm:$0xf]
      %v1048 = vld [vmem:[%s165 + $0x20] sm:$0xf]
      %v1049 = vld [vmem:[%s165 + $0x24] sm:$0xf]
      %v1050 = vld [vmem:[%s165 + $0x28] sm:$0x1]
      %s1051 = scalar_lea.vmem %s1, 24
      %v1052 = vld [vmem:[%s1051] sm:$0xf]
      %v1063 = vunpack.c.l.b16 %v1041
      %v1064 = vunpack.c.l.b16 %v1042
      %v1065 = vunpack.c.l.b16 %v1043
      %v1066 = vunpack.c.l.b16 %v1044
      %v1067 = vunpack.c.l.b16 %v1045
      %v1068 = vunpack.c.l.b16 %v1046
      %v1069 = vunpack.c.l.b16 %v1047
      %v1070 = vunpack.c.l.b16 %v1048
      %v1071 = vunpack.c.l.b16 %v1049
      %v1072 = vunpack.c.l.b16 %v1050
      %v1073 = vpack.c.b16 %v1064, %v1063
      %v1074 = vpack.c.b16 %v1066, %v1065
      %v1075 = vpack.c.b16 %v1068, %v1067
      %v1076 = vpack.c.b16 %v1070, %v1069
      %v1077 = vpack.c.b16 %v1072, %v1071
      %v1079 = vshrl.u32 %v1073, 16
      %v1081 = vshll.u32 %v1073, 16
      %v1083 = vrot.slane %v1081, 1
      %v1084 = vor.u32 %v1079, %v1083
      %v1086 = vshll.u32 %v1074, 16
      %v1088 = vrot.slane %v1086, 1
      %v1089 = vsel %vm459, %v1084, %v1088
      %v1090 = vshrl.u32 %v1074, 16
      %v1092 = vor.u32 %v1090, %v1088
      %v1094 = vshll.u32 %v1075, 16
      %v1096 = vrot.slane %v1094, 1
      %v1097 = vsel %vm459, %v1092, %v1096
      %v1098 = vshrl.u32 %v1075, 16
      %v1100 = vor.u32 %v1098, %v1096
      %v1102 = vshll.u32 %v1076, 16
      %v1104 = vrot.slane %v1102, 1
      %v1105 = vsel %vm459, %v1100, %v1104
      %v1106 = vshrl.u32 %v1076, 16
      %v1108 = vor.u32 %v1106, %v1104
      %v1110 = vshll.u32 %v1077, 16
      %v1112 = vrot.slane %v1110, 1
      %v1113 = vsel %vm459, %v1108, %v1112
      %v1114 = vshrl.u32 %v1077, 16
      %v1116 = vor.u32 %v1114, %v1112
      %v1118 = vsel %vm217, %v1089, 0
      %v1121 = vsel %vm217, %v1097, 0
      %v1124 = vsel %vm217, %v1105, 0
      %v1127 = vsel %vm217, %v1113, 0
      %v1130 = vsel %vm217, %v1116, 0
      %v1133 = vsel %vm233, %v1052, 0
      %1135 = vmatprep.subr.bf16.mxu0 0
      %1136 = vmatpush1.bf16.msra.mxu0 %v1133
      %1137 = vmatprep.subr.bf16.mxu0 0
      %1138 = vmatpush1.bf16.msra.mxu0 0
      %1139 = vmatprep.subr.bf16.mxu0 0
      %1140 = vmatpush1.bf16.msra.mxu0 0
      %1141 = vmatprep.subr.bf16.mxu0 0
      %1142 = vmatpush1.bf16.msra.mxu0 0
      %1143 = vmatprep.subr.bf16.mxu0 0
      %1144 = vmatpush1.bf16.msra.mxu0 0
      %1145 = vmatprep.subr.bf16.mxu0 0
      %1146 = vmatpush1.bf16.msra.mxu0 0
      %1147 = vmatprep.subr.bf16.mxu0 0
      %1148 = vmatpush1.bf16.msra.mxu0 0
      %1149 = vmatprep.subr.bf16.mxu0 0
      %1150 = vmatpush1.bf16.msra.mxu0 0
      %1151 = vmatprep.subr.bf16.mxu0 0
      %1152 = vmatpush1.bf16.msra.mxu0 0
      %1153 = vmatprep.subr.bf16.mxu0 0
      %1154 = vmatpush1.bf16.msra.mxu0 0
      %1155 = vmatprep.subr.bf16.mxu0 0
      %1156 = vmatpush1.bf16.msra.mxu0 0
      %1157 = vmatprep.subr.bf16.mxu0 0
      %1158 = vmatpush1.bf16.msra.mxu0 0
      %1159 = vmatprep.subr.bf16.mxu0 0
      %1160 = vmatpush1.bf16.msra.mxu0 0
      %1161 = vmatprep.subr.bf16.mxu0 0
      %1162 = vmatpush1.bf16.msra.mxu0 0
      %1163 = vmatprep.subr.bf16.mxu0 0
      %1164 = vmatpush1.bf16.msra.mxu0 0
      %1165 = vmatprep.subr.bf16.mxu0 0
      %1166 = vmatpush1.bf16.msra.mxu0 0
      %1167 = vmatprep.mubr.bf16.mxu0 0
      %1168 = vmatmul.mubr.bf16.gmra.mrb[0].mxu0 %v1118
      %v1169 = vpop.f32.mrb[0].mxu0
      %v1170 = vadd.f32 0.0, %v1169
      %v1171 = vpop.f32.mrb[0].mxu0
      %v1172 = vpop.f32.mrb[0].mxu0
      %v1173 = vadd.f32 0.0, %v1172
      %v1174 = vpop.f32.mrb[0].mxu0
      %1175 = vmatprep.mubr.bf16.mxu0 0
      %1176 = vmatmul.mubr.bf16.gmra.mrb[0].mxu0 %v1121
      %v1177 = vpop.f32.mrb[0].mxu0
      %v1178 = vadd.f32 0.0, %v1177
      %v1179 = vpop.f32.mrb[0].mxu0
      %v1180 = vpop.f32.mrb[0].mxu0
      %v1181 = vadd.f32 0.0, %v1180
      %v1182 = vpop.f32.mrb[0].mxu0
      %1183 = vmatprep.mubr.bf16.mxu0 0
      %1184 = vmatmul.mubr.bf16.gmra.mrb[0].mxu0 %v1124
      %v1185 = vpop.f32.mrb[0].mxu0
      %v1186 = vadd.f32 0.0, %v1185
      %v1187 = vpop.f32.mrb[0].mxu0
      %v1188 = vpop.f32.mrb[0].mxu0
      %v1189 = vadd.f32 0.0, %v1188
      %v1190 = vpop.f32.mrb[0].mxu0
      %1191 = vmatprep.mubr.bf16.mxu0 0
      %1192 = vmatmul.mubr.bf16.gmra.mrb[0].mxu0 %v1127
      %v1193 = vpop.f32.mrb[0].mxu0
      %v1194 = vadd.f32 0.0, %v1193
      %v1195 = vpop.f32.mrb[0].mxu0
      %v1196 = vpop.f32.mrb[0].mxu0
      %v1197 = vadd.f32 0.0, %v1196
      %v1198 = vpop.f32.mrb[0].mxu0
      %1199 = vmatprep.mubr.bf16.mxu0 0
      %1200 = vmatmul.mubr.bf16.gmra.mrb[0].mxu0 %v1130
      %v1201 = vpop.f32.mrb[0].mxu0
      %v1202 = vadd.f32 0.0, %v1201
      %v1203 = vpop.f32.mrb[0].mxu0
      %v1204 = vpop.f32.mrb[0].mxu0
      %v1205 = vpop.f32.mrb[0].mxu0
      %1206 = vdwg.mxu0
      %v1207 = vadd.f32 %v1032, %v1170
      %v1208 = vadd.f32 %v1033, %v1173
      %v1209 = vadd.f32 %v1034, %v1178
      %v1210 = vadd.f32 %v1035, %v1181
      %v1211 = vadd.f32 %v1036, %v1186
      %v1212 = vadd.f32 %v1037, %v1189
      %v1213 = vadd.f32 %v1038, %v1194
      %v1214 = vadd.f32 %v1039, %v1197
      %v1215 = vadd.f32 %v1040, %v1202
      %v1216 = vld [vmem:[%s182 + $0x4] sm:$0xf]
      %v1217 = vld [vmem:[%s182 + $0x8] sm:$0xf]
      %v1218 = vld [vmem:[%s182 + $0xc] sm:$0xf]
      %v1219 = vld [vmem:[%s182 + $0x10] sm:$0xf]
      %v1220 = vld [vmem:[%s182 + $0x14] sm:$0xf]
      %v1221 = vld [vmem:[%s182 + $0x18] sm:$0xf]
      %v1222 = vld [vmem:[%s182 + $0x1c] sm:$0xf]
      %v1223 = vld [vmem:[%s182 + $0x20] sm:$0xf]
      %v1224 = vld [vmem:[%s182 + $0x24] sm:$0xf]
      %v1225 = vld [vmem:[%s182 + $0x28] sm:$0x1]
      %s1226 = scalar_lea.vmem %s1, 28
      %v1227 = vld [vmem:[%s1226] sm:$0xf]
      %v1238 = vunpack.c.l.b16 %v1216
      %v1239 = vunpack.c.l.b16 %v1217
      %v1240 = vunpack.c.l.b16 %v1218
      %v1241 = vunpack.c.l.b16 %v1219
      %v1242 = vunpack.c.l.b16 %v1220
      %v1243 = vunpack.c.l.b16 %v1221
      %v1244 = vunpack.c.l.b16 %v1222
      %v1245 = vunpack.c.l.b16 %v1223
      %v1246 = vunpack.c.l.b16 %v1224
      %v1247 = vunpack.c.l.b16 %v1225
      %v1248 = vpack.c.b16 %v1239, %v1238
      %v1249 = vpack.c.b16 %v1241, %v1240
      %v1250 = vpack.c.b16 %v1243, %v1242
      %v1251 = vpack.c.b16 %v1245, %v1244
      %v1252 = vpack.c.b16 %v1247, %v1246
      %v1254 = vshrl.u32 %v1248, 16
      %v1256 = vshll.u32 %v1248, 16
      %v1258 = vrot.slane %v1256, 1
      %v1259 = vor.u32 %v1254, %v1258
      %v1261 = vshll.u32 %v1249, 16
      %v1263 = vrot.slane %v1261, 1
      %v1264 = vsel %vm459, %v1259, %v1263
      %v1265 = vshrl.u32 %v1249, 16
      %v1267 = vor.u32 %v1265, %v1263
      %v1269 = vshll.u32 %v1250, 16
      %v1271 = vrot.slane %v1269, 1
      %v1272 = vsel %vm459, %v1267, %v1271
      %v1273 = vshrl.u32 %v1250, 16
      %v1275 = vor.u32 %v1273, %v1271
      %v1277 = vshll.u32 %v1251, 16
      %v1279 = vrot.slane %v1277, 1
      %v1280 = vsel %vm459, %v1275, %v1279
      %v1281 = vshrl.u32 %v1251, 16
      %v1283 = vor.u32 %v1281, %v1279
      %v1285 = vshll.u32 %v1252, 16
      %v1287 = vrot.slane %v1285, 1
      %v1288 = vsel %vm459, %v1283, %v1287
      %v1289 = vshrl.u32 %v1252, 16
      %v1291 = vor.u32 %v1289, %v1287
      %v1293 = vsel %vm217, %v1264, 0
      %v1296 = vsel %vm217, %v1272, 0
      %v1299 = vsel %vm217, %v1280, 0
      %v1302 = vsel %vm217, %v1288, 0
      %v1305 = vsel %vm217, %v1291, 0
      %v1308 = vsel %vm233, %v1227, 0
      %1310 = vmatprep.subr.bf16.mxu0 0
      %1311 = vmatpush1.bf16.msra.mxu0 %v1308
      %1312 = vmatprep.subr.bf16.mxu0 0
      %1313 = vmatpush1.bf16.msra.mxu0 0
      %1314 = vmatprep.subr.bf16.mxu0 0
      %1315 = vmatpush1.bf16.msra.mxu0 0
      %1316 = vmatprep.subr.bf16.mxu0 0
      %1317 = vmatpush1.bf16.msra.mxu0 0
      %1318 = vmatprep.subr.bf16.mxu0 0
      %1319 = vmatpush1.bf16.msra.mxu0 0
      %1320 = vmatprep.subr.bf16.mxu0 0
      %1321 = vmatpush1.bf16.msra.mxu0 0
      %1322 = vmatprep.subr.bf16.mxu0 0
      %1323 = vmatpush1.bf16.msra.mxu0 0
      %1324 = vmatprep.subr.bf16.mxu0 0
      %1325 = vmatpush1.bf16.msra.mxu0 0
      %1326 = vmatprep.subr.bf16.mxu0 0
      %1327 = vmatpush1.bf16.msra.mxu0 0
      %1328 = vmatprep.subr.bf16.mxu0 0
      %1329 = vmatpush1.bf16.msra.mxu0 0
      %1330 = vmatprep.subr.bf16.mxu0 0
      %1331 = vmatpush1.bf16.msra.mxu0 0
      %1332 = vmatprep.subr.bf16.mxu0 0
      %1333 = vmatpush1.bf16.msra.mxu0 0
      %1334 = vmatprep.subr.bf16.mxu0 0
      %1335 = vmatpush1.bf16.msra.mxu0 0
      %1336 = vmatprep.subr.bf16.mxu0 0
      %1337 = vmatpush1.bf16.msra.mxu0 0
      %1338 = vmatprep.subr.bf16.mxu0 0
      %1339 = vmatpush1.bf16.msra.mxu0 0
      %1340 = vmatprep.subr.bf16.mxu0 0
      %1341 = vmatpush1.bf16.msra.mxu0 0
      %1342 = vmatprep.mubr.bf16.mxu0 0
      %1343 = vmatmul.mubr.bf16.gmra.mrb[0].mxu0 %v1293
      %v1344 = vpop.f32.mrb[0].mxu0
      %v1345 = vadd.f32 0.0, %v1344
      %v1346 = vpop.f32.mrb[0].mxu0
      %v1347 = vpop.f32.mrb[0].mxu0
      %v1348 = vadd.f32 0.0, %v1347
      %v1349 = vpop.f32.mrb[0].mxu0
      %1350 = vmatprep.mubr.bf16.mxu0 0
      %1351 = vmatmul.mubr.bf16.gmra.mrb[0].mxu0 %v1296
      %v1352 = vpop.f32.mrb[0].mxu0
      %v1353 = vadd.f32 0.0, %v1352
      %v1354 = vpop.f32.mrb[0].mxu0
      %v1355 = vpop.f32.mrb[0].mxu0
      %v1356 = vadd.f32 0.0, %v1355
      %v1357 = vpop.f32.mrb[0].mxu0
      %1358 = vmatprep.mubr.bf16.mxu0 0
      %1359 = vmatmul.mubr.bf16.gmra.mrb[0].mxu0 %v1299
      %v1360 = vpop.f32.mrb[0].mxu0
      %v1361 = vadd.f32 0.0, %v1360
      %v1362 = vpop.f32.mrb[0].mxu0
      %v1363 = vpop.f32.mrb[0].mxu0
      %v1364 = vadd.f32 0.0, %v1363
      %v1365 = vpop.f32.mrb[0].mxu0
      %1366 = vmatprep.mubr.bf16.mxu0 0
      %1367 = vmatmul.mubr.bf16.gmra.mrb[0].mxu0 %v1302
      %v1368 = vpop.f32.mrb[0].mxu0
      %v1369 = vadd.f32 0.0, %v1368
      %v1370 = vpop.f32.mrb[0].mxu0
      %v1371 = vpop.f32.mrb[0].mxu0
      %v1372 = vadd.f32 0.0, %v1371
      %v1373 = vpop.f32.mrb[0].mxu0
      %1374 = vmatprep.mubr.bf16.mxu0 0
      %1375 = vmatmul.mubr.bf16.gmra.mrb[0].mxu0 %v1305
      %v1376 = vpop.f32.mrb[0].mxu0
      %v1377 = vadd.f32 0.0, %v1376
      %v1378 = vpop.f32.mrb[0].mxu0
      %v1379 = vpop.f32.mrb[0].mxu0
      %v1380 = vpop.f32.mrb[0].mxu0
      %1381 = vdwg.mxu0
      %v1382 = vadd.f32 %v1207, %v1345
      %v1383 = vadd.f32 %v1208, %v1348
      %v1384 = vadd.f32 %v1209, %v1353
      %v1385 = vadd.f32 %v1210, %v1356
      %v1386 = vadd.f32 %v1211, %v1361
      %v1387 = vadd.f32 %v1212, %v1364
      %v1388 = vadd.f32 %v1213, %v1369
      %v1389 = vadd.f32 %v1214, %v1372
      %v1390 = vadd.f32 %v1215, %v1377
      %v1391 = vld [vmem:[%s165 + $0x4] sm:$0xe]
      %s1392 = scalar_lea.vmem %s1, 32
      %v1393 = vld [vmem:[%s1392] sm:$0xf]
      %v1395 = vunpack.c.l.b16 %v1391
      %v1396 = vpack.c.b16 %v1064, %v1395
      %vm1397 = vcmask 1046528
      %v1398 = vrot.slane %v1396, 1
      %v1399 = vrot.slane %v1074, 1
      %v1400 = vsel %vm1397, %v1398, %v1399
      %v1401 = vrot.slane %v1075, 1
      %v1402 = vsel %vm1397, %v1399, %v1401
      %v1403 = vrot.slane %v1076, 1
      %v1404 = vsel %vm1397, %v1401, %v1403
      %v1405 = vrot.slane %v1077, 1
      %v1406 = vsel %vm1397, %v1403, %v1405
      %v1408 = vsel %vm217, %v1400, 0
      %v1411 = vsel %vm217, %v1402, 0
      %v1414 = vsel %vm217, %v1404, 0
      %v1417 = vsel %vm217, %v1406, 0
      %v1420 = vsel %vm217, %v1405, 0
      %v1423 = vsel %vm233, %v1393, 0
      %1425 = vmatprep.subr.bf16.mxu0 0
      %1426 = vmatpush1.bf16.msra.mxu0 %v1423
      %1427 = vmatprep.subr.bf16.mxu0 0
      %1428 = vmatpush1.bf16.msra.mxu0 0
      %1429 = vmatprep.subr.bf16.mxu0 0
      %1430 = vmatpush1.bf16.msra.mxu0 0
      %1431 = vmatprep.subr.bf16.mxu0 0
      %1432 = vmatpush1.bf16.msra.mxu0 0
      %1433 = vmatprep.subr.bf16.mxu0 0
      %1434 = vmatpush1.bf16.msra.mxu0 0
      %1435 = vmatprep.subr.bf16.mxu0 0
      %1436 = vmatpush1.bf16.msra.mxu0 0
      %1437 = vmatprep.subr.bf16.mxu0 0
      %1438 = vmatpush1.bf16.msra.mxu0 0
      %1439 = vmatprep.subr.bf16.mxu0 0
      %1440 = vmatpush1.bf16.msra.mxu0 0
      %1441 = vmatprep.subr.bf16.mxu0 0
      %1442 = vmatpush1.bf16.msra.mxu0 0
      %1443 = vmatprep.subr.bf16.mxu0 0
      %1444 = vmatpush1.bf16.msra.mxu0 0
      %1445 = vmatprep.subr.bf16.mxu0 0
      %1446 = vmatpush1.bf16.msra.mxu0 0
      %1447 = vmatprep.subr.bf16.mxu0 0
      %1448 = vmatpush1.bf16.msra.mxu0 0
      %1449 = vmatprep.subr.bf16.mxu0 0
      %1450 = vmatpush1.bf16.msra.mxu0 0
      %1451 = vmatprep.subr.bf16.mxu0 0
      %1452 = vmatpush1.bf16.msra.mxu0 0
      %1453 = vmatprep.subr.bf16.mxu0 0
      %1454 = vmatpush1.bf16.msra.mxu0 0
      %1455 = vmatprep.subr.bf16.mxu0 0
      %1456 = vmatpush1.bf16.msra.mxu0 0
      %1457 = vmatprep.mubr.bf16.mxu0 0
      %1458 = vmatmul.mubr.bf16.gmra.mrb[0].mxu0 %v1408
      %v1459 = vpop.f32.mrb[0].mxu0
      %v1460 = vadd.f32 0.0, %v1459
      %v1461 = vpop.f32.mrb[0].mxu0
      %v1462 = vpop.f32.mrb[0].mxu0
      %v1463 = vadd.f32 0.0, %v1462
      %v1464 = vpop.f32.mrb[0].mxu0
      %1465 = vmatprep.mubr.bf16.mxu0 0
      %1466 = vmatmul.mubr.bf16.gmra.mrb[0].mxu0 %v1411
      %v1467 = vpop.f32.mrb[0].mxu0
      %v1468 = vadd.f32 0.0, %v1467
      %v1469 = vpop.f32.mrb[0].mxu0
      %v1470 = vpop.f32.mrb[0].mxu0
      %v1471 = vadd.f32 0.0, %v1470
      %v1472 = vpop.f32.mrb[0].mxu0
      %1473 = vmatprep.mubr.bf16.mxu0 0
      %1474 = vmatmul.mubr.bf16.gmra.mrb[0].mxu0 %v1414
      %v1475 = vpop.f32.mrb[0].mxu0
      %v1476 = vadd.f32 0.0, %v1475
      %v1477 = vpop.f32.mrb[0].mxu0
      %v1478 = vpop.f32.mrb[0].mxu0
      %v1479 = vadd.f32 0.0, %v1478
      %v1480 = vpop.f32.mrb[0].mxu0
      %1481 = vmatprep.mubr.bf16.mxu0 0
      %1482 = vmatmul.mubr.bf16.gmra.mrb[0].mxu0 %v1417
      %v1483 = vpop.f32.mrb[0].mxu0
      %v1484 = vadd.f32 0.0, %v1483
      %v1485 = vpop.f32.mrb[0].mxu0
      %v1486 = vpop.f32.mrb[0].mxu0
      %v1487 = vadd.f32 0.0, %v1486
      %v1488 = vpop.f32.mrb[0].mxu0
      %1489 = vmatprep.mubr.bf16.mxu0 0
      %1490 = vmatmul.mubr.bf16.gmra.mrb[0].mxu0 %v1420
      %v1491 = vpop.f32.mrb[0].mxu0
      %v1492 = vadd.f32 0.0, %v1491
      %v1493 = vpop.f32.mrb[0].mxu0
      %v1494 = vpop.f32.mrb[0].mxu0
      %v1495 = vpop.f32.mrb[0].mxu0
      %1496 = vdwg.mxu0
      %v1497 = vadd.f32 %v1382, %v1460
      %v1498 = vadd.f32 %v1383, %v1463
      %v1499 = vadd.f32 %v1384, %v1468
      %v1500 = vadd.f32 %v1385, %v1471
      %v1501 = vadd.f32 %v1386, %v1476
      %v1502 = vadd.f32 %v1387, %v1479
      %v1503 = vadd.f32 %v1388, %v1484
      %v1504 = vadd.f32 %v1389, %v1487
      %v1505 = vadd.f32 %v1390, %v1492
      %v1506 = vld [vmem:[%s2] sm:$0x1]
      %v1508 = vlaneseq
      %v1509 = vshrl.u32 %v1508, 7
      %v1510 = vsub.s32 0, %v1509
      %v1511 = vrot.slane %v1506, %v1510
      %v1513 = vadd.f32 %v1497, %v1511
      %v1514 = vadd.f32 %v1498, %v1511
      %v1515 = vadd.f32 %v1499, %v1511
      %v1516 = vadd.f32 %v1500, %v1511
      %v1517 = vadd.f32 %v1501, %v1511
      %v1518 = vadd.f32 %v1502, %v1511
      %v1519 = vadd.f32 %v1503, %v1511
      %v1520 = vadd.f32 %v1504, %v1511
      %v1521 = vadd.f32 %v1505, %v1511
      %v1522 = vmax.f32 %v1513, 0.0
      %v1523 = vmax.f32 %v1514, 0.0
      %v1524 = vmax.f32 %v1515, 0.0
      %v1525 = vmax.f32 %v1516, 0.0
      %v1526 = vmax.f32 %v1517, 0.0
      %v1527 = vmax.f32 %v1518, 0.0
      %v1528 = vmax.f32 %v1519, 0.0
      %v1529 = vmax.f32 %v1520, 0.0
      %v1530 = vmax.f32 %v1521, 0.0
      %1531 = vst [vmem:[%s170] sm:$0xff] %v1522
      %1532 = vst [vmem:[%s170 + $0x8] sm:$0xff] %v1523
      %1533 = vst [vmem:[%s170 + $0x10] sm:$0xff] %v1524
      %1534 = vst [vmem:[%s170 + $0x18] sm:$0xff] %v1525
      %1535 = vst [vmem:[%s170 + $0x20] sm:$0xff] %v1526
      %1536 = vst [vmem:[%s170 + $0x28] sm:$0xff] %v1527
      %1537 = vst [vmem:[%s170 + $0x30] sm:$0xff] %v1528
      %1538 = vst [vmem:[%s170 + $0x38] sm:$0xff] %v1529
      %1539 = vst [vmem:[%s170 + $0x40] sm:$0xff] %v1530
      %p1540 = scmp.lt.s32.totalorder %s14, 1
      %s1541 = scalar_select %p1540, %s14, 1
      %s1542 = smul.addr %s1541, 9
      %s1543 = smul.addr %s1542, 8
      %s1544 = scalar_lea.vmem %s3, %s1543
      // Predicated region
      $region33: #{a_call__.5} parent=31 // pred_check
        %p1545 = pneg %p100
      $region34: #{a_call__.5} parent=31 // pred_check_branch
        %1547 = sbr.rel (%p1545) target = $region36
      $region35: #{a_call__.5} parent=31 // pred_region
        _
      $region36: #{a_call__.5} parent=31 // pred_fallthru
        _
    $region32: #{a_call__.5} parent=5 // pred_fallthru
      _
    %p1548 = scmp.le.s32.totalorder 2, %s9
    // Predicated region
    $region37: #{a_call__.5} parent=5 // pred_check
      %p1549 = pneg %p1548
    $region38: #{a_call__.5} parent=5 // pred_check_branch
      %1551 = sbr.rel (%p1549) target = $region40
    $region39: #{a_call__.5} parent=5 // pred_region
      %s1552 = ssub.s32 %s9, 2
      // Predicated region
      $region41: #{a_call__.5} parent=39 // pred_check
        %p1553 = pneg %p106
      $region42: #{a_call__.5} parent=39 // pred_check_branch
        %1555 = sbr.rel (%p1553) target = $region44
      $region43: #{a_call__.5} parent=39 // pred_region
        %p1556 = scmp.lt.s32.totalorder %s15, 1
        %s1557 = scalar_select %p1556, %s15, 1
        %s1558 = smul.addr %s1557, 9
        %s1559 = smul.addr %s1558, 8
        %s1560 = scalar_lea.vmem %s3, %s1559
      $region44: #{a_call__.5} parent=39 // pred_fallthru
        _
    $region40: #{a_call__.5} parent=5 // pred_fallthru
      _
  $region6: #{a_call__.5} parent=0 // loop_footer
    %s13 = sadd.s32 1, %s9
  $region7: #{a_call__.5} parent=0 // loop_footer_branch
    %8 = sbr.rel target = $region3
  $region8: #{a_call__.5} parent=0 // loop_exit
    _

// kernel: a_call__.6
$region0: #{a_call__.6}
  #allocation0 [shape = 'u32[]', space=smem, size = 0x4, offset = 0x4, fixed_abs, tag = 'smem constant byte address 0x4 - core index']
  #allocation1 [shape = 'u32[144,128]{1,0:T(1,128)}', space=vmem, size = 0x12000, scoped, tag = 'internal scratch']
  %s0 = inlined_call_operand.vmem [shape: bf16[2,2,2,30,16], index: 0, kind: input, shape index: {}]
  %s1 = inlined_call_operand.vmem [shape: bf16[9,16,128], index: 1, kind: input, shape index: {}]
  %s2 = inlined_call_operand.vmem [shape: f32[1,128], index: 2, kind: input, shape index: {}]
  %s3 = inlined_call_operand.vmem [shape: f32[2,20,128], index: 3, kind: output, shape index: {}]
  %s4 = sld [smem:[#allocation0]]
  $region45: #{a_call__.6} parent=0
    _
  %s6 = ssub.s32 1, %s4
  %s7 = scalar_select 0, %s6, %s4
  loop: start=0, step=1, limit=4
  $region2: #{a_call__.6} parent=0 // loop_pre_header
    _
  $region3: #{a_call__.6} parent=0 // loop_header
    %s9 = sphi 0, %s13
    %p10 = scmp.ge.s32.totalorder %s9, 4
    %s19 = sphi 0, %s21
    %s22 = sphi 0, %s19
    %s23 = sphi 0, %s22
    %s39 = sphi 0, %s23
    %s43 = sphi 0, %s43
    %s45 = sphi 0, %s43
    %s46 = sphi 0, %s45
    %s60 = sphi 0, %s46
    %s64 = sphi 0, %s64
    %s66 = sphi 0, %s64
    %s67 = sphi 0, %s66
    %s81 = sphi 0, %s67
    %s87 = sphi 0, %s89
    %s90 = sphi 0, %s87
    %s91 = sphi 0, %s90
    %s107 = sphi 0, %s91
  $region4: #{a_call__.6} parent=0 // loop_header_branch
    %12 = sbr.rel (%p10) target = $region8
  $region5: #{a_call__.6} parent=0 // loop_body
    %s14 = ssub.s32 %s9, 1
    %s15 = ssub.s32 %s9, 2
    %s16 = sadd.s32 %s9, 1
    %s17 = ssub.s32 %s9, %s16
    %p18 = scmp.eq.s32.totalorder %s17, 0
    %s20 = sadd.s32 %s19, 1
    %s21 = scalar_select %p18, %s19, %s20
    %p24 = pneg %p18
    %p25 = scmp.eq.s32.totalorder %s9, 1
    %p26 = por %p24, %p25
    %p27 = scmp.ne.s32.totalorder %s19, %s22
    %p28 = scmp.eq.s32.totalorder %s9, 0
    %p29 = por %p27, %p28
    %p30 = scmp.ne.s32.totalorder %s19, %s22
    %p31 = scmp.eq.s32.totalorder %s14, 1
    %p32 = por %p30, %p31
    %p33 = scmp.ne.s32.totalorder %s22, %s23
    %p34 = scmp.eq.s32.totalorder %s14, 0
    %p35 = por %p33, %p34
    %p36 = scmp.ne.s32.totalorder %s22, %s23
    %p37 = scmp.eq.s32.totalorder %s15, 1
    %p38 = por %p36, %p37
    %p40 = scmp.ne.s32.totalorder %s23, %s39
    %p41 = scmp.eq.s32.totalorder %s15, 0
    %p42 = por %p40, %p41
    %s44 = sadd.s32 %s43, 1
    %p47 = scmp.eq.s32.totalorder %s9, 1
    %p48 = scmp.ne.s32.totalorder %s43, %s45
    %p49 = scmp.eq.s32.totalorder %s9, 0
    %p50 = por %p48, %p49
    %p51 = scmp.ne.s32.totalorder %s43, %s45
    %p52 = scmp.eq.s32.totalorder %s14, 1
    %p53 = por %p51, %p52
    %p54 = scmp.ne.s32.totalorder %s45, %s46
    %p55 = scmp.eq.s32.totalorder %s14, 0
    %p56 = por %p54, %p55
    %p57 = scmp.ne.s32.totalorder %s45, %s46
    %p58 = scmp.eq.s32.totalorder %s15, 1
    %p59 = por %p57, %p58
    %p61 = scmp.ne.s32.totalorder %s46, %s60
    %p62 = scmp.eq.s32.totalorder %s15, 0
    %p63 = por %p61, %p62
    %s65 = sadd.s32 %s64, 1
    %p68 = scmp.eq.s32.totalorder %s9, 1
    %p69 = scmp.ne.s32.totalorder %s64, %s66
    %p70 = scmp.eq.s32.totalorder %s9, 0
    %p71 = por %p69, %p70
    %p72 = scmp.ne.s32.totalorder %s64, %s66
    %p73 = scmp.eq.s32.totalorder %s14, 1
    %p74 = por %p72, %p73
    %p75 = scmp.ne.s32.totalorder %s66, %s67
    %p76 = scmp.eq.s32.totalorder %s14, 0
    %p77 = por %p75, %p76
    %p78 = scmp.ne.s32.totalorder %s66, %s67
    %p79 = scmp.eq.s32.totalorder %s15, 1
    %p80 = por %p78, %p79
    %p82 = scmp.ne.s32.totalorder %s67, %s81
    %p83 = scmp.eq.s32.totalorder %s15, 0
    %p84 = por %p82, %p83
    %s85 = ssub.s32 %s9, %s16
    %p86 = scmp.eq.s32.totalorder %s85, 0
    %s88 = sadd.s32 %s87, 1
    %s89 = scalar_select %p86, %s87, %s88
    %p92 = pneg %p86
    %p93 = scmp.eq.s32.totalorder %s9, 1
    %p94 = por %p92, %p93
    %p95 = scmp.ne.s32.totalorder %s87, %s90
    %p96 = scmp.eq.s32.totalorder %s9, 0
    %p97 = por %p95, %p96
    %p98 = scmp.ne.s32.totalorder %s87, %s90
    %p99 = scmp.eq.s32.totalorder %s14, 1
    %p100 = por %p98, %p99
    %p101 = scmp.ne.s32.totalorder %s90, %s91
    %p102 = scmp.eq.s32.totalorder %s14, 0
    %p103 = por %p101, %p102
    %p104 = scmp.ne.s32.totalorder %s90, %s91
    %p105 = scmp.eq.s32.totalorder %s15, 1
    %p106 = por %p104, %p105
    %p108 = scmp.ne.s32.totalorder %s91, %s107
    %p109 = scmp.eq.s32.totalorder %s15, 0
    %p110 = por %p108, %p109
    %p111 = scmp.le.s32.totalorder 1, %s9
    %p112 = scmp.lt.s32.totalorder %s9, 3
    %p113 = pnand %p111, %p112
    %p114 = pneg %p113
    // Predicated region
    $region9: #{a_call__.6} parent=5 // pred_check
      _
    $region10: #{a_call__.6} parent=5 // pred_check_branch
      %116 = sbr.rel (%p113) target = $region12
    $region11: #{a_call__.6} parent=5 // pred_region
      %s117 = ssub.s32 %s9, 1
      // Predicated region
      $region13: #{a_call__.6} parent=11 // pred_check
        %p118 = pneg %p56
      $region14: #{a_call__.6} parent=11 // pred_check_branch
        %120 = sbr.rel (%p118) target = $region16
      $region15: #{a_call__.6} parent=11 // pred_region
        _
      $region16: #{a_call__.6} parent=11 // pred_fallthru
        _
      // Predicated region
      $region17: #{a_call__.6} parent=11 // pred_check
        %p121 = pneg %p77
      $region18: #{a_call__.6} parent=11 // pred_check_branch
        %123 = sbr.rel (%p121) target = $region20
      $region19: #{a_call__.6} parent=11 // pred_region
        _
      $region20: #{a_call__.6} parent=11 // pred_fallthru
        _
    $region12: #{a_call__.6} parent=5 // pred_fallthru
      _
    %p124 = scmp.lt.s32.totalorder %s9, 2
    // Predicated region
    $region21: #{a_call__.6} parent=5 // pred_check
      %p125 = pneg %p124
    $region22: #{a_call__.6} parent=5 // pred_check_branch
      %127 = sbr.rel (%p125) target = $region24
    $region23: #{a_call__.6} parent=5 // pred_region
      // Predicated region
      $region25: #{a_call__.6} parent=23 // pred_check
        %p128 = pneg %p29
      $region26: #{a_call__.6} parent=23 // pred_check_branch
        %130 = sbr.rel (%p128) target = $region28
      $region27: #{a_call__.6} parent=23 // pred_region
        %p131 = scmp.lt.s32.totalorder %s9, 1
        %s132 = scalar_select %p131, %s9, 1
        %s133 = smul.addr %s132, 16
        %s134 = smul.addr %s133, 4
        %s135 = scalar_lea.vmem %s0, %s134
      $region28: #{a_call__.6} parent=23 // pred_fallthru
        _
    $region24: #{a_call__.6} parent=5 // pred_fallthru
      _
    %p136 = scmp.le.s32.totalorder 1, %s9
    %p137 = scmp.lt.s32.totalorder %s9, 3
    %p138 = pnand %p136, %p137
    %p139 = pneg %p138
    // Predicated region
    $region29: #{a_call__.6} parent=5 // pred_check
      _
    $region30: #{a_call__.6} parent=5 // pred_check_branch
      %141 = sbr.rel (%p138) target = $region32
    $region31: #{a_call__.6} parent=5 // pred_region
      %s142 = ssub.s32 %s9, 1
      %p143 = scmp.lt.s32.totalorder %s14, 1
      %s144 = scalar_select %p143, %s14, 1
      %s145 = smul.addr %s144, 16
      %s146 = smul.addr %s145, 4
      %s147 = scalar_lea.vmem %s0, %s146
      %p148 = pneg %p35
      %p149 = pneg %p32
      %p150 = pneg %p56
      %p151 = pneg %p53
      %p152 = pneg %p77
      %p153 = pneg %p74
      %p154 = pneg %p103
      %p155 = pneg %p100
      %p156 = scmp.lt.s32.totalorder %s14, 1
      %s157 = scalar_select %p156, %s14, 1
      %s158 = smul.addr %s157, 3
      %s159 = smul.addr %s158, 8
      %s160 = scalar_lea.vmem %s3, %s159
      %p161 = scmp.lt.s32.totalorder %s14, 1
      %s162 = scalar_select %p161, %s14, 1
      %s163 = smul.addr %s162, 16
      %s164 = smul.addr %s163, 4
      %s165 = scalar_lea.vmem %s0, %s164
      %p166 = scmp.lt.s32.totalorder %s14, 1
      %s167 = scalar_select %p166, %s14, 1
      %s168 = smul.addr %s167, 3
      %s169 = smul.addr %s168, 8
      %s170 = scalar_lea.vmem %s3, %s169
      %v172 = vld [vmem:[%s165] sm:$0xf]
      %v173 = vld [vmem:[%s165 + $0x4] sm:$0xf]
      %v174 = vld [vmem:[%s165 + $0x8] sm:$0x3]
      %v175 = vld [vmem:[%s1] sm:$0xf]
      %v176 = vld [vmem:[%s1 + $0x4] sm:$0xf]
      %s177 = scalar_lea.vmem %s165, 16
      %v178 = vld [vmem:[%s177] sm:$0xf]
      %v179 = vld [vmem:[%s177 + $0x4] sm:$0xf]
      %v180 = vld [vmem:[%s177 + $0x8] sm:$0x3]
      %s181 = scalar_lea.vmem %s1, 8
      %v182 = vld [vmem:[%s181] sm:$0xf]
      %v183 = vld [vmem:[%s181 + $0x4] sm:$0xf]
      %v187 = vunpack.c.l.b16 %v178
      %v188 = vunpack.c.l.b16 %v179
      %v189 = vunpack.c.l.b16 %v180
      %v190 = vpack.c.b16 %v188, %v187
      %v191 = vpack.c.b16 %v189, %v189
      %v194 = vunpack.c.l.b16 %v182
      %v195 = vunpack.c.l.b16 %v183
      %v196 = vpack.c.b16 %v195, %v194
      %vm198 = vcmask 130048
      %v200 = vsel %vm198, %v190, 0
      %v203 = vsel %vm198, %v191, 0
      %205 = vmatprep.subr.bf16.mxu0 0
      %206 = vmatpush1.bf16.msra.mxu0 %v196
      %207 = vmatprep.subr.bf16.mxu0 0
      %208 = vmatpush1.bf16.msra.mxu0 0
      %209 = vmatprep.subr.bf16.mxu0 0
      %210 = vmatpush1.bf16.msra.mxu0 0
      %211 = vmatprep.subr.bf16.mxu0 0
      %212 = vmatpush1.bf16.msra.mxu0 0
      %213 = vmatprep.subr.bf16.mxu0 0
      %214 = vmatpush1.bf16.msra.mxu0 0
      %215 = vmatprep.subr.bf16.mxu0 0
      %216 = vmatpush1.bf16.msra.mxu0 0
      %217 = vmatprep.subr.bf16.mxu0 0
      %218 = vmatpush1.bf16.msra.mxu0 0
      %219 = vmatprep.subr.bf16.mxu0 0
      %220 = vmatpush1.bf16.msra.mxu0 0
      %221 = vmatprep.subr.bf16.mxu0 0
      %222 = vmatpush1.bf16.msra.mxu0 0
      %223 = vmatprep.subr.bf16.mxu0 0
      %224 = vmatpush1.bf16.msra.mxu0 0
      %225 = vmatprep.subr.bf16.mxu0 0
      %226 = vmatpush1.bf16.msra.mxu0 0
      %227 = vmatprep.subr.bf16.mxu0 0
      %228 = vmatpush1.bf16.msra.mxu0 0
      %229 = vmatprep.subr.bf16.mxu0 0
      %230 = vmatpush1.bf16.msra.mxu0 0
      %231 = vmatprep.subr.bf16.mxu0 0
      %232 = vmatpush1.bf16.msra.mxu0 0
      %233 = vmatprep.subr.bf16.mxu0 0
      %234 = vmatpush1.bf16.msra.mxu0 0
      %235 = vmatprep.subr.bf16.mxu0 0
      %236 = vmatpush1.bf16.msra.mxu0 0
      %237 = vmatprep.mubr.bf16.mxu0 0
      %238 = vmatmul.mubr.bf16.gmra.mrb[0].mxu0 %v200
      %v239 = vpop.f32.mrb[0].mxu0
      %v240 = vadd.f32 0.0, %v239
      %v241 = vpop.f32.mrb[0].mxu0
      %v242 = vpop.f32.mrb[0].mxu0
      %v243 = vadd.f32 0.0, %v242
      %v244 = vpop.f32.mrb[0].mxu0
      %245 = vmatprep.mubr.bf16.mxu0 0
      %246 = vmatmul.mubr.bf16.gmra.mrb[0].mxu0 %v203
      %v247 = vpop.f32.mrb[0].mxu0
      %v248 = vadd.f32 0.0, %v247
      %v249 = vpop.f32.mrb[0].mxu0
      %v250 = vpop.f32.mrb[0].mxu0
      %v251 = vpop.f32.mrb[0].mxu0
      %252 = vdwg.mxu0
      %v256 = vunpack.c.l.b16 %v172
      %v257 = vunpack.c.l.b16 %v173
      %v258 = vunpack.c.l.b16 %v174
      %v259 = vpack.c.b16 %v257, %v256
      %v260 = vpack.c.b16 %v258, %v258
      %v263 = vunpack.c.l.b16 %v175
      %v264 = vunpack.c.l.b16 %v176
      %v265 = vpack.c.b16 %v264, %v263
      %v268 = vsel %vm198, %v259, 0
      %v271 = vsel %vm198, %v260, 0
      %273 = vmatprep.subr.bf16.mxu0 0
      %274 = vmatpush1.bf16.msra.mxu0 %v265
      %275 = vmatprep.subr.bf16.mxu0 0
      %276 = vmatpush1.bf16.msra.mxu0 0
      %277 = vmatprep.subr.bf16.mxu0 0
      %278 = vmatpush1.bf16.msra.mxu0 0
      %279 = vmatprep.subr.bf16.mxu0 0
      %280 = vmatpush1.bf16.msra.mxu0 0
      %281 = vmatprep.subr.bf16.mxu0 0
      %282 = vmatpush1.bf16.msra.mxu0 0
      %283 = vmatprep.subr.bf16.mxu0 0
      %284 = vmatpush1.bf16.msra.mxu0 0
      %285 = vmatprep.subr.bf16.mxu0 0
      %286 = vmatpush1.bf16.msra.mxu0 0
      %287 = vmatprep.subr.bf16.mxu0 0
      %288 = vmatpush1.bf16.msra.mxu0 0
      %289 = vmatprep.subr.bf16.mxu0 0
      %290 = vmatpush1.bf16.msra.mxu0 0
      %291 = vmatprep.subr.bf16.mxu0 0
      %292 = vmatpush1.bf16.msra.mxu0 0
      %293 = vmatprep.subr.bf16.mxu0 0
      %294 = vmatpush1.bf16.msra.mxu0 0
      %295 = vmatprep.subr.bf16.mxu0 0
      %296 = vmatpush1.bf16.msra.mxu0 0
      %297 = vmatprep.subr.bf16.mxu0 0
      %298 = vmatpush1.bf16.msra.mxu0 0
      %299 = vmatprep.subr.bf16.mxu0 0
      %300 = vmatpush1.bf16.msra.mxu0 0
      %301 = vmatprep.subr.bf16.mxu0 0
      %302 = vmatpush1.bf16.msra.mxu0 0
      %303 = vmatprep.subr.bf16.mxu0 0
      %304 = vmatpush1.bf16.msra.mxu0 0
      %305 = vmatprep.mubr.bf16.mxu0 0
      %306 = vmatmul.mubr.bf16.gmra.mrb[0].mxu0 %v268
      %v307 = vpop.f32.mrb[0].mxu0
      %v308 = vadd.f32 %v240, %v307
      %v309 = vpop.f32.mrb[0].mxu0
      %v310 = vpop.f32.mrb[0].mxu0
      %v311 = vadd.f32 %v243, %v310
      %v312 = vpop.f32.mrb[0].mxu0
      %313 = vmatprep.mubr.bf16.mxu0 0
      %314 = vmatmul.mubr.bf16.gmra.mrb[0].mxu0 %v271
      %v315 = vpop.f32.mrb[0].mxu0
      %v316 = vadd.f32 %v248, %v315
      %v317 = vpop.f32.mrb[0].mxu0
      %v318 = vpop.f32.mrb[0].mxu0
      %v319 = vpop.f32.mrb[0].mxu0
      %320 = vdwg.mxu0
      %v321 = vld [vmem:[%s165 + $0x8] sm:$0x7]
      %s322 = scalar_lea.vmem %s1, 16
      %v323 = vld [vmem:[%s322] sm:$0xf]
      %v324 = vld [vmem:[%s322 + $0x4] sm:$0xf]
      %v326 = vunpack.c.l.b16 %v321
      %v327 = vpack.c.b16 %v326, %v326
      %vm328 = vsmask.f32 7424
      %v329 = vshrl.u32 %v259, 16
      %v331 = vshll.u32 %v259, 16
      %v333 = vrot.slane %v331, 1
      %v334 = vor.u32 %v329, %v333
      %v336 = vshll.u32 %v327, 16
      %v338 = vrot.slane %v336, 1
      %v339 = vsel %vm328, %v334, %v338
      %v340 = vshrl.u32 %v327, 16
      %v342 = vor.u32 %v340, %v338
      %v345 = vunpack.c.l.b16 %v323
      %v346 = vunpack.c.l.b16 %v324
      %v347 = vpack.c.b16 %v346, %v345
      %v350 = vsel %vm198, %v339, 0
      %v353 = vsel %vm198, %v342, 0
      %355 = vmatprep.subr.bf16.mxu0 0
      %356 = vmatpush1.bf16.msra.mxu0 %v347
      %357 = vmatprep.subr.bf16.mxu0 0
      %358 = vmatpush1.bf16.msra.mxu0 0
      %359 = vmatprep.subr.bf16.mxu0 0
      %360 = vmatpush1.bf16.msra.mxu0 0
      %361 = vmatprep.subr.bf16.mxu0 0
      %362 = vmatpush1.bf16.msra.mxu0 0
      %363 = vmatprep.subr.bf16.mxu0 0
      %364 = vmatpush1.bf16.msra.mxu0 0
      %365 = vmatprep.subr.bf16.mxu0 0
      %366 = vmatpush1.bf16.msra.mxu0 0
      %367 = vmatprep.subr.bf16.mxu0 0
      %368 = vmatpush1.bf16.msra.mxu0 0
      %369 = vmatprep.subr.bf16.mxu0 0
      %370 = vmatpush1.bf16.msra.mxu0 0
      %371 = vmatprep.subr.bf16.mxu0 0
      %372 = vmatpush1.bf16.msra.mxu0 0
      %373 = vmatprep.subr.bf16.mxu0 0
      %374 = vmatpush1.bf16.msra.mxu0 0
      %375 = vmatprep.subr.bf16.mxu0 0
      %376 = vmatpush1.bf16.msra.mxu0 0
      %377 = vmatprep.subr.bf16.mxu0 0
      %378 = vmatpush1.bf16.msra.mxu0 0
      %379 = vmatprep.subr.bf16.mxu0 0
      %380 = vmatpush1.bf16.msra.mxu0 0
      %381 = vmatprep.subr.bf16.mxu0 0
      %382 = vmatpush1.bf16.msra.mxu0 0
      %383 = vmatprep.subr.bf16.mxu0 0
      %384 = vmatpush1.bf16.msra.mxu0 0
      %385 = vmatprep.subr.bf16.mxu0 0
      %386 = vmatpush1.bf16.msra.mxu0 0
      %387 = vmatprep.mubr.bf16.mxu0 0
      %388 = vmatmul.mubr.bf16.gmra.mrb[0].mxu0 %v350
      %v389 = vpop.f32.mrb[0].mxu0
      %v390 = vadd.f32 0.0, %v389
      %v391 = vpop.f32.mrb[0].mxu0
      %v392 = vpop.f32.mrb[0].mxu0
      %v393 = vadd.f32 0.0, %v392
      %v394 = vpop.f32.mrb[0].mxu0
      %395 = vmatprep.mubr.bf16.mxu0 0
      %396 = vmatmul.mubr.bf16.gmra.mrb[0].mxu0 %v353
      %v397 = vpop.f32.mrb[0].mxu0
      %v398 = vadd.f32 0.0, %v397
      %v399 = vpop.f32.mrb[0].mxu0
      %v400 = vpop.f32.mrb[0].mxu0
      %v401 = vpop.f32.mrb[0].mxu0
      %402 = vdwg.mxu0
      %v403 = vadd.f32 %v308, %v390
      %v404 = vadd.f32 %v311, %v393
      %v405 = vadd.f32 %v316, %v398
      %s406 = scalar_lea.vmem %s165, 32
      %v407 = vld [vmem:[%s406] sm:$0xf]
      %v408 = vld [vmem:[%s406 + $0x4] sm:$0xf]
      %v409 = vld [vmem:[%s406 + $0x8] sm:$0x3]
      %s410 = scalar_lea.vmem %s1, 24
      %v411 = vld [vmem:[%s410] sm:$0xf]
      %v412 = vld [vmem:[%s410 + $0x4] sm:$0xf]
      %v416 = vunpack.c.l.b16 %v407
      %v417 = vunpack.c.l.b16 %v408
      %v418 = vunpack.c.l.b16 %v409
      %v419 = vpack.c.b16 %v417, %v416
      %v420 = vpack.c.b16 %v418, %v418
      %v423 = vunpack.c.l.b16 %v411
      %v424 = vunpack.c.l.b16 %v412
      %v425 = vpack.c.b16 %v424, %v423
      %v428 = vsel %vm198, %v419, 0
      %v431 = vsel %vm198, %v420, 0
      %433 = vmatprep.subr.bf16.mxu0 0
      %434 = vmatpush1.bf16.msra.mxu0 %v425
      %435 = vmatprep.subr.bf16.mxu0 0
      %436 = vmatpush1.bf16.msra.mxu0 0
      %437 = vmatprep.subr.bf16.mxu0 0
      %438 = vmatpush1.bf16.msra.mxu0 0
      %439 = vmatprep.subr.bf16.mxu0 0
      %440 = vmatpush1.bf16.msra.mxu0 0
      %441 = vmatprep.subr.bf16.mxu0 0
      %442 = vmatpush1.bf16.msra.mxu0 0
      %443 = vmatprep.subr.bf16.mxu0 0
      %444 = vmatpush1.bf16.msra.mxu0 0
      %445 = vmatprep.subr.bf16.mxu0 0
      %446 = vmatpush1.bf16.msra.mxu0 0
      %447 = vmatprep.subr.bf16.mxu0 0
      %448 = vmatpush1.bf16.msra.mxu0 0
      %449 = vmatprep.subr.bf16.mxu0 0
      %450 = vmatpush1.bf16.msra.mxu0 0
      %451 = vmatprep.subr.bf16.mxu0 0
      %452 = vmatpush1.bf16.msra.mxu0 0
      %453 = vmatprep.subr.bf16.mxu0 0
      %454 = vmatpush1.bf16.msra.mxu0 0
      %455 = vmatprep.subr.bf16.mxu0 0
      %456 = vmatpush1.bf16.msra.mxu0 0
      %457 = vmatprep.subr.bf16.mxu0 0
      %458 = vmatpush1.bf16.msra.mxu0 0
      %459 = vmatprep.subr.bf16.mxu0 0
      %460 = vmatpush1.bf16.msra.mxu0 0
      %461 = vmatprep.subr.bf16.mxu0 0
      %462 = vmatpush1.bf16.msra.mxu0 0
      %463 = vmatprep.subr.bf16.mxu0 0
      %464 = vmatpush1.bf16.msra.mxu0 0
      %465 = vmatprep.mubr.bf16.mxu0 0
      %466 = vmatmul.mubr.bf16.gmra.mrb[0].mxu0 %v428
      %v467 = vpop.f32.mrb[0].mxu0
      %v468 = vadd.f32 0.0, %v467
      %v469 = vpop.f32.mrb[0].mxu0
      %v470 = vpop.f32.mrb[0].mxu0
      %v471 = vadd.f32 0.0, %v470
      %v472 = vpop.f32.mrb[0].mxu0
      %473 = vmatprep.mubr.bf16.mxu0 0
      %474 = vmatmul.mubr.bf16.gmra.mrb[0].mxu0 %v431
      %v475 = vpop.f32.mrb[0].mxu0
      %v476 = vadd.f32 0.0, %v475
      %v477 = vpop.f32.mrb[0].mxu0
      %v478 = vpop.f32.mrb[0].mxu0
      %v479 = vpop.f32.mrb[0].mxu0
      %480 = vdwg.mxu0
      %v481 = vadd.f32 %v403, %v468
      %v482 = vadd.f32 %v404, %v471
      %v483 = vadd.f32 %v405, %v476
      %s484 = scalar_lea.vmem %s165, 48
      %v485 = vld [vmem:[%s484] sm:$0xf]
      %v486 = vld [vmem:[%s484 + $0x4] sm:$0xf]
      %v487 = vld [vmem:[%s484 + $0x8] sm:$0x3]
      %s488 = scalar_lea.vmem %s1, 32
      %v489 = vld [vmem:[%s488] sm:$0xf]
      %v490 = vld [vmem:[%s488 + $0x4] sm:$0xf]
      %v494 = vunpack.c.l.b16 %v485
      %v495 = vunpack.c.l.b16 %v486
      %v496 = vunpack.c.l.b16 %v487
      %v497 = vpack.c.b16 %v495, %v494
      %v498 = vpack.c.b16 %v496, %v496
      %v501 = vunpack.c.l.b16 %v489
      %v502 = vunpack.c.l.b16 %v490
      %v503 = vpack.c.b16 %v502, %v501
      %v506 = vsel %vm198, %v497, 0
      %v509 = vsel %vm198, %v498, 0
      %511 = vmatprep.subr.bf16.mxu0 0
      %512 = vmatpush1.bf16.msra.mxu0 %v503
      %513 = vmatprep.subr.bf16.mxu0 0
      %514 = vmatpush1.bf16.msra.mxu0 0
      %515 = vmatprep.subr.bf16.mxu0 0
      %516 = vmatpush1.bf16.msra.mxu0 0
      %517 = vmatprep.subr.bf16.mxu0 0
      %518 = vmatpush1.bf16.msra.mxu0 0
      %519 = vmatprep.subr.bf16.mxu0 0
      %520 = vmatpush1.bf16.msra.mxu0 0
      %521 = vmatprep.subr.bf16.mxu0 0
      %522 = vmatpush1.bf16.msra.mxu0 0
      %523 = vmatprep.subr.bf16.mxu0 0
      %524 = vmatpush1.bf16.msra.mxu0 0
      %525 = vmatprep.subr.bf16.mxu0 0
      %526 = vmatpush1.bf16.msra.mxu0 0
      %527 = vmatprep.subr.bf16.mxu0 0
      %528 = vmatpush1.bf16.msra.mxu0 0
      %529 = vmatprep.subr.bf16.mxu0 0
      %530 = vmatpush1.bf16.msra.mxu0 0
      %531 = vmatprep.subr.bf16.mxu0 0
      %532 = vmatpush1.bf16.msra.mxu0 0
      %533 = vmatprep.subr.bf16.mxu0 0
      %534 = vmatpush1.bf16.msra.mxu0 0
      %535 = vmatprep.subr.bf16.mxu0 0
      %536 = vmatpush1.bf16.msra.mxu0 0
      %537 = vmatprep.subr.bf16.mxu0 0
      %538 = vmatpush1.bf16.msra.mxu0 0
      %539 = vmatprep.subr.bf16.mxu0 0
      %540 = vmatpush1.bf16.msra.mxu0 0
      %541 = vmatprep.subr.bf16.mxu0 0
      %542 = vmatpush1.bf16.msra.mxu0 0
      %543 = vmatprep.mubr.bf16.mxu0 0
      %544 = vmatmul.mubr.bf16.gmra.mrb[0].mxu0 %v506
      %v545 = vpop.f32.mrb[0].mxu0
      %v546 = vadd.f32 0.0, %v545
      %v547 = vpop.f32.mrb[0].mxu0
      %v548 = vpop.f32.mrb[0].mxu0
      %v549 = vadd.f32 0.0, %v548
      %v550 = vpop.f32.mrb[0].mxu0
      %551 = vmatprep.mubr.bf16.mxu0 0
      %552 = vmatmul.mubr.bf16.gmra.mrb[0].mxu0 %v509
      %v553 = vpop.f32.mrb[0].mxu0
      %v554 = vadd.f32 0.0, %v553
      %v555 = vpop.f32.mrb[0].mxu0
      %v556 = vpop.f32.mrb[0].mxu0
      %v557 = vpop.f32.mrb[0].mxu0
      %558 = vdwg.mxu0
      %v559 = vadd.f32 %v481, %v546
      %v560 = vadd.f32 %v482, %v549
      %v561 = vadd.f32 %v483, %v554
      %v562 = vld [vmem:[%s406 + $0x8] sm:$0x7]
      %s563 = scalar_lea.vmem %s1, 40
      %v564 = vld [vmem:[%s563] sm:$0xf]
      %v565 = vld [vmem:[%s563 + $0x4] sm:$0xf]
      %v567 = vunpack.c.l.b16 %v562
      %v568 = vpack.c.b16 %v567, %v567
      %v569 = vshrl.u32 %v419, 16
      %v571 = vshll.u32 %v419, 16
      %v573 = vrot.slane %v571, 1
      %v574 = vor.u32 %v569, %v573
      %v576 = vshll.u32 %v568, 16
      %v578 = vrot.slane %v576, 1
      %v579 = vsel %vm328, %v574, %v578
      %v580 = vshrl.u32 %v568, 16
      %v582 = vor.u32 %v580, %v578
      %v585 = vunpack.c.l.b16 %v564
      %v586 = vunpack.c.l.b16 %v565
      %v587 = vpack.c.b16 %v586, %v585
      %v590 = vsel %vm198, %v579, 0
      %v593 = vsel %vm198, %v582, 0
      %595 = vmatprep.subr.bf16.mxu0 0
      %596 = vmatpush1.bf16.msra.mxu0 %v587
      %597 = vmatprep.subr.bf16.mxu0 0
      %598 = vmatpush1.bf16.msra.mxu0 0
      %599 = vmatprep.subr.bf16.mxu0 0
      %600 = vmatpush1.bf16.msra.mxu0 0
      %601 = vmatprep.subr.bf16.mxu0 0
      %602 = vmatpush1.bf16.msra.mxu0 0
      %603 = vmatprep.subr.bf16.mxu0 0
      %604 = vmatpush1.bf16.msra.mxu0 0
      %605 = vmatprep.subr.bf16.mxu0 0
      %606 = vmatpush1.bf16.msra.mxu0 0
      %607 = vmatprep.subr.bf16.mxu0 0
      %608 = vmatpush1.bf16.msra.mxu0 0
      %609 = vmatprep.subr.bf16.mxu0 0
      %610 = vmatpush1.bf16.msra.mxu0 0
      %611 = vmatprep.subr.bf16.mxu0 0
      %612 = vmatpush1.bf16.msra.mxu0 0
      %613 = vmatprep.subr.bf16.mxu0 0
      %614 = vmatpush1.bf16.msra.mxu0 0
      %615 = vmatprep.subr.bf16.mxu0 0
      %616 = vmatpush1.bf16.msra.mxu0 0
      %617 = vmatprep.subr.bf16.mxu0 0
      %618 = vmatpush1.bf16.msra.mxu0 0
      %619 = vmatprep.subr.bf16.mxu0 0
      %620 = vmatpush1.bf16.msra.mxu0 0
      %621 = vmatprep.subr.bf16.mxu0 0
      %622 = vmatpush1.bf16.msra.mxu0 0
      %623 = vmatprep.subr.bf16.mxu0 0
      %624 = vmatpush1.bf16.msra.mxu0 0
      %625 = vmatprep.subr.bf16.mxu0 0
      %626 = vmatpush1.bf16.msra.mxu0 0
      %627 = vmatprep.mubr.bf16.mxu0 0
      %628 = vmatmul.mubr.bf16.gmra.mrb[0].mxu0 %v590
      %v629 = vpop.f32.mrb[0].mxu0
      %v630 = vadd.f32 0.0, %v629
      %v631 = vpop.f32.mrb[0].mxu0
      %v632 = vpop.f32.mrb[0].mxu0
      %v633 = vadd.f32 0.0, %v632
      %v634 = vpop.f32.mrb[0].mxu0
      %635 = vmatprep.mubr.bf16.mxu0 0
      %636 = vmatmul.mubr.bf16.gmra.mrb[0].mxu0 %v593
      %v637 = vpop.f32.mrb[0].mxu0
      %v638 = vadd.f32 0.0, %v637
      %v639 = vpop.f32.mrb[0].mxu0
      %v640 = vpop.f32.mrb[0].mxu0
      %v641 = vpop.f32.mrb[0].mxu0
      %642 = vdwg.mxu0
      %v643 = vadd.f32 %v559, %v630
      %v644 = vadd.f32 %v560, %v633
      %v645 = vadd.f32 %v561, %v638
      %v646 = vld [vmem:[%s165] sm:$0xc]
      %v647 = vld [vmem:[%s165 + $0x4] sm:$0xf]
      %v648 = vld [vmem:[%s165 + $0x8] sm:$0xf]
      %v649 = vld [vmem:[%s165 + $0xc] sm:$0x1]
      %s650 = scalar_lea.vmem %s1, 48
      %v651 = vld [vmem:[%s650] sm:$0xf]
      %v652 = vld [vmem:[%s650 + $0x4] sm:$0xf]
      %v657 = vunpack.c.l.b16 %v646
      %v658 = vunpack.c.l.b16 %v647
      %v659 = vunpack.c.l.b16 %v648
      %v660 = vunpack.c.l.b16 %v649
      %v661 = vpack.c.b16 %v658, %v657
      %v662 = vpack.c.b16 %v660, %v659
      %vm663 = vsmask.f32 5376
      %v665 = vshrl.u32 %v661, 16
      %v667 = vrot.slane %v665, 2
      %v668 = vshll.u32 %v661, 16
      %v670 = vrot.slane %v668, 3
      %v671 = vor.u32 %v667, %v670
      %v673 = vshrl.u32 %v662, 16
      %v675 = vrot.slane %v673, 2
      %v676 = vshll.u32 %v662, 16
      %v678 = vrot.slane %v676, 3
      %v679 = vor.u32 %v675, %v678
      %v680 = vsel %vm663, %v671, %v679
      %v683 = vunpack.c.l.b16 %v651
      %v684 = vunpack.c.l.b16 %v652
      %v685 = vpack.c.b16 %v684, %v683
      %v688 = vsel %vm198, %v680, 0
      %v691 = vsel %vm198, %v679, 0
      %693 = vmatprep.subr.bf16.mxu0 0
      %694 = vmatpush1.bf16.msra.mxu0 %v685
      %695 = vmatprep.subr.bf16.mxu0 0
      %696 = vmatpush1.bf16.msra.mxu0 0
      %697 = vmatprep.subr.bf16.mxu0 0
      %698 = vmatpush1.bf16.msra.mxu0 0
      %699 = vmatprep.subr.bf16.mxu0 0
      %700 = vmatpush1.bf16.msra.mxu0 0
      %701 = vmatprep.subr.bf16.mxu0 0
      %702 = vmatpush1.bf16.msra.mxu0 0
      %703 = vmatprep.subr.bf16.mxu0 0
      %704 = vmatpush1.bf16.msra.mxu0 0
      %705 = vmatprep.subr.bf16.mxu0 0
      %706 = vmatpush1.bf16.msra.mxu0 0
      %707 = vmatprep.subr.bf16.mxu0 0
      %708 = vmatpush1.bf16.msra.mxu0 0
      %709 = vmatprep.subr.bf16.mxu0 0
      %710 = vmatpush1.bf16.msra.mxu0 0
      %711 = vmatprep.subr.bf16.mxu0 0
      %712 = vmatpush1.bf16.msra.mxu0 0
      %713 = vmatprep.subr.bf16.mxu0 0
      %714 = vmatpush1.bf16.msra.mxu0 0
      %715 = vmatprep.subr.bf16.mxu0 0
      %716 = vmatpush1.bf16.msra.mxu0 0
      %717 = vmatprep.subr.bf16.mxu0 0
      %718 = vmatpush1.bf16.msra.mxu0 0
      %719 = vmatprep.subr.bf16.mxu0 0
      %720 = vmatpush1.bf16.msra.mxu0 0
      %721 = vmatprep.subr.bf16.mxu0 0
      %722 = vmatpush1.bf16.msra.mxu0 0
      %723 = vmatprep.subr.bf16.mxu0 0
      %724 = vmatpush1.bf16.msra.mxu0 0
      %725 = vmatprep.mubr.bf16.mxu0 0
      %726 = vmatmul.mubr.bf16.gmra.mrb[0].mxu0 %v688
      %v727 = vpop.f32.mrb[0].mxu0
      %v728 = vadd.f32 0.0, %v727
      %v729 = vpop.f32.mrb[0].mxu0
      %v730 = vpop.f32.mrb[0].mxu0
      %v731 = vadd.f32 0.0, %v730
      %v732 = vpop.f32.mrb[0].mxu0
      %733 = vmatprep.mubr.bf16.mxu0 0
      %734 = vmatmul.mubr.bf16.gmra.mrb[0].mxu0 %v691
      %v735 = vpop.f32.mrb[0].mxu0
      %v736 = vadd.f32 0.0, %v735
      %v737 = vpop.f32.mrb[0].mxu0
      %v738 = vpop.f32.mrb[0].mxu0
      %v739 = vpop.f32.mrb[0].mxu0
      %740 = vdwg.mxu0
      %v741 = vadd.f32 %v643, %v728
      %v742 = vadd.f32 %v644, %v731
      %v743 = vadd.f32 %v645, %v736
      %v744 = vld [vmem:[%s177] sm:$0xc]
      %v745 = vld [vmem:[%s177 + $0x4] sm:$0xf]
      %v746 = vld [vmem:[%s177 + $0x8] sm:$0xf]
      %v747 = vld [vmem:[%s177 + $0xc] sm:$0x1]
      %s748 = scalar_lea.vmem %s1, 56
      %v749 = vld [vmem:[%s748] sm:$0xf]
      %v750 = vld [vmem:[%s748 + $0x4] sm:$0xf]
      %v755 = vunpack.c.l.b16 %v744
      %v756 = vunpack.c.l.b16 %v745
      %v757 = vunpack.c.l.b16 %v746
      %v758 = vunpack.c.l.b16 %v747
      %v759 = vpack.c.b16 %v756, %v755
      %v760 = vpack.c.b16 %v758, %v757
      %v762 = vshrl.u32 %v759, 16
      %v764 = vrot.slane %v762, 2
      %v765 = vshll.u32 %v759, 16
      %v767 = vrot.slane %v765, 3
      %v768 = vor.u32 %v764, %v767
      %v770 = vshrl.u32 %v760, 16
      %v772 = vrot.slane %v770, 2
      %v773 = vshll.u32 %v760, 16
      %v775 = vrot.slane %v773, 3
      %v776 = vor.u32 %v772, %v775
      %v777 = vsel %vm663, %v768, %v776
      %v780 = vunpack.c.l.b16 %v749
      %v781 = vunpack.c.l.b16 %v750
      %v782 = vpack.c.b16 %v781, %v780
      %v785 = vsel %vm198, %v777, 0
      %v788 = vsel %vm198, %v776, 0
      %790 = vmatprep.subr.bf16.mxu0 0
      %791 = vmatpush1.bf16.msra.mxu0 %v782
      %792 = vmatprep.subr.bf16.mxu0 0
      %793 = vmatpush1.bf16.msra.mxu0 0
      %794 = vmatprep.subr.bf16.mxu0 0
      %795 = vmatpush1.bf16.msra.mxu0 0
      %796 = vmatprep.subr.bf16.mxu0 0
      %797 = vmatpush1.bf16.msra.mxu0 0
      %798 = vmatprep.subr.bf16.mxu0 0
      %799 = vmatpush1.bf16.msra.mxu0 0
      %800 = vmatprep.subr.bf16.mxu0 0
      %801 = vmatpush1.bf16.msra.mxu0 0
      %802 = vmatprep.subr.bf16.mxu0 0
      %803 = vmatpush1.bf16.msra.mxu0 0
      %804 = vmatprep.subr.bf16.mxu0 0
      %805 = vmatpush1.bf16.msra.mxu0 0
      %806 = vmatprep.subr.bf16.mxu0 0
      %807 = vmatpush1.bf16.msra.mxu0 0
      %808 = vmatprep.subr.bf16.mxu0 0
      %809 = vmatpush1.bf16.msra.mxu0 0
      %810 = vmatprep.subr.bf16.mxu0 0
      %811 = vmatpush1.bf16.msra.mxu0 0
      %812 = vmatprep.subr.bf16.mxu0 0
      %813 = vmatpush1.bf16.msra.mxu0 0
      %814 = vmatprep.subr.bf16.mxu0 0
      %815 = vmatpush1.bf16.msra.mxu0 0
      %816 = vmatprep.subr.bf16.mxu0 0
      %817 = vmatpush1.bf16.msra.mxu0 0
      %818 = vmatprep.subr.bf16.mxu0 0
      %819 = vmatpush1.bf16.msra.mxu0 0
      %820 = vmatprep.subr.bf16.mxu0 0
      %821 = vmatpush1.bf16.msra.mxu0 0
      %822 = vmatprep.mubr.bf16.mxu0 0
      %823 = vmatmul.mubr.bf16.gmra.mrb[0].mxu0 %v785
      %v824 = vpop.f32.mrb[0].mxu0
      %v825 = vadd.f32 0.0, %v824
      %v826 = vpop.f32.mrb[0].mxu0
      %v827 = vpop.f32.mrb[0].mxu0
      %v828 = vadd.f32 0.0, %v827
      %v829 = vpop.f32.mrb[0].mxu0
      %830 = vmatprep.mubr.bf16.mxu0 0
      %831 = vmatmul.mubr.bf16.gmra.mrb[0].mxu0 %v788
      %v832 = vpop.f32.mrb[0].mxu0
      %v833 = vadd.f32 0.0, %v832
      %v834 = vpop.f32.mrb[0].mxu0
      %v835 = vpop.f32.mrb[0].mxu0
      %v836 = vpop.f32.mrb[0].mxu0
      %837 = vdwg.mxu0
      %v838 = vadd.f32 %v741, %v825
      %v839 = vadd.f32 %v742, %v828
      %v840 = vadd.f32 %v743, %v833
      %v841 = vld [vmem:[%s165] sm:$0x8]
      %s842 = scalar_lea.vmem %s1, 64
      %v843 = vld [vmem:[%s842] sm:$0xf]
      %v844 = vld [vmem:[%s842 + $0x4] sm:$0xf]
      %v846 = vunpack.c.l.b16 %v841
      %v847 = vpack.c.b16 %v658, %v846
      %vm848 = vcmask 1044480
      %v849 = vrot.slane %v847, 3
      %v850 = vrot.slane %v662, 3
      %v851 = vsel %vm848, %v849, %v850
      %v854 = vunpack.c.l.b16 %v843
      %v855 = vunpack.c.l.b16 %v844
      %v856 = vpack.c.b16 %v855, %v854
      %v859 = vsel %vm198, %v851, 0
      %v862 = vsel %vm198, %v850, 0
      %864 = vmatprep.subr.bf16.mxu0 0
      %865 = vmatpush1.bf16.msra.mxu0 %v856
      %866 = vmatprep.subr.bf16.mxu0 0
      %867 = vmatpush1.bf16.msra.mxu0 0
      %868 = vmatprep.subr.bf16.mxu0 0
      %869 = vmatpush1.bf16.msra.mxu0 0
      %870 = vmatprep.subr.bf16.mxu0 0
      %871 = vmatpush1.bf16.msra.mxu0 0
      %872 = vmatprep.subr.bf16.mxu0 0
      %873 = vmatpush1.bf16.msra.mxu0 0
      %874 = vmatprep.subr.bf16.mxu0 0
      %875 = vmatpush1.bf16.msra.mxu0 0
      %876 = vmatprep.subr.bf16.mxu0 0
      %877 = vmatpush1.bf16.msra.mxu0 0
      %878 = vmatprep.subr.bf16.mxu0 0
      %879 = vmatpush1.bf16.msra.mxu0 0
      %880 = vmatprep.subr.bf16.mxu0 0
      %881 = vmatpush1.bf16.msra.mxu0 0
      %882 = vmatprep.subr.bf16.mxu0 0
      %883 = vmatpush1.bf16.msra.mxu0 0
      %884 = vmatprep.subr.bf16.mxu0 0
      %885 = vmatpush1.bf16.msra.mxu0 0
      %886 = vmatprep.subr.bf16.mxu0 0
      %887 = vmatpush1.bf16.msra.mxu0 0
      %888 = vmatprep.subr.bf16.mxu0 0
      %889 = vmatpush1.bf16.msra.mxu0 0
      %890 = vmatprep.subr.bf16.mxu0 0
      %891 = vmatpush1.bf16.msra.mxu0 0
      %892 = vmatprep.subr.bf16.mxu0 0
      %893 = vmatpush1.bf16.msra.mxu0 0
      %894 = vmatprep.subr.bf16.mxu0 0
      %895 = vmatpush1.bf16.msra.mxu0 0
      %896 = vmatprep.mubr.bf16.mxu0 0
      %897 = vmatmul.mubr.bf16.gmra.mrb[0].mxu0 %v859
      %v898 = vpop.f32.mrb[0].mxu0
      %v899 = vadd.f32 0.0, %v898
      %v900 = vpop.f32.mrb[0].mxu0
      %v901 = vpop.f32.mrb[0].mxu0
      %v902 = vadd.f32 0.0, %v901
      %v903 = vpop.f32.mrb[0].mxu0
      %904 = vmatprep.mubr.bf16.mxu0 0
      %905 = vmatmul.mubr.bf16.gmra.mrb[0].mxu0 %v862
      %v906 = vpop.f32.mrb[0].mxu0
      %v907 = vadd.f32 0.0, %v906
      %v908 = vpop.f32.mrb[0].mxu0
      %v909 = vpop.f32.mrb[0].mxu0
      %v910 = vpop.f32.mrb[0].mxu0
      %911 = vdwg.mxu0
      %v912 = vadd.f32 %v838, %v899
      %v913 = vadd.f32 %v839, %v902
      %v914 = vadd.f32 %v840, %v907
      %v915 = vld [vmem:[%s2] sm:$0x1]
      %v917 = vlaneseq
      %v918 = vshrl.u32 %v917, 7
      %v919 = vsub.s32 0, %v918
      %v920 = vrot.slane %v915, %v919
      %v922 = vadd.f32 %v912, %v920
      %v923 = vadd.f32 %v913, %v920
      %v924 = vadd.f32 %v914, %v920
      %v925 = vmax.f32 %v922, 0.0
      %v926 = vmax.f32 %v923, 0.0
      %v927 = vmax.f32 %v924, 0.0
      %928 = vst [vmem:[%s170] sm:$0xff] %v925
      %929 = vst [vmem:[%s170 + $0x8] sm:$0xff] %v926
      %930 = vst [vmem:[%s170 + $0x10] sm:$0xf] %v927
      %p931 = scmp.lt.s32.totalorder %s14, 1
      %s932 = scalar_select %p931, %s14, 1
      %s933 = smul.addr %s932, 3
      %s934 = smul.addr %s933, 8
      %s935 = scalar_lea.vmem %s3, %s934
      // Predicated region
      $region33: #{a_call__.6} parent=31 // pred_check
        %p936 = pneg %p100
      $region34: #{a_call__.6} parent=31 // pred_check_branch
        %938 = sbr.rel (%p936) target = $region36
      $region35: #{a_call__.6} parent=31 // pred_region
        _
      $region36: #{a_call__.6} parent=31 // pred_fallthru
        _
    $region32: #{a_call__.6} parent=5 // pred_fallthru
      _
    %p939 = scmp.le.s32.totalorder 2, %s9
    // Predicated region
    $region37: #{a_call__.6} parent=5 // pred_check
      %p940 = pneg %p939
    $region38: #{a_call__.6} parent=5 // pred_check_branch
      %942 = sbr.rel (%p940) target = $region40
    $region39: #{a_call__.6} parent=5 // pred_region
      %s943 = ssub.s32 %s9, 2
      // Predicated region
      $region41: #{a_call__.6} parent=39 // pred_check
        %p944 = pneg %p106
      $region42: #{a_call__.6} parent=39 // pred_check_branch
        %946 = sbr.rel (%p944) target = $region44
      $region43: #{a_call__.6} parent=39 // pred_region
        %p947 = scmp.lt.s32.totalorder %s15, 1
        %s948 = scalar_select %p947, %s15, 1
        %s949 = smul.addr %s948, 3
        %s950 = smul.addr %s949, 8
        %s951 = scalar_lea.vmem %s3, %s950
      $region44: #{a_call__.6} parent=39 // pred_fallthru
        _
    $region40: #{a_call__.6} parent=5 // pred_fallthru
      _
  $region6: #{a_call__.6} parent=0 // loop_footer
    %s13 = sadd.s32 1, %s9
  $region7: #{a_call__.6} parent=0 // loop_footer_branch
    %8 = sbr.rel target = $region3
  $region8: #{a_call__.6} parent=0 // loop_exit
    _

// kernel: a_call__.7
$region0: #{a_call__.7}
  #allocation0 [shape = 'u32[]', space=smem, size = 0x4, offset = 0x4, fixed_abs, tag = 'smem constant byte address 0x4 - core index']
  #allocation1 [shape = 'u32[144,128]{1,0:T(1,128)}', space=vmem, size = 0x12000, scoped, tag = 'internal scratch']
  %s0 = inlined_call_operand.vmem [shape: bf16[2,2,2,12,32], index: 0, kind: input, shape index: {}]
  %s1 = inlined_call_operand.vmem [shape: bf16[9,32,128], index: 1, kind: input, shape index: {}]
  %s2 = inlined_call_operand.vmem [shape: f32[1,128], index: 2, kind: input, shape index: {}]
  %s3 = inlined_call_operand.vmem [shape: f32[2,6,128], index: 3, kind: output, shape index: {}]
  %s4 = sld [smem:[#allocation0]]
  $region45: #{a_call__.7} parent=0
    _
  %s6 = ssub.s32 1, %s4
  %s7 = scalar_select 0, %s6, %s4
  loop: start=0, step=1, limit=4
  $region2: #{a_call__.7} parent=0 // loop_pre_header
    _
  $region3: #{a_call__.7} parent=0 // loop_header
    %s9 = sphi 0, %s13
    %p10 = scmp.ge.s32.totalorder %s9, 4
    %s19 = sphi 0, %s21
    %s22 = sphi 0, %s19
    %s23 = sphi 0, %s22
    %s39 = sphi 0, %s23
    %s43 = sphi 0, %s43
    %s45 = sphi 0, %s43
    %s46 = sphi 0, %s45
    %s60 = sphi 0, %s46
    %s64 = sphi 0, %s64
    %s66 = sphi 0, %s64
    %s67 = sphi 0, %s66
    %s81 = sphi 0, %s67
    %s87 = sphi 0, %s89
    %s90 = sphi 0, %s87
    %s91 = sphi 0, %s90
    %s107 = sphi 0, %s91
  $region4: #{a_call__.7} parent=0 // loop_header_branch
    %12 = sbr.rel (%p10) target = $region8
  $region5: #{a_call__.7} parent=0 // loop_body
    %s14 = ssub.s32 %s9, 1
    %s15 = ssub.s32 %s9, 2
    %s16 = sadd.s32 %s9, 1
    %s17 = ssub.s32 %s9, %s16
    %p18 = scmp.eq.s32.totalorder %s17, 0
    %s20 = sadd.s32 %s19, 1
    %s21 = scalar_select %p18, %s19, %s20
    %p24 = pneg %p18
    %p25 = scmp.eq.s32.totalorder %s9, 1
    %p26 = por %p24, %p25
    %p27 = scmp.ne.s32.totalorder %s19, %s22
    %p28 = scmp.eq.s32.totalorder %s9, 0
    %p29 = por %p27, %p28
    %p30 = scmp.ne.s32.totalorder %s19, %s22
    %p31 = scmp.eq.s32.totalorder %s14, 1
    %p32 = por %p30, %p31
    %p33 = scmp.ne.s32.totalorder %s22, %s23
    %p34 = scmp.eq.s32.totalorder %s14, 0
    %p35 = por %p33, %p34
    %p36 = scmp.ne.s32.totalorder %s22, %s23
    %p37 = scmp.eq.s32.totalorder %s15, 1
    %p38 = por %p36, %p37
    %p40 = scmp.ne.s32.totalorder %s23, %s39
    %p41 = scmp.eq.s32.totalorder %s15, 0
    %p42 = por %p40, %p41
    %s44 = sadd.s32 %s43, 1
    %p47 = scmp.eq.s32.totalorder %s9, 1
    %p48 = scmp.ne.s32.totalorder %s43, %s45
    %p49 = scmp.eq.s32.totalorder %s9, 0
    %p50 = por %p48, %p49
    %p51 = scmp.ne.s32.totalorder %s43, %s45
    %p52 = scmp.eq.s32.totalorder %s14, 1
    %p53 = por %p51, %p52
    %p54 = scmp.ne.s32.totalorder %s45, %s46
    %p55 = scmp.eq.s32.totalorder %s14, 0
    %p56 = por %p54, %p55
    %p57 = scmp.ne.s32.totalorder %s45, %s46
    %p58 = scmp.eq.s32.totalorder %s15, 1
    %p59 = por %p57, %p58
    %p61 = scmp.ne.s32.totalorder %s46, %s60
    %p62 = scmp.eq.s32.totalorder %s15, 0
    %p63 = por %p61, %p62
    %s65 = sadd.s32 %s64, 1
    %p68 = scmp.eq.s32.totalorder %s9, 1
    %p69 = scmp.ne.s32.totalorder %s64, %s66
    %p70 = scmp.eq.s32.totalorder %s9, 0
    %p71 = por %p69, %p70
    %p72 = scmp.ne.s32.totalorder %s64, %s66
    %p73 = scmp.eq.s32.totalorder %s14, 1
    %p74 = por %p72, %p73
    %p75 = scmp.ne.s32.totalorder %s66, %s67
    %p76 = scmp.eq.s32.totalorder %s14, 0
    %p77 = por %p75, %p76
    %p78 = scmp.ne.s32.totalorder %s66, %s67
    %p79 = scmp.eq.s32.totalorder %s15, 1
    %p80 = por %p78, %p79
    %p82 = scmp.ne.s32.totalorder %s67, %s81
    %p83 = scmp.eq.s32.totalorder %s15, 0
    %p84 = por %p82, %p83
    %s85 = ssub.s32 %s9, %s16
    %p86 = scmp.eq.s32.totalorder %s85, 0
    %s88 = sadd.s32 %s87, 1
    %s89 = scalar_select %p86, %s87, %s88
    %p92 = pneg %p86
    %p93 = scmp.eq.s32.totalorder %s9, 1
    %p94 = por %p92, %p93
    %p95 = scmp.ne.s32.totalorder %s87, %s90
    %p96 = scmp.eq.s32.totalorder %s9, 0
    %p97 = por %p95, %p96
    %p98 = scmp.ne.s32.totalorder %s87, %s90
    %p99 = scmp.eq.s32.totalorder %s14, 1
    %p100 = por %p98, %p99
    %p101 = scmp.ne.s32.totalorder %s90, %s91
    %p102 = scmp.eq.s32.totalorder %s14, 0
    %p103 = por %p101, %p102
    %p104 = scmp.ne.s32.totalorder %s90, %s91
    %p105 = scmp.eq.s32.totalorder %s15, 1
    %p106 = por %p104, %p105
    %p108 = scmp.ne.s32.totalorder %s91, %s107
    %p109 = scmp.eq.s32.totalorder %s15, 0
    %p110 = por %p108, %p109
    %p111 = scmp.le.s32.totalorder 1, %s9
    %p112 = scmp.lt.s32.totalorder %s9, 3
    %p113 = pnand %p111, %p112
    %p114 = pneg %p113
    // Predicated region
    $region9: #{a_call__.7} parent=5 // pred_check
      _
    $region10: #{a_call__.7} parent=5 // pred_check_branch
      %116 = sbr.rel (%p113) target = $region12
    $region11: #{a_call__.7} parent=5 // pred_region
      %s117 = ssub.s32 %s9, 1
      // Predicated region
      $region13: #{a_call__.7} parent=11 // pred_check
        %p118 = pneg %p56
      $region14: #{a_call__.7} parent=11 // pred_check_branch
        %120 = sbr.rel (%p118) target = $region16
      $region15: #{a_call__.7} parent=11 // pred_region
        _
      $region16: #{a_call__.7} parent=11 // pred_fallthru
        _
      // Predicated region
      $region17: #{a_call__.7} parent=11 // pred_check
        %p121 = pneg %p77
      $region18: #{a_call__.7} parent=11 // pred_check_branch
        %123 = sbr.rel (%p121) target = $region20
      $region19: #{a_call__.7} parent=11 // pred_region
        _
      $region20: #{a_call__.7} parent=11 // pred_fallthru
        _
    $region12: #{a_call__.7} parent=5 // pred_fallthru
      _
    %p124 = scmp.lt.s32.totalorder %s9, 2
    // Predicated region
    $region21: #{a_call__.7} parent=5 // pred_check
      %p125 = pneg %p124
    $region22: #{a_call__.7} parent=5 // pred_check_branch
      %127 = sbr.rel (%p125) target = $region24
    $region23: #{a_call__.7} parent=5 // pred_region
      // Predicated region
      $region25: #{a_call__.7} parent=23 // pred_check
        %p128 = pneg %p29
      $region26: #{a_call__.7} parent=23 // pred_check_branch
        %130 = sbr.rel (%p128) target = $region28
      $region27: #{a_call__.7} parent=23 // pred_region
        %p131 = scmp.lt.s32.totalorder %s9, 1
        %s132 = scalar_select %p131, %s9, 1
        %s133 = smul.addr %s132, 8
        %s134 = smul.addr %s133, 4
        %s135 = scalar_lea.vmem %s0, %s134
      $region28: #{a_call__.7} parent=23 // pred_fallthru
        _
    $region24: #{a_call__.7} parent=5 // pred_fallthru
      _
    %p136 = scmp.le.s32.totalorder 1, %s9
    %p137 = scmp.lt.s32.totalorder %s9, 3
    %p138 = pnand %p136, %p137
    %p139 = pneg %p138
    // Predicated region
    $region29: #{a_call__.7} parent=5 // pred_check
      _
    $region30: #{a_call__.7} parent=5 // pred_check_branch
      %141 = sbr.rel (%p138) target = $region32
    $region31: #{a_call__.7} parent=5 // pred_region
      %s142 = ssub.s32 %s9, 1
      %p143 = scmp.lt.s32.totalorder %s14, 1
      %s144 = scalar_select %p143, %s14, 1
      %s145 = smul.addr %s144, 8
      %s146 = smul.addr %s145, 4
      %s147 = scalar_lea.vmem %s0, %s146
      %p148 = pneg %p35
      %p149 = pneg %p32
      %p150 = pneg %p56
      %p151 = pneg %p53
      %p152 = pneg %p77
      %p153 = pneg %p74
      %p154 = pneg %p103
      %p155 = pneg %p100
      %p156 = scmp.lt.s32.totalorder %s14, 1
      %s157 = scalar_select %p156, %s14, 1
      %s158 = smul.addr %s157, 8
      %s159 = scalar_lea.vmem %s3, %s158
      %p160 = scmp.lt.s32.totalorder %s14, 1
      %s161 = scalar_select %p160, %s14, 1
      %s162 = smul.addr %s161, 8
      %s163 = smul.addr %s162, 4
      %s164 = scalar_lea.vmem %s0, %s163
      %p165 = scmp.lt.s32.totalorder %s14, 1
      %s166 = scalar_select %p165, %s14, 1
      %s167 = smul.addr %s166, 8
      %s168 = scalar_lea.vmem %s3, %s167
      %v170 = vld [vmem:[%s164] sm:$0x7]
      %v171 = vld [vmem:[%s1] sm:$0xf]
      %v172 = vld [vmem:[%s1 + $0x4] sm:$0xf]
      %v173 = vld [vmem:[%s1 + $0x8] sm:$0xf]
      %v174 = vld [vmem:[%s1 + $0xc] sm:$0xf]
      %s175 = scalar_lea.vmem %s164, 8
      %v176 = vld [vmem:[%s175] sm:$0x7]
      %s177 = scalar_lea.vmem %s1, 16
      %v178 = vld [vmem:[%s177] sm:$0xf]
      %v179 = vld [vmem:[%s177 + $0x4] sm:$0xf]
      %v180 = vld [vmem:[%s177 + $0x8] sm:$0xf]
      %v181 = vld [vmem:[%s177 + $0xc] sm:$0xf]
      %v186 = vunpack.c.l.b16 %v178
      %v187 = vunpack.c.l.b16 %v179
      %v188 = vunpack.c.l.b16 %v180
      %v189 = vunpack.c.l.b16 %v181
      %v190 = vpack.c.b16 %v187, %v186
      %v191 = vpack.c.b16 %v189, %v188
      %vm194 = vcmask 261120
      %v196 = vsel %vm194, %v176, 0
      %198 = vmatprep.subr.bf16.mxu0 0
      %199 = vmatpush1.bf16.msra.mxu0 %v190
      %200 = vmatprep.subr.bf16.mxu0 0
      %201 = vmatpush1.bf16.msra.mxu0 %v191
      %202 = vmatprep.subr.bf16.mxu0 0
      %203 = vmatpush1.bf16.msra.mxu0 0
      %204 = vmatprep.subr.bf16.mxu0 0
      %205 = vmatpush1.bf16.msra.mxu0 0
      %206 = vmatprep.subr.bf16.mxu0 0
      %207 = vmatpush1.bf16.msra.mxu0 0
      %208 = vmatprep.subr.bf16.mxu0 0
      %209 = vmatpush1.bf16.msra.mxu0 0
      %210 = vmatprep.subr.bf16.mxu0 0
      %211 = vmatpush1.bf16.msra.mxu0 0
      %212 = vmatprep.subr.bf16.mxu0 0
      %213 = vmatpush1.bf16.msra.mxu0 0
      %214 = vmatprep.subr.bf16.mxu0 0
      %215 = vmatpush1.bf16.msra.mxu0 0
      %216 = vmatprep.subr.bf16.mxu0 0
      %217 = vmatpush1.bf16.msra.mxu0 0
      %218 = vmatprep.subr.bf16.mxu0 0
      %219 = vmatpush1.bf16.msra.mxu0 0
      %220 = vmatprep.subr.bf16.mxu0 0
      %221 = vmatpush1.bf16.msra.mxu0 0
      %222 = vmatprep.subr.bf16.mxu0 0
      %223 = vmatpush1.bf16.msra.mxu0 0
      %224 = vmatprep.subr.bf16.mxu0 0
      %225 = vmatpush1.bf16.msra.mxu0 0
      %226 = vmatprep.subr.bf16.mxu0 0
      %227 = vmatpush1.bf16.msra.mxu0 0
      %228 = vmatprep.subr.bf16.mxu0 0
      %229 = vmatpush1.bf16.msra.mxu0 0
      %230 = vmatprep.mubr.bf16.mxu0 0
      %231 = vmatmul.mubr.bf16.gmra.mrb[0].mxu0 %v196
      %v232 = vpop.f32.mrb[0].mxu0
      %v233 = vadd.f32 0.0, %v232
      %v234 = vpop.f32.mrb[0].mxu0
      %v235 = vpop.f32.mrb[0].mxu0
      %v236 = vpop.f32.mrb[0].mxu0
      %237 = vdwg.mxu0
      %v242 = vunpack.c.l.b16 %v171
      %v243 = vunpack.c.l.b16 %v172
      %v244 = vunpack.c.l.b16 %v173
      %v245 = vunpack.c.l.b16 %v174
      %v246 = vpack.c.b16 %v243, %v242
      %v247 = vpack.c.b16 %v245, %v244
      %v251 = vsel %vm194, %v170, 0
      %253 = vmatprep.subr.bf16.mxu0 0
      %254 = vmatpush1.bf16.msra.mxu0 %v246
      %255 = vmatprep.subr.bf16.mxu0 0
      %256 = vmatpush1.bf16.msra.mxu0 %v247
      %257 = vmatprep.subr.bf16.mxu0 0
      %258 = vmatpush1.bf16.msra.mxu0 0
      %259 = vmatprep.subr.bf16.mxu0 0
      %260 = vmatpush1.bf16.msra.mxu0 0
      %261 = vmatprep.subr.bf16.mxu0 0
      %262 = vmatpush1.bf16.msra.mxu0 0
      %263 = vmatprep.subr.bf16.mxu0 0
      %264 = vmatpush1.bf16.msra.mxu0 0
      %265 = vmatprep.subr.bf16.mxu0 0
      %266 = vmatpush1.bf16.msra.mxu0 0
      %267 = vmatprep.subr.bf16.mxu0 0
      %268 = vmatpush1.bf16.msra.mxu0 0
      %269 = vmatprep.subr.bf16.mxu0 0
      %270 = vmatpush1.bf16.msra.mxu0 0
      %271 = vmatprep.subr.bf16.mxu0 0
      %272 = vmatpush1.bf16.msra.mxu0 0
      %273 = vmatprep.subr.bf16.mxu0 0
      %274 = vmatpush1.bf16.msra.mxu0 0
      %275 = vmatprep.subr.bf16.mxu0 0
      %276 = vmatpush1.bf16.msra.mxu0 0
      %277 = vmatprep.subr.bf16.mxu0 0
      %278 = vmatpush1.bf16.msra.mxu0 0
      %279 = vmatprep.subr.bf16.mxu0 0
      %280 = vmatpush1.bf16.msra.mxu0 0
      %281 = vmatprep.subr.bf16.mxu0 0
      %282 = vmatpush1.bf16.msra.mxu0 0
      %283 = vmatprep.subr.bf16.mxu0 0
      %284 = vmatpush1.bf16.msra.mxu0 0
      %285 = vmatprep.mubr.bf16.mxu0 0
      %286 = vmatmul.mubr.bf16.gmra.mrb[0].mxu0 %v251
      %v287 = vpop.f32.mrb[0].mxu0
      %v288 = vadd.f32 %v233, %v287
      %v289 = vpop.f32.mrb[0].mxu0
      %v290 = vpop.f32.mrb[0].mxu0
      %v291 = vpop.f32.mrb[0].mxu0
      %292 = vdwg.mxu0
      %v293 = vld [vmem:[%s164] sm:$0xf]
      %s294 = scalar_lea.vmem %s1, 32
      %v295 = vld [vmem:[%s294] sm:$0xf]
      %v296 = vld [vmem:[%s294 + $0x4] sm:$0xf]
      %v297 = vld [vmem:[%s294 + $0x8] sm:$0xf]
      %v298 = vld [vmem:[%s294 + $0xc] sm:$0xf]
      %v300 = vunpack.c.l.b16 %v293
      %v301 = vpack.c.b16 %v300, %v300
      %v303 = vshrl.u32 %v301, 16
      %v305 = vshll.u32 %v301, 16
      %v307 = vrot.slane %v305, 1
      %v308 = vor.u32 %v303, %v307
      %v313 = vunpack.c.l.b16 %v295
      %v314 = vunpack.c.l.b16 %v296
      %v315 = vunpack.c.l.b16 %v297
      %v316 = vunpack.c.l.b16 %v298
      %v317 = vpack.c.b16 %v314, %v313
      %v318 = vpack.c.b16 %v316, %v315
      %v322 = vsel %vm194, %v308, 0
      %324 = vmatprep.subr.bf16.mxu0 0
      %325 = vmatpush1.bf16.msra.mxu0 %v317
      %326 = vmatprep.subr.bf16.mxu0 0
      %327 = vmatpush1.bf16.msra.mxu0 %v318
      %328 = vmatprep.subr.bf16.mxu0 0
      %329 = vmatpush1.bf16.msra.mxu0 0
      %330 = vmatprep.subr.bf16.mxu0 0
      %331 = vmatpush1.bf16.msra.mxu0 0
      %332 = vmatprep.subr.bf16.mxu0 0
      %333 = vmatpush1.bf16.msra.mxu0 0
      %334 = vmatprep.subr.bf16.mxu0 0
      %335 = vmatpush1.bf16.msra.mxu0 0
      %336 = vmatprep.subr.bf16.mxu0 0
      %337 = vmatpush1.bf16.msra.mxu0 0
      %338 = vmatprep.subr.bf16.mxu0 0
      %339 = vmatpush1.bf16.msra.mxu0 0
      %340 = vmatprep.subr.bf16.mxu0 0
      %341 = vmatpush1.bf16.msra.mxu0 0
      %342 = vmatprep.subr.bf16.mxu0 0
      %343 = vmatpush1.bf16.msra.mxu0 0
      %344 = vmatprep.subr.bf16.mxu0 0
      %345 = vmatpush1.bf16.msra.mxu0 0
      %346 = vmatprep.subr.bf16.mxu0 0
      %347 = vmatpush1.bf16.msra.mxu0 0
      %348 = vmatprep.subr.bf16.mxu0 0
      %349 = vmatpush1.bf16.msra.mxu0 0
      %350 = vmatprep.subr.bf16.mxu0 0
      %351 = vmatpush1.bf16.msra.mxu0 0
      %352 = vmatprep.subr.bf16.mxu0 0
      %353 = vmatpush1.bf16.msra.mxu0 0
      %354 = vmatprep.subr.bf16.mxu0 0
      %355 = vmatpush1.bf16.msra.mxu0 0
      %356 = vmatprep.mubr.bf16.mxu0 0
      %357 = vmatmul.mubr.bf16.gmra.mrb[0].mxu0 %v322
      %v358 = vpop.f32.mrb[0].mxu0
      %v359 = vadd.f32 0.0, %v358
      %v360 = vpop.f32.mrb[0].mxu0
      %v361 = vpop.f32.mrb[0].mxu0
      %v362 = vpop.f32.mrb[0].mxu0
      %363 = vdwg.mxu0
      %v364 = vadd.f32 %v288, %v359
      %s365 = scalar_lea.vmem %s164, 16
      %v366 = vld [vmem:[%s365] sm:$0x7]
      %s367 = scalar_lea.vmem %s1, 48
      %v368 = vld [vmem:[%s367] sm:$0xf]
      %v369 = vld [vmem:[%s367 + $0x4] sm:$0xf]
      %v370 = vld [vmem:[%s367 + $0x8] sm:$0xf]
      %v371 = vld [vmem:[%s367 + $0xc] sm:$0xf]
      %v376 = vunpack.c.l.b16 %v368
      %v377 = vunpack.c.l.b16 %v369
      %v378 = vunpack.c.l.b16 %v370
      %v379 = vunpack.c.l.b16 %v371
      %v380 = vpack.c.b16 %v377, %v376
      %v381 = vpack.c.b16 %v379, %v378
      %v385 = vsel %vm194, %v366, 0
      %387 = vmatprep.subr.bf16.mxu0 0
      %388 = vmatpush1.bf16.msra.mxu0 %v380
      %389 = vmatprep.subr.bf16.mxu0 0
      %390 = vmatpush1.bf16.msra.mxu0 %v381
      %391 = vmatprep.subr.bf16.mxu0 0
      %392 = vmatpush1.bf16.msra.mxu0 0
      %393 = vmatprep.subr.bf16.mxu0 0
      %394 = vmatpush1.bf16.msra.mxu0 0
      %395 = vmatprep.subr.bf16.mxu0 0
      %396 = vmatpush1.bf16.msra.mxu0 0
      %397 = vmatprep.subr.bf16.mxu0 0
      %398 = vmatpush1.bf16.msra.mxu0 0
      %399 = vmatprep.subr.bf16.mxu0 0
      %400 = vmatpush1.bf16.msra.mxu0 0
      %401 = vmatprep.subr.bf16.mxu0 0
      %402 = vmatpush1.bf16.msra.mxu0 0
      %403 = vmatprep.subr.bf16.mxu0 0
      %404 = vmatpush1.bf16.msra.mxu0 0
      %405 = vmatprep.subr.bf16.mxu0 0
      %406 = vmatpush1.bf16.msra.mxu0 0
      %407 = vmatprep.subr.bf16.mxu0 0
      %408 = vmatpush1.bf16.msra.mxu0 0
      %409 = vmatprep.subr.bf16.mxu0 0
      %410 = vmatpush1.bf16.msra.mxu0 0
      %411 = vmatprep.subr.bf16.mxu0 0
      %412 = vmatpush1.bf16.msra.mxu0 0
      %413 = vmatprep.subr.bf16.mxu0 0
      %414 = vmatpush1.bf16.msra.mxu0 0
      %415 = vmatprep.subr.bf16.mxu0 0
      %416 = vmatpush1.bf16.msra.mxu0 0
      %417 = vmatprep.subr.bf16.mxu0 0
      %418 = vmatpush1.bf16.msra.mxu0 0
      %419 = vmatprep.mubr.bf16.mxu0 0
      %420 = vmatmul.mubr.bf16.gmra.mrb[0].mxu0 %v385
      %v421 = vpop.f32.mrb[0].mxu0
      %v422 = vadd.f32 0.0, %v421
      %v423 = vpop.f32.mrb[0].mxu0
      %v424 = vpop.f32.mrb[0].mxu0
      %v425 = vpop.f32.mrb[0].mxu0
      %426 = vdwg.mxu0
      %v427 = vadd.f32 %v364, %v422
      %s428 = scalar_lea.vmem %s164, 24
      %v429 = vld [vmem:[%s428] sm:$0x7]
      %s430 = scalar_lea.vmem %s1, 64
      %v431 = vld [vmem:[%s430] sm:$0xf]
      %v432 = vld [vmem:[%s430 + $0x4] sm:$0xf]
      %v433 = vld [vmem:[%s430 + $0x8] sm:$0xf]
      %v434 = vld [vmem:[%s430 + $0xc] sm:$0xf]
      %v439 = vunpack.c.l.b16 %v431
      %v440 = vunpack.c.l.b16 %v432
      %v441 = vunpack.c.l.b16 %v433
      %v442 = vunpack.c.l.b16 %v434
      %v443 = vpack.c.b16 %v440, %v439
      %v444 = vpack.c.b16 %v442, %v441
      %v448 = vsel %vm194, %v429, 0
      %450 = vmatprep.subr.bf16.mxu0 0
      %451 = vmatpush1.bf16.msra.mxu0 %v443
      %452 = vmatprep.subr.bf16.mxu0 0
      %453 = vmatpush1.bf16.msra.mxu0 %v444
      %454 = vmatprep.subr.bf16.mxu0 0
      %455 = vmatpush1.bf16.msra.mxu0 0
      %456 = vmatprep.subr.bf16.mxu0 0
      %457 = vmatpush1.bf16.msra.mxu0 0
      %458 = vmatprep.subr.bf16.mxu0 0
      %459 = vmatpush1.bf16.msra.mxu0 0
      %460 = vmatprep.subr.bf16.mxu0 0
      %461 = vmatpush1.bf16.msra.mxu0 0
      %462 = vmatprep.subr.bf16.mxu0 0
      %463 = vmatpush1.bf16.msra.mxu0 0
      %464 = vmatprep.subr.bf16.mxu0 0
      %465 = vmatpush1.bf16.msra.mxu0 0
      %466 = vmatprep.subr.bf16.mxu0 0
      %467 = vmatpush1.bf16.msra.mxu0 0
      %468 = vmatprep.subr.bf16.mxu0 0
      %469 = vmatpush1.bf16.msra.mxu0 0
      %470 = vmatprep.subr.bf16.mxu0 0
      %471 = vmatpush1.bf16.msra.mxu0 0
      %472 = vmatprep.subr.bf16.mxu0 0
      %473 = vmatpush1.bf16.msra.mxu0 0
      %474 = vmatprep.subr.bf16.mxu0 0
      %475 = vmatpush1.bf16.msra.mxu0 0
      %476 = vmatprep.subr.bf16.mxu0 0
      %477 = vmatpush1.bf16.msra.mxu0 0
      %478 = vmatprep.subr.bf16.mxu0 0
      %479 = vmatpush1.bf16.msra.mxu0 0
      %480 = vmatprep.subr.bf16.mxu0 0
      %481 = vmatpush1.bf16.msra.mxu0 0
      %482 = vmatprep.mubr.bf16.mxu0 0
      %483 = vmatmul.mubr.bf16.gmra.mrb[0].mxu0 %v448
      %v484 = vpop.f32.mrb[0].mxu0
      %v485 = vadd.f32 0.0, %v484
      %v486 = vpop.f32.mrb[0].mxu0
      %v487 = vpop.f32.mrb[0].mxu0
      %v488 = vpop.f32.mrb[0].mxu0
      %489 = vdwg.mxu0
      %v490 = vadd.f32 %v427, %v485
      %v491 = vld [vmem:[%s365] sm:$0xf]
      %s492 = scalar_lea.vmem %s1, 80
      %v493 = vld [vmem:[%s492] sm:$0xf]
      %v494 = vld [vmem:[%s492 + $0x4] sm:$0xf]
      %v495 = vld [vmem:[%s492 + $0x8] sm:$0xf]
      %v496 = vld [vmem:[%s492 + $0xc] sm:$0xf]
      %v498 = vunpack.c.l.b16 %v491
      %v499 = vpack.c.b16 %v498, %v498
      %v501 = vshrl.u32 %v499, 16
      %v503 = vshll.u32 %v499, 16
      %v505 = vrot.slane %v503, 1
      %v506 = vor.u32 %v501, %v505
      %v511 = vunpack.c.l.b16 %v493
      %v512 = vunpack.c.l.b16 %v494
      %v513 = vunpack.c.l.b16 %v495
      %v514 = vunpack.c.l.b16 %v496
      %v515 = vpack.c.b16 %v512, %v511
      %v516 = vpack.c.b16 %v514, %v513
      %v520 = vsel %vm194, %v506, 0
      %522 = vmatprep.subr.bf16.mxu0 0
      %523 = vmatpush1.bf16.msra.mxu0 %v515
      %524 = vmatprep.subr.bf16.mxu0 0
      %525 = vmatpush1.bf16.msra.mxu0 %v516
      %526 = vmatprep.subr.bf16.mxu0 0
      %527 = vmatpush1.bf16.msra.mxu0 0
      %528 = vmatprep.subr.bf16.mxu0 0
      %529 = vmatpush1.bf16.msra.mxu0 0
      %530 = vmatprep.subr.bf16.mxu0 0
      %531 = vmatpush1.bf16.msra.mxu0 0
      %532 = vmatprep.subr.bf16.mxu0 0
      %533 = vmatpush1.bf16.msra.mxu0 0
      %534 = vmatprep.subr.bf16.mxu0 0
      %535 = vmatpush1.bf16.msra.mxu0 0
      %536 = vmatprep.subr.bf16.mxu0 0
      %537 = vmatpush1.bf16.msra.mxu0 0
      %538 = vmatprep.subr.bf16.mxu0 0
      %539 = vmatpush1.bf16.msra.mxu0 0
      %540 = vmatprep.subr.bf16.mxu0 0
      %541 = vmatpush1.bf16.msra.mxu0 0
      %542 = vmatprep.subr.bf16.mxu0 0
      %543 = vmatpush1.bf16.msra.mxu0 0
      %544 = vmatprep.subr.bf16.mxu0 0
      %545 = vmatpush1.bf16.msra.mxu0 0
      %546 = vmatprep.subr.bf16.mxu0 0
      %547 = vmatpush1.bf16.msra.mxu0 0
      %548 = vmatprep.subr.bf16.mxu0 0
      %549 = vmatpush1.bf16.msra.mxu0 0
      %550 = vmatprep.subr.bf16.mxu0 0
      %551 = vmatpush1.bf16.msra.mxu0 0
      %552 = vmatprep.subr.bf16.mxu0 0
      %553 = vmatpush1.bf16.msra.mxu0 0
      %554 = vmatprep.mubr.bf16.mxu0 0
      %555 = vmatmul.mubr.bf16.gmra.mrb[0].mxu0 %v520
      %v556 = vpop.f32.mrb[0].mxu0
      %v557 = vadd.f32 0.0, %v556
      %v558 = vpop.f32.mrb[0].mxu0
      %v559 = vpop.f32.mrb[0].mxu0
      %v560 = vpop.f32.mrb[0].mxu0
      %561 = vdwg.mxu0
      %v562 = vadd.f32 %v490, %v557
      %v563 = vld [vmem:[%s164] sm:$0xe]
      %v564 = vld [vmem:[%s164 + $0x4] sm:$0x1]
      %s565 = scalar_lea.vmem %s1, 96
      %v566 = vld [vmem:[%s565] sm:$0xf]
      %v567 = vld [vmem:[%s565 + $0x4] sm:$0xf]
      %v568 = vld [vmem:[%s565 + $0x8] sm:$0xf]
      %v569 = vld [vmem:[%s565 + $0xc] sm:$0xf]
      %v572 = vunpack.c.l.b16 %v563
      %v573 = vunpack.c.l.b16 %v564
      %v574 = vpack.c.b16 %v573, %v572
      %v576 = vshrl.u32 %v574, 16
      %v578 = vrot.slane %v576, 1
      %v579 = vshll.u32 %v574, 16
      %v581 = vrot.slane %v579, 2
      %v582 = vor.u32 %v578, %v581
      %v587 = vunpack.c.l.b16 %v566
      %v588 = vunpack.c.l.b16 %v567
      %v589 = vunpack.c.l.b16 %v568
      %v590 = vunpack.c.l.b16 %v569
      %v591 = vpack.c.b16 %v588, %v587
      %v592 = vpack.c.b16 %v590, %v589
      %v596 = vsel %vm194, %v582, 0
      %598 = vmatprep.subr.bf16.mxu0 0
      %599 = vmatpush1.bf16.msra.mxu0 %v591
      %600 = vmatprep.subr.bf16.mxu0 0
      %601 = vmatpush1.bf16.msra.mxu0 %v592
      %602 = vmatprep.subr.bf16.mxu0 0
      %603 = vmatpush1.bf16.msra.mxu0 0
      %604 = vmatprep.subr.bf16.mxu0 0
      %605 = vmatpush1.bf16.msra.mxu0 0
      %606 = vmatprep.subr.bf16.mxu0 0
      %607 = vmatpush1.bf16.msra.mxu0 0
      %608 = vmatprep.subr.bf16.mxu0 0
      %609 = vmatpush1.bf16.msra.mxu0 0
      %610 = vmatprep.subr.bf16.mxu0 0
      %611 = vmatpush1.bf16.msra.mxu0 0
      %612 = vmatprep.subr.bf16.mxu0 0
      %613 = vmatpush1.bf16.msra.mxu0 0
      %614 = vmatprep.subr.bf16.mxu0 0
      %615 = vmatpush1.bf16.msra.mxu0 0
      %616 = vmatprep.subr.bf16.mxu0 0
      %617 = vmatpush1.bf16.msra.mxu0 0
      %618 = vmatprep.subr.bf16.mxu0 0
      %619 = vmatpush1.bf16.msra.mxu0 0
      %620 = vmatprep.subr.bf16.mxu0 0
      %621 = vmatpush1.bf16.msra.mxu0 0
      %622 = vmatprep.subr.bf16.mxu0 0
      %623 = vmatpush1.bf16.msra.mxu0 0
      %624 = vmatprep.subr.bf16.mxu0 0
      %625 = vmatpush1.bf16.msra.mxu0 0
      %626 = vmatprep.subr.bf16.mxu0 0
      %627 = vmatpush1.bf16.msra.mxu0 0
      %628 = vmatprep.subr.bf16.mxu0 0
      %629 = vmatpush1.bf16.msra.mxu0 0
      %630 = vmatprep.mubr.bf16.mxu0 0
      %631 = vmatmul.mubr.bf16.gmra.mrb[0].mxu0 %v596
      %v632 = vpop.f32.mrb[0].mxu0
      %v633 = vadd.f32 0.0, %v632
      %v634 = vpop.f32.mrb[0].mxu0
      %v635 = vpop.f32.mrb[0].mxu0
      %v636 = vpop.f32.mrb[0].mxu0
      %637 = vdwg.mxu0
      %v638 = vadd.f32 %v562, %v633
      %v639 = vld [vmem:[%s175] sm:$0xe]
      %v640 = vld [vmem:[%s175 + $0x4] sm:$0x1]
      %s641 = scalar_lea.vmem %s1, 112
      %v642 = vld [vmem:[%s641] sm:$0xf]
      %v643 = vld [vmem:[%s641 + $0x4] sm:$0xf]
      %v644 = vld [vmem:[%s641 + $0x8] sm:$0xf]
      %v645 = vld [vmem:[%s641 + $0xc] sm:$0xf]
      %v648 = vunpack.c.l.b16 %v639
      %v649 = vunpack.c.l.b16 %v640
      %v650 = vpack.c.b16 %v649, %v648
      %v652 = vshrl.u32 %v650, 16
      %v654 = vrot.slane %v652, 1
      %v655 = vshll.u32 %v650, 16
      %v657 = vrot.slane %v655, 2
      %v658 = vor.u32 %v654, %v657
      %v663 = vunpack.c.l.b16 %v642
      %v664 = vunpack.c.l.b16 %v643
      %v665 = vunpack.c.l.b16 %v644
      %v666 = vunpack.c.l.b16 %v645
      %v667 = vpack.c.b16 %v664, %v663
      %v668 = vpack.c.b16 %v666, %v665
      %v672 = vsel %vm194, %v658, 0
      %674 = vmatprep.subr.bf16.mxu0 0
      %675 = vmatpush1.bf16.msra.mxu0 %v667
      %676 = vmatprep.subr.bf16.mxu0 0
      %677 = vmatpush1.bf16.msra.mxu0 %v668
      %678 = vmatprep.subr.bf16.mxu0 0
      %679 = vmatpush1.bf16.msra.mxu0 0
      %680 = vmatprep.subr.bf16.mxu0 0
      %681 = vmatpush1.bf16.msra.mxu0 0
      %682 = vmatprep.subr.bf16.mxu0 0
      %683 = vmatpush1.bf16.msra.mxu0 0
      %684 = vmatprep.subr.bf16.mxu0 0
      %685 = vmatpush1.bf16.msra.mxu0 0
      %686 = vmatprep.subr.bf16.mxu0 0
      %687 = vmatpush1.bf16.msra.mxu0 0
      %688 = vmatprep.subr.bf16.mxu0 0
      %689 = vmatpush1.bf16.msra.mxu0 0
      %690 = vmatprep.subr.bf16.mxu0 0
      %691 = vmatpush1.bf16.msra.mxu0 0
      %692 = vmatprep.subr.bf16.mxu0 0
      %693 = vmatpush1.bf16.msra.mxu0 0
      %694 = vmatprep.subr.bf16.mxu0 0
      %695 = vmatpush1.bf16.msra.mxu0 0
      %696 = vmatprep.subr.bf16.mxu0 0
      %697 = vmatpush1.bf16.msra.mxu0 0
      %698 = vmatprep.subr.bf16.mxu0 0
      %699 = vmatpush1.bf16.msra.mxu0 0
      %700 = vmatprep.subr.bf16.mxu0 0
      %701 = vmatpush1.bf16.msra.mxu0 0
      %702 = vmatprep.subr.bf16.mxu0 0
      %703 = vmatpush1.bf16.msra.mxu0 0
      %704 = vmatprep.subr.bf16.mxu0 0
      %705 = vmatpush1.bf16.msra.mxu0 0
      %706 = vmatprep.mubr.bf16.mxu0 0
      %707 = vmatmul.mubr.bf16.gmra.mrb[0].mxu0 %v672
      %v708 = vpop.f32.mrb[0].mxu0
      %v709 = vadd.f32 0.0, %v708
      %v710 = vpop.f32.mrb[0].mxu0
      %v711 = vpop.f32.mrb[0].mxu0
      %v712 = vpop.f32.mrb[0].mxu0
      %713 = vdwg.mxu0
      %v714 = vadd.f32 %v638, %v709
      %v715 = vld [vmem:[%s164] sm:$0xc]
      %s716 = scalar_lea.vmem %s1, 128
      %v717 = vld [vmem:[%s716] sm:$0xf]
      %v718 = vld [vmem:[%s716 + $0x4] sm:$0xf]
      %v719 = vld [vmem:[%s716 + $0x8] sm:$0xf]
      %v720 = vld [vmem:[%s716 + $0xc] sm:$0xf]
      %v722 = vunpack.c.l.b16 %v715
      %v723 = vpack.c.b16 %v573, %v722
      %v724 = vrot.slane %v723, 2
      %v729 = vunpack.c.l.b16 %v717
      %v730 = vunpack.c.l.b16 %v718
      %v731 = vunpack.c.l.b16 %v719
      %v732 = vunpack.c.l.b16 %v720
      %v733 = vpack.c.b16 %v730, %v729
      %v734 = vpack.c.b16 %v732, %v731
      %v738 = vsel %vm194, %v724, 0
      %740 = vmatprep.subr.bf16.mxu0 0
      %741 = vmatpush1.bf16.msra.mxu0 %v733
      %742 = vmatprep.subr.bf16.mxu0 0
      %743 = vmatpush1.bf16.msra.mxu0 %v734
      %744 = vmatprep.subr.bf16.mxu0 0
      %745 = vmatpush1.bf16.msra.mxu0 0
      %746 = vmatprep.subr.bf16.mxu0 0
      %747 = vmatpush1.bf16.msra.mxu0 0
      %748 = vmatprep.subr.bf16.mxu0 0
      %749 = vmatpush1.bf16.msra.mxu0 0
      %750 = vmatprep.subr.bf16.mxu0 0
      %751 = vmatpush1.bf16.msra.mxu0 0
      %752 = vmatprep.subr.bf16.mxu0 0
      %753 = vmatpush1.bf16.msra.mxu0 0
      %754 = vmatprep.subr.bf16.mxu0 0
      %755 = vmatpush1.bf16.msra.mxu0 0
      %756 = vmatprep.subr.bf16.mxu0 0
      %757 = vmatpush1.bf16.msra.mxu0 0
      %758 = vmatprep.subr.bf16.mxu0 0
      %759 = vmatpush1.bf16.msra.mxu0 0
      %760 = vmatprep.subr.bf16.mxu0 0
      %761 = vmatpush1.bf16.msra.mxu0 0
      %762 = vmatprep.subr.bf16.mxu0 0
      %763 = vmatpush1.bf16.msra.mxu0 0
      %764 = vmatprep.subr.bf16.mxu0 0
      %765 = vmatpush1.bf16.msra.mxu0 0
      %766 = vmatprep.subr.bf16.mxu0 0
      %767 = vmatpush1.bf16.msra.mxu0 0
      %768 = vmatprep.subr.bf16.mxu0 0
      %769 = vmatpush1.bf16.msra.mxu0 0
      %770 = vmatprep.subr.bf16.mxu0 0
      %771 = vmatpush1.bf16.msra.mxu0 0
      %772 = vmatprep.mubr.bf16.mxu0 0
      %773 = vmatmul.mubr.bf16.gmra.mrb[0].mxu0 %v738
      %v774 = vpop.f32.mrb[0].mxu0
      %v775 = vadd.f32 0.0, %v774
      %v776 = vpop.f32.mrb[0].mxu0
      %v777 = vpop.f32.mrb[0].mxu0
      %v778 = vpop.f32.mrb[0].mxu0
      %779 = vdwg.mxu0
      %v780 = vadd.f32 %v714, %v775
      %v781 = vld [vmem:[%s2] sm:$0x1]
      %v783 = vlaneseq
      %v784 = vshrl.u32 %v783, 7
      %v785 = vsub.s32 0, %v784
      %v786 = vrot.slane %v781, %v785
      %v788 = vadd.f32 %v780, %v786
      %v789 = vmax.f32 %v788, 0.0
      %790 = vst [vmem:[%s168] sm:$0x3f] %v789
      %p791 = scmp.lt.s32.totalorder %s14, 1
      %s792 = scalar_select %p791, %s14, 1
      %s793 = smul.addr %s792, 8
      %s794 = scalar_lea.vmem %s3, %s793
      // Predicated region
      $region33: #{a_call__.7} parent=31 // pred_check
        %p795 = pneg %p100
      $region34: #{a_call__.7} parent=31 // pred_check_branch
        %797 = sbr.rel (%p795) target = $region36
      $region35: #{a_call__.7} parent=31 // pred_region
        _
      $region36: #{a_call__.7} parent=31 // pred_fallthru
        _
    $region32: #{a_call__.7} parent=5 // pred_fallthru
      _
    %p798 = scmp.le.s32.totalorder 2, %s9
    // Predicated region
    $region37: #{a_call__.7} parent=5 // pred_check
      %p799 = pneg %p798
    $region38: #{a_call__.7} parent=5 // pred_check_branch
      %801 = sbr.rel (%p799) target = $region40
    $region39: #{a_call__.7} parent=5 // pred_region
      %s802 = ssub.s32 %s9, 2
      // Predicated region
      $region41: #{a_call__.7} parent=39 // pred_check
        %p803 = pneg %p106
      $region42: #{a_call__.7} parent=39 // pred_check_branch
        %805 = sbr.rel (%p803) target = $region44
      $region43: #{a_call__.7} parent=39 // pred_region
        %p806 = scmp.lt.s32.totalorder %s15, 1
        %s807 = scalar_select %p806, %s15, 1
        %s808 = smul.addr %s807, 8
        %s809 = scalar_lea.vmem %s3, %s808
      $region44: #{a_call__.7} parent=39 // pred_fallthru
        _
    $region40: #{a_call__.7} parent=5 // pred_fallthru
      _
  $region6: #{a_call__.7} parent=0 // loop_footer
    %s13 = sadd.s32 1, %s9
  $region7: #{a_call__.7} parent=0 // loop_footer_branch
    %8 = sbr.rel target = $region3
  $region8: #{a_call__.7} parent=0 // loop_exit
    _

</llo_original>
